<compile_context>
chip_gen: v5e
topology: v5e:2x2
jax: 0.10.0
libtpu: 0.0.40
codegen_flags: <defaults>
</compile_context>

<pallas_src>
import jax
import jax.numpy as jnp
from jax.experimental import pallas as pl
from jax.experimental.pallas import tpu as pltpu

D_EMBEDDING = 512
D_FF = 1024
LN_EPS = 1e-5


def _round_up(a, b):
    return ((a + b - 1) // b) * b


def _ffn_kernel(x_ref, w1_ref, w2_ref, vec_ref, o_ref):
    d = o_ref.shape[-1]

    # x tile: [tm, D] in the activation I/O dtype (bf16 by default).
    x_in = x_ref[...]
    x_bf = x_in.astype(jnp.bfloat16)        # MXU operand
    x_f32 = x_in.astype(jnp.float32)        # residual / LN path

    # Packed per-feature vectors (one DMA): row 0 = b1 (width F),
    # rows 1..3 = b2 / gamma / beta (first D lanes).
    b1 = vec_ref[0:1, :]
    b2 = vec_ref[1:2, :d]
    gamma = vec_ref[2:3, :d]
    beta = vec_ref[3:4, :d]

    # conv1 (1x1) == x @ W1 + b1, then ReLU      -> [tm, F]  (bf16 MXU, f32 acc)
    h = jnp.dot(x_bf, w1_ref[...], preferred_element_type=jnp.float32)
    h = jnp.maximum(h + b1, 0.0)

    # conv2 (1x1) == h @ W2                      -> [tm, D]  (bf16 MXU, f32 acc)
    y = jnp.dot(h.astype(jnp.bfloat16), w2_ref[...],
                preferred_element_type=jnp.float32)

    # bias + residual in f32
    y = y + b2 + x_f32

    # LayerNorm over last dim (d_embedding), f32
    mean = jnp.mean(y, axis=-1, keepdims=True)
    yc = y - mean
    var = jnp.mean(yc * yc, axis=-1, keepdims=True)
    y_norm = yc * jax.lax.rsqrt(var + LN_EPS)
    o_ref[...] = (y_norm * gamma + beta).astype(o_ref.dtype)


def _default_vmem_limit(tm_eff, d, f, act_bytes, out_bytes):
    """Generation-aware VMEM limit derived from actual buffer sizes."""
    need = (2 * tm_eff * d * act_bytes      # x tile, double-buffered
            + 2 * tm_eff * d * out_bytes    # out tile, double-buffered
            + 2 * 2 * d * f * 2             # W1 + W2 (bf16), worst-case 2 buffers
            + 2 * 8 * f * 4                 # packed bias/gamma/beta block
            + tm_eff * f * 4                # f32 hidden activation h
            + 3 * tm_eff * d * 4)           # f32 residual / LN temporaries
    need = need + need // 2                 # headroom for compiler scratch
    try:
        phys = pltpu.get_tpu_info().vmem_capacity_bytes
    except Exception:
        phys = 128 << 20
    # v7x has 64 MiB/TC -> cap at 40 MiB; v5e/v6e have 128 MiB -> cap at 64 MiB.
    cap = (40 << 20) if phys <= (64 << 20) else (64 << 20)
    return int(min(max(need, 16 << 20), cap))


def poswise_ffn(x, w1, b1, w2, b2, gamma, beta, *, tm=1024,
                io_dtype=jnp.bfloat16, out_dtype=jnp.bfloat16,
                vmem_limit_bytes=None):
    """Fused position-wise FFN + residual + LayerNorm.

    x: [B, S, D]; w1: [D, F]; b1: [F]; w2: [F, D]; b2: [D]; gamma/beta: [D].
    (w1/w2 are the Conv1d kernel_size=1 weights stored as [in, out], i.e.
     conv.weight.squeeze(-1).T from PyTorch.)
    """
    B, S, D = x.shape
    F = w1.shape[1]
    M = B * S
    assert D % 128 == 0 and F % 128 == 0, "feature dims must be lane-aligned"

    # ---- Row tiling -------------------------------------------------------
    # Never bigger than needed, multiple of 8, and (when M allows it) at least
    # 2 grid steps so both v7x TensorCores get work under "parallel".
    tm_req = max(8, _round_up(min(int(tm), M), 8))
    tm_two = max(8, _round_up(pl.cdiv(M, 2), 8))
    tm_eff = min(tm_req, tm_two)
    grid_m = pl.cdiv(M, tm_eff)
    M_pad = grid_m * tm_eff

    # ---- Operand preparation ---------------------------------------------
    x2 = x.reshape(M, D).astype(io_dtype)
    if M_pad != M:
        x2 = jnp.pad(x2, ((0, M_pad - M), (0, 0)))

    w1_bf = w1.astype(jnp.bfloat16)
    w2_bf = w2.astype(jnp.bfloat16)

    # Pack b1 / b2 / gamma / beta into one (8, F) f32 block -> single DMA.
    vecs = jnp.zeros((8, F), dtype=jnp.float32)
    vecs = vecs.at[0, :].set(b1.astype(jnp.float32))
    vecs = vecs.at[1, :D].set(b2.astype(jnp.float32))
    vecs = vecs.at[2, :D].set(gamma.astype(jnp.float32))
    vecs = vecs.at[3, :D].set(beta.astype(jnp.float32))

    act_bytes = jnp.dtype(io_dtype).itemsize
    out_bytes = jnp.dtype(out_dtype).itemsize
    if vmem_limit_bytes is None:
        vmem_limit_bytes = _default_vmem_limit(tm_eff, D, F, act_bytes, out_bytes)

    cost = pl.CostEstimate(
        flops=4 * M_pad * D * F,                         # two matmuls
        transcendentals=M_pad,                           # one rsqrt per row
        bytes_accessed=(M_pad * D * (act_bytes + out_bytes)  # activations in/out
                        + 2 * D * F * 2                       # bf16 weights
                        + 8 * F * 4),                         # packed vectors
    )

    def _call(resident_mode):
        rk = {} if resident_mode is None else {"pipeline_mode": resident_mode}
        grid_spec = pltpu.PrefetchScalarGridSpec(
            num_scalar_prefetch=0,
            grid=(grid_m,),
            in_specs=[
                pl.BlockSpec((tm_eff, D), lambda i: (i, 0)),           # x rows
                pl.BlockSpec((D, F), lambda i: (0, 0), **rk),          # W1 (bf16, resident)
                pl.BlockSpec((F, D), lambda i: (0, 0), **rk),          # W2 (bf16, resident)
                pl.BlockSpec((8, F), lambda i: (0, 0), **rk),          # packed b1/b2/gamma/beta
            ],
            out_specs=pl.BlockSpec((tm_eff, D), lambda i: (i, 0)),
        )
        return pl.pallas_call(
            _ffn_kernel,
            out_shape=jax.ShapeDtypeStruct((M_pad, D), out_dtype),
            grid_spec=grid_spec,
            compiler_params=pltpu.CompilerParams(
                dimension_semantics=("parallel",),   # row tiles shard across TCs (v7x)
                vmem_limit_bytes=vmem_limit_bytes,
            ),
            cost_estimate=cost,
        )(x2, w1_bf, w2_bf, vecs)

    # Single-buffer the resident operands (constant index_map => fetched once);
    # fall back to default double-buffering if this Pallas version rejects it.
    out = None
    err = None
    for single_buffer in (True, False):
        try:
            mode = pl.Buffered(1) if single_buffer else None
            out = _call(mode)
            break
        except Exception as e:  # pragma: no cover - compatibility fallback
            err = e
    if out is None:
        raise err

    if M_pad != M:
        out = out[:M]
    return out.reshape(B, S, D)


def poswise_ffn_ref_f32(x, w1, b1, w2, b2, gamma, beta):
    """Pure-JAX f32 reference mirroring the PyTorch forward exactly."""
    h = jnp.maximum(jnp.einsum("bsd,df->bsf", x, w1) + b1, 0.0)
    y = jnp.einsum("bsf,fd->bsd", h, w2) + b2
    y = y + x
    mean = jnp.mean(y, axis=-1, keepdims=True)
    var = jnp.mean((y - mean) ** 2, axis=-1, keepdims=True)
    return (y - mean) / jnp.sqrt(var + LN_EPS) * gamma + beta


def poswise_ffn_ref_matched(x, w1, b1, w2, b2, gamma, beta, out_dtype=jnp.bfloat16):
    """Reference mirroring the kernel's bf16 I/O + bf16 MXU / f32 accumulate numerics."""
    x_bf = x.astype(jnp.bfloat16)
    h = jnp.einsum("bsd,df->bsf", x_bf, w1.astype(jnp.bfloat16),
                   preferred_element_type=jnp.float32) + b1
    h = jnp.maximum(h, 0.0)
    y = jnp.einsum("bsf,fd->bsd", h.astype(jnp.bfloat16), w2.astype(jnp.bfloat16),
                   preferred_element_type=jnp.float32) + b2
    y = y + x_bf.astype(jnp.float32)
    mean = jnp.mean(y, axis=-1, keepdims=True)
    var = jnp.mean((y - mean) ** 2, axis=-1, keepdims=True)
    out = (y - mean) / jnp.sqrt(var + LN_EPS) * gamma + beta
    return out.astype(out_dtype)


if __name__ == "__main__":
    key = jax.random.PRNGKey(0)
    B, S, D, F = 2, 8, D_EMBEDDING, D_FF

    k_x, k_w1, k_b1, k_w2, k_b2 = jax.random.split(key, 5)
    x = jax.random.normal(k_x, (B, S, D), dtype=jnp.float32)

    # Deterministic synthetic parameters (Conv1d k=1 weights stored as [in, out]).
    w1 = jax.random.normal(k_w1, (D, F), dtype=jnp.float32) * (1.0 / jnp.sqrt(D))
    b1 = jax.random.normal(k_b1, (F,), dtype=jnp.float32) * 0.01
    w2 = jax.random.normal(k_w2, (F, D), dtype=jnp.float32) * (1.0 / jnp.sqrt(F))
    b2 = jax.random.normal(k_b2, (D,), dtype=jnp.float32) * 0.01
    gamma = jnp.ones((D,), dtype=jnp.float32)
    beta = jnp.zeros((D,), dtype=jnp.float32)

    # NOTE: the PyTorch forward ignores the `hyper` argument, so it is omitted here.
    out = poswise_ffn(x, w1, b1, w2, b2, gamma, beta)
    out = jax.block_until_ready(out)
    assert out.shape == (B, S, D)
    out_f32 = out.astype(jnp.float32)

    # Tight check against a reference with matching bf16 I/O + bf16 matmul numerics.
    ref_m = poswise_ffn_ref_matched(x, w1, b1, w2, b2, gamma, beta).astype(jnp.float32)
    assert jnp.allclose(out_f32, ref_m, atol=2e-2, rtol=2e-2)

    # Loose check against exact f32 PyTorch semantics (bf16 quantization noise).
    ref_f32 = poswise_ffn_ref_f32(x, w1, b1, w2, b2, gamma, beta)
    assert jnp.allclose(out_f32, ref_f32, atol=1e-1, rtol=5e-2)

    print("KERNEL_OK")
</pallas_src>

<mosaic_0001>
module attributes {stable_mosaic.version = 11 : i64} {
  func.func @_ffn_kernel(%arg0: i32, %arg1: memref<8x512xbf16, #tpu.memory_space<vmem>>, %arg2: memref<512x1024xbf16, #tpu.memory_space<vmem>>, %arg3: memref<1024x512xbf16, #tpu.memory_space<vmem>>, %arg4: memref<8x1024xf32, #tpu.memory_space<vmem>>, %arg5: memref<8x512xbf16, #tpu.memory_space<vmem>>) attributes {dimension_semantics = [#tpu.dimension_semantics<parallel>], iteration_bounds = array<i64: 2>, scalar_prefetch = 0 : i64, scratch_operands = 0 : i64, tpu.core_type = #tpu.core_type<tc>, window_params = [{transform_indices = @transform_0, window_bounds = array<i64: 8, 512>}, {pipeline_mode = #tpu.pipeline_mode<synchronous>, transform_indices = @transform_1, window_bounds = array<i64: 512, 1024>}, {pipeline_mode = #tpu.pipeline_mode<synchronous>, transform_indices = @transform_2, window_bounds = array<i64: 1024, 512>}, {pipeline_mode = #tpu.pipeline_mode<synchronous>, transform_indices = @transform_3, window_bounds = array<i64: 8, 1024>}, {transform_indices = @transform_4, window_bounds = array<i64: 8, 512>}]} {
    %c0 = arith.constant 0 : index
    %c0_0 = arith.constant 0 : index
    %0 = vector.load %arg1[%c0, %c0_0] : memref<8x512xbf16, #tpu.memory_space<vmem>>, vector<8x512xbf16>
    %1 = arith.extf %0 : vector<8x512xbf16> to vector<8x512xf32>
    %c0_1 = arith.constant 0 : index
    %c0_2 = arith.constant 0 : index
    %2 = vector.load %arg4[%c0_1, %c0_2] : memref<8x1024xf32, #tpu.memory_space<vmem>>, vector<1x1024xf32>
    %c1 = arith.constant 1 : index
    %c0_3 = arith.constant 0 : index
    %3 = vector.load %arg4[%c1, %c0_3] : memref<8x1024xf32, #tpu.memory_space<vmem>>, vector<1x512xf32>
    %c2 = arith.constant 2 : index
    %c0_4 = arith.constant 0 : index
    %4 = vector.load %arg4[%c2, %c0_4] : memref<8x1024xf32, #tpu.memory_space<vmem>>, vector<1x512xf32>
    %c3 = arith.constant 3 : index
    %c0_5 = arith.constant 0 : index
    %5 = vector.load %arg4[%c3, %c0_5] : memref<8x1024xf32, #tpu.memory_space<vmem>>, vector<1x512xf32>
    %c0_6 = arith.constant 0 : index
    %c0_7 = arith.constant 0 : index
    %6 = vector.load %arg2[%c0_6, %c0_7] : memref<512x1024xbf16, #tpu.memory_space<vmem>>, vector<512x1024xbf16>
    %cst = arith.constant dense<0.000000e+00> : vector<8x1024xf32>
    %7 = tpu.matmul %0, %6, %cst {dimension_numbers = #tpu.dot_dimension_numbers<[1], [0], [0], [1], [0, 0, 1, 1], [], []>} : vector<8x512xbf16>, vector<512x1024xbf16>, vector<8x1024xf32> -> vector<8x1024xf32>
    %8 = vector.broadcast %2 : vector<1x1024xf32> to vector<8x1024xf32>
    %9 = arith.addf %7, %8 : vector<8x1024xf32>
    %cst_8 = arith.constant 0.000000e+00 : f32
    %10 = vector.broadcast %cst_8 : f32 to vector<8x1024xf32>
    %11 = arith.maximumf %9, %10 : vector<8x1024xf32>
    %12 = arith.truncf %11 : vector<8x1024xf32> to vector<8x1024xbf16>
    %c0_9 = arith.constant 0 : index
    %c0_10 = arith.constant 0 : index
    %13 = vector.load %arg3[%c0_9, %c0_10] : memref<1024x512xbf16, #tpu.memory_space<vmem>>, vector<1024x512xbf16>
    %cst_11 = arith.constant dense<0.000000e+00> : vector<8x512xf32>
    %14 = tpu.matmul %12, %13, %cst_11 {dimension_numbers = #tpu.dot_dimension_numbers<[1], [0], [0], [1], [0, 0, 1, 1], [], []>} : vector<8x1024xbf16>, vector<1024x512xbf16>, vector<8x512xf32> -> vector<8x512xf32>
    %15 = vector.broadcast %3 : vector<1x512xf32> to vector<8x512xf32>
    %16 = arith.addf %14, %15 : vector<8x512xf32>
    %17 = arith.addf %16, %1 : vector<8x512xf32>
    %cst_12 = arith.constant dense<0.000000e+00> : vector<8xf32>
    %18 = vector.multi_reduction <add>, %17, %cst_12 [1] : vector<8x512xf32> to vector<8xf32>
    %19 = vector.shape_cast %18 : vector<8xf32> to vector<8x1xf32>
    %cst_13 = arith.constant 5.120000e+02 : f32
    %20 = vector.broadcast %cst_13 : f32 to vector<8x1xf32>
    %21 = arith.divf %19, %20 : vector<8x1xf32>
    %22 = vector.broadcast %21 : vector<8x1xf32> to vector<8x512xf32>
    %23 = arith.subf %17, %22 : vector<8x512xf32>
    %24 = arith.mulf %23, %23 : vector<8x512xf32>
    %cst_14 = arith.constant dense<0.000000e+00> : vector<8xf32>
    %25 = vector.multi_reduction <add>, %24, %cst_14 [1] : vector<8x512xf32> to vector<8xf32>
    %26 = vector.shape_cast %25 : vector<8xf32> to vector<8x1xf32>
    %cst_15 = arith.constant 5.120000e+02 : f32
    %27 = vector.broadcast %cst_15 : f32 to vector<8x1xf32>
    %28 = arith.divf %26, %27 : vector<8x1xf32>
    %cst_16 = arith.constant 9.99999974E-6 : f32
    %29 = vector.broadcast %cst_16 : f32 to vector<8x1xf32>
    %30 = arith.addf %28, %29 : vector<8x1xf32>
    %31 = math.rsqrt %30 : vector<8x1xf32>
    %32 = vector.broadcast %31 : vector<8x1xf32> to vector<8x512xf32>
    %33 = arith.mulf %23, %32 : vector<8x512xf32>
    %34 = vector.broadcast %4 : vector<1x512xf32> to vector<8x512xf32>
    %35 = arith.mulf %33, %34 : vector<8x512xf32>
    %36 = vector.broadcast %5 : vector<1x512xf32> to vector<8x512xf32>
    %37 = arith.addf %35, %36 : vector<8x512xf32>
    %38 = arith.truncf %37 : vector<8x512xf32> to vector<8x512xbf16>
    %c0_17 = arith.constant 0 : index
    %c0_18 = arith.constant 0 : index
    %39 = vector.load %arg5[%c0_17, %c0_18] : memref<8x512xbf16, #tpu.memory_space<vmem>>, vector<8x512xbf16>
    tpu.vector_store %arg5[%c0_17, %c0_18], %38 {strides = array<i32>} : memref<8x512xbf16, #tpu.memory_space<vmem>>, vector<8x512xbf16>,
    return
  }
  func.func @transform_0(%arg0: i32) -> (i32, i32) {
    %c0_i32 = arith.constant 0 : i32
    %c0_i32_0 = arith.constant 0 : i32
    return %arg0, %c0_i32 : i32, i32
  }
  func.func @transform_1(%arg0: i32) -> (i32, i32) {
    %c0_i32 = arith.constant 0 : i32
    %c0_i32_0 = arith.constant 0 : i32
    %c0_i32_1 = arith.constant 0 : i32
    return %c0_i32, %c0_i32_0 : i32, i32
  }
  func.func @transform_2(%arg0: i32) -> (i32, i32) {
    %c0_i32 = arith.constant 0 : i32
    %c0_i32_0 = arith.constant 0 : i32
    %c0_i32_1 = arith.constant 0 : i32
    return %c0_i32, %c0_i32_0 : i32, i32
  }
  func.func @transform_3(%arg0: i32) -> (i32, i32) {
    %c0_i32 = arith.constant 0 : i32
    %c0_i32_0 = arith.constant 0 : i32
    %c0_i32_1 = arith.constant 0 : i32
    return %c0_i32, %c0_i32_0 : i32, i32
  }
  func.func @transform_4(%arg0: i32) -> (i32, i32) {
    %c0_i32 = arith.constant 0 : i32
    %c0_i32_0 = arith.constant 0 : i32
    return %arg0, %c0_i32 : i32, i32
  }
}

module attributes {stable_mosaic.version = 11 : i64} {
  func.func @_ffn_kernel(%arg0: i32, %arg1: memref<8x512xbf16, #tpu.memory_space<vmem>>, %arg2: memref<512x1024xbf16, #tpu.memory_space<vmem>>, %arg3: memref<1024x512xbf16, #tpu.memory_space<vmem>>, %arg4: memref<8x1024xf32, #tpu.memory_space<vmem>>, %arg5: memref<8x512xbf16, #tpu.memory_space<vmem>>) attributes {dimension_semantics = [#tpu.dimension_semantics<parallel>], iteration_bounds = array<i64: 2>, scalar_prefetch = 0 : i64, scratch_operands = 0 : i64, tpu.core_type = #tpu.core_type<tc>, window_params = [{transform_indices = @transform_0, window_bounds = array<i64: 8, 512>}, {pipeline_mode = #tpu.pipeline_mode<synchronous>, transform_indices = @transform_1, window_bounds = array<i64: 512, 1024>}, {pipeline_mode = #tpu.pipeline_mode<synchronous>, transform_indices = @transform_2, window_bounds = array<i64: 1024, 512>}, {pipeline_mode = #tpu.pipeline_mode<synchronous>, transform_indices = @transform_3, window_bounds = array<i64: 8, 1024>}, {transform_indices = @transform_4, window_bounds = array<i64: 8, 512>}]} {
    %c0 = arith.constant 0 : index
    %c0_0 = arith.constant 0 : index
    %0 = vector.load %arg1[%c0, %c0_0] : memref<8x512xbf16, #tpu.memory_space<vmem>>, vector<8x512xbf16>
    %1 = arith.extf %0 : vector<8x512xbf16> to vector<8x512xf32>
    %c0_1 = arith.constant 0 : index
    %c0_2 = arith.constant 0 : index
    %2 = vector.load %arg4[%c0_1, %c0_2] : memref<8x1024xf32, #tpu.memory_space<vmem>>, vector<1x1024xf32>
    %c1 = arith.constant 1 : index
    %c0_3 = arith.constant 0 : index
    %3 = vector.load %arg4[%c1, %c0_3] : memref<8x1024xf32, #tpu.memory_space<vmem>>, vector<1x512xf32>
    %c2 = arith.constant 2 : index
    %c0_4 = arith.constant 0 : index
    %4 = vector.load %arg4[%c2, %c0_4] : memref<8x1024xf32, #tpu.memory_space<vmem>>, vector<1x512xf32>
    %c3 = arith.constant 3 : index
    %c0_5 = arith.constant 0 : index
    %5 = vector.load %arg4[%c3, %c0_5] : memref<8x1024xf32, #tpu.memory_space<vmem>>, vector<1x512xf32>
    %c0_6 = arith.constant 0 : index
    %c0_7 = arith.constant 0 : index
    %6 = vector.load %arg2[%c0_6, %c0_7] : memref<512x1024xbf16, #tpu.memory_space<vmem>>, vector<512x1024xbf16>
    %cst = arith.constant dense<0.000000e+00> : vector<8x1024xf32>
    %7 = tpu.matmul %0, %6, %cst {dimension_numbers = #tpu.dot_dimension_numbers<[1], [0], [0], [1], [0, 0, 1, 1], [], []>} : vector<8x512xbf16>, vector<512x1024xbf16>, vector<8x1024xf32> -> vector<8x1024xf32>
    %8 = vector.broadcast %2 : vector<1x1024xf32> to vector<8x1024xf32>
    %9 = arith.addf %7, %8 : vector<8x1024xf32>
    %cst_8 = arith.constant 0.000000e+00 : f32
    %10 = vector.broadcast %cst_8 : f32 to vector<8x1024xf32>
    %11 = arith.maximumf %9, %10 : vector<8x1024xf32>
    %12 = arith.truncf %11 : vector<8x1024xf32> to vector<8x1024xbf16>
    %c0_9 = arith.constant 0 : index
    %c0_10 = arith.constant 0 : index
    %13 = vector.load %arg3[%c0_9, %c0_10] : memref<1024x512xbf16, #tpu.memory_space<vmem>>, vector<1024x512xbf16>
    %cst_11 = arith.constant dense<0.000000e+00> : vector<8x512xf32>
    %14 = tpu.matmul %12, %13, %cst_11 {dimension_numbers = #tpu.dot_dimension_numbers<[1], [0], [0], [1], [0, 0, 1, 1], [], []>} : vector<8x1024xbf16>, vector<1024x512xbf16>, vector<8x512xf32> -> vector<8x512xf32>
    %15 = vector.broadcast %3 : vector<1x512xf32> to vector<8x512xf32>
    %16 = arith.addf %14, %15 : vector<8x512xf32>
    %17 = arith.addf %16, %1 : vector<8x512xf32>
    %cst_12 = arith.constant dense<0.000000e+00> : vector<8xf32>
    %18 = vector.multi_reduction <add>, %17, %cst_12 [1] : vector<8x512xf32> to vector<8xf32>
    %19 = vector.shape_cast %18 : vector<8xf32> to vector<8x1xf32>
    %cst_13 = arith.constant 5.120000e+02 : f32
    %20 = vector.broadcast %cst_13 : f32 to vector<8x1xf32>
    %21 = arith.divf %19, %20 : vector<8x1xf32>
    %22 = vector.broadcast %21 : vector<8x1xf32> to vector<8x512xf32>
    %23 = arith.subf %17, %22 : vector<8x512xf32>
    %24 = arith.mulf %23, %23 : vector<8x512xf32>
    %cst_14 = arith.constant dense<0.000000e+00> : vector<8xf32>
    %25 = vector.multi_reduction <add>, %24, %cst_14 [1] : vector<8x512xf32> to vector<8xf32>
    %26 = vector.shape_cast %25 : vector<8xf32> to vector<8x1xf32>
    %cst_15 = arith.constant 5.120000e+02 : f32
    %27 = vector.broadcast %cst_15 : f32 to vector<8x1xf32>
    %28 = arith.divf %26, %27 : vector<8x1xf32>
    %cst_16 = arith.constant 9.99999974E-6 : f32
    %29 = vector.broadcast %cst_16 : f32 to vector<8x1xf32>
    %30 = arith.addf %28, %29 : vector<8x1xf32>
    %31 = math.rsqrt %30 : vector<8x1xf32>
    %32 = vector.broadcast %31 : vector<8x1xf32> to vector<8x512xf32>
    %33 = arith.mulf %23, %32 : vector<8x512xf32>
    %34 = vector.broadcast %4 : vector<1x512xf32> to vector<8x512xf32>
    %35 = arith.mulf %33, %34 : vector<8x512xf32>
    %36 = vector.broadcast %5 : vector<1x512xf32> to vector<8x512xf32>
    %37 = arith.addf %35, %36 : vector<8x512xf32>
    %38 = arith.truncf %37 : vector<8x512xf32> to vector<8x512xbf16>
    %c0_17 = arith.constant 0 : index
    %c0_18 = arith.constant 0 : index
    %39 = vector.load %arg5[%c0_17, %c0_18] : memref<8x512xbf16, #tpu.memory_space<vmem>>, vector<8x512xbf16>
    tpu.vector_store %arg5[%c0_17, %c0_18], %38 {strides = array<i32>} : memref<8x512xbf16, #tpu.memory_space<vmem>>, vector<8x512xbf16>,
    return
  }
  func.func @transform_0(%arg0: i32) -> (i32, i32) {
    %c0_i32 = arith.constant 0 : i32
    %c0_i32_0 = arith.constant 0 : i32
    return %arg0, %c0_i32 : i32, i32
  }
  func.func @transform_1(%arg0: i32) -> (i32, i32) {
    %c0_i32 = arith.constant 0 : i32
    %c0_i32_0 = arith.constant 0 : i32
    %c0_i32_1 = arith.constant 0 : i32
    return %c0_i32, %c0_i32_0 : i32, i32
  }
  func.func @transform_2(%arg0: i32) -> (i32, i32) {
    %c0_i32 = arith.constant 0 : i32
    %c0_i32_0 = arith.constant 0 : i32
    %c0_i32_1 = arith.constant 0 : i32
    return %c0_i32, %c0_i32_0 : i32, i32
  }
  func.func @transform_3(%arg0: i32) -> (i32, i32) {
    %c0_i32 = arith.constant 0 : i32
    %c0_i32_0 = arith.constant 0 : i32
    %c0_i32_1 = arith.constant 0 : i32
    return %c0_i32, %c0_i32_0 : i32, i32
  }
  func.func @transform_4(%arg0: i32) -> (i32, i32) {
    %c0_i32 = arith.constant 0 : i32
    %c0_i32_0 = arith.constant 0 : i32
    return %arg0, %c0_i32 : i32, i32
  }
}

</mosaic_0001>

<llo_original>
// kernel: tpu_custom_call.1
$region0: #{tpu_custom_call.1}
  #allocation0 [shape = 'u32[]', space=smem, size = 0x4, offset = 0x4, fixed_abs, tag = 'smem constant byte address 0x4 - core index']
  #allocation1 [shape = 'u32[72,128]{1,0:T(1,128)}', space=vmem, size = 0x9000, scoped, tag = 'internal scratch']
  %s0 = inlined_call_operand.hbm [shape: bf16[16,512], index: 0, kind: input, shape index: {}]
  %s1 = inlined_call_operand.hbm [shape: bf16[512,1024], index: 1, kind: input, shape index: {}]
  %s2 = inlined_call_operand.hbm [shape: bf16[1024,512], index: 2, kind: input, shape index: {}]
  %s3 = inlined_call_operand.hbm [shape: f32[8,1024], index: 3, kind: input, shape index: {}]
  %s4 = inlined_call_operand.hbm [shape: bf16[16,512], index: 4, kind: output, shape index: {}]
  %s5 = sld [smem:[#allocation0]]
  $region65: #{tpu_custom_call.1} parent=0
    _
  %s7 = ssub.s32 1, %s5
  %s8 = scalar_select 0, %s7, %s5
  $region1: #{tpu_custom_call.1} parent=0
    #allocation2 [shape = 'u8[16384]{0}', space=vmem, size = 0x4000, scoped, tag = 'input window, operand 0']
    #allocation3 [shape = 's32[2]{0}', space=sflag, size = 0x8, scoped, tag = 'scoped memory for tpu_custom_call.1']
    #allocation4 [shape = 's32[2]{0}', space=sflag, size = 0x8, scoped, tag = 'scoped memory for tpu_custom_call.1']
    #allocation5 [shape = 'u8[1048576]{0}', space=vmem, size = 0x100000, scoped, tag = 'input window, operand 1, single buffered']
    #allocation6 [shape = 's32[1]{0}', space=sflag, size = 0x4, scoped, tag = 'scoped memory for tpu_custom_call.1']
    #allocation7 [shape = 'u8[1048576]{0}', space=vmem, size = 0x100000, scoped, tag = 'input window, operand 2, single buffered']
    #allocation8 [shape = 'u8[32768]{0}', space=vmem, size = 0x8000, scoped, tag = 'input window, operand 3, single buffered']
    #allocation9 [shape = 's32[1]{0}', space=sflag, size = 0x4, scoped, tag = 'scoped memory for tpu_custom_call.1']
    #allocation10 [shape = 'u8[16384]{0}', space=vmem, size = 0x4000, scoped, tag = 'output window, operand 0']
    %9 = vsyncpa [#allocation3], 0
    %s10 = scalar_lea.sflag [#allocation3], 1
    %11 = vsyncpa %s10, 0
    %12 = vsyncpa [#allocation6], 0
    %13 = vsyncpa [#allocation9], 0
    %14 = vsyncpa [#allocation4], 0
    %s15 = scalar_lea.sflag [#allocation4], 1
    %16 = vsyncpa %s15, 0
    loop: start=0, step=1, limit=4
    $region2: #{tpu_custom_call.1} parent=1 // loop_pre_header
      _
    $region3: #{tpu_custom_call.1} parent=1 // loop_header
      %s18 = sphi 0, %s22
      %p19 = scmp.ge.s32.totalorder %s18, 4
      %s28 = sphi 0, %s30
      %s31 = sphi 0, %s28
      %s32 = sphi 0, %s31
      %s48 = sphi 0, %s32
      %s52 = sphi 0, %s52
      %s54 = sphi 0, %s52
      %s55 = sphi 0, %s54
      %s69 = sphi 0, %s55
      %s73 = sphi 0, %s73
      %s75 = sphi 0, %s73
      %s76 = sphi 0, %s75
      %s90 = sphi 0, %s76
      %s94 = sphi 0, %s94
      %s96 = sphi 0, %s94
      %s97 = sphi 0, %s96
      %s111 = sphi 0, %s97
      %s117 = sphi 0, %s119
      %s120 = sphi 0, %s117
      %s121 = sphi 0, %s120
      %s137 = sphi 0, %s121
    $region4: #{tpu_custom_call.1} parent=1 // loop_header_branch
      %21 = sbr.rel (%p19) target = $region8
    $region5: #{tpu_custom_call.1} parent=1 // loop_body
      %s23 = ssub.s32 %s18, 1
      %s24 = ssub.s32 %s18, 2
      %s25 = sadd.s32 %s18, 1
      %s26 = ssub.s32 %s18, %s25
      %p27 = scmp.eq.s32.totalorder %s26, 0
      %s29 = sadd.s32 %s28, 1
      %s30 = scalar_select %p27, %s28, %s29
      %p33 = pneg %p27
      %p34 = scmp.eq.s32.totalorder %s18, 1
      %p35 = por %p33, %p34
      %p36 = scmp.ne.s32.totalorder %s28, %s31
      %p37 = scmp.eq.s32.totalorder %s18, 0
      %p38 = por %p36, %p37
      %p39 = scmp.ne.s32.totalorder %s28, %s31
      %p40 = scmp.eq.s32.totalorder %s23, 1
      %p41 = por %p39, %p40
      %p42 = scmp.ne.s32.totalorder %s31, %s32
      %p43 = scmp.eq.s32.totalorder %s23, 0
      %p44 = por %p42, %p43
      %p45 = scmp.ne.s32.totalorder %s31, %s32
      %p46 = scmp.eq.s32.totalorder %s24, 1
      %p47 = por %p45, %p46
      %p49 = scmp.ne.s32.totalorder %s32, %s48
      %p50 = scmp.eq.s32.totalorder %s24, 0
      %p51 = por %p49, %p50
      %s53 = sadd.s32 %s52, 1
      %p56 = scmp.eq.s32.totalorder %s18, 1
      %p57 = scmp.ne.s32.totalorder %s52, %s54
      %p58 = scmp.eq.s32.totalorder %s18, 0
      %p59 = por %p57, %p58
      %p60 = scmp.ne.s32.totalorder %s52, %s54
      %p61 = scmp.eq.s32.totalorder %s23, 1
      %p62 = por %p60, %p61
      %p63 = scmp.ne.s32.totalorder %s54, %s55
      %p64 = scmp.eq.s32.totalorder %s23, 0
      %p65 = por %p63, %p64
      %p66 = scmp.ne.s32.totalorder %s54, %s55
      %p67 = scmp.eq.s32.totalorder %s24, 1
      %p68 = por %p66, %p67
      %p70 = scmp.ne.s32.totalorder %s55, %s69
      %p71 = scmp.eq.s32.totalorder %s24, 0
      %p72 = por %p70, %p71
      %s74 = sadd.s32 %s73, 1
      %p77 = scmp.eq.s32.totalorder %s18, 1
      %p78 = scmp.ne.s32.totalorder %s73, %s75
      %p79 = scmp.eq.s32.totalorder %s18, 0
      %p80 = por %p78, %p79
      %p81 = scmp.ne.s32.totalorder %s73, %s75
      %p82 = scmp.eq.s32.totalorder %s23, 1
      %p83 = por %p81, %p82
      %p84 = scmp.ne.s32.totalorder %s75, %s76
      %p85 = scmp.eq.s32.totalorder %s23, 0
      %p86 = por %p84, %p85
      %p87 = scmp.ne.s32.totalorder %s75, %s76
      %p88 = scmp.eq.s32.totalorder %s24, 1
      %p89 = por %p87, %p88
      %p91 = scmp.ne.s32.totalorder %s76, %s90
      %p92 = scmp.eq.s32.totalorder %s24, 0
      %p93 = por %p91, %p92
      %s95 = sadd.s32 %s94, 1
      %p98 = scmp.eq.s32.totalorder %s18, 1
      %p99 = scmp.ne.s32.totalorder %s94, %s96
      %p100 = scmp.eq.s32.totalorder %s18, 0
      %p101 = por %p99, %p100
      %p102 = scmp.ne.s32.totalorder %s94, %s96
      %p103 = scmp.eq.s32.totalorder %s23, 1
      %p104 = por %p102, %p103
      %p105 = scmp.ne.s32.totalorder %s96, %s97
      %p106 = scmp.eq.s32.totalorder %s23, 0
      %p107 = por %p105, %p106
      %p108 = scmp.ne.s32.totalorder %s96, %s97
      %p109 = scmp.eq.s32.totalorder %s24, 1
      %p110 = por %p108, %p109
      %p112 = scmp.ne.s32.totalorder %s97, %s111
      %p113 = scmp.eq.s32.totalorder %s24, 0
      %p114 = por %p112, %p113
      %s115 = ssub.s32 %s18, %s25
      %p116 = scmp.eq.s32.totalorder %s115, 0
      %s118 = sadd.s32 %s117, 1
      %s119 = scalar_select %p116, %s117, %s118
      %p122 = pneg %p116
      %p123 = scmp.eq.s32.totalorder %s18, 1
      %p124 = por %p122, %p123
      %p125 = scmp.ne.s32.totalorder %s117, %s120
      %p126 = scmp.eq.s32.totalorder %s18, 0
      %p127 = por %p125, %p126
      %p128 = scmp.ne.s32.totalorder %s117, %s120
      %p129 = scmp.eq.s32.totalorder %s23, 1
      %p130 = por %p128, %p129
      %p131 = scmp.ne.s32.totalorder %s120, %s121
      %p132 = scmp.eq.s32.totalorder %s23, 0
      %p133 = por %p131, %p132
      %p134 = scmp.ne.s32.totalorder %s120, %s121
      %p135 = scmp.eq.s32.totalorder %s24, 1
      %p136 = por %p134, %p135
      %p138 = scmp.ne.s32.totalorder %s121, %s137
      %p139 = scmp.eq.s32.totalorder %s24, 0
      %p140 = por %p138, %p139
      %p141 = scmp.le.s32.totalorder 1, %s18
      %p142 = scmp.lt.s32.totalorder %s18, 3
      %p143 = pnand %p141, %p142
      %p144 = pneg %p143
      // Predicated region
      $region9: #{tpu_custom_call.1} parent=5 // pred_check
        _
      $region10: #{tpu_custom_call.1} parent=5 // pred_check_branch
        %146 = sbr.rel (%p143) target = $region12
      $region11: #{tpu_custom_call.1} parent=5 // pred_region
        %s147 = ssub.s32 %s18, 1
        // Predicated region
        $region13: #{tpu_custom_call.1} parent=11 // pred_check
          %p148 = pneg %p65
        $region14: #{tpu_custom_call.1} parent=11 // pred_check_branch
          %150 = sbr.rel (%p148) target = $region16
        $region15: #{tpu_custom_call.1} parent=11 // pred_region
          %152 = vsyncadd [#allocation6], 0
          %s153 = sshll.u32 %s1, 4
          %s154 = int_to_ptr.hbm [resolvable:$true] %s153
          %s155 = sshll.u32 [#allocation5], 4
          %s156 = int_to_ptr.vmem [resolvable:$true] %s155
          %161 = dma.hbm_to_vmem [thread:$0]  %s154, 32768, %s156, [#allocation6], 512, 512, 32
        $region16: #{tpu_custom_call.1} parent=11 // pred_fallthru
          _
        // Predicated region
        $region17: #{tpu_custom_call.1} parent=11 // pred_check
          %p162 = pneg %p86
        $region18: #{tpu_custom_call.1} parent=11 // pred_check_branch
          %164 = sbr.rel (%p162) target = $region20
        $region19: #{tpu_custom_call.1} parent=11 // pred_region
          %166 = vsyncadd [#allocation6], 0
          %s167 = sshll.u32 %s2, 4
          %s168 = int_to_ptr.hbm [resolvable:$true] %s167
          %s169 = sshll.u32 [#allocation7], 4
          %s170 = int_to_ptr.vmem [resolvable:$true] %s169
          %175 = dma.hbm_to_vmem [thread:$0]  %s168, 32768, %s170, [#allocation6], 256, 256, 16
        $region20: #{tpu_custom_call.1} parent=11 // pred_fallthru
          _
        // Predicated region
        $region21: #{tpu_custom_call.1} parent=11 // pred_check
          %p176 = pneg %p107
        $region22: #{tpu_custom_call.1} parent=11 // pred_check_branch
          %178 = sbr.rel (%p176) target = $region24
        $region23: #{tpu_custom_call.1} parent=11 // pred_region
          %180 = vsyncadd [#allocation9], 0
          %s182 = sshll.u32 %s3, 4
          %s183 = int_to_ptr.hbm [resolvable:$true] %s182
          %s184 = sshll.u32 [#allocation8], 4
          %s185 = int_to_ptr.vmem [resolvable:$true] %s184
          %187 = dma.hbm_to_vmem [thread:$0]  %s183, 1024, %s185, [#allocation9]
        $region24: #{tpu_custom_call.1} parent=11 // pred_fallthru
          _
      $region12: #{tpu_custom_call.1} parent=5 // pred_fallthru
        _
      %p188 = scmp.lt.s32.totalorder %s18, 2
      // Predicated region
      $region25: #{tpu_custom_call.1} parent=5 // pred_check
        %p189 = pneg %p188
      $region26: #{tpu_custom_call.1} parent=5 // pred_check_branch
        %191 = sbr.rel (%p189) target = $region28
      $region27: #{tpu_custom_call.1} parent=5 // pred_region
        // Predicated region
        $region29: #{tpu_custom_call.1} parent=27 // pred_check
          %p192 = pneg %p38
        $region30: #{tpu_custom_call.1} parent=27 // pred_check_branch
          %194 = sbr.rel (%p192) target = $region32
        $region31: #{tpu_custom_call.1} parent=27 // pred_region
          %s195 = sand.u32 %s28, 1
          %s196 = scalar_lea.sflag [#allocation3], %s195
          %s197 = sand.u32 %s28, 1
          %s198 = smul.addr %s197, 16
          %s199 = scalar_lea.vmem [#allocation2], %s198
          %201 = vsyncadd %s196, 0
          %s202 = smul.addr %s18, 4
          %s203 = smul.addr %s202, 4
          %s204 = scalar_lea.hbm %s0, %s203
          %s206 = sshll.u32 %s204, 4
          %s207 = int_to_ptr.hbm [resolvable:$true] %s206
          %s208 = sshll.u32 %s199, 4
          %s209 = int_to_ptr.vmem [resolvable:$true] %s208
          %211 = dma.hbm_to_vmem [thread:$0]  %s207, 256, %s209, %s196
        $region32: #{tpu_custom_call.1} parent=27 // pred_fallthru
          _
      $region28: #{tpu_custom_call.1} parent=5 // pred_fallthru
        _
      %p212 = scmp.le.s32.totalorder 1, %s18
      %p213 = scmp.lt.s32.totalorder %s18, 3
      %p214 = pnand %p212, %p213
      %p215 = pneg %p214
      // Predicated region
      $region33: #{tpu_custom_call.1} parent=5 // pred_check
        _
      $region34: #{tpu_custom_call.1} parent=5 // pred_check_branch
        %217 = sbr.rel (%p214) target = $region36
      $region35: #{tpu_custom_call.1} parent=5 // pred_region
        %s218 = ssub.s32 %s18, 1
        %s219 = sand.u32 %s31, 1
        %s220 = scalar_lea.sflag [#allocation3], %s219
        %s221 = sand.u32 %s31, 1
        %s222 = smul.addr %s221, 16
        %s223 = scalar_lea.vmem [#allocation2], %s222
        // Predicated region
        $region37: #{tpu_custom_call.1} parent=35 // pred_check
          %p224 = pneg %p44
        $region38: #{tpu_custom_call.1} parent=35 // pred_check_branch
          %226 = sbr.rel (%p224) target = $region40
        $region39: #{tpu_custom_call.1} parent=35 // pred_region
          %228 = dma.done %s220, 256
        $region40: #{tpu_custom_call.1} parent=35 // pred_fallthru
          _
        // Predicated region
        $region41: #{tpu_custom_call.1} parent=35 // pred_check
          %p229 = pneg %p65
        $region42: #{tpu_custom_call.1} parent=35 // pred_check_branch
          %231 = sbr.rel (%p229) target = $region44
        $region43: #{tpu_custom_call.1} parent=35 // pred_region
          %233 = dma.done [#allocation6], 32768
        $region44: #{tpu_custom_call.1} parent=35 // pred_fallthru
          _
        // Predicated region
        $region45: #{tpu_custom_call.1} parent=35 // pred_check
          %p234 = pneg %p86
        $region46: #{tpu_custom_call.1} parent=35 // pred_check_branch
          %236 = sbr.rel (%p234) target = $region48
        $region47: #{tpu_custom_call.1} parent=35 // pred_region
          %238 = dma.done [#allocation6], 32768
        $region48: #{tpu_custom_call.1} parent=35 // pred_fallthru
          _
        // Predicated region
        $region49: #{tpu_custom_call.1} parent=35 // pred_check
          %p239 = pneg %p107
        $region50: #{tpu_custom_call.1} parent=35 // pred_check_branch
          %241 = sbr.rel (%p239) target = $region52
        $region51: #{tpu_custom_call.1} parent=35 // pred_region
          %243 = dma.done [#allocation9], 1024
        $region52: #{tpu_custom_call.1} parent=35 // pred_fallthru
          _
        %s244 = sand.u32 %s31, 1
        %s245 = scalar_lea.sflag [#allocation3], %s244
        %s246 = sand.u32 %s31, 1
        %s247 = smul.addr %s246, 16
        %s248 = scalar_lea.vmem [#allocation2], %s247
        %p249 = pneg %p44
        %p250 = pneg %p41
        %p251 = pneg %p65
        %p252 = pneg %p62
        %p253 = pneg %p86
        %p254 = pneg %p83
        %p255 = pneg %p107
        %p256 = pneg %p104
        %p257 = pneg %p133
        %p258 = pneg %p130
        %s259 = sand.u32 %s120, 1
        %s260 = scalar_lea.sflag [#allocation4], %s259
        %s261 = sand.u32 %s120, 1
        %s262 = smul.addr %s261, 16
        %s263 = scalar_lea.vmem [#allocation10], %s262
        %v264 = vld [vmem:[%s223] sm:$0xff]
        %v265 = vld [vmem:[%s223 + $0x8] sm:$0xff]
        %v266 = vunpack.c.l.bf16 %v264
        %v267 = vunpack.c.h.bf16 %v264
        %v268 = vunpack.c.l.bf16 %v265
        %v269 = vunpack.c.h.bf16 %v265
        %v270 = vld [vmem:[#allocation8] ss:$8 sm:$0xf]
        %v271 = vld [vmem:[#allocation8] ss:$8 sm:$0xf0]
        %v272 = vor.u32 %v270, %v271
        %s273 = scalar_lea.vmem [#allocation8], 1
        %v274 = vld [vmem:[%s273] ss:$8 sm:$0xf]
        %s275 = scalar_lea.vmem [#allocation8], 2
        %v276 = vld [vmem:[%s275] ss:$8 sm:$0xf]
        %s277 = scalar_lea.vmem [#allocation8], 3
        %v278 = vld [vmem:[%s277] ss:$8 sm:$0xf]
        %v279 = vld [vmem:[#allocation5] sm:$0xff]
        %v280 = vld [vmem:[#allocation5 + $0x8] sm:$0xff]
        %v281 = vld [vmem:[#allocation5 + $0x10] sm:$0xff]
        %v282 = vld [vmem:[#allocation5 + $0x18] sm:$0xff]
        %v283 = vld [vmem:[#allocation5 + $0x20] sm:$0xff]
        %v284 = vld [vmem:[#allocation5 + $0x28] sm:$0xff]
        %v285 = vld [vmem:[#allocation5 + $0x30] sm:$0xff]
        %v286 = vld [vmem:[#allocation5 + $0x38] sm:$0xff]
        %v287 = vld [vmem:[#allocation5 + $0x40] sm:$0xff]
        %v288 = vld [vmem:[#allocation5 + $0x48] sm:$0xff]
        %v289 = vld [vmem:[#allocation5 + $0x50] sm:$0xff]
        %v290 = vld [vmem:[#allocation5 + $0x58] sm:$0xff]
        %v291 = vld [vmem:[#allocation5 + $0x60] sm:$0xff]
        %v292 = vld [vmem:[#allocation5 + $0x68] sm:$0xff]
        %v293 = vld [vmem:[#allocation5 + $0x70] sm:$0xff]
        %v294 = vld [vmem:[#allocation5 + $0x78] sm:$0xff]
        %v295 = vld [vmem:[#allocation5 + $0x80] sm:$0xff]
        %v296 = vld [vmem:[#allocation5 + $0x88] sm:$0xff]
        %v297 = vld [vmem:[#allocation5 + $0x90] sm:$0xff]
        %v298 = vld [vmem:[#allocation5 + $0x98] sm:$0xff]
        %v299 = vld [vmem:[#allocation5 + $0xa0] sm:$0xff]
        %v300 = vld [vmem:[#allocation5 + $0xa8] sm:$0xff]
        %v301 = vld [vmem:[#allocation5 + $0xb0] sm:$0xff]
        %v302 = vld [vmem:[#allocation5 + $0xb8] sm:$0xff]
        %v303 = vld [vmem:[#allocation5 + $0xc0] sm:$0xff]
        %v304 = vld [vmem:[#allocation5 + $0xc8] sm:$0xff]
        %v305 = vld [vmem:[#allocation5 + $0xd0] sm:$0xff]
        %v306 = vld [vmem:[#allocation5 + $0xd8] sm:$0xff]
        %v307 = vld [vmem:[#allocation5 + $0xe0] sm:$0xff]
        %v308 = vld [vmem:[#allocation5 + $0xe8] sm:$0xff]
        %v309 = vld [vmem:[#allocation5 + $0xf0] sm:$0xff]
        %v310 = vld [vmem:[#allocation5 + $0xf8] sm:$0xff]
        %v311 = vld [vmem:[#allocation5 + $0x100] sm:$0xff]
        %v312 = vld [vmem:[#allocation5 + $0x108] sm:$0xff]
        %v313 = vld [vmem:[#allocation5 + $0x110] sm:$0xff]
        %v314 = vld [vmem:[#allocation5 + $0x118] sm:$0xff]
        %v315 = vld [vmem:[#allocation5 + $0x120] sm:$0xff]
        %v316 = vld [vmem:[#allocation5 + $0x128] sm:$0xff]
        %v317 = vld [vmem:[#allocation5 + $0x130] sm:$0xff]
        %v318 = vld [vmem:[#allocation5 + $0x138] sm:$0xff]
        %v319 = vld [vmem:[#allocation5 + $0x140] sm:$0xff]
        %v320 = vld [vmem:[#allocation5 + $0x148] sm:$0xff]
        %v321 = vld [vmem:[#allocation5 + $0x150] sm:$0xff]
        %v322 = vld [vmem:[#allocation5 + $0x158] sm:$0xff]
        %v323 = vld [vmem:[#allocation5 + $0x160] sm:$0xff]
        %v324 = vld [vmem:[#allocation5 + $0x168] sm:$0xff]
        %v325 = vld [vmem:[#allocation5 + $0x170] sm:$0xff]
        %v326 = vld [vmem:[#allocation5 + $0x178] sm:$0xff]
        %v327 = vld [vmem:[#allocation5 + $0x180] sm:$0xff]
        %v328 = vld [vmem:[#allocation5 + $0x188] sm:$0xff]
        %v329 = vld [vmem:[#allocation5 + $0x190] sm:$0xff]
        %v330 = vld [vmem:[#allocation5 + $0x198] sm:$0xff]
        %v331 = vld [vmem:[#allocation5 + $0x1a0] sm:$0xff]
        %v332 = vld [vmem:[#allocation5 + $0x1a8] sm:$0xff]
        %v333 = vld [vmem:[#allocation5 + $0x1b0] sm:$0xff]
        %v334 = vld [vmem:[#allocation5 + $0x1b8] sm:$0xff]
        %v335 = vld [vmem:[#allocation5 + $0x1c0] sm:$0xff]
        %v336 = vld [vmem:[#allocation5 + $0x1c8] sm:$0xff]
        %v337 = vld [vmem:[#allocation5 + $0x1d0] sm:$0xff]
        %v338 = vld [vmem:[#allocation5 + $0x1d8] sm:$0xff]
        %v339 = vld [vmem:[#allocation5 + $0x1e0] sm:$0xff]
        %v340 = vld [vmem:[#allocation5 + $0x1e8] sm:$0xff]
        %v341 = vld [vmem:[#allocation5 + $0x1f0] sm:$0xff]
        %v342 = vld [vmem:[#allocation5 + $0x1f8] sm:$0xff]
        %v343 = vld [vmem:[#allocation5 + $0x200] sm:$0xff]
        %v344 = vld [vmem:[#allocation5 + $0x208] sm:$0xff]
        %v345 = vld [vmem:[#allocation5 + $0x210] sm:$0xff]
        %v346 = vld [vmem:[#allocation5 + $0x218] sm:$0xff]
        %v347 = vld [vmem:[#allocation5 + $0x220] sm:$0xff]
        %v348 = vld [vmem:[#allocation5 + $0x228] sm:$0xff]
        %v349 = vld [vmem:[#allocation5 + $0x230] sm:$0xff]
        %v350 = vld [vmem:[#allocation5 + $0x238] sm:$0xff]
        %v351 = vld [vmem:[#allocation5 + $0x240] sm:$0xff]
        %v352 = vld [vmem:[#allocation5 + $0x248] sm:$0xff]
        %v353 = vld [vmem:[#allocation5 + $0x250] sm:$0xff]
        %v354 = vld [vmem:[#allocation5 + $0x258] sm:$0xff]
        %v355 = vld [vmem:[#allocation5 + $0x260] sm:$0xff]
        %v356 = vld [vmem:[#allocation5 + $0x268] sm:$0xff]
        %v357 = vld [vmem:[#allocation5 + $0x270] sm:$0xff]
        %v358 = vld [vmem:[#allocation5 + $0x278] sm:$0xff]
        %v359 = vld [vmem:[#allocation5 + $0x280] sm:$0xff]
        %v360 = vld [vmem:[#allocation5 + $0x288] sm:$0xff]
        %v361 = vld [vmem:[#allocation5 + $0x290] sm:$0xff]
        %v362 = vld [vmem:[#allocation5 + $0x298] sm:$0xff]
        %v363 = vld [vmem:[#allocation5 + $0x2a0] sm:$0xff]
        %v364 = vld [vmem:[#allocation5 + $0x2a8] sm:$0xff]
        %v365 = vld [vmem:[#allocation5 + $0x2b0] sm:$0xff]
        %v366 = vld [vmem:[#allocation5 + $0x2b8] sm:$0xff]
        %v367 = vld [vmem:[#allocation5 + $0x2c0] sm:$0xff]
        %v368 = vld [vmem:[#allocation5 + $0x2c8] sm:$0xff]
        %v369 = vld [vmem:[#allocation5 + $0x2d0] sm:$0xff]
        %v370 = vld [vmem:[#allocation5 + $0x2d8] sm:$0xff]
        %v371 = vld [vmem:[#allocation5 + $0x2e0] sm:$0xff]
        %v372 = vld [vmem:[#allocation5 + $0x2e8] sm:$0xff]
        %v373 = vld [vmem:[#allocation5 + $0x2f0] sm:$0xff]
        %v374 = vld [vmem:[#allocation5 + $0x2f8] sm:$0xff]
        %v375 = vld [vmem:[#allocation5 + $0x300] sm:$0xff]
        %v376 = vld [vmem:[#allocation5 + $0x308] sm:$0xff]
        %v377 = vld [vmem:[#allocation5 + $0x310] sm:$0xff]
        %v378 = vld [vmem:[#allocation5 + $0x318] sm:$0xff]
        %v379 = vld [vmem:[#allocation5 + $0x320] sm:$0xff]
        %v380 = vld [vmem:[#allocation5 + $0x328] sm:$0xff]
        %v381 = vld [vmem:[#allocation5 + $0x330] sm:$0xff]
        %v382 = vld [vmem:[#allocation5 + $0x338] sm:$0xff]
        %v383 = vld [vmem:[#allocation5 + $0x340] sm:$0xff]
        %v384 = vld [vmem:[#allocation5 + $0x348] sm:$0xff]
        %v385 = vld [vmem:[#allocation5 + $0x350] sm:$0xff]
        %v386 = vld [vmem:[#allocation5 + $0x358] sm:$0xff]
        %v387 = vld [vmem:[#allocation5 + $0x360] sm:$0xff]
        %v388 = vld [vmem:[#allocation5 + $0x368] sm:$0xff]
        %v389 = vld [vmem:[#allocation5 + $0x370] sm:$0xff]
        %v390 = vld [vmem:[#allocation5 + $0x378] sm:$0xff]
        %v391 = vld [vmem:[#allocation5 + $0x380] sm:$0xff]
        %v392 = vld [vmem:[#allocation5 + $0x388] sm:$0xff]
        %v393 = vld [vmem:[#allocation5 + $0x390] sm:$0xff]
        %v394 = vld [vmem:[#allocation5 + $0x398] sm:$0xff]
        %v395 = vld [vmem:[#allocation5 + $0x3a0] sm:$0xff]
        %v396 = vld [vmem:[#allocation5 + $0x3a8] sm:$0xff]
        %v397 = vld [vmem:[#allocation5 + $0x3b0] sm:$0xff]
        %v398 = vld [vmem:[#allocation5 + $0x3b8] sm:$0xff]
        %v399 = vld [vmem:[#allocation5 + $0x3c0] sm:$0xff]
        %v400 = vld [vmem:[#allocation5 + $0x3c8] sm:$0xff]
        %v401 = vld [vmem:[#allocation5 + $0x3d0] sm:$0xff]
        %v402 = vld [vmem:[#allocation5 + $0x3d8] sm:$0xff]
        %v403 = vld [vmem:[#allocation5 + $0x3e0] sm:$0xff]
        %v404 = vld [vmem:[#allocation5 + $0x3e8] sm:$0xff]
        %v405 = vld [vmem:[#allocation5 + $0x3f0] sm:$0xff]
        %v406 = vld [vmem:[#allocation5 + $0x3f8] sm:$0xff]
        %v407 = vld [vmem:[#allocation5 + $0x400] sm:$0xff]
        %v408 = vld [vmem:[#allocation5 + $0x408] sm:$0xff]
        %v409 = vld [vmem:[#allocation5 + $0x410] sm:$0xff]
        %v410 = vld [vmem:[#allocation5 + $0x418] sm:$0xff]
        %v411 = vld [vmem:[#allocation5 + $0x420] sm:$0xff]
        %v412 = vld [vmem:[#allocation5 + $0x428] sm:$0xff]
        %v413 = vld [vmem:[#allocation5 + $0x430] sm:$0xff]
        %v414 = vld [vmem:[#allocation5 + $0x438] sm:$0xff]
        %v415 = vld [vmem:[#allocation5 + $0x440] sm:$0xff]
        %v416 = vld [vmem:[#allocation5 + $0x448] sm:$0xff]
        %v417 = vld [vmem:[#allocation5 + $0x450] sm:$0xff]
        %v418 = vld [vmem:[#allocation5 + $0x458] sm:$0xff]
        %v419 = vld [vmem:[#allocation5 + $0x460] sm:$0xff]
        %v420 = vld [vmem:[#allocation5 + $0x468] sm:$0xff]
        %v421 = vld [vmem:[#allocation5 + $0x470] sm:$0xff]
        %v422 = vld [vmem:[#allocation5 + $0x478] sm:$0xff]
        %v423 = vld [vmem:[#allocation5 + $0x480] sm:$0xff]
        %v424 = vld [vmem:[#allocation5 + $0x488] sm:$0xff]
        %v425 = vld [vmem:[#allocation5 + $0x490] sm:$0xff]
        %v426 = vld [vmem:[#allocation5 + $0x498] sm:$0xff]
        %v427 = vld [vmem:[#allocation5 + $0x4a0] sm:$0xff]
        %v428 = vld [vmem:[#allocation5 + $0x4a8] sm:$0xff]
        %v429 = vld [vmem:[#allocation5 + $0x4b0] sm:$0xff]
        %v430 = vld [vmem:[#allocation5 + $0x4b8] sm:$0xff]
        %v431 = vld [vmem:[#allocation5 + $0x4c0] sm:$0xff]
        %v432 = vld [vmem:[#allocation5 + $0x4c8] sm:$0xff]
        %v433 = vld [vmem:[#allocation5 + $0x4d0] sm:$0xff]
        %v434 = vld [vmem:[#allocation5 + $0x4d8] sm:$0xff]
        %v435 = vld [vmem:[#allocation5 + $0x4e0] sm:$0xff]
        %v436 = vld [vmem:[#allocation5 + $0x4e8] sm:$0xff]
        %v437 = vld [vmem:[#allocation5 + $0x4f0] sm:$0xff]
        %v438 = vld [vmem:[#allocation5 + $0x4f8] sm:$0xff]
        %v439 = vld [vmem:[#allocation5 + $0x500] sm:$0xff]
        %v440 = vld [vmem:[#allocation5 + $0x508] sm:$0xff]
        %v441 = vld [vmem:[#allocation5 + $0x510] sm:$0xff]
        %v442 = vld [vmem:[#allocation5 + $0x518] sm:$0xff]
        %v443 = vld [vmem:[#allocation5 + $0x520] sm:$0xff]
        %v444 = vld [vmem:[#allocation5 + $0x528] sm:$0xff]
        %v445 = vld [vmem:[#allocation5 + $0x530] sm:$0xff]
        %v446 = vld [vmem:[#allocation5 + $0x538] sm:$0xff]
        %v447 = vld [vmem:[#allocation5 + $0x540] sm:$0xff]
        %v448 = vld [vmem:[#allocation5 + $0x548] sm:$0xff]
        %v449 = vld [vmem:[#allocation5 + $0x550] sm:$0xff]
        %v450 = vld [vmem:[#allocation5 + $0x558] sm:$0xff]
        %v451 = vld [vmem:[#allocation5 + $0x560] sm:$0xff]
        %v452 = vld [vmem:[#allocation5 + $0x568] sm:$0xff]
        %v453 = vld [vmem:[#allocation5 + $0x570] sm:$0xff]
        %v454 = vld [vmem:[#allocation5 + $0x578] sm:$0xff]
        %v455 = vld [vmem:[#allocation5 + $0x580] sm:$0xff]
        %v456 = vld [vmem:[#allocation5 + $0x588] sm:$0xff]
        %v457 = vld [vmem:[#allocation5 + $0x590] sm:$0xff]
        %v458 = vld [vmem:[#allocation5 + $0x598] sm:$0xff]
        %v459 = vld [vmem:[#allocation5 + $0x5a0] sm:$0xff]
        %v460 = vld [vmem:[#allocation5 + $0x5a8] sm:$0xff]
        %v461 = vld [vmem:[#allocation5 + $0x5b0] sm:$0xff]
        %v462 = vld [vmem:[#allocation5 + $0x5b8] sm:$0xff]
        %v463 = vld [vmem:[#allocation5 + $0x5c0] sm:$0xff]
        %v464 = vld [vmem:[#allocation5 + $0x5c8] sm:$0xff]
        %v465 = vld [vmem:[#allocation5 + $0x5d0] sm:$0xff]
        %v466 = vld [vmem:[#allocation5 + $0x5d8] sm:$0xff]
        %v467 = vld [vmem:[#allocation5 + $0x5e0] sm:$0xff]
        %v468 = vld [vmem:[#allocation5 + $0x5e8] sm:$0xff]
        %v469 = vld [vmem:[#allocation5 + $0x5f0] sm:$0xff]
        %v470 = vld [vmem:[#allocation5 + $0x5f8] sm:$0xff]
        %v471 = vld [vmem:[#allocation5 + $0x600] sm:$0xff]
        %v472 = vld [vmem:[#allocation5 + $0x608] sm:$0xff]
        %v473 = vld [vmem:[#allocation5 + $0x610] sm:$0xff]
        %v474 = vld [vmem:[#allocation5 + $0x618] sm:$0xff]
        %v475 = vld [vmem:[#allocation5 + $0x620] sm:$0xff]
        %v476 = vld [vmem:[#allocation5 + $0x628] sm:$0xff]
        %v477 = vld [vmem:[#allocation5 + $0x630] sm:$0xff]
        %v478 = vld [vmem:[#allocation5 + $0x638] sm:$0xff]
        %v479 = vld [vmem:[#allocation5 + $0x640] sm:$0xff]
        %v480 = vld [vmem:[#allocation5 + $0x648] sm:$0xff]
        %v481 = vld [vmem:[#allocation5 + $0x650] sm:$0xff]
        %v482 = vld [vmem:[#allocation5 + $0x658] sm:$0xff]
        %v483 = vld [vmem:[#allocation5 + $0x660] sm:$0xff]
        %v484 = vld [vmem:[#allocation5 + $0x668] sm:$0xff]
        %v485 = vld [vmem:[#allocation5 + $0x670] sm:$0xff]
        %v486 = vld [vmem:[#allocation5 + $0x678] sm:$0xff]
        %v487 = vld [vmem:[#allocation5 + $0x680] sm:$0xff]
        %v488 = vld [vmem:[#allocation5 + $0x688] sm:$0xff]
        %v489 = vld [vmem:[#allocation5 + $0x690] sm:$0xff]
        %v490 = vld [vmem:[#allocation5 + $0x698] sm:$0xff]
        %v491 = vld [vmem:[#allocation5 + $0x6a0] sm:$0xff]
        %v492 = vld [vmem:[#allocation5 + $0x6a8] sm:$0xff]
        %v493 = vld [vmem:[#allocation5 + $0x6b0] sm:$0xff]
        %v494 = vld [vmem:[#allocation5 + $0x6b8] sm:$0xff]
        %v495 = vld [vmem:[#allocation5 + $0x6c0] sm:$0xff]
        %v496 = vld [vmem:[#allocation5 + $0x6c8] sm:$0xff]
        %v497 = vld [vmem:[#allocation5 + $0x6d0] sm:$0xff]
        %v498 = vld [vmem:[#allocation5 + $0x6d8] sm:$0xff]
        %v499 = vld [vmem:[#allocation5 + $0x6e0] sm:$0xff]
        %v500 = vld [vmem:[#allocation5 + $0x6e8] sm:$0xff]
        %v501 = vld [vmem:[#allocation5 + $0x6f0] sm:$0xff]
        %v502 = vld [vmem:[#allocation5 + $0x6f8] sm:$0xff]
        %v503 = vld [vmem:[#allocation5 + $0x700] sm:$0xff]
        %v504 = vld [vmem:[#allocation5 + $0x708] sm:$0xff]
        %v505 = vld [vmem:[#allocation5 + $0x710] sm:$0xff]
        %v506 = vld [vmem:[#allocation5 + $0x718] sm:$0xff]
        %v507 = vld [vmem:[#allocation5 + $0x720] sm:$0xff]
        %v508 = vld [vmem:[#allocation5 + $0x728] sm:$0xff]
        %v509 = vld [vmem:[#allocation5 + $0x730] sm:$0xff]
        %v510 = vld [vmem:[#allocation5 + $0x738] sm:$0xff]
        %v511 = vld [vmem:[#allocation5 + $0x740] sm:$0xff]
        %v512 = vld [vmem:[#allocation5 + $0x748] sm:$0xff]
        %v513 = vld [vmem:[#allocation5 + $0x750] sm:$0xff]
        %v514 = vld [vmem:[#allocation5 + $0x758] sm:$0xff]
        %v515 = vld [vmem:[#allocation5 + $0x760] sm:$0xff]
        %v516 = vld [vmem:[#allocation5 + $0x768] sm:$0xff]
        %v517 = vld [vmem:[#allocation5 + $0x770] sm:$0xff]
        %v518 = vld [vmem:[#allocation5 + $0x778] sm:$0xff]
        %v519 = vld [vmem:[#allocation5 + $0x780] sm:$0xff]
        %v520 = vld [vmem:[#allocation5 + $0x788] sm:$0xff]
        %v521 = vld [vmem:[#allocation5 + $0x790] sm:$0xff]
        %v522 = vld [vmem:[#allocation5 + $0x798] sm:$0xff]
        %v523 = vld [vmem:[#allocation5 + $0x7a0] sm:$0xff]
        %v524 = vld [vmem:[#allocation5 + $0x7a8] sm:$0xff]
        %v525 = vld [vmem:[#allocation5 + $0x7b0] sm:$0xff]
        %v526 = vld [vmem:[#allocation5 + $0x7b8] sm:$0xff]
        %v527 = vld [vmem:[#allocation5 + $0x7c0] sm:$0xff]
        %v528 = vld [vmem:[#allocation5 + $0x7c8] sm:$0xff]
        %v529 = vld [vmem:[#allocation5 + $0x7d0] sm:$0xff]
        %v530 = vld [vmem:[#allocation5 + $0x7d8] sm:$0xff]
        %v531 = vld [vmem:[#allocation5 + $0x7e0] sm:$0xff]
        %v532 = vld [vmem:[#allocation5 + $0x7e8] sm:$0xff]
        %v533 = vld [vmem:[#allocation5 + $0x7f0] sm:$0xff]
        %v534 = vld [vmem:[#allocation5 + $0x7f8] sm:$0xff]
        %v536 = vperm.slane %v272, 0
        %v537 = vperm.slane %v272, 1
        %v538 = vperm.slane %v272, 2
        %v539 = vperm.slane %v272, 3
        %v540 = vperm.slane %v272, 4
        %v541 = vperm.slane %v272, 5
        %v542 = vperm.slane %v272, 6
        %v543 = vperm.slane %v272, 7
        %v554 = vunpack.c.l.b16 %v264
        %v555 = vunpack.c.h.b16 %v264
        %v556 = vunpack.c.l.b16 %v265
        %v557 = vunpack.c.h.b16 %v265
        %v558 = vpack.c.b16 %v554, %v554
        %v559 = vpack.c.b16 %v555, %v555
        %v560 = vpack.c.b16 %v556, %v556
        %v561 = vpack.c.b16 %v557, %v557
        %v822 = vunpack.c.l.b16 %v279
        %v823 = vunpack.c.h.b16 %v279
        %v824 = vunpack.c.l.b16 %v280
        %v825 = vunpack.c.h.b16 %v280
        %v826 = vunpack.c.l.b16 %v281
        %v827 = vunpack.c.h.b16 %v281
        %v828 = vunpack.c.l.b16 %v282
        %v829 = vunpack.c.h.b16 %v282
        %v830 = vunpack.c.l.b16 %v283
        %v831 = vunpack.c.h.b16 %v283
        %v832 = vunpack.c.l.b16 %v284
        %v833 = vunpack.c.h.b16 %v284
        %v834 = vunpack.c.l.b16 %v285
        %v835 = vunpack.c.h.b16 %v285
        %v836 = vunpack.c.l.b16 %v286
        %v837 = vunpack.c.h.b16 %v286
        %v838 = vunpack.c.l.b16 %v287
        %v839 = vunpack.c.h.b16 %v287
        %v840 = vunpack.c.l.b16 %v288
        %v841 = vunpack.c.h.b16 %v288
        %v842 = vunpack.c.l.b16 %v289
        %v843 = vunpack.c.h.b16 %v289
        %v844 = vunpack.c.l.b16 %v290
        %v845 = vunpack.c.h.b16 %v290
        %v846 = vunpack.c.l.b16 %v291
        %v847 = vunpack.c.h.b16 %v291
        %v848 = vunpack.c.l.b16 %v292
        %v849 = vunpack.c.h.b16 %v292
        %v850 = vunpack.c.l.b16 %v293
        %v851 = vunpack.c.h.b16 %v293
        %v852 = vunpack.c.l.b16 %v294
        %v853 = vunpack.c.h.b16 %v294
        %v854 = vunpack.c.l.b16 %v295
        %v855 = vunpack.c.h.b16 %v295
        %v856 = vunpack.c.l.b16 %v296
        %v857 = vunpack.c.h.b16 %v296
        %v858 = vunpack.c.l.b16 %v297
        %v859 = vunpack.c.h.b16 %v297
        %v860 = vunpack.c.l.b16 %v298
        %v861 = vunpack.c.h.b16 %v298
        %v862 = vunpack.c.l.b16 %v299
        %v863 = vunpack.c.h.b16 %v299
        %v864 = vunpack.c.l.b16 %v300
        %v865 = vunpack.c.h.b16 %v300
        %v866 = vunpack.c.l.b16 %v301
        %v867 = vunpack.c.h.b16 %v301
        %v868 = vunpack.c.l.b16 %v302
        %v869 = vunpack.c.h.b16 %v302
        %v870 = vunpack.c.l.b16 %v303
        %v871 = vunpack.c.h.b16 %v303
        %v872 = vunpack.c.l.b16 %v304
        %v873 = vunpack.c.h.b16 %v304
        %v874 = vunpack.c.l.b16 %v305
        %v875 = vunpack.c.h.b16 %v305
        %v876 = vunpack.c.l.b16 %v306
        %v877 = vunpack.c.h.b16 %v306
        %v878 = vunpack.c.l.b16 %v307
        %v879 = vunpack.c.h.b16 %v307
        %v880 = vunpack.c.l.b16 %v308
        %v881 = vunpack.c.h.b16 %v308
        %v882 = vunpack.c.l.b16 %v309
        %v883 = vunpack.c.h.b16 %v309
        %v884 = vunpack.c.l.b16 %v310
        %v885 = vunpack.c.h.b16 %v310
        %v886 = vunpack.c.l.b16 %v311
        %v887 = vunpack.c.h.b16 %v311
        %v888 = vunpack.c.l.b16 %v312
        %v889 = vunpack.c.h.b16 %v312
        %v890 = vunpack.c.l.b16 %v313
        %v891 = vunpack.c.h.b16 %v313
        %v892 = vunpack.c.l.b16 %v314
        %v893 = vunpack.c.h.b16 %v314
        %v894 = vunpack.c.l.b16 %v315
        %v895 = vunpack.c.h.b16 %v315
        %v896 = vunpack.c.l.b16 %v316
        %v897 = vunpack.c.h.b16 %v316
        %v898 = vunpack.c.l.b16 %v317
        %v899 = vunpack.c.h.b16 %v317
        %v900 = vunpack.c.l.b16 %v318
        %v901 = vunpack.c.h.b16 %v318
        %v902 = vunpack.c.l.b16 %v319
        %v903 = vunpack.c.h.b16 %v319
        %v904 = vunpack.c.l.b16 %v320
        %v905 = vunpack.c.h.b16 %v320
        %v906 = vunpack.c.l.b16 %v321
        %v907 = vunpack.c.h.b16 %v321
        %v908 = vunpack.c.l.b16 %v322
        %v909 = vunpack.c.h.b16 %v322
        %v910 = vunpack.c.l.b16 %v323
        %v911 = vunpack.c.h.b16 %v323
        %v912 = vunpack.c.l.b16 %v324
        %v913 = vunpack.c.h.b16 %v324
        %v914 = vunpack.c.l.b16 %v325
        %v915 = vunpack.c.h.b16 %v325
        %v916 = vunpack.c.l.b16 %v326
        %v917 = vunpack.c.h.b16 %v326
        %v918 = vunpack.c.l.b16 %v327
        %v919 = vunpack.c.h.b16 %v327
        %v920 = vunpack.c.l.b16 %v328
        %v921 = vunpack.c.h.b16 %v328
        %v922 = vunpack.c.l.b16 %v329
        %v923 = vunpack.c.h.b16 %v329
        %v924 = vunpack.c.l.b16 %v330
        %v925 = vunpack.c.h.b16 %v330
        %v926 = vunpack.c.l.b16 %v331
        %v927 = vunpack.c.h.b16 %v331
        %v928 = vunpack.c.l.b16 %v332
        %v929 = vunpack.c.h.b16 %v332
        %v930 = vunpack.c.l.b16 %v333
        %v931 = vunpack.c.h.b16 %v333
        %v932 = vunpack.c.l.b16 %v334
        %v933 = vunpack.c.h.b16 %v334
        %v934 = vunpack.c.l.b16 %v335
        %v935 = vunpack.c.h.b16 %v335
        %v936 = vunpack.c.l.b16 %v336
        %v937 = vunpack.c.h.b16 %v336
        %v938 = vunpack.c.l.b16 %v337
        %v939 = vunpack.c.h.b16 %v337
        %v940 = vunpack.c.l.b16 %v338
        %v941 = vunpack.c.h.b16 %v338
        %v942 = vunpack.c.l.b16 %v339
        %v943 = vunpack.c.h.b16 %v339
        %v944 = vunpack.c.l.b16 %v340
        %v945 = vunpack.c.h.b16 %v340
        %v946 = vunpack.c.l.b16 %v341
        %v947 = vunpack.c.h.b16 %v341
        %v948 = vunpack.c.l.b16 %v342
        %v949 = vunpack.c.h.b16 %v342
        %v950 = vunpack.c.l.b16 %v343
        %v951 = vunpack.c.h.b16 %v343
        %v952 = vunpack.c.l.b16 %v344
        %v953 = vunpack.c.h.b16 %v344
        %v954 = vunpack.c.l.b16 %v345
        %v955 = vunpack.c.h.b16 %v345
        %v956 = vunpack.c.l.b16 %v346
        %v957 = vunpack.c.h.b16 %v346
        %v958 = vunpack.c.l.b16 %v347
        %v959 = vunpack.c.h.b16 %v347
        %v960 = vunpack.c.l.b16 %v348
        %v961 = vunpack.c.h.b16 %v348
        %v962 = vunpack.c.l.b16 %v349
        %v963 = vunpack.c.h.b16 %v349
        %v964 = vunpack.c.l.b16 %v350
        %v965 = vunpack.c.h.b16 %v350
        %v966 = vunpack.c.l.b16 %v351
        %v967 = vunpack.c.h.b16 %v351
        %v968 = vunpack.c.l.b16 %v352
        %v969 = vunpack.c.h.b16 %v352
        %v970 = vunpack.c.l.b16 %v353
        %v971 = vunpack.c.h.b16 %v353
        %v972 = vunpack.c.l.b16 %v354
        %v973 = vunpack.c.h.b16 %v354
        %v974 = vunpack.c.l.b16 %v355
        %v975 = vunpack.c.h.b16 %v355
        %v976 = vunpack.c.l.b16 %v356
        %v977 = vunpack.c.h.b16 %v356
        %v978 = vunpack.c.l.b16 %v357
        %v979 = vunpack.c.h.b16 %v357
        %v980 = vunpack.c.l.b16 %v358
        %v981 = vunpack.c.h.b16 %v358
        %v982 = vunpack.c.l.b16 %v359
        %v983 = vunpack.c.h.b16 %v359
        %v984 = vunpack.c.l.b16 %v360
        %v985 = vunpack.c.h.b16 %v360
        %v986 = vunpack.c.l.b16 %v361
        %v987 = vunpack.c.h.b16 %v361
        %v988 = vunpack.c.l.b16 %v362
        %v989 = vunpack.c.h.b16 %v362
        %v990 = vunpack.c.l.b16 %v363
        %v991 = vunpack.c.h.b16 %v363
        %v992 = vunpack.c.l.b16 %v364
        %v993 = vunpack.c.h.b16 %v364
        %v994 = vunpack.c.l.b16 %v365
        %v995 = vunpack.c.h.b16 %v365
        %v996 = vunpack.c.l.b16 %v366
        %v997 = vunpack.c.h.b16 %v366
        %v998 = vunpack.c.l.b16 %v367
        %v999 = vunpack.c.h.b16 %v367
        %v1000 = vunpack.c.l.b16 %v368
        %v1001 = vunpack.c.h.b16 %v368
        %v1002 = vunpack.c.l.b16 %v369
        %v1003 = vunpack.c.h.b16 %v369
        %v1004 = vunpack.c.l.b16 %v370
        %v1005 = vunpack.c.h.b16 %v370
        %v1006 = vunpack.c.l.b16 %v371
        %v1007 = vunpack.c.h.b16 %v371
        %v1008 = vunpack.c.l.b16 %v372
        %v1009 = vunpack.c.h.b16 %v372
        %v1010 = vunpack.c.l.b16 %v373
        %v1011 = vunpack.c.h.b16 %v373
        %v1012 = vunpack.c.l.b16 %v374
        %v1013 = vunpack.c.h.b16 %v374
        %v1014 = vunpack.c.l.b16 %v375
        %v1015 = vunpack.c.h.b16 %v375
        %v1016 = vunpack.c.l.b16 %v376
        %v1017 = vunpack.c.h.b16 %v376
        %v1018 = vunpack.c.l.b16 %v377
        %v1019 = vunpack.c.h.b16 %v377
        %v1020 = vunpack.c.l.b16 %v378
        %v1021 = vunpack.c.h.b16 %v378
        %v1022 = vunpack.c.l.b16 %v379
        %v1023 = vunpack.c.h.b16 %v379
        %v1024 = vunpack.c.l.b16 %v380
        %v1025 = vunpack.c.h.b16 %v380
        %v1026 = vunpack.c.l.b16 %v381
        %v1027 = vunpack.c.h.b16 %v381
        %v1028 = vunpack.c.l.b16 %v382
        %v1029 = vunpack.c.h.b16 %v382
        %v1030 = vunpack.c.l.b16 %v383
        %v1031 = vunpack.c.h.b16 %v383
        %v1032 = vunpack.c.l.b16 %v384
        %v1033 = vunpack.c.h.b16 %v384
        %v1034 = vunpack.c.l.b16 %v385
        %v1035 = vunpack.c.h.b16 %v385
        %v1036 = vunpack.c.l.b16 %v386
        %v1037 = vunpack.c.h.b16 %v386
        %v1038 = vunpack.c.l.b16 %v387
        %v1039 = vunpack.c.h.b16 %v387
        %v1040 = vunpack.c.l.b16 %v388
        %v1041 = vunpack.c.h.b16 %v388
        %v1042 = vunpack.c.l.b16 %v389
        %v1043 = vunpack.c.h.b16 %v389
        %v1044 = vunpack.c.l.b16 %v390
        %v1045 = vunpack.c.h.b16 %v390
        %v1046 = vunpack.c.l.b16 %v391
        %v1047 = vunpack.c.h.b16 %v391
        %v1048 = vunpack.c.l.b16 %v392
        %v1049 = vunpack.c.h.b16 %v392
        %v1050 = vunpack.c.l.b16 %v393
        %v1051 = vunpack.c.h.b16 %v393
        %v1052 = vunpack.c.l.b16 %v394
        %v1053 = vunpack.c.h.b16 %v394
        %v1054 = vunpack.c.l.b16 %v395
        %v1055 = vunpack.c.h.b16 %v395
        %v1056 = vunpack.c.l.b16 %v396
        %v1057 = vunpack.c.h.b16 %v396
        %v1058 = vunpack.c.l.b16 %v397
        %v1059 = vunpack.c.h.b16 %v397
        %v1060 = vunpack.c.l.b16 %v398
        %v1061 = vunpack.c.h.b16 %v398
        %v1062 = vunpack.c.l.b16 %v399
        %v1063 = vunpack.c.h.b16 %v399
        %v1064 = vunpack.c.l.b16 %v400
        %v1065 = vunpack.c.h.b16 %v400
        %v1066 = vunpack.c.l.b16 %v401
        %v1067 = vunpack.c.h.b16 %v401
        %v1068 = vunpack.c.l.b16 %v402
        %v1069 = vunpack.c.h.b16 %v402
        %v1070 = vunpack.c.l.b16 %v403
        %v1071 = vunpack.c.h.b16 %v403
        %v1072 = vunpack.c.l.b16 %v404
        %v1073 = vunpack.c.h.b16 %v404
        %v1074 = vunpack.c.l.b16 %v405
        %v1075 = vunpack.c.h.b16 %v405
        %v1076 = vunpack.c.l.b16 %v406
        %v1077 = vunpack.c.h.b16 %v406
        %v1078 = vunpack.c.l.b16 %v407
        %v1079 = vunpack.c.h.b16 %v407
        %v1080 = vunpack.c.l.b16 %v408
        %v1081 = vunpack.c.h.b16 %v408
        %v1082 = vunpack.c.l.b16 %v409
        %v1083 = vunpack.c.h.b16 %v409
        %v1084 = vunpack.c.l.b16 %v410
        %v1085 = vunpack.c.h.b16 %v410
        %v1086 = vunpack.c.l.b16 %v411
        %v1087 = vunpack.c.h.b16 %v411
        %v1088 = vunpack.c.l.b16 %v412
        %v1089 = vunpack.c.h.b16 %v412
        %v1090 = vunpack.c.l.b16 %v413
        %v1091 = vunpack.c.h.b16 %v413
        %v1092 = vunpack.c.l.b16 %v414
        %v1093 = vunpack.c.h.b16 %v414
        %v1094 = vunpack.c.l.b16 %v415
        %v1095 = vunpack.c.h.b16 %v415
        %v1096 = vunpack.c.l.b16 %v416
        %v1097 = vunpack.c.h.b16 %v416
        %v1098 = vunpack.c.l.b16 %v417
        %v1099 = vunpack.c.h.b16 %v417
        %v1100 = vunpack.c.l.b16 %v418
        %v1101 = vunpack.c.h.b16 %v418
        %v1102 = vunpack.c.l.b16 %v419
        %v1103 = vunpack.c.h.b16 %v419
        %v1104 = vunpack.c.l.b16 %v420
        %v1105 = vunpack.c.h.b16 %v420
        %v1106 = vunpack.c.l.b16 %v421
        %v1107 = vunpack.c.h.b16 %v421
        %v1108 = vunpack.c.l.b16 %v422
        %v1109 = vunpack.c.h.b16 %v422
        %v1110 = vunpack.c.l.b16 %v423
        %v1111 = vunpack.c.h.b16 %v423
        %v1112 = vunpack.c.l.b16 %v424
        %v1113 = vunpack.c.h.b16 %v424
        %v1114 = vunpack.c.l.b16 %v425
        %v1115 = vunpack.c.h.b16 %v425
        %v1116 = vunpack.c.l.b16 %v426
        %v1117 = vunpack.c.h.b16 %v426
        %v1118 = vunpack.c.l.b16 %v427
        %v1119 = vunpack.c.h.b16 %v427
        %v1120 = vunpack.c.l.b16 %v428
        %v1121 = vunpack.c.h.b16 %v428
        %v1122 = vunpack.c.l.b16 %v429
        %v1123 = vunpack.c.h.b16 %v429
        %v1124 = vunpack.c.l.b16 %v430
        %v1125 = vunpack.c.h.b16 %v430
        %v1126 = vunpack.c.l.b16 %v431
        %v1127 = vunpack.c.h.b16 %v431
        %v1128 = vunpack.c.l.b16 %v432
        %v1129 = vunpack.c.h.b16 %v432
        %v1130 = vunpack.c.l.b16 %v433
        %v1131 = vunpack.c.h.b16 %v433
        %v1132 = vunpack.c.l.b16 %v434
        %v1133 = vunpack.c.h.b16 %v434
        %v1134 = vunpack.c.l.b16 %v435
        %v1135 = vunpack.c.h.b16 %v435
        %v1136 = vunpack.c.l.b16 %v436
        %v1137 = vunpack.c.h.b16 %v436
        %v1138 = vunpack.c.l.b16 %v437
        %v1139 = vunpack.c.h.b16 %v437
        %v1140 = vunpack.c.l.b16 %v438
        %v1141 = vunpack.c.h.b16 %v438
        %v1142 = vunpack.c.l.b16 %v439
        %v1143 = vunpack.c.h.b16 %v439
        %v1144 = vunpack.c.l.b16 %v440
        %v1145 = vunpack.c.h.b16 %v440
        %v1146 = vunpack.c.l.b16 %v441
        %v1147 = vunpack.c.h.b16 %v441
        %v1148 = vunpack.c.l.b16 %v442
        %v1149 = vunpack.c.h.b16 %v442
        %v1150 = vunpack.c.l.b16 %v443
        %v1151 = vunpack.c.h.b16 %v443
        %v1152 = vunpack.c.l.b16 %v444
        %v1153 = vunpack.c.h.b16 %v444
        %v1154 = vunpack.c.l.b16 %v445
        %v1155 = vunpack.c.h.b16 %v445
        %v1156 = vunpack.c.l.b16 %v446
        %v1157 = vunpack.c.h.b16 %v446
        %v1158 = vunpack.c.l.b16 %v447
        %v1159 = vunpack.c.h.b16 %v447
        %v1160 = vunpack.c.l.b16 %v448
        %v1161 = vunpack.c.h.b16 %v448
        %v1162 = vunpack.c.l.b16 %v449
        %v1163 = vunpack.c.h.b16 %v449
        %v1164 = vunpack.c.l.b16 %v450
        %v1165 = vunpack.c.h.b16 %v450
        %v1166 = vunpack.c.l.b16 %v451
        %v1167 = vunpack.c.h.b16 %v451
        %v1168 = vunpack.c.l.b16 %v452
        %v1169 = vunpack.c.h.b16 %v452
        %v1170 = vunpack.c.l.b16 %v453
        %v1171 = vunpack.c.h.b16 %v453
        %v1172 = vunpack.c.l.b16 %v454
        %v1173 = vunpack.c.h.b16 %v454
        %v1174 = vunpack.c.l.b16 %v455
        %v1175 = vunpack.c.h.b16 %v455
        %v1176 = vunpack.c.l.b16 %v456
        %v1177 = vunpack.c.h.b16 %v456
        %v1178 = vunpack.c.l.b16 %v457
        %v1179 = vunpack.c.h.b16 %v457
        %v1180 = vunpack.c.l.b16 %v458
        %v1181 = vunpack.c.h.b16 %v458
        %v1182 = vunpack.c.l.b16 %v459
        %v1183 = vunpack.c.h.b16 %v459
        %v1184 = vunpack.c.l.b16 %v460
        %v1185 = vunpack.c.h.b16 %v460
        %v1186 = vunpack.c.l.b16 %v461
        %v1187 = vunpack.c.h.b16 %v461
        %v1188 = vunpack.c.l.b16 %v462
        %v1189 = vunpack.c.h.b16 %v462
        %v1190 = vunpack.c.l.b16 %v463
        %v1191 = vunpack.c.h.b16 %v463
        %v1192 = vunpack.c.l.b16 %v464
        %v1193 = vunpack.c.h.b16 %v464
        %v1194 = vunpack.c.l.b16 %v465
        %v1195 = vunpack.c.h.b16 %v465
        %v1196 = vunpack.c.l.b16 %v466
        %v1197 = vunpack.c.h.b16 %v466
        %v1198 = vunpack.c.l.b16 %v467
        %v1199 = vunpack.c.h.b16 %v467
        %v1200 = vunpack.c.l.b16 %v468
        %v1201 = vunpack.c.h.b16 %v468
        %v1202 = vunpack.c.l.b16 %v469
        %v1203 = vunpack.c.h.b16 %v469
        %v1204 = vunpack.c.l.b16 %v470
        %v1205 = vunpack.c.h.b16 %v470
        %v1206 = vunpack.c.l.b16 %v471
        %v1207 = vunpack.c.h.b16 %v471
        %v1208 = vunpack.c.l.b16 %v472
        %v1209 = vunpack.c.h.b16 %v472
        %v1210 = vunpack.c.l.b16 %v473
        %v1211 = vunpack.c.h.b16 %v473
        %v1212 = vunpack.c.l.b16 %v474
        %v1213 = vunpack.c.h.b16 %v474
        %v1214 = vunpack.c.l.b16 %v475
        %v1215 = vunpack.c.h.b16 %v475
        %v1216 = vunpack.c.l.b16 %v476
        %v1217 = vunpack.c.h.b16 %v476
        %v1218 = vunpack.c.l.b16 %v477
        %v1219 = vunpack.c.h.b16 %v477
        %v1220 = vunpack.c.l.b16 %v478
        %v1221 = vunpack.c.h.b16 %v478
        %v1222 = vunpack.c.l.b16 %v479
        %v1223 = vunpack.c.h.b16 %v479
        %v1224 = vunpack.c.l.b16 %v480
        %v1225 = vunpack.c.h.b16 %v480
        %v1226 = vunpack.c.l.b16 %v481
        %v1227 = vunpack.c.h.b16 %v481
        %v1228 = vunpack.c.l.b16 %v482
        %v1229 = vunpack.c.h.b16 %v482
        %v1230 = vunpack.c.l.b16 %v483
        %v1231 = vunpack.c.h.b16 %v483
        %v1232 = vunpack.c.l.b16 %v484
        %v1233 = vunpack.c.h.b16 %v484
        %v1234 = vunpack.c.l.b16 %v485
        %v1235 = vunpack.c.h.b16 %v485
        %v1236 = vunpack.c.l.b16 %v486
        %v1237 = vunpack.c.h.b16 %v486
        %v1238 = vunpack.c.l.b16 %v487
        %v1239 = vunpack.c.h.b16 %v487
        %v1240 = vunpack.c.l.b16 %v488
        %v1241 = vunpack.c.h.b16 %v488
        %v1242 = vunpack.c.l.b16 %v489
        %v1243 = vunpack.c.h.b16 %v489
        %v1244 = vunpack.c.l.b16 %v490
        %v1245 = vunpack.c.h.b16 %v490
        %v1246 = vunpack.c.l.b16 %v491
        %v1247 = vunpack.c.h.b16 %v491
        %v1248 = vunpack.c.l.b16 %v492
        %v1249 = vunpack.c.h.b16 %v492
        %v1250 = vunpack.c.l.b16 %v493
        %v1251 = vunpack.c.h.b16 %v493
        %v1252 = vunpack.c.l.b16 %v494
        %v1253 = vunpack.c.h.b16 %v494
        %v1254 = vunpack.c.l.b16 %v495
        %v1255 = vunpack.c.h.b16 %v495
        %v1256 = vunpack.c.l.b16 %v496
        %v1257 = vunpack.c.h.b16 %v496
        %v1258 = vunpack.c.l.b16 %v497
        %v1259 = vunpack.c.h.b16 %v497
        %v1260 = vunpack.c.l.b16 %v498
        %v1261 = vunpack.c.h.b16 %v498
        %v1262 = vunpack.c.l.b16 %v499
        %v1263 = vunpack.c.h.b16 %v499
        %v1264 = vunpack.c.l.b16 %v500
        %v1265 = vunpack.c.h.b16 %v500
        %v1266 = vunpack.c.l.b16 %v501
        %v1267 = vunpack.c.h.b16 %v501
        %v1268 = vunpack.c.l.b16 %v502
        %v1269 = vunpack.c.h.b16 %v502
        %v1270 = vunpack.c.l.b16 %v503
        %v1271 = vunpack.c.h.b16 %v503
        %v1272 = vunpack.c.l.b16 %v504
        %v1273 = vunpack.c.h.b16 %v504
        %v1274 = vunpack.c.l.b16 %v505
        %v1275 = vunpack.c.h.b16 %v505
        %v1276 = vunpack.c.l.b16 %v506
        %v1277 = vunpack.c.h.b16 %v506
        %v1278 = vunpack.c.l.b16 %v507
        %v1279 = vunpack.c.h.b16 %v507
        %v1280 = vunpack.c.l.b16 %v508
        %v1281 = vunpack.c.h.b16 %v508
        %v1282 = vunpack.c.l.b16 %v509
        %v1283 = vunpack.c.h.b16 %v509
        %v1284 = vunpack.c.l.b16 %v510
        %v1285 = vunpack.c.h.b16 %v510
        %v1286 = vunpack.c.l.b16 %v511
        %v1287 = vunpack.c.h.b16 %v511
        %v1288 = vunpack.c.l.b16 %v512
        %v1289 = vunpack.c.h.b16 %v512
        %v1290 = vunpack.c.l.b16 %v513
        %v1291 = vunpack.c.h.b16 %v513
        %v1292 = vunpack.c.l.b16 %v514
        %v1293 = vunpack.c.h.b16 %v514
        %v1294 = vunpack.c.l.b16 %v515
        %v1295 = vunpack.c.h.b16 %v515
        %v1296 = vunpack.c.l.b16 %v516
        %v1297 = vunpack.c.h.b16 %v516
        %v1298 = vunpack.c.l.b16 %v517
        %v1299 = vunpack.c.h.b16 %v517
        %v1300 = vunpack.c.l.b16 %v518
        %v1301 = vunpack.c.h.b16 %v518
        %v1302 = vunpack.c.l.b16 %v519
        %v1303 = vunpack.c.h.b16 %v519
        %v1304 = vunpack.c.l.b16 %v520
        %v1305 = vunpack.c.h.b16 %v520
        %v1306 = vunpack.c.l.b16 %v521
        %v1307 = vunpack.c.h.b16 %v521
        %v1308 = vunpack.c.l.b16 %v522
        %v1309 = vunpack.c.h.b16 %v522
        %v1310 = vunpack.c.l.b16 %v523
        %v1311 = vunpack.c.h.b16 %v523
        %v1312 = vunpack.c.l.b16 %v524
        %v1313 = vunpack.c.h.b16 %v524
        %v1314 = vunpack.c.l.b16 %v525
        %v1315 = vunpack.c.h.b16 %v525
        %v1316 = vunpack.c.l.b16 %v526
        %v1317 = vunpack.c.h.b16 %v526
        %v1318 = vunpack.c.l.b16 %v527
        %v1319 = vunpack.c.h.b16 %v527
        %v1320 = vunpack.c.l.b16 %v528
        %v1321 = vunpack.c.h.b16 %v528
        %v1322 = vunpack.c.l.b16 %v529
        %v1323 = vunpack.c.h.b16 %v529
        %v1324 = vunpack.c.l.b16 %v530
        %v1325 = vunpack.c.h.b16 %v530
        %v1326 = vunpack.c.l.b16 %v531
        %v1327 = vunpack.c.h.b16 %v531
        %v1328 = vunpack.c.l.b16 %v532
        %v1329 = vunpack.c.h.b16 %v532
        %v1330 = vunpack.c.l.b16 %v533
        %v1331 = vunpack.c.h.b16 %v533
        %v1332 = vunpack.c.l.b16 %v534
        %v1333 = vunpack.c.h.b16 %v534
        %v1334 = vpack.c.b16 %v830, %v822
        %v1335 = vpack.c.b16 %v831, %v823
        %v1336 = vpack.c.b16 %v832, %v824
        %v1337 = vpack.c.b16 %v833, %v825
        %v1338 = vpack.c.b16 %v834, %v826
        %v1339 = vpack.c.b16 %v835, %v827
        %v1340 = vpack.c.b16 %v836, %v828
        %v1341 = vpack.c.b16 %v837, %v829
        %v1342 = vpack.c.b16 %v846, %v838
        %v1343 = vpack.c.b16 %v847, %v839
        %v1344 = vpack.c.b16 %v848, %v840
        %v1345 = vpack.c.b16 %v849, %v841
        %v1346 = vpack.c.b16 %v850, %v842
        %v1347 = vpack.c.b16 %v851, %v843
        %v1348 = vpack.c.b16 %v852, %v844
        %v1349 = vpack.c.b16 %v853, %v845
        %v1350 = vpack.c.b16 %v862, %v854
        %v1351 = vpack.c.b16 %v863, %v855
        %v1352 = vpack.c.b16 %v864, %v856
        %v1353 = vpack.c.b16 %v865, %v857
        %v1354 = vpack.c.b16 %v866, %v858
        %v1355 = vpack.c.b16 %v867, %v859
        %v1356 = vpack.c.b16 %v868, %v860
        %v1357 = vpack.c.b16 %v869, %v861
        %v1358 = vpack.c.b16 %v878, %v870
        %v1359 = vpack.c.b16 %v879, %v871
        %v1360 = vpack.c.b16 %v880, %v872
        %v1361 = vpack.c.b16 %v881, %v873
        %v1362 = vpack.c.b16 %v882, %v874
        %v1363 = vpack.c.b16 %v883, %v875
        %v1364 = vpack.c.b16 %v884, %v876
        %v1365 = vpack.c.b16 %v885, %v877
        %v1366 = vpack.c.b16 %v894, %v886
        %v1367 = vpack.c.b16 %v895, %v887
        %v1368 = vpack.c.b16 %v896, %v888
        %v1369 = vpack.c.b16 %v897, %v889
        %v1370 = vpack.c.b16 %v898, %v890
        %v1371 = vpack.c.b16 %v899, %v891
        %v1372 = vpack.c.b16 %v900, %v892
        %v1373 = vpack.c.b16 %v901, %v893
        %v1374 = vpack.c.b16 %v910, %v902
        %v1375 = vpack.c.b16 %v911, %v903
        %v1376 = vpack.c.b16 %v912, %v904
        %v1377 = vpack.c.b16 %v913, %v905
        %v1378 = vpack.c.b16 %v914, %v906
        %v1379 = vpack.c.b16 %v915, %v907
        %v1380 = vpack.c.b16 %v916, %v908
        %v1381 = vpack.c.b16 %v917, %v909
        %v1382 = vpack.c.b16 %v926, %v918
        %v1383 = vpack.c.b16 %v927, %v919
        %v1384 = vpack.c.b16 %v928, %v920
        %v1385 = vpack.c.b16 %v929, %v921
        %v1386 = vpack.c.b16 %v930, %v922
        %v1387 = vpack.c.b16 %v931, %v923
        %v1388 = vpack.c.b16 %v932, %v924
        %v1389 = vpack.c.b16 %v933, %v925
        %v1390 = vpack.c.b16 %v942, %v934
        %v1391 = vpack.c.b16 %v943, %v935
        %v1392 = vpack.c.b16 %v944, %v936
        %v1393 = vpack.c.b16 %v945, %v937
        %v1394 = vpack.c.b16 %v946, %v938
        %v1395 = vpack.c.b16 %v947, %v939
        %v1396 = vpack.c.b16 %v948, %v940
        %v1397 = vpack.c.b16 %v949, %v941
        %v1398 = vpack.c.b16 %v958, %v950
        %v1399 = vpack.c.b16 %v959, %v951
        %v1400 = vpack.c.b16 %v960, %v952
        %v1401 = vpack.c.b16 %v961, %v953
        %v1402 = vpack.c.b16 %v962, %v954
        %v1403 = vpack.c.b16 %v963, %v955
        %v1404 = vpack.c.b16 %v964, %v956
        %v1405 = vpack.c.b16 %v965, %v957
        %v1406 = vpack.c.b16 %v974, %v966
        %v1407 = vpack.c.b16 %v975, %v967
        %v1408 = vpack.c.b16 %v976, %v968
        %v1409 = vpack.c.b16 %v977, %v969
        %v1410 = vpack.c.b16 %v978, %v970
        %v1411 = vpack.c.b16 %v979, %v971
        %v1412 = vpack.c.b16 %v980, %v972
        %v1413 = vpack.c.b16 %v981, %v973
        %v1414 = vpack.c.b16 %v990, %v982
        %v1415 = vpack.c.b16 %v991, %v983
        %v1416 = vpack.c.b16 %v992, %v984
        %v1417 = vpack.c.b16 %v993, %v985
        %v1418 = vpack.c.b16 %v994, %v986
        %v1419 = vpack.c.b16 %v995, %v987
        %v1420 = vpack.c.b16 %v996, %v988
        %v1421 = vpack.c.b16 %v997, %v989
        %v1422 = vpack.c.b16 %v1006, %v998
        %v1423 = vpack.c.b16 %v1007, %v999
        %v1424 = vpack.c.b16 %v1008, %v1000
        %v1425 = vpack.c.b16 %v1009, %v1001
        %v1426 = vpack.c.b16 %v1010, %v1002
        %v1427 = vpack.c.b16 %v1011, %v1003
        %v1428 = vpack.c.b16 %v1012, %v1004
        %v1429 = vpack.c.b16 %v1013, %v1005
        %v1430 = vpack.c.b16 %v1022, %v1014
        %v1431 = vpack.c.b16 %v1023, %v1015
        %v1432 = vpack.c.b16 %v1024, %v1016
        %v1433 = vpack.c.b16 %v1025, %v1017
        %v1434 = vpack.c.b16 %v1026, %v1018
        %v1435 = vpack.c.b16 %v1027, %v1019
        %v1436 = vpack.c.b16 %v1028, %v1020
        %v1437 = vpack.c.b16 %v1029, %v1021
        %v1438 = vpack.c.b16 %v1038, %v1030
        %v1439 = vpack.c.b16 %v1039, %v1031
        %v1440 = vpack.c.b16 %v1040, %v1032
        %v1441 = vpack.c.b16 %v1041, %v1033
        %v1442 = vpack.c.b16 %v1042, %v1034
        %v1443 = vpack.c.b16 %v1043, %v1035
        %v1444 = vpack.c.b16 %v1044, %v1036
        %v1445 = vpack.c.b16 %v1045, %v1037
        %v1446 = vpack.c.b16 %v1054, %v1046
        %v1447 = vpack.c.b16 %v1055, %v1047
        %v1448 = vpack.c.b16 %v1056, %v1048
        %v1449 = vpack.c.b16 %v1057, %v1049
        %v1450 = vpack.c.b16 %v1058, %v1050
        %v1451 = vpack.c.b16 %v1059, %v1051
        %v1452 = vpack.c.b16 %v1060, %v1052
        %v1453 = vpack.c.b16 %v1061, %v1053
        %v1454 = vpack.c.b16 %v1070, %v1062
        %v1455 = vpack.c.b16 %v1071, %v1063
        %v1456 = vpack.c.b16 %v1072, %v1064
        %v1457 = vpack.c.b16 %v1073, %v1065
        %v1458 = vpack.c.b16 %v1074, %v1066
        %v1459 = vpack.c.b16 %v1075, %v1067
        %v1460 = vpack.c.b16 %v1076, %v1068
        %v1461 = vpack.c.b16 %v1077, %v1069
        %v1462 = vpack.c.b16 %v1086, %v1078
        %v1463 = vpack.c.b16 %v1087, %v1079
        %v1464 = vpack.c.b16 %v1088, %v1080
        %v1465 = vpack.c.b16 %v1089, %v1081
        %v1466 = vpack.c.b16 %v1090, %v1082
        %v1467 = vpack.c.b16 %v1091, %v1083
        %v1468 = vpack.c.b16 %v1092, %v1084
        %v1469 = vpack.c.b16 %v1093, %v1085
        %v1470 = vpack.c.b16 %v1102, %v1094
        %v1471 = vpack.c.b16 %v1103, %v1095
        %v1472 = vpack.c.b16 %v1104, %v1096
        %v1473 = vpack.c.b16 %v1105, %v1097
        %v1474 = vpack.c.b16 %v1106, %v1098
        %v1475 = vpack.c.b16 %v1107, %v1099
        %v1476 = vpack.c.b16 %v1108, %v1100
        %v1477 = vpack.c.b16 %v1109, %v1101
        %v1478 = vpack.c.b16 %v1118, %v1110
        %v1479 = vpack.c.b16 %v1119, %v1111
        %v1480 = vpack.c.b16 %v1120, %v1112
        %v1481 = vpack.c.b16 %v1121, %v1113
        %v1482 = vpack.c.b16 %v1122, %v1114
        %v1483 = vpack.c.b16 %v1123, %v1115
        %v1484 = vpack.c.b16 %v1124, %v1116
        %v1485 = vpack.c.b16 %v1125, %v1117
        %v1486 = vpack.c.b16 %v1134, %v1126
        %v1487 = vpack.c.b16 %v1135, %v1127
        %v1488 = vpack.c.b16 %v1136, %v1128
        %v1489 = vpack.c.b16 %v1137, %v1129
        %v1490 = vpack.c.b16 %v1138, %v1130
        %v1491 = vpack.c.b16 %v1139, %v1131
        %v1492 = vpack.c.b16 %v1140, %v1132
        %v1493 = vpack.c.b16 %v1141, %v1133
        %v1494 = vpack.c.b16 %v1150, %v1142
        %v1495 = vpack.c.b16 %v1151, %v1143
        %v1496 = vpack.c.b16 %v1152, %v1144
        %v1497 = vpack.c.b16 %v1153, %v1145
        %v1498 = vpack.c.b16 %v1154, %v1146
        %v1499 = vpack.c.b16 %v1155, %v1147
        %v1500 = vpack.c.b16 %v1156, %v1148
        %v1501 = vpack.c.b16 %v1157, %v1149
        %v1502 = vpack.c.b16 %v1166, %v1158
        %v1503 = vpack.c.b16 %v1167, %v1159
        %v1504 = vpack.c.b16 %v1168, %v1160
        %v1505 = vpack.c.b16 %v1169, %v1161
        %v1506 = vpack.c.b16 %v1170, %v1162
        %v1507 = vpack.c.b16 %v1171, %v1163
        %v1508 = vpack.c.b16 %v1172, %v1164
        %v1509 = vpack.c.b16 %v1173, %v1165
        %v1510 = vpack.c.b16 %v1182, %v1174
        %v1511 = vpack.c.b16 %v1183, %v1175
        %v1512 = vpack.c.b16 %v1184, %v1176
        %v1513 = vpack.c.b16 %v1185, %v1177
        %v1514 = vpack.c.b16 %v1186, %v1178
        %v1515 = vpack.c.b16 %v1187, %v1179
        %v1516 = vpack.c.b16 %v1188, %v1180
        %v1517 = vpack.c.b16 %v1189, %v1181
        %v1518 = vpack.c.b16 %v1198, %v1190
        %v1519 = vpack.c.b16 %v1199, %v1191
        %v1520 = vpack.c.b16 %v1200, %v1192
        %v1521 = vpack.c.b16 %v1201, %v1193
        %v1522 = vpack.c.b16 %v1202, %v1194
        %v1523 = vpack.c.b16 %v1203, %v1195
        %v1524 = vpack.c.b16 %v1204, %v1196
        %v1525 = vpack.c.b16 %v1205, %v1197
        %v1526 = vpack.c.b16 %v1214, %v1206
        %v1527 = vpack.c.b16 %v1215, %v1207
        %v1528 = vpack.c.b16 %v1216, %v1208
        %v1529 = vpack.c.b16 %v1217, %v1209
        %v1530 = vpack.c.b16 %v1218, %v1210
        %v1531 = vpack.c.b16 %v1219, %v1211
        %v1532 = vpack.c.b16 %v1220, %v1212
        %v1533 = vpack.c.b16 %v1221, %v1213
        %v1534 = vpack.c.b16 %v1230, %v1222
        %v1535 = vpack.c.b16 %v1231, %v1223
        %v1536 = vpack.c.b16 %v1232, %v1224
        %v1537 = vpack.c.b16 %v1233, %v1225
        %v1538 = vpack.c.b16 %v1234, %v1226
        %v1539 = vpack.c.b16 %v1235, %v1227
        %v1540 = vpack.c.b16 %v1236, %v1228
        %v1541 = vpack.c.b16 %v1237, %v1229
        %v1542 = vpack.c.b16 %v1246, %v1238
        %v1543 = vpack.c.b16 %v1247, %v1239
        %v1544 = vpack.c.b16 %v1248, %v1240
        %v1545 = vpack.c.b16 %v1249, %v1241
        %v1546 = vpack.c.b16 %v1250, %v1242
        %v1547 = vpack.c.b16 %v1251, %v1243
        %v1548 = vpack.c.b16 %v1252, %v1244
        %v1549 = vpack.c.b16 %v1253, %v1245
        %v1550 = vpack.c.b16 %v1262, %v1254
        %v1551 = vpack.c.b16 %v1263, %v1255
        %v1552 = vpack.c.b16 %v1264, %v1256
        %v1553 = vpack.c.b16 %v1265, %v1257
        %v1554 = vpack.c.b16 %v1266, %v1258
        %v1555 = vpack.c.b16 %v1267, %v1259
        %v1556 = vpack.c.b16 %v1268, %v1260
        %v1557 = vpack.c.b16 %v1269, %v1261
        %v1558 = vpack.c.b16 %v1278, %v1270
        %v1559 = vpack.c.b16 %v1279, %v1271
        %v1560 = vpack.c.b16 %v1280, %v1272
        %v1561 = vpack.c.b16 %v1281, %v1273
        %v1562 = vpack.c.b16 %v1282, %v1274
        %v1563 = vpack.c.b16 %v1283, %v1275
        %v1564 = vpack.c.b16 %v1284, %v1276
        %v1565 = vpack.c.b16 %v1285, %v1277
        %v1566 = vpack.c.b16 %v1294, %v1286
        %v1567 = vpack.c.b16 %v1295, %v1287
        %v1568 = vpack.c.b16 %v1296, %v1288
        %v1569 = vpack.c.b16 %v1297, %v1289
        %v1570 = vpack.c.b16 %v1298, %v1290
        %v1571 = vpack.c.b16 %v1299, %v1291
        %v1572 = vpack.c.b16 %v1300, %v1292
        %v1573 = vpack.c.b16 %v1301, %v1293
        %v1574 = vpack.c.b16 %v1310, %v1302
        %v1575 = vpack.c.b16 %v1311, %v1303
        %v1576 = vpack.c.b16 %v1312, %v1304
        %v1577 = vpack.c.b16 %v1313, %v1305
        %v1578 = vpack.c.b16 %v1314, %v1306
        %v1579 = vpack.c.b16 %v1315, %v1307
        %v1580 = vpack.c.b16 %v1316, %v1308
        %v1581 = vpack.c.b16 %v1317, %v1309
        %v1582 = vpack.c.b16 %v1326, %v1318
        %v1583 = vpack.c.b16 %v1327, %v1319
        %v1584 = vpack.c.b16 %v1328, %v1320
        %v1585 = vpack.c.b16 %v1329, %v1321
        %v1586 = vpack.c.b16 %v1330, %v1322
        %v1587 = vpack.c.b16 %v1331, %v1323
        %v1588 = vpack.c.b16 %v1332, %v1324
        %v1589 = vpack.c.b16 %v1333, %v1325
        %1846 = vmatpush.bf16.msra.mxu0 %v1390
        %1847 = vmatpush.bf16.msra.mxu0 %v1382
        %1848 = vmatpush.bf16.msra.mxu0 %v1374
        %1849 = vmatpush.bf16.msra.mxu0 %v1366
        %1850 = vmatpush.bf16.msra.mxu0 %v1358
        %1851 = vmatpush.bf16.msra.mxu0 %v1350
        %1852 = vmatpush.bf16.msra.mxu0 %v1342
        %1853 = vmatpush.bf16.msra.mxu0 %v1334
        %1854 = vmatmul.bf16.gmra.mxu0 %v558
        %v1855 = vpop.f32.mrf.mxu0
        %v1856 = vadd.f32 %v536, %v1855
        %v1857 = vpop.f32.mrf.mxu0
        %1858 = vdwg.mxu0
        %1859 = vmatpush.bf16.msra.mxu0 %v1454
        %1860 = vmatpush.bf16.msra.mxu0 %v1446
        %1861 = vmatpush.bf16.msra.mxu0 %v1438
        %1862 = vmatpush.bf16.msra.mxu0 %v1430
        %1863 = vmatpush.bf16.msra.mxu0 %v1422
        %1864 = vmatpush.bf16.msra.mxu0 %v1414
        %1865 = vmatpush.bf16.msra.mxu0 %v1406
        %1866 = vmatpush.bf16.msra.mxu0 %v1398
        %1867 = vmatmul.bf16.gmra.mxu0 %v559
        %v1868 = vpop.f32.mrf.mxu0
        %v1869 = vadd.f32 %v1856, %v1868
        %v1870 = vpop.f32.mrf.mxu0
        %1871 = vdwg.mxu0
        %1872 = vmatpush.bf16.msra.mxu0 %v1518
        %1873 = vmatpush.bf16.msra.mxu0 %v1510
        %1874 = vmatpush.bf16.msra.mxu0 %v1502
        %1875 = vmatpush.bf16.msra.mxu0 %v1494
        %1876 = vmatpush.bf16.msra.mxu0 %v1486
        %1877 = vmatpush.bf16.msra.mxu0 %v1478
        %1878 = vmatpush.bf16.msra.mxu0 %v1470
        %1879 = vmatpush.bf16.msra.mxu0 %v1462
        %1880 = vmatmul.bf16.gmra.mxu0 %v560
        %v1881 = vpop.f32.mrf.mxu0
        %v1882 = vadd.f32 %v1869, %v1881
        %v1883 = vpop.f32.mrf.mxu0
        %1884 = vdwg.mxu0
        %1885 = vmatpush.bf16.msra.mxu0 %v1582
        %1886 = vmatpush.bf16.msra.mxu0 %v1574
        %1887 = vmatpush.bf16.msra.mxu0 %v1566
        %1888 = vmatpush.bf16.msra.mxu0 %v1558
        %1889 = vmatpush.bf16.msra.mxu0 %v1550
        %1890 = vmatpush.bf16.msra.mxu0 %v1542
        %1891 = vmatpush.bf16.msra.mxu0 %v1534
        %1892 = vmatpush.bf16.msra.mxu0 %v1526
        %1893 = vmatmul.bf16.gmra.mxu0 %v561
        %v1894 = vpop.f32.mrf.mxu0
        %v1895 = vadd.f32 %v1882, %v1894
        %v1896 = vpop.f32.mrf.mxu0
        %1897 = vdwg.mxu0
        %1898 = vmatpush.bf16.msra.mxu0 %v1391
        %1899 = vmatpush.bf16.msra.mxu0 %v1383
        %1900 = vmatpush.bf16.msra.mxu0 %v1375
        %1901 = vmatpush.bf16.msra.mxu0 %v1367
        %1902 = vmatpush.bf16.msra.mxu0 %v1359
        %1903 = vmatpush.bf16.msra.mxu0 %v1351
        %1904 = vmatpush.bf16.msra.mxu0 %v1343
        %1905 = vmatpush.bf16.msra.mxu0 %v1335
        %1906 = vmatmul.bf16.gmra.mxu0 %v558
        %v1907 = vpop.f32.mrf.mxu0
        %v1908 = vadd.f32 %v537, %v1907
        %v1909 = vpop.f32.mrf.mxu0
        %1910 = vdwg.mxu0
        %1911 = vmatpush.bf16.msra.mxu0 %v1455
        %1912 = vmatpush.bf16.msra.mxu0 %v1447
        %1913 = vmatpush.bf16.msra.mxu0 %v1439
        %1914 = vmatpush.bf16.msra.mxu0 %v1431
        %1915 = vmatpush.bf16.msra.mxu0 %v1423
        %1916 = vmatpush.bf16.msra.mxu0 %v1415
        %1917 = vmatpush.bf16.msra.mxu0 %v1407
        %1918 = vmatpush.bf16.msra.mxu0 %v1399
        %1919 = vmatmul.bf16.gmra.mxu0 %v559
        %v1920 = vpop.f32.mrf.mxu0
        %v1921 = vadd.f32 %v1908, %v1920
        %v1922 = vpop.f32.mrf.mxu0
        %1923 = vdwg.mxu0
        %1924 = vmatpush.bf16.msra.mxu0 %v1519
        %1925 = vmatpush.bf16.msra.mxu0 %v1511
        %1926 = vmatpush.bf16.msra.mxu0 %v1503
        %1927 = vmatpush.bf16.msra.mxu0 %v1495
        %1928 = vmatpush.bf16.msra.mxu0 %v1487
        %1929 = vmatpush.bf16.msra.mxu0 %v1479
        %1930 = vmatpush.bf16.msra.mxu0 %v1471
        %1931 = vmatpush.bf16.msra.mxu0 %v1463
        %1932 = vmatmul.bf16.gmra.mxu0 %v560
        %v1933 = vpop.f32.mrf.mxu0
        %v1934 = vadd.f32 %v1921, %v1933
        %v1935 = vpop.f32.mrf.mxu0
        %1936 = vdwg.mxu0
        %1937 = vmatpush.bf16.msra.mxu0 %v1583
        %1938 = vmatpush.bf16.msra.mxu0 %v1575
        %1939 = vmatpush.bf16.msra.mxu0 %v1567
        %1940 = vmatpush.bf16.msra.mxu0 %v1559
        %1941 = vmatpush.bf16.msra.mxu0 %v1551
        %1942 = vmatpush.bf16.msra.mxu0 %v1543
        %1943 = vmatpush.bf16.msra.mxu0 %v1535
        %1944 = vmatpush.bf16.msra.mxu0 %v1527
        %1945 = vmatmul.bf16.gmra.mxu0 %v561
        %v1946 = vpop.f32.mrf.mxu0
        %v1947 = vadd.f32 %v1934, %v1946
        %v1948 = vpop.f32.mrf.mxu0
        %1949 = vdwg.mxu0
        %1950 = vmatpush.bf16.msra.mxu0 %v1392
        %1951 = vmatpush.bf16.msra.mxu0 %v1384
        %1952 = vmatpush.bf16.msra.mxu0 %v1376
        %1953 = vmatpush.bf16.msra.mxu0 %v1368
        %1954 = vmatpush.bf16.msra.mxu0 %v1360
        %1955 = vmatpush.bf16.msra.mxu0 %v1352
        %1956 = vmatpush.bf16.msra.mxu0 %v1344
        %1957 = vmatpush.bf16.msra.mxu0 %v1336
        %1958 = vmatmul.bf16.gmra.mxu0 %v558
        %v1959 = vpop.f32.mrf.mxu0
        %v1960 = vadd.f32 %v538, %v1959
        %v1961 = vpop.f32.mrf.mxu0
        %1962 = vdwg.mxu0
        %1963 = vmatpush.bf16.msra.mxu0 %v1456
        %1964 = vmatpush.bf16.msra.mxu0 %v1448
        %1965 = vmatpush.bf16.msra.mxu0 %v1440
        %1966 = vmatpush.bf16.msra.mxu0 %v1432
        %1967 = vmatpush.bf16.msra.mxu0 %v1424
        %1968 = vmatpush.bf16.msra.mxu0 %v1416
        %1969 = vmatpush.bf16.msra.mxu0 %v1408
        %1970 = vmatpush.bf16.msra.mxu0 %v1400
        %1971 = vmatmul.bf16.gmra.mxu0 %v559
        %v1972 = vpop.f32.mrf.mxu0
        %v1973 = vadd.f32 %v1960, %v1972
        %v1974 = vpop.f32.mrf.mxu0
        %1975 = vdwg.mxu0
        %1976 = vmatpush.bf16.msra.mxu0 %v1520
        %1977 = vmatpush.bf16.msra.mxu0 %v1512
        %1978 = vmatpush.bf16.msra.mxu0 %v1504
        %1979 = vmatpush.bf16.msra.mxu0 %v1496
        %1980 = vmatpush.bf16.msra.mxu0 %v1488
        %1981 = vmatpush.bf16.msra.mxu0 %v1480
        %1982 = vmatpush.bf16.msra.mxu0 %v1472
        %1983 = vmatpush.bf16.msra.mxu0 %v1464
        %1984 = vmatmul.bf16.gmra.mxu0 %v560
        %v1985 = vpop.f32.mrf.mxu0
        %v1986 = vadd.f32 %v1973, %v1985
        %v1987 = vpop.f32.mrf.mxu0
        %1988 = vdwg.mxu0
        %1989 = vmatpush.bf16.msra.mxu0 %v1584
        %1990 = vmatpush.bf16.msra.mxu0 %v1576
        %1991 = vmatpush.bf16.msra.mxu0 %v1568
        %1992 = vmatpush.bf16.msra.mxu0 %v1560
        %1993 = vmatpush.bf16.msra.mxu0 %v1552
        %1994 = vmatpush.bf16.msra.mxu0 %v1544
        %1995 = vmatpush.bf16.msra.mxu0 %v1536
        %1996 = vmatpush.bf16.msra.mxu0 %v1528
        %1997 = vmatmul.bf16.gmra.mxu0 %v561
        %v1998 = vpop.f32.mrf.mxu0
        %v1999 = vadd.f32 %v1986, %v1998
        %v2000 = vpop.f32.mrf.mxu0
        %2001 = vdwg.mxu0
        %2002 = vmatpush.bf16.msra.mxu0 %v1393
        %2003 = vmatpush.bf16.msra.mxu0 %v1385
        %2004 = vmatpush.bf16.msra.mxu0 %v1377
        %2005 = vmatpush.bf16.msra.mxu0 %v1369
        %2006 = vmatpush.bf16.msra.mxu0 %v1361
        %2007 = vmatpush.bf16.msra.mxu0 %v1353
        %2008 = vmatpush.bf16.msra.mxu0 %v1345
        %2009 = vmatpush.bf16.msra.mxu0 %v1337
        %2010 = vmatmul.bf16.gmra.mxu0 %v558
        %v2011 = vpop.f32.mrf.mxu0
        %v2012 = vadd.f32 %v539, %v2011
        %v2013 = vpop.f32.mrf.mxu0
        %2014 = vdwg.mxu0
        %2015 = vmatpush.bf16.msra.mxu0 %v1457
        %2016 = vmatpush.bf16.msra.mxu0 %v1449
        %2017 = vmatpush.bf16.msra.mxu0 %v1441
        %2018 = vmatpush.bf16.msra.mxu0 %v1433
        %2019 = vmatpush.bf16.msra.mxu0 %v1425
        %2020 = vmatpush.bf16.msra.mxu0 %v1417
        %2021 = vmatpush.bf16.msra.mxu0 %v1409
        %2022 = vmatpush.bf16.msra.mxu0 %v1401
        %2023 = vmatmul.bf16.gmra.mxu0 %v559
        %v2024 = vpop.f32.mrf.mxu0
        %v2025 = vadd.f32 %v2012, %v2024
        %v2026 = vpop.f32.mrf.mxu0
        %2027 = vdwg.mxu0
        %2028 = vmatpush.bf16.msra.mxu0 %v1521
        %2029 = vmatpush.bf16.msra.mxu0 %v1513
        %2030 = vmatpush.bf16.msra.mxu0 %v1505
        %2031 = vmatpush.bf16.msra.mxu0 %v1497
        %2032 = vmatpush.bf16.msra.mxu0 %v1489
        %2033 = vmatpush.bf16.msra.mxu0 %v1481
        %2034 = vmatpush.bf16.msra.mxu0 %v1473
        %2035 = vmatpush.bf16.msra.mxu0 %v1465
        %2036 = vmatmul.bf16.gmra.mxu0 %v560
        %v2037 = vpop.f32.mrf.mxu0
        %v2038 = vadd.f32 %v2025, %v2037
        %v2039 = vpop.f32.mrf.mxu0
        %2040 = vdwg.mxu0
        %2041 = vmatpush.bf16.msra.mxu0 %v1585
        %2042 = vmatpush.bf16.msra.mxu0 %v1577
        %2043 = vmatpush.bf16.msra.mxu0 %v1569
        %2044 = vmatpush.bf16.msra.mxu0 %v1561
        %2045 = vmatpush.bf16.msra.mxu0 %v1553
        %2046 = vmatpush.bf16.msra.mxu0 %v1545
        %2047 = vmatpush.bf16.msra.mxu0 %v1537
        %2048 = vmatpush.bf16.msra.mxu0 %v1529
        %2049 = vmatmul.bf16.gmra.mxu0 %v561
        %v2050 = vpop.f32.mrf.mxu0
        %v2051 = vadd.f32 %v2038, %v2050
        %v2052 = vpop.f32.mrf.mxu0
        %2053 = vdwg.mxu0
        %2054 = vmatpush.bf16.msra.mxu0 %v1394
        %2055 = vmatpush.bf16.msra.mxu0 %v1386
        %2056 = vmatpush.bf16.msra.mxu0 %v1378
        %2057 = vmatpush.bf16.msra.mxu0 %v1370
        %2058 = vmatpush.bf16.msra.mxu0 %v1362
        %2059 = vmatpush.bf16.msra.mxu0 %v1354
        %2060 = vmatpush.bf16.msra.mxu0 %v1346
        %2061 = vmatpush.bf16.msra.mxu0 %v1338
        %2062 = vmatmul.bf16.gmra.mxu0 %v558
        %v2063 = vpop.f32.mrf.mxu0
        %v2064 = vadd.f32 %v540, %v2063
        %v2065 = vpop.f32.mrf.mxu0
        %2066 = vdwg.mxu0
        %2067 = vmatpush.bf16.msra.mxu0 %v1458
        %2068 = vmatpush.bf16.msra.mxu0 %v1450
        %2069 = vmatpush.bf16.msra.mxu0 %v1442
        %2070 = vmatpush.bf16.msra.mxu0 %v1434
        %2071 = vmatpush.bf16.msra.mxu0 %v1426
        %2072 = vmatpush.bf16.msra.mxu0 %v1418
        %2073 = vmatpush.bf16.msra.mxu0 %v1410
        %2074 = vmatpush.bf16.msra.mxu0 %v1402
        %2075 = vmatmul.bf16.gmra.mxu0 %v559
        %v2076 = vpop.f32.mrf.mxu0
        %v2077 = vadd.f32 %v2064, %v2076
        %v2078 = vpop.f32.mrf.mxu0
        %2079 = vdwg.mxu0
        %2080 = vmatpush.bf16.msra.mxu0 %v1522
        %2081 = vmatpush.bf16.msra.mxu0 %v1514
        %2082 = vmatpush.bf16.msra.mxu0 %v1506
        %2083 = vmatpush.bf16.msra.mxu0 %v1498
        %2084 = vmatpush.bf16.msra.mxu0 %v1490
        %2085 = vmatpush.bf16.msra.mxu0 %v1482
        %2086 = vmatpush.bf16.msra.mxu0 %v1474
        %2087 = vmatpush.bf16.msra.mxu0 %v1466
        %2088 = vmatmul.bf16.gmra.mxu0 %v560
        %v2089 = vpop.f32.mrf.mxu0
        %v2090 = vadd.f32 %v2077, %v2089
        %v2091 = vpop.f32.mrf.mxu0
        %2092 = vdwg.mxu0
        %2093 = vmatpush.bf16.msra.mxu0 %v1586
        %2094 = vmatpush.bf16.msra.mxu0 %v1578
        %2095 = vmatpush.bf16.msra.mxu0 %v1570
        %2096 = vmatpush.bf16.msra.mxu0 %v1562
        %2097 = vmatpush.bf16.msra.mxu0 %v1554
        %2098 = vmatpush.bf16.msra.mxu0 %v1546
        %2099 = vmatpush.bf16.msra.mxu0 %v1538
        %2100 = vmatpush.bf16.msra.mxu0 %v1530
        %2101 = vmatmul.bf16.gmra.mxu0 %v561
        %v2102 = vpop.f32.mrf.mxu0
        %v2103 = vadd.f32 %v2090, %v2102
        %v2104 = vpop.f32.mrf.mxu0
        %2105 = vdwg.mxu0
        %2106 = vmatpush.bf16.msra.mxu0 %v1395
        %2107 = vmatpush.bf16.msra.mxu0 %v1387
        %2108 = vmatpush.bf16.msra.mxu0 %v1379
        %2109 = vmatpush.bf16.msra.mxu0 %v1371
        %2110 = vmatpush.bf16.msra.mxu0 %v1363
        %2111 = vmatpush.bf16.msra.mxu0 %v1355
        %2112 = vmatpush.bf16.msra.mxu0 %v1347
        %2113 = vmatpush.bf16.msra.mxu0 %v1339
        %2114 = vmatmul.bf16.gmra.mxu0 %v558
        %v2115 = vpop.f32.mrf.mxu0
        %v2116 = vadd.f32 %v541, %v2115
        %v2117 = vpop.f32.mrf.mxu0
        %2118 = vdwg.mxu0
        %2119 = vmatpush.bf16.msra.mxu0 %v1459
        %2120 = vmatpush.bf16.msra.mxu0 %v1451
        %2121 = vmatpush.bf16.msra.mxu0 %v1443
        %2122 = vmatpush.bf16.msra.mxu0 %v1435
        %2123 = vmatpush.bf16.msra.mxu0 %v1427
        %2124 = vmatpush.bf16.msra.mxu0 %v1419
        %2125 = vmatpush.bf16.msra.mxu0 %v1411
        %2126 = vmatpush.bf16.msra.mxu0 %v1403
        %2127 = vmatmul.bf16.gmra.mxu0 %v559
        %v2128 = vpop.f32.mrf.mxu0
        %v2129 = vadd.f32 %v2116, %v2128
        %v2130 = vpop.f32.mrf.mxu0
        %2131 = vdwg.mxu0
        %2132 = vmatpush.bf16.msra.mxu0 %v1523
        %2133 = vmatpush.bf16.msra.mxu0 %v1515
        %2134 = vmatpush.bf16.msra.mxu0 %v1507
        %2135 = vmatpush.bf16.msra.mxu0 %v1499
        %2136 = vmatpush.bf16.msra.mxu0 %v1491
        %2137 = vmatpush.bf16.msra.mxu0 %v1483
        %2138 = vmatpush.bf16.msra.mxu0 %v1475
        %2139 = vmatpush.bf16.msra.mxu0 %v1467
        %2140 = vmatmul.bf16.gmra.mxu0 %v560
        %v2141 = vpop.f32.mrf.mxu0
        %v2142 = vadd.f32 %v2129, %v2141
        %v2143 = vpop.f32.mrf.mxu0
        %2144 = vdwg.mxu0
        %2145 = vmatpush.bf16.msra.mxu0 %v1587
        %2146 = vmatpush.bf16.msra.mxu0 %v1579
        %2147 = vmatpush.bf16.msra.mxu0 %v1571
        %2148 = vmatpush.bf16.msra.mxu0 %v1563
        %2149 = vmatpush.bf16.msra.mxu0 %v1555
        %2150 = vmatpush.bf16.msra.mxu0 %v1547
        %2151 = vmatpush.bf16.msra.mxu0 %v1539
        %2152 = vmatpush.bf16.msra.mxu0 %v1531
        %2153 = vmatmul.bf16.gmra.mxu0 %v561
        %v2154 = vpop.f32.mrf.mxu0
        %v2155 = vadd.f32 %v2142, %v2154
        %v2156 = vpop.f32.mrf.mxu0
        %2157 = vdwg.mxu0
        %2158 = vmatpush.bf16.msra.mxu0 %v1396
        %2159 = vmatpush.bf16.msra.mxu0 %v1388
        %2160 = vmatpush.bf16.msra.mxu0 %v1380
        %2161 = vmatpush.bf16.msra.mxu0 %v1372
        %2162 = vmatpush.bf16.msra.mxu0 %v1364
        %2163 = vmatpush.bf16.msra.mxu0 %v1356
        %2164 = vmatpush.bf16.msra.mxu0 %v1348
        %2165 = vmatpush.bf16.msra.mxu0 %v1340
        %2166 = vmatmul.bf16.gmra.mxu0 %v558
        %v2167 = vpop.f32.mrf.mxu0
        %v2168 = vadd.f32 %v542, %v2167
        %v2169 = vpop.f32.mrf.mxu0
        %2170 = vdwg.mxu0
        %2171 = vmatpush.bf16.msra.mxu0 %v1460
        %2172 = vmatpush.bf16.msra.mxu0 %v1452
        %2173 = vmatpush.bf16.msra.mxu0 %v1444
        %2174 = vmatpush.bf16.msra.mxu0 %v1436
        %2175 = vmatpush.bf16.msra.mxu0 %v1428
        %2176 = vmatpush.bf16.msra.mxu0 %v1420
        %2177 = vmatpush.bf16.msra.mxu0 %v1412
        %2178 = vmatpush.bf16.msra.mxu0 %v1404
        %2179 = vmatmul.bf16.gmra.mxu0 %v559
        %v2180 = vpop.f32.mrf.mxu0
        %v2181 = vadd.f32 %v2168, %v2180
        %v2182 = vpop.f32.mrf.mxu0
        %2183 = vdwg.mxu0
        %2184 = vmatpush.bf16.msra.mxu0 %v1524
        %2185 = vmatpush.bf16.msra.mxu0 %v1516
        %2186 = vmatpush.bf16.msra.mxu0 %v1508
        %2187 = vmatpush.bf16.msra.mxu0 %v1500
        %2188 = vmatpush.bf16.msra.mxu0 %v1492
        %2189 = vmatpush.bf16.msra.mxu0 %v1484
        %2190 = vmatpush.bf16.msra.mxu0 %v1476
        %2191 = vmatpush.bf16.msra.mxu0 %v1468
        %2192 = vmatmul.bf16.gmra.mxu0 %v560
        %v2193 = vpop.f32.mrf.mxu0
        %v2194 = vadd.f32 %v2181, %v2193
        %v2195 = vpop.f32.mrf.mxu0
        %2196 = vdwg.mxu0
        %2197 = vmatpush.bf16.msra.mxu0 %v1588
        %2198 = vmatpush.bf16.msra.mxu0 %v1580
        %2199 = vmatpush.bf16.msra.mxu0 %v1572
        %2200 = vmatpush.bf16.msra.mxu0 %v1564
        %2201 = vmatpush.bf16.msra.mxu0 %v1556
        %2202 = vmatpush.bf16.msra.mxu0 %v1548
        %2203 = vmatpush.bf16.msra.mxu0 %v1540
        %2204 = vmatpush.bf16.msra.mxu0 %v1532
        %2205 = vmatmul.bf16.gmra.mxu0 %v561
        %v2206 = vpop.f32.mrf.mxu0
        %v2207 = vadd.f32 %v2194, %v2206
        %v2208 = vpop.f32.mrf.mxu0
        %2209 = vdwg.mxu0
        %2210 = vmatpush.bf16.msra.mxu0 %v1397
        %2211 = vmatpush.bf16.msra.mxu0 %v1389
        %2212 = vmatpush.bf16.msra.mxu0 %v1381
        %2213 = vmatpush.bf16.msra.mxu0 %v1373
        %2214 = vmatpush.bf16.msra.mxu0 %v1365
        %2215 = vmatpush.bf16.msra.mxu0 %v1357
        %2216 = vmatpush.bf16.msra.mxu0 %v1349
        %2217 = vmatpush.bf16.msra.mxu0 %v1341
        %2218 = vmatmul.bf16.gmra.mxu0 %v558
        %v2219 = vpop.f32.mrf.mxu0
        %v2220 = vadd.f32 %v543, %v2219
        %v2221 = vpop.f32.mrf.mxu0
        %2222 = vdwg.mxu0
        %2223 = vmatpush.bf16.msra.mxu0 %v1461
        %2224 = vmatpush.bf16.msra.mxu0 %v1453
        %2225 = vmatpush.bf16.msra.mxu0 %v1445
        %2226 = vmatpush.bf16.msra.mxu0 %v1437
        %2227 = vmatpush.bf16.msra.mxu0 %v1429
        %2228 = vmatpush.bf16.msra.mxu0 %v1421
        %2229 = vmatpush.bf16.msra.mxu0 %v1413
        %2230 = vmatpush.bf16.msra.mxu0 %v1405
        %2231 = vmatmul.bf16.gmra.mxu0 %v559
        %v2232 = vpop.f32.mrf.mxu0
        %v2233 = vadd.f32 %v2220, %v2232
        %v2234 = vpop.f32.mrf.mxu0
        %2235 = vdwg.mxu0
        %2236 = vmatpush.bf16.msra.mxu0 %v1525
        %2237 = vmatpush.bf16.msra.mxu0 %v1517
        %2238 = vmatpush.bf16.msra.mxu0 %v1509
        %2239 = vmatpush.bf16.msra.mxu0 %v1501
        %2240 = vmatpush.bf16.msra.mxu0 %v1493
        %2241 = vmatpush.bf16.msra.mxu0 %v1485
        %2242 = vmatpush.bf16.msra.mxu0 %v1477
        %2243 = vmatpush.bf16.msra.mxu0 %v1469
        %2244 = vmatmul.bf16.gmra.mxu0 %v560
        %v2245 = vpop.f32.mrf.mxu0
        %v2246 = vadd.f32 %v2233, %v2245
        %v2247 = vpop.f32.mrf.mxu0
        %2248 = vdwg.mxu0
        %2249 = vmatpush.bf16.msra.mxu0 %v1589
        %2250 = vmatpush.bf16.msra.mxu0 %v1581
        %2251 = vmatpush.bf16.msra.mxu0 %v1573
        %2252 = vmatpush.bf16.msra.mxu0 %v1565
        %2253 = vmatpush.bf16.msra.mxu0 %v1557
        %2254 = vmatpush.bf16.msra.mxu0 %v1549
        %2255 = vmatpush.bf16.msra.mxu0 %v1541
        %2256 = vmatpush.bf16.msra.mxu0 %v1533
        %2257 = vmatmul.bf16.gmra.mxu0 %v561
        %v2258 = vpop.f32.mrf.mxu0
        %v2259 = vadd.f32 %v2246, %v2258
        %v2260 = vpop.f32.mrf.mxu0
        %2261 = vdwg.mxu0
        %v2262 = vmax.f32 %v1895, 0.0
        %v2263 = vmax.f32 %v1947, 0.0
        %v2264 = vmax.f32 %v1999, 0.0
        %v2265 = vmax.f32 %v2051, 0.0
        %v2266 = vmax.f32 %v2103, 0.0
        %v2267 = vmax.f32 %v2155, 0.0
        %v2268 = vmax.f32 %v2207, 0.0
        %v2269 = vmax.f32 %v2259, 0.0
        %v2270 = vpack.c.bf16 %v2262, %v2262
        %v2271 = vpack.c.bf16 %v2263, %v2263
        %v2272 = vpack.c.bf16 %v2264, %v2264
        %v2273 = vpack.c.bf16 %v2265, %v2265
        %v2274 = vpack.c.bf16 %v2266, %v2266
        %v2275 = vpack.c.bf16 %v2267, %v2267
        %v2276 = vpack.c.bf16 %v2268, %v2268
        %v2277 = vpack.c.bf16 %v2269, %v2269
        %v2278 = vld [vmem:[#allocation7] sm:$0xff]
        %v2279 = vld [vmem:[#allocation7 + $0x8] sm:$0xff]
        %v2280 = vld [vmem:[#allocation7 + $0x10] sm:$0xff]
        %v2281 = vld [vmem:[#allocation7 + $0x18] sm:$0xff]
        %v2282 = vld [vmem:[#allocation7 + $0x20] sm:$0xff]
        %v2283 = vld [vmem:[#allocation7 + $0x28] sm:$0xff]
        %v2284 = vld [vmem:[#allocation7 + $0x30] sm:$0xff]
        %v2285 = vld [vmem:[#allocation7 + $0x38] sm:$0xff]
        %v2286 = vld [vmem:[#allocation7 + $0x40] sm:$0xff]
        %v2287 = vld [vmem:[#allocation7 + $0x48] sm:$0xff]
        %v2288 = vld [vmem:[#allocation7 + $0x50] sm:$0xff]
        %v2289 = vld [vmem:[#allocation7 + $0x58] sm:$0xff]
        %v2290 = vld [vmem:[#allocation7 + $0x60] sm:$0xff]
        %v2291 = vld [vmem:[#allocation7 + $0x68] sm:$0xff]
        %v2292 = vld [vmem:[#allocation7 + $0x70] sm:$0xff]
        %v2293 = vld [vmem:[#allocation7 + $0x78] sm:$0xff]
        %v2294 = vld [vmem:[#allocation7 + $0x80] sm:$0xff]
        %v2295 = vld [vmem:[#allocation7 + $0x88] sm:$0xff]
        %v2296 = vld [vmem:[#allocation7 + $0x90] sm:$0xff]
        %v2297 = vld [vmem:[#allocation7 + $0x98] sm:$0xff]
        %v2298 = vld [vmem:[#allocation7 + $0xa0] sm:$0xff]
        %v2299 = vld [vmem:[#allocation7 + $0xa8] sm:$0xff]
        %v2300 = vld [vmem:[#allocation7 + $0xb0] sm:$0xff]
        %v2301 = vld [vmem:[#allocation7 + $0xb8] sm:$0xff]
        %v2302 = vld [vmem:[#allocation7 + $0xc0] sm:$0xff]
        %v2303 = vld [vmem:[#allocation7 + $0xc8] sm:$0xff]
        %v2304 = vld [vmem:[#allocation7 + $0xd0] sm:$0xff]
        %v2305 = vld [vmem:[#allocation7 + $0xd8] sm:$0xff]
        %v2306 = vld [vmem:[#allocation7 + $0xe0] sm:$0xff]
        %v2307 = vld [vmem:[#allocation7 + $0xe8] sm:$0xff]
        %v2308 = vld [vmem:[#allocation7 + $0xf0] sm:$0xff]
        %v2309 = vld [vmem:[#allocation7 + $0xf8] sm:$0xff]
        %v2310 = vld [vmem:[#allocation7 + $0x100] sm:$0xff]
        %v2311 = vld [vmem:[#allocation7 + $0x108] sm:$0xff]
        %v2312 = vld [vmem:[#allocation7 + $0x110] sm:$0xff]
        %v2313 = vld [vmem:[#allocation7 + $0x118] sm:$0xff]
        %v2314 = vld [vmem:[#allocation7 + $0x120] sm:$0xff]
        %v2315 = vld [vmem:[#allocation7 + $0x128] sm:$0xff]
        %v2316 = vld [vmem:[#allocation7 + $0x130] sm:$0xff]
        %v2317 = vld [vmem:[#allocation7 + $0x138] sm:$0xff]
        %v2318 = vld [vmem:[#allocation7 + $0x140] sm:$0xff]
        %v2319 = vld [vmem:[#allocation7 + $0x148] sm:$0xff]
        %v2320 = vld [vmem:[#allocation7 + $0x150] sm:$0xff]
        %v2321 = vld [vmem:[#allocation7 + $0x158] sm:$0xff]
        %v2322 = vld [vmem:[#allocation7 + $0x160] sm:$0xff]
        %v2323 = vld [vmem:[#allocation7 + $0x168] sm:$0xff]
        %v2324 = vld [vmem:[#allocation7 + $0x170] sm:$0xff]
        %v2325 = vld [vmem:[#allocation7 + $0x178] sm:$0xff]
        %v2326 = vld [vmem:[#allocation7 + $0x180] sm:$0xff]
        %v2327 = vld [vmem:[#allocation7 + $0x188] sm:$0xff]
        %v2328 = vld [vmem:[#allocation7 + $0x190] sm:$0xff]
        %v2329 = vld [vmem:[#allocation7 + $0x198] sm:$0xff]
        %v2330 = vld [vmem:[#allocation7 + $0x1a0] sm:$0xff]
        %v2331 = vld [vmem:[#allocation7 + $0x1a8] sm:$0xff]
        %v2332 = vld [vmem:[#allocation7 + $0x1b0] sm:$0xff]
        %v2333 = vld [vmem:[#allocation7 + $0x1b8] sm:$0xff]
        %v2334 = vld [vmem:[#allocation7 + $0x1c0] sm:$0xff]
        %v2335 = vld [vmem:[#allocation7 + $0x1c8] sm:$0xff]
        %v2336 = vld [vmem:[#allocation7 + $0x1d0] sm:$0xff]
        %v2337 = vld [vmem:[#allocation7 + $0x1d8] sm:$0xff]
        %v2338 = vld [vmem:[#allocation7 + $0x1e0] sm:$0xff]
        %v2339 = vld [vmem:[#allocation7 + $0x1e8] sm:$0xff]
        %v2340 = vld [vmem:[#allocation7 + $0x1f0] sm:$0xff]
        %v2341 = vld [vmem:[#allocation7 + $0x1f8] sm:$0xff]
        %v2342 = vld [vmem:[#allocation7 + $0x200] sm:$0xff]
        %v2343 = vld [vmem:[#allocation7 + $0x208] sm:$0xff]
        %v2344 = vld [vmem:[#allocation7 + $0x210] sm:$0xff]
        %v2345 = vld [vmem:[#allocation7 + $0x218] sm:$0xff]
        %v2346 = vld [vmem:[#allocation7 + $0x220] sm:$0xff]
        %v2347 = vld [vmem:[#allocation7 + $0x228] sm:$0xff]
        %v2348 = vld [vmem:[#allocation7 + $0x230] sm:$0xff]
        %v2349 = vld [vmem:[#allocation7 + $0x238] sm:$0xff]
        %v2350 = vld [vmem:[#allocation7 + $0x240] sm:$0xff]
        %v2351 = vld [vmem:[#allocation7 + $0x248] sm:$0xff]
        %v2352 = vld [vmem:[#allocation7 + $0x250] sm:$0xff]
        %v2353 = vld [vmem:[#allocation7 + $0x258] sm:$0xff]
        %v2354 = vld [vmem:[#allocation7 + $0x260] sm:$0xff]
        %v2355 = vld [vmem:[#allocation7 + $0x268] sm:$0xff]
        %v2356 = vld [vmem:[#allocation7 + $0x270] sm:$0xff]
        %v2357 = vld [vmem:[#allocation7 + $0x278] sm:$0xff]
        %v2358 = vld [vmem:[#allocation7 + $0x280] sm:$0xff]
        %v2359 = vld [vmem:[#allocation7 + $0x288] sm:$0xff]
        %v2360 = vld [vmem:[#allocation7 + $0x290] sm:$0xff]
        %v2361 = vld [vmem:[#allocation7 + $0x298] sm:$0xff]
        %v2362 = vld [vmem:[#allocation7 + $0x2a0] sm:$0xff]
        %v2363 = vld [vmem:[#allocation7 + $0x2a8] sm:$0xff]
        %v2364 = vld [vmem:[#allocation7 + $0x2b0] sm:$0xff]
        %v2365 = vld [vmem:[#allocation7 + $0x2b8] sm:$0xff]
        %v2366 = vld [vmem:[#allocation7 + $0x2c0] sm:$0xff]
        %v2367 = vld [vmem:[#allocation7 + $0x2c8] sm:$0xff]
        %v2368 = vld [vmem:[#allocation7 + $0x2d0] sm:$0xff]
        %v2369 = vld [vmem:[#allocation7 + $0x2d8] sm:$0xff]
        %v2370 = vld [vmem:[#allocation7 + $0x2e0] sm:$0xff]
        %v2371 = vld [vmem:[#allocation7 + $0x2e8] sm:$0xff]
        %v2372 = vld [vmem:[#allocation7 + $0x2f0] sm:$0xff]
        %v2373 = vld [vmem:[#allocation7 + $0x2f8] sm:$0xff]
        %v2374 = vld [vmem:[#allocation7 + $0x300] sm:$0xff]
        %v2375 = vld [vmem:[#allocation7 + $0x308] sm:$0xff]
        %v2376 = vld [vmem:[#allocation7 + $0x310] sm:$0xff]
        %v2377 = vld [vmem:[#allocation7 + $0x318] sm:$0xff]
        %v2378 = vld [vmem:[#allocation7 + $0x320] sm:$0xff]
        %v2379 = vld [vmem:[#allocation7 + $0x328] sm:$0xff]
        %v2380 = vld [vmem:[#allocation7 + $0x330] sm:$0xff]
        %v2381 = vld [vmem:[#allocation7 + $0x338] sm:$0xff]
        %v2382 = vld [vmem:[#allocation7 + $0x340] sm:$0xff]
        %v2383 = vld [vmem:[#allocation7 + $0x348] sm:$0xff]
        %v2384 = vld [vmem:[#allocation7 + $0x350] sm:$0xff]
        %v2385 = vld [vmem:[#allocation7 + $0x358] sm:$0xff]
        %v2386 = vld [vmem:[#allocation7 + $0x360] sm:$0xff]
        %v2387 = vld [vmem:[#allocation7 + $0x368] sm:$0xff]
        %v2388 = vld [vmem:[#allocation7 + $0x370] sm:$0xff]
        %v2389 = vld [vmem:[#allocation7 + $0x378] sm:$0xff]
        %v2390 = vld [vmem:[#allocation7 + $0x380] sm:$0xff]
        %v2391 = vld [vmem:[#allocation7 + $0x388] sm:$0xff]
        %v2392 = vld [vmem:[#allocation7 + $0x390] sm:$0xff]
        %v2393 = vld [vmem:[#allocation7 + $0x398] sm:$0xff]
        %v2394 = vld [vmem:[#allocation7 + $0x3a0] sm:$0xff]
        %v2395 = vld [vmem:[#allocation7 + $0x3a8] sm:$0xff]
        %v2396 = vld [vmem:[#allocation7 + $0x3b0] sm:$0xff]
        %v2397 = vld [vmem:[#allocation7 + $0x3b8] sm:$0xff]
        %v2398 = vld [vmem:[#allocation7 + $0x3c0] sm:$0xff]
        %v2399 = vld [vmem:[#allocation7 + $0x3c8] sm:$0xff]
        %v2400 = vld [vmem:[#allocation7 + $0x3d0] sm:$0xff]
        %v2401 = vld [vmem:[#allocation7 + $0x3d8] sm:$0xff]
        %v2402 = vld [vmem:[#allocation7 + $0x3e0] sm:$0xff]
        %v2403 = vld [vmem:[#allocation7 + $0x3e8] sm:$0xff]
        %v2404 = vld [vmem:[#allocation7 + $0x3f0] sm:$0xff]
        %v2405 = vld [vmem:[#allocation7 + $0x3f8] sm:$0xff]
        %v2406 = vld [vmem:[#allocation7 + $0x400] sm:$0xff]
        %v2407 = vld [vmem:[#allocation7 + $0x408] sm:$0xff]
        %v2408 = vld [vmem:[#allocation7 + $0x410] sm:$0xff]
        %v2409 = vld [vmem:[#allocation7 + $0x418] sm:$0xff]
        %v2410 = vld [vmem:[#allocation7 + $0x420] sm:$0xff]
        %v2411 = vld [vmem:[#allocation7 + $0x428] sm:$0xff]
        %v2412 = vld [vmem:[#allocation7 + $0x430] sm:$0xff]
        %v2413 = vld [vmem:[#allocation7 + $0x438] sm:$0xff]
        %v2414 = vld [vmem:[#allocation7 + $0x440] sm:$0xff]
        %v2415 = vld [vmem:[#allocation7 + $0x448] sm:$0xff]
        %v2416 = vld [vmem:[#allocation7 + $0x450] sm:$0xff]
        %v2417 = vld [vmem:[#allocation7 + $0x458] sm:$0xff]
        %v2418 = vld [vmem:[#allocation7 + $0x460] sm:$0xff]
        %v2419 = vld [vmem:[#allocation7 + $0x468] sm:$0xff]
        %v2420 = vld [vmem:[#allocation7 + $0x470] sm:$0xff]
        %v2421 = vld [vmem:[#allocation7 + $0x478] sm:$0xff]
        %v2422 = vld [vmem:[#allocation7 + $0x480] sm:$0xff]
        %v2423 = vld [vmem:[#allocation7 + $0x488] sm:$0xff]
        %v2424 = vld [vmem:[#allocation7 + $0x490] sm:$0xff]
        %v2425 = vld [vmem:[#allocation7 + $0x498] sm:$0xff]
        %v2426 = vld [vmem:[#allocation7 + $0x4a0] sm:$0xff]
        %v2427 = vld [vmem:[#allocation7 + $0x4a8] sm:$0xff]
        %v2428 = vld [vmem:[#allocation7 + $0x4b0] sm:$0xff]
        %v2429 = vld [vmem:[#allocation7 + $0x4b8] sm:$0xff]
        %v2430 = vld [vmem:[#allocation7 + $0x4c0] sm:$0xff]
        %v2431 = vld [vmem:[#allocation7 + $0x4c8] sm:$0xff]
        %v2432 = vld [vmem:[#allocation7 + $0x4d0] sm:$0xff]
        %v2433 = vld [vmem:[#allocation7 + $0x4d8] sm:$0xff]
        %v2434 = vld [vmem:[#allocation7 + $0x4e0] sm:$0xff]
        %v2435 = vld [vmem:[#allocation7 + $0x4e8] sm:$0xff]
        %v2436 = vld [vmem:[#allocation7 + $0x4f0] sm:$0xff]
        %v2437 = vld [vmem:[#allocation7 + $0x4f8] sm:$0xff]
        %v2438 = vld [vmem:[#allocation7 + $0x500] sm:$0xff]
        %v2439 = vld [vmem:[#allocation7 + $0x508] sm:$0xff]
        %v2440 = vld [vmem:[#allocation7 + $0x510] sm:$0xff]
        %v2441 = vld [vmem:[#allocation7 + $0x518] sm:$0xff]
        %v2442 = vld [vmem:[#allocation7 + $0x520] sm:$0xff]
        %v2443 = vld [vmem:[#allocation7 + $0x528] sm:$0xff]
        %v2444 = vld [vmem:[#allocation7 + $0x530] sm:$0xff]
        %v2445 = vld [vmem:[#allocation7 + $0x538] sm:$0xff]
        %v2446 = vld [vmem:[#allocation7 + $0x540] sm:$0xff]
        %v2447 = vld [vmem:[#allocation7 + $0x548] sm:$0xff]
        %v2448 = vld [vmem:[#allocation7 + $0x550] sm:$0xff]
        %v2449 = vld [vmem:[#allocation7 + $0x558] sm:$0xff]
        %v2450 = vld [vmem:[#allocation7 + $0x560] sm:$0xff]
        %v2451 = vld [vmem:[#allocation7 + $0x568] sm:$0xff]
        %v2452 = vld [vmem:[#allocation7 + $0x570] sm:$0xff]
        %v2453 = vld [vmem:[#allocation7 + $0x578] sm:$0xff]
        %v2454 = vld [vmem:[#allocation7 + $0x580] sm:$0xff]
        %v2455 = vld [vmem:[#allocation7 + $0x588] sm:$0xff]
        %v2456 = vld [vmem:[#allocation7 + $0x590] sm:$0xff]
        %v2457 = vld [vmem:[#allocation7 + $0x598] sm:$0xff]
        %v2458 = vld [vmem:[#allocation7 + $0x5a0] sm:$0xff]
        %v2459 = vld [vmem:[#allocation7 + $0x5a8] sm:$0xff]
        %v2460 = vld [vmem:[#allocation7 + $0x5b0] sm:$0xff]
        %v2461 = vld [vmem:[#allocation7 + $0x5b8] sm:$0xff]
        %v2462 = vld [vmem:[#allocation7 + $0x5c0] sm:$0xff]
        %v2463 = vld [vmem:[#allocation7 + $0x5c8] sm:$0xff]
        %v2464 = vld [vmem:[#allocation7 + $0x5d0] sm:$0xff]
        %v2465 = vld [vmem:[#allocation7 + $0x5d8] sm:$0xff]
        %v2466 = vld [vmem:[#allocation7 + $0x5e0] sm:$0xff]
        %v2467 = vld [vmem:[#allocation7 + $0x5e8] sm:$0xff]
        %v2468 = vld [vmem:[#allocation7 + $0x5f0] sm:$0xff]
        %v2469 = vld [vmem:[#allocation7 + $0x5f8] sm:$0xff]
        %v2470 = vld [vmem:[#allocation7 + $0x600] sm:$0xff]
        %v2471 = vld [vmem:[#allocation7 + $0x608] sm:$0xff]
        %v2472 = vld [vmem:[#allocation7 + $0x610] sm:$0xff]
        %v2473 = vld [vmem:[#allocation7 + $0x618] sm:$0xff]
        %v2474 = vld [vmem:[#allocation7 + $0x620] sm:$0xff]
        %v2475 = vld [vmem:[#allocation7 + $0x628] sm:$0xff]
        %v2476 = vld [vmem:[#allocation7 + $0x630] sm:$0xff]
        %v2477 = vld [vmem:[#allocation7 + $0x638] sm:$0xff]
        %v2478 = vld [vmem:[#allocation7 + $0x640] sm:$0xff]
        %v2479 = vld [vmem:[#allocation7 + $0x648] sm:$0xff]
        %v2480 = vld [vmem:[#allocation7 + $0x650] sm:$0xff]
        %v2481 = vld [vmem:[#allocation7 + $0x658] sm:$0xff]
        %v2482 = vld [vmem:[#allocation7 + $0x660] sm:$0xff]
        %v2483 = vld [vmem:[#allocation7 + $0x668] sm:$0xff]
        %v2484 = vld [vmem:[#allocation7 + $0x670] sm:$0xff]
        %v2485 = vld [vmem:[#allocation7 + $0x678] sm:$0xff]
        %v2486 = vld [vmem:[#allocation7 + $0x680] sm:$0xff]
        %v2487 = vld [vmem:[#allocation7 + $0x688] sm:$0xff]
        %v2488 = vld [vmem:[#allocation7 + $0x690] sm:$0xff]
        %v2489 = vld [vmem:[#allocation7 + $0x698] sm:$0xff]
        %v2490 = vld [vmem:[#allocation7 + $0x6a0] sm:$0xff]
        %v2491 = vld [vmem:[#allocation7 + $0x6a8] sm:$0xff]
        %v2492 = vld [vmem:[#allocation7 + $0x6b0] sm:$0xff]
        %v2493 = vld [vmem:[#allocation7 + $0x6b8] sm:$0xff]
        %v2494 = vld [vmem:[#allocation7 + $0x6c0] sm:$0xff]
        %v2495 = vld [vmem:[#allocation7 + $0x6c8] sm:$0xff]
        %v2496 = vld [vmem:[#allocation7 + $0x6d0] sm:$0xff]
        %v2497 = vld [vmem:[#allocation7 + $0x6d8] sm:$0xff]
        %v2498 = vld [vmem:[#allocation7 + $0x6e0] sm:$0xff]
        %v2499 = vld [vmem:[#allocation7 + $0x6e8] sm:$0xff]
        %v2500 = vld [vmem:[#allocation7 + $0x6f0] sm:$0xff]
        %v2501 = vld [vmem:[#allocation7 + $0x6f8] sm:$0xff]
        %v2502 = vld [vmem:[#allocation7 + $0x700] sm:$0xff]
        %v2503 = vld [vmem:[#allocation7 + $0x708] sm:$0xff]
        %v2504 = vld [vmem:[#allocation7 + $0x710] sm:$0xff]
        %v2505 = vld [vmem:[#allocation7 + $0x718] sm:$0xff]
        %v2506 = vld [vmem:[#allocation7 + $0x720] sm:$0xff]
        %v2507 = vld [vmem:[#allocation7 + $0x728] sm:$0xff]
        %v2508 = vld [vmem:[#allocation7 + $0x730] sm:$0xff]
        %v2509 = vld [vmem:[#allocation7 + $0x738] sm:$0xff]
        %v2510 = vld [vmem:[#allocation7 + $0x740] sm:$0xff]
        %v2511 = vld [vmem:[#allocation7 + $0x748] sm:$0xff]
        %v2512 = vld [vmem:[#allocation7 + $0x750] sm:$0xff]
        %v2513 = vld [vmem:[#allocation7 + $0x758] sm:$0xff]
        %v2514 = vld [vmem:[#allocation7 + $0x760] sm:$0xff]
        %v2515 = vld [vmem:[#allocation7 + $0x768] sm:$0xff]
        %v2516 = vld [vmem:[#allocation7 + $0x770] sm:$0xff]
        %v2517 = vld [vmem:[#allocation7 + $0x778] sm:$0xff]
        %v2518 = vld [vmem:[#allocation7 + $0x780] sm:$0xff]
        %v2519 = vld [vmem:[#allocation7 + $0x788] sm:$0xff]
        %v2520 = vld [vmem:[#allocation7 + $0x790] sm:$0xff]
        %v2521 = vld [vmem:[#allocation7 + $0x798] sm:$0xff]
        %v2522 = vld [vmem:[#allocation7 + $0x7a0] sm:$0xff]
        %v2523 = vld [vmem:[#allocation7 + $0x7a8] sm:$0xff]
        %v2524 = vld [vmem:[#allocation7 + $0x7b0] sm:$0xff]
        %v2525 = vld [vmem:[#allocation7 + $0x7b8] sm:$0xff]
        %v2526 = vld [vmem:[#allocation7 + $0x7c0] sm:$0xff]
        %v2527 = vld [vmem:[#allocation7 + $0x7c8] sm:$0xff]
        %v2528 = vld [vmem:[#allocation7 + $0x7d0] sm:$0xff]
        %v2529 = vld [vmem:[#allocation7 + $0x7d8] sm:$0xff]
        %v2530 = vld [vmem:[#allocation7 + $0x7e0] sm:$0xff]
        %v2531 = vld [vmem:[#allocation7 + $0x7e8] sm:$0xff]
        %v2532 = vld [vmem:[#allocation7 + $0x7f0] sm:$0xff]
        %v2533 = vld [vmem:[#allocation7 + $0x7f8] sm:$0xff]
        %v2535 = vperm.slane %v274, 0
        %v2536 = vperm.slane %v274, 1
        %v2537 = vperm.slane %v274, 2
        %v2538 = vperm.slane %v274, 3
        %v2799 = vunpack.c.l.b16 %v2278
        %v2800 = vunpack.c.h.b16 %v2278
        %v2801 = vunpack.c.l.b16 %v2279
        %v2802 = vunpack.c.h.b16 %v2279
        %v2803 = vunpack.c.l.b16 %v2280
        %v2804 = vunpack.c.h.b16 %v2280
        %v2805 = vunpack.c.l.b16 %v2281
        %v2806 = vunpack.c.h.b16 %v2281
        %v2807 = vunpack.c.l.b16 %v2282
        %v2808 = vunpack.c.h.b16 %v2282
        %v2809 = vunpack.c.l.b16 %v2283
        %v2810 = vunpack.c.h.b16 %v2283
        %v2811 = vunpack.c.l.b16 %v2284
        %v2812 = vunpack.c.h.b16 %v2284
        %v2813 = vunpack.c.l.b16 %v2285
        %v2814 = vunpack.c.h.b16 %v2285
        %v2815 = vunpack.c.l.b16 %v2286
        %v2816 = vunpack.c.h.b16 %v2286
        %v2817 = vunpack.c.l.b16 %v2287
        %v2818 = vunpack.c.h.b16 %v2287
        %v2819 = vunpack.c.l.b16 %v2288
        %v2820 = vunpack.c.h.b16 %v2288
        %v2821 = vunpack.c.l.b16 %v2289
        %v2822 = vunpack.c.h.b16 %v2289
        %v2823 = vunpack.c.l.b16 %v2290
        %v2824 = vunpack.c.h.b16 %v2290
        %v2825 = vunpack.c.l.b16 %v2291
        %v2826 = vunpack.c.h.b16 %v2291
        %v2827 = vunpack.c.l.b16 %v2292
        %v2828 = vunpack.c.h.b16 %v2292
        %v2829 = vunpack.c.l.b16 %v2293
        %v2830 = vunpack.c.h.b16 %v2293
        %v2831 = vunpack.c.l.b16 %v2294
        %v2832 = vunpack.c.h.b16 %v2294
        %v2833 = vunpack.c.l.b16 %v2295
        %v2834 = vunpack.c.h.b16 %v2295
        %v2835 = vunpack.c.l.b16 %v2296
        %v2836 = vunpack.c.h.b16 %v2296
        %v2837 = vunpack.c.l.b16 %v2297
        %v2838 = vunpack.c.h.b16 %v2297
        %v2839 = vunpack.c.l.b16 %v2298
        %v2840 = vunpack.c.h.b16 %v2298
        %v2841 = vunpack.c.l.b16 %v2299
        %v2842 = vunpack.c.h.b16 %v2299
        %v2843 = vunpack.c.l.b16 %v2300
        %v2844 = vunpack.c.h.b16 %v2300
        %v2845 = vunpack.c.l.b16 %v2301
        %v2846 = vunpack.c.h.b16 %v2301
        %v2847 = vunpack.c.l.b16 %v2302
        %v2848 = vunpack.c.h.b16 %v2302
        %v2849 = vunpack.c.l.b16 %v2303
        %v2850 = vunpack.c.h.b16 %v2303
        %v2851 = vunpack.c.l.b16 %v2304
        %v2852 = vunpack.c.h.b16 %v2304
        %v2853 = vunpack.c.l.b16 %v2305
        %v2854 = vunpack.c.h.b16 %v2305
        %v2855 = vunpack.c.l.b16 %v2306
        %v2856 = vunpack.c.h.b16 %v2306
        %v2857 = vunpack.c.l.b16 %v2307
        %v2858 = vunpack.c.h.b16 %v2307
        %v2859 = vunpack.c.l.b16 %v2308
        %v2860 = vunpack.c.h.b16 %v2308
        %v2861 = vunpack.c.l.b16 %v2309
        %v2862 = vunpack.c.h.b16 %v2309
        %v2863 = vunpack.c.l.b16 %v2310
        %v2864 = vunpack.c.h.b16 %v2310
        %v2865 = vunpack.c.l.b16 %v2311
        %v2866 = vunpack.c.h.b16 %v2311
        %v2867 = vunpack.c.l.b16 %v2312
        %v2868 = vunpack.c.h.b16 %v2312
        %v2869 = vunpack.c.l.b16 %v2313
        %v2870 = vunpack.c.h.b16 %v2313
        %v2871 = vunpack.c.l.b16 %v2314
        %v2872 = vunpack.c.h.b16 %v2314
        %v2873 = vunpack.c.l.b16 %v2315
        %v2874 = vunpack.c.h.b16 %v2315
        %v2875 = vunpack.c.l.b16 %v2316
        %v2876 = vunpack.c.h.b16 %v2316
        %v2877 = vunpack.c.l.b16 %v2317
        %v2878 = vunpack.c.h.b16 %v2317
        %v2879 = vunpack.c.l.b16 %v2318
        %v2880 = vunpack.c.h.b16 %v2318
        %v2881 = vunpack.c.l.b16 %v2319
        %v2882 = vunpack.c.h.b16 %v2319
        %v2883 = vunpack.c.l.b16 %v2320
        %v2884 = vunpack.c.h.b16 %v2320
        %v2885 = vunpack.c.l.b16 %v2321
        %v2886 = vunpack.c.h.b16 %v2321
        %v2887 = vunpack.c.l.b16 %v2322
        %v2888 = vunpack.c.h.b16 %v2322
        %v2889 = vunpack.c.l.b16 %v2323
        %v2890 = vunpack.c.h.b16 %v2323
        %v2891 = vunpack.c.l.b16 %v2324
        %v2892 = vunpack.c.h.b16 %v2324
        %v2893 = vunpack.c.l.b16 %v2325
        %v2894 = vunpack.c.h.b16 %v2325
        %v2895 = vunpack.c.l.b16 %v2326
        %v2896 = vunpack.c.h.b16 %v2326
        %v2897 = vunpack.c.l.b16 %v2327
        %v2898 = vunpack.c.h.b16 %v2327
        %v2899 = vunpack.c.l.b16 %v2328
        %v2900 = vunpack.c.h.b16 %v2328
        %v2901 = vunpack.c.l.b16 %v2329
        %v2902 = vunpack.c.h.b16 %v2329
        %v2903 = vunpack.c.l.b16 %v2330
        %v2904 = vunpack.c.h.b16 %v2330
        %v2905 = vunpack.c.l.b16 %v2331
        %v2906 = vunpack.c.h.b16 %v2331
        %v2907 = vunpack.c.l.b16 %v2332
        %v2908 = vunpack.c.h.b16 %v2332
        %v2909 = vunpack.c.l.b16 %v2333
        %v2910 = vunpack.c.h.b16 %v2333
        %v2911 = vunpack.c.l.b16 %v2334
        %v2912 = vunpack.c.h.b16 %v2334
        %v2913 = vunpack.c.l.b16 %v2335
        %v2914 = vunpack.c.h.b16 %v2335
        %v2915 = vunpack.c.l.b16 %v2336
        %v2916 = vunpack.c.h.b16 %v2336
        %v2917 = vunpack.c.l.b16 %v2337
        %v2918 = vunpack.c.h.b16 %v2337
        %v2919 = vunpack.c.l.b16 %v2338
        %v2920 = vunpack.c.h.b16 %v2338
        %v2921 = vunpack.c.l.b16 %v2339
        %v2922 = vunpack.c.h.b16 %v2339
        %v2923 = vunpack.c.l.b16 %v2340
        %v2924 = vunpack.c.h.b16 %v2340
        %v2925 = vunpack.c.l.b16 %v2341
        %v2926 = vunpack.c.h.b16 %v2341
        %v2927 = vunpack.c.l.b16 %v2342
        %v2928 = vunpack.c.h.b16 %v2342
        %v2929 = vunpack.c.l.b16 %v2343
        %v2930 = vunpack.c.h.b16 %v2343
        %v2931 = vunpack.c.l.b16 %v2344
        %v2932 = vunpack.c.h.b16 %v2344
        %v2933 = vunpack.c.l.b16 %v2345
        %v2934 = vunpack.c.h.b16 %v2345
        %v2935 = vunpack.c.l.b16 %v2346
        %v2936 = vunpack.c.h.b16 %v2346
        %v2937 = vunpack.c.l.b16 %v2347
        %v2938 = vunpack.c.h.b16 %v2347
        %v2939 = vunpack.c.l.b16 %v2348
        %v2940 = vunpack.c.h.b16 %v2348
        %v2941 = vunpack.c.l.b16 %v2349
        %v2942 = vunpack.c.h.b16 %v2349
        %v2943 = vunpack.c.l.b16 %v2350
        %v2944 = vunpack.c.h.b16 %v2350
        %v2945 = vunpack.c.l.b16 %v2351
        %v2946 = vunpack.c.h.b16 %v2351
        %v2947 = vunpack.c.l.b16 %v2352
        %v2948 = vunpack.c.h.b16 %v2352
        %v2949 = vunpack.c.l.b16 %v2353
        %v2950 = vunpack.c.h.b16 %v2353
        %v2951 = vunpack.c.l.b16 %v2354
        %v2952 = vunpack.c.h.b16 %v2354
        %v2953 = vunpack.c.l.b16 %v2355
        %v2954 = vunpack.c.h.b16 %v2355
        %v2955 = vunpack.c.l.b16 %v2356
        %v2956 = vunpack.c.h.b16 %v2356
        %v2957 = vunpack.c.l.b16 %v2357
        %v2958 = vunpack.c.h.b16 %v2357
        %v2959 = vunpack.c.l.b16 %v2358
        %v2960 = vunpack.c.h.b16 %v2358
        %v2961 = vunpack.c.l.b16 %v2359
        %v2962 = vunpack.c.h.b16 %v2359
        %v2963 = vunpack.c.l.b16 %v2360
        %v2964 = vunpack.c.h.b16 %v2360
        %v2965 = vunpack.c.l.b16 %v2361
        %v2966 = vunpack.c.h.b16 %v2361
        %v2967 = vunpack.c.l.b16 %v2362
        %v2968 = vunpack.c.h.b16 %v2362
        %v2969 = vunpack.c.l.b16 %v2363
        %v2970 = vunpack.c.h.b16 %v2363
        %v2971 = vunpack.c.l.b16 %v2364
        %v2972 = vunpack.c.h.b16 %v2364
        %v2973 = vunpack.c.l.b16 %v2365
        %v2974 = vunpack.c.h.b16 %v2365
        %v2975 = vunpack.c.l.b16 %v2366
        %v2976 = vunpack.c.h.b16 %v2366
        %v2977 = vunpack.c.l.b16 %v2367
        %v2978 = vunpack.c.h.b16 %v2367
        %v2979 = vunpack.c.l.b16 %v2368
        %v2980 = vunpack.c.h.b16 %v2368
        %v2981 = vunpack.c.l.b16 %v2369
        %v2982 = vunpack.c.h.b16 %v2369
        %v2983 = vunpack.c.l.b16 %v2370
        %v2984 = vunpack.c.h.b16 %v2370
        %v2985 = vunpack.c.l.b16 %v2371
        %v2986 = vunpack.c.h.b16 %v2371
        %v2987 = vunpack.c.l.b16 %v2372
        %v2988 = vunpack.c.h.b16 %v2372
        %v2989 = vunpack.c.l.b16 %v2373
        %v2990 = vunpack.c.h.b16 %v2373
        %v2991 = vunpack.c.l.b16 %v2374
        %v2992 = vunpack.c.h.b16 %v2374
        %v2993 = vunpack.c.l.b16 %v2375
        %v2994 = vunpack.c.h.b16 %v2375
        %v2995 = vunpack.c.l.b16 %v2376
        %v2996 = vunpack.c.h.b16 %v2376
        %v2997 = vunpack.c.l.b16 %v2377
        %v2998 = vunpack.c.h.b16 %v2377
        %v2999 = vunpack.c.l.b16 %v2378
        %v3000 = vunpack.c.h.b16 %v2378
        %v3001 = vunpack.c.l.b16 %v2379
        %v3002 = vunpack.c.h.b16 %v2379
        %v3003 = vunpack.c.l.b16 %v2380
        %v3004 = vunpack.c.h.b16 %v2380
        %v3005 = vunpack.c.l.b16 %v2381
        %v3006 = vunpack.c.h.b16 %v2381
        %v3007 = vunpack.c.l.b16 %v2382
        %v3008 = vunpack.c.h.b16 %v2382
        %v3009 = vunpack.c.l.b16 %v2383
        %v3010 = vunpack.c.h.b16 %v2383
        %v3011 = vunpack.c.l.b16 %v2384
        %v3012 = vunpack.c.h.b16 %v2384
        %v3013 = vunpack.c.l.b16 %v2385
        %v3014 = vunpack.c.h.b16 %v2385
        %v3015 = vunpack.c.l.b16 %v2386
        %v3016 = vunpack.c.h.b16 %v2386
        %v3017 = vunpack.c.l.b16 %v2387
        %v3018 = vunpack.c.h.b16 %v2387
        %v3019 = vunpack.c.l.b16 %v2388
        %v3020 = vunpack.c.h.b16 %v2388
        %v3021 = vunpack.c.l.b16 %v2389
        %v3022 = vunpack.c.h.b16 %v2389
        %v3023 = vunpack.c.l.b16 %v2390
        %v3024 = vunpack.c.h.b16 %v2390
        %v3025 = vunpack.c.l.b16 %v2391
        %v3026 = vunpack.c.h.b16 %v2391
        %v3027 = vunpack.c.l.b16 %v2392
        %v3028 = vunpack.c.h.b16 %v2392
        %v3029 = vunpack.c.l.b16 %v2393
        %v3030 = vunpack.c.h.b16 %v2393
        %v3031 = vunpack.c.l.b16 %v2394
        %v3032 = vunpack.c.h.b16 %v2394
        %v3033 = vunpack.c.l.b16 %v2395
        %v3034 = vunpack.c.h.b16 %v2395
        %v3035 = vunpack.c.l.b16 %v2396
        %v3036 = vunpack.c.h.b16 %v2396
        %v3037 = vunpack.c.l.b16 %v2397
        %v3038 = vunpack.c.h.b16 %v2397
        %v3039 = vunpack.c.l.b16 %v2398
        %v3040 = vunpack.c.h.b16 %v2398
        %v3041 = vunpack.c.l.b16 %v2399
        %v3042 = vunpack.c.h.b16 %v2399
        %v3043 = vunpack.c.l.b16 %v2400
        %v3044 = vunpack.c.h.b16 %v2400
        %v3045 = vunpack.c.l.b16 %v2401
        %v3046 = vunpack.c.h.b16 %v2401
        %v3047 = vunpack.c.l.b16 %v2402
        %v3048 = vunpack.c.h.b16 %v2402
        %v3049 = vunpack.c.l.b16 %v2403
        %v3050 = vunpack.c.h.b16 %v2403
        %v3051 = vunpack.c.l.b16 %v2404
        %v3052 = vunpack.c.h.b16 %v2404
        %v3053 = vunpack.c.l.b16 %v2405
        %v3054 = vunpack.c.h.b16 %v2405
        %v3055 = vunpack.c.l.b16 %v2406
        %v3056 = vunpack.c.h.b16 %v2406
        %v3057 = vunpack.c.l.b16 %v2407
        %v3058 = vunpack.c.h.b16 %v2407
        %v3059 = vunpack.c.l.b16 %v2408
        %v3060 = vunpack.c.h.b16 %v2408
        %v3061 = vunpack.c.l.b16 %v2409
        %v3062 = vunpack.c.h.b16 %v2409
        %v3063 = vunpack.c.l.b16 %v2410
        %v3064 = vunpack.c.h.b16 %v2410
        %v3065 = vunpack.c.l.b16 %v2411
        %v3066 = vunpack.c.h.b16 %v2411
        %v3067 = vunpack.c.l.b16 %v2412
        %v3068 = vunpack.c.h.b16 %v2412
        %v3069 = vunpack.c.l.b16 %v2413
        %v3070 = vunpack.c.h.b16 %v2413
        %v3071 = vunpack.c.l.b16 %v2414
        %v3072 = vunpack.c.h.b16 %v2414
        %v3073 = vunpack.c.l.b16 %v2415
        %v3074 = vunpack.c.h.b16 %v2415
        %v3075 = vunpack.c.l.b16 %v2416
        %v3076 = vunpack.c.h.b16 %v2416
        %v3077 = vunpack.c.l.b16 %v2417
        %v3078 = vunpack.c.h.b16 %v2417
        %v3079 = vunpack.c.l.b16 %v2418
        %v3080 = vunpack.c.h.b16 %v2418
        %v3081 = vunpack.c.l.b16 %v2419
        %v3082 = vunpack.c.h.b16 %v2419
        %v3083 = vunpack.c.l.b16 %v2420
        %v3084 = vunpack.c.h.b16 %v2420
        %v3085 = vunpack.c.l.b16 %v2421
        %v3086 = vunpack.c.h.b16 %v2421
        %v3087 = vunpack.c.l.b16 %v2422
        %v3088 = vunpack.c.h.b16 %v2422
        %v3089 = vunpack.c.l.b16 %v2423
        %v3090 = vunpack.c.h.b16 %v2423
        %v3091 = vunpack.c.l.b16 %v2424
        %v3092 = vunpack.c.h.b16 %v2424
        %v3093 = vunpack.c.l.b16 %v2425
        %v3094 = vunpack.c.h.b16 %v2425
        %v3095 = vunpack.c.l.b16 %v2426
        %v3096 = vunpack.c.h.b16 %v2426
        %v3097 = vunpack.c.l.b16 %v2427
        %v3098 = vunpack.c.h.b16 %v2427
        %v3099 = vunpack.c.l.b16 %v2428
        %v3100 = vunpack.c.h.b16 %v2428
        %v3101 = vunpack.c.l.b16 %v2429
        %v3102 = vunpack.c.h.b16 %v2429
        %v3103 = vunpack.c.l.b16 %v2430
        %v3104 = vunpack.c.h.b16 %v2430
        %v3105 = vunpack.c.l.b16 %v2431
        %v3106 = vunpack.c.h.b16 %v2431
        %v3107 = vunpack.c.l.b16 %v2432
        %v3108 = vunpack.c.h.b16 %v2432
        %v3109 = vunpack.c.l.b16 %v2433
        %v3110 = vunpack.c.h.b16 %v2433
        %v3111 = vunpack.c.l.b16 %v2434
        %v3112 = vunpack.c.h.b16 %v2434
        %v3113 = vunpack.c.l.b16 %v2435
        %v3114 = vunpack.c.h.b16 %v2435
        %v3115 = vunpack.c.l.b16 %v2436
        %v3116 = vunpack.c.h.b16 %v2436
        %v3117 = vunpack.c.l.b16 %v2437
        %v3118 = vunpack.c.h.b16 %v2437
        %v3119 = vunpack.c.l.b16 %v2438
        %v3120 = vunpack.c.h.b16 %v2438
        %v3121 = vunpack.c.l.b16 %v2439
        %v3122 = vunpack.c.h.b16 %v2439
        %v3123 = vunpack.c.l.b16 %v2440
        %v3124 = vunpack.c.h.b16 %v2440
        %v3125 = vunpack.c.l.b16 %v2441
        %v3126 = vunpack.c.h.b16 %v2441
        %v3127 = vunpack.c.l.b16 %v2442
        %v3128 = vunpack.c.h.b16 %v2442
        %v3129 = vunpack.c.l.b16 %v2443
        %v3130 = vunpack.c.h.b16 %v2443
        %v3131 = vunpack.c.l.b16 %v2444
        %v3132 = vunpack.c.h.b16 %v2444
        %v3133 = vunpack.c.l.b16 %v2445
        %v3134 = vunpack.c.h.b16 %v2445
        %v3135 = vunpack.c.l.b16 %v2446
        %v3136 = vunpack.c.h.b16 %v2446
        %v3137 = vunpack.c.l.b16 %v2447
        %v3138 = vunpack.c.h.b16 %v2447
        %v3139 = vunpack.c.l.b16 %v2448
        %v3140 = vunpack.c.h.b16 %v2448
        %v3141 = vunpack.c.l.b16 %v2449
        %v3142 = vunpack.c.h.b16 %v2449
        %v3143 = vunpack.c.l.b16 %v2450
        %v3144 = vunpack.c.h.b16 %v2450
        %v3145 = vunpack.c.l.b16 %v2451
        %v3146 = vunpack.c.h.b16 %v2451
        %v3147 = vunpack.c.l.b16 %v2452
        %v3148 = vunpack.c.h.b16 %v2452
        %v3149 = vunpack.c.l.b16 %v2453
        %v3150 = vunpack.c.h.b16 %v2453
        %v3151 = vunpack.c.l.b16 %v2454
        %v3152 = vunpack.c.h.b16 %v2454
        %v3153 = vunpack.c.l.b16 %v2455
        %v3154 = vunpack.c.h.b16 %v2455
        %v3155 = vunpack.c.l.b16 %v2456
        %v3156 = vunpack.c.h.b16 %v2456
        %v3157 = vunpack.c.l.b16 %v2457
        %v3158 = vunpack.c.h.b16 %v2457
        %v3159 = vunpack.c.l.b16 %v2458
        %v3160 = vunpack.c.h.b16 %v2458
        %v3161 = vunpack.c.l.b16 %v2459
        %v3162 = vunpack.c.h.b16 %v2459
        %v3163 = vunpack.c.l.b16 %v2460
        %v3164 = vunpack.c.h.b16 %v2460
        %v3165 = vunpack.c.l.b16 %v2461
        %v3166 = vunpack.c.h.b16 %v2461
        %v3167 = vunpack.c.l.b16 %v2462
        %v3168 = vunpack.c.h.b16 %v2462
        %v3169 = vunpack.c.l.b16 %v2463
        %v3170 = vunpack.c.h.b16 %v2463
        %v3171 = vunpack.c.l.b16 %v2464
        %v3172 = vunpack.c.h.b16 %v2464
        %v3173 = vunpack.c.l.b16 %v2465
        %v3174 = vunpack.c.h.b16 %v2465
        %v3175 = vunpack.c.l.b16 %v2466
        %v3176 = vunpack.c.h.b16 %v2466
        %v3177 = vunpack.c.l.b16 %v2467
        %v3178 = vunpack.c.h.b16 %v2467
        %v3179 = vunpack.c.l.b16 %v2468
        %v3180 = vunpack.c.h.b16 %v2468
        %v3181 = vunpack.c.l.b16 %v2469
        %v3182 = vunpack.c.h.b16 %v2469
        %v3183 = vunpack.c.l.b16 %v2470
        %v3184 = vunpack.c.h.b16 %v2470
        %v3185 = vunpack.c.l.b16 %v2471
        %v3186 = vunpack.c.h.b16 %v2471
        %v3187 = vunpack.c.l.b16 %v2472
        %v3188 = vunpack.c.h.b16 %v2472
        %v3189 = vunpack.c.l.b16 %v2473
        %v3190 = vunpack.c.h.b16 %v2473
        %v3191 = vunpack.c.l.b16 %v2474
        %v3192 = vunpack.c.h.b16 %v2474
        %v3193 = vunpack.c.l.b16 %v2475
        %v3194 = vunpack.c.h.b16 %v2475
        %v3195 = vunpack.c.l.b16 %v2476
        %v3196 = vunpack.c.h.b16 %v2476
        %v3197 = vunpack.c.l.b16 %v2477
        %v3198 = vunpack.c.h.b16 %v2477
        %v3199 = vunpack.c.l.b16 %v2478
        %v3200 = vunpack.c.h.b16 %v2478
        %v3201 = vunpack.c.l.b16 %v2479
        %v3202 = vunpack.c.h.b16 %v2479
        %v3203 = vunpack.c.l.b16 %v2480
        %v3204 = vunpack.c.h.b16 %v2480
        %v3205 = vunpack.c.l.b16 %v2481
        %v3206 = vunpack.c.h.b16 %v2481
        %v3207 = vunpack.c.l.b16 %v2482
        %v3208 = vunpack.c.h.b16 %v2482
        %v3209 = vunpack.c.l.b16 %v2483
        %v3210 = vunpack.c.h.b16 %v2483
        %v3211 = vunpack.c.l.b16 %v2484
        %v3212 = vunpack.c.h.b16 %v2484
        %v3213 = vunpack.c.l.b16 %v2485
        %v3214 = vunpack.c.h.b16 %v2485
        %v3215 = vunpack.c.l.b16 %v2486
        %v3216 = vunpack.c.h.b16 %v2486
        %v3217 = vunpack.c.l.b16 %v2487
        %v3218 = vunpack.c.h.b16 %v2487
        %v3219 = vunpack.c.l.b16 %v2488
        %v3220 = vunpack.c.h.b16 %v2488
        %v3221 = vunpack.c.l.b16 %v2489
        %v3222 = vunpack.c.h.b16 %v2489
        %v3223 = vunpack.c.l.b16 %v2490
        %v3224 = vunpack.c.h.b16 %v2490
        %v3225 = vunpack.c.l.b16 %v2491
        %v3226 = vunpack.c.h.b16 %v2491
        %v3227 = vunpack.c.l.b16 %v2492
        %v3228 = vunpack.c.h.b16 %v2492
        %v3229 = vunpack.c.l.b16 %v2493
        %v3230 = vunpack.c.h.b16 %v2493
        %v3231 = vunpack.c.l.b16 %v2494
        %v3232 = vunpack.c.h.b16 %v2494
        %v3233 = vunpack.c.l.b16 %v2495
        %v3234 = vunpack.c.h.b16 %v2495
        %v3235 = vunpack.c.l.b16 %v2496
        %v3236 = vunpack.c.h.b16 %v2496
        %v3237 = vunpack.c.l.b16 %v2497
        %v3238 = vunpack.c.h.b16 %v2497
        %v3239 = vunpack.c.l.b16 %v2498
        %v3240 = vunpack.c.h.b16 %v2498
        %v3241 = vunpack.c.l.b16 %v2499
        %v3242 = vunpack.c.h.b16 %v2499
        %v3243 = vunpack.c.l.b16 %v2500
        %v3244 = vunpack.c.h.b16 %v2500
        %v3245 = vunpack.c.l.b16 %v2501
        %v3246 = vunpack.c.h.b16 %v2501
        %v3247 = vunpack.c.l.b16 %v2502
        %v3248 = vunpack.c.h.b16 %v2502
        %v3249 = vunpack.c.l.b16 %v2503
        %v3250 = vunpack.c.h.b16 %v2503
        %v3251 = vunpack.c.l.b16 %v2504
        %v3252 = vunpack.c.h.b16 %v2504
        %v3253 = vunpack.c.l.b16 %v2505
        %v3254 = vunpack.c.h.b16 %v2505
        %v3255 = vunpack.c.l.b16 %v2506
        %v3256 = vunpack.c.h.b16 %v2506
        %v3257 = vunpack.c.l.b16 %v2507
        %v3258 = vunpack.c.h.b16 %v2507
        %v3259 = vunpack.c.l.b16 %v2508
        %v3260 = vunpack.c.h.b16 %v2508
        %v3261 = vunpack.c.l.b16 %v2509
        %v3262 = vunpack.c.h.b16 %v2509
        %v3263 = vunpack.c.l.b16 %v2510
        %v3264 = vunpack.c.h.b16 %v2510
        %v3265 = vunpack.c.l.b16 %v2511
        %v3266 = vunpack.c.h.b16 %v2511
        %v3267 = vunpack.c.l.b16 %v2512
        %v3268 = vunpack.c.h.b16 %v2512
        %v3269 = vunpack.c.l.b16 %v2513
        %v3270 = vunpack.c.h.b16 %v2513
        %v3271 = vunpack.c.l.b16 %v2514
        %v3272 = vunpack.c.h.b16 %v2514
        %v3273 = vunpack.c.l.b16 %v2515
        %v3274 = vunpack.c.h.b16 %v2515
        %v3275 = vunpack.c.l.b16 %v2516
        %v3276 = vunpack.c.h.b16 %v2516
        %v3277 = vunpack.c.l.b16 %v2517
        %v3278 = vunpack.c.h.b16 %v2517
        %v3279 = vunpack.c.l.b16 %v2518
        %v3280 = vunpack.c.h.b16 %v2518
        %v3281 = vunpack.c.l.b16 %v2519
        %v3282 = vunpack.c.h.b16 %v2519
        %v3283 = vunpack.c.l.b16 %v2520
        %v3284 = vunpack.c.h.b16 %v2520
        %v3285 = vunpack.c.l.b16 %v2521
        %v3286 = vunpack.c.h.b16 %v2521
        %v3287 = vunpack.c.l.b16 %v2522
        %v3288 = vunpack.c.h.b16 %v2522
        %v3289 = vunpack.c.l.b16 %v2523
        %v3290 = vunpack.c.h.b16 %v2523
        %v3291 = vunpack.c.l.b16 %v2524
        %v3292 = vunpack.c.h.b16 %v2524
        %v3293 = vunpack.c.l.b16 %v2525
        %v3294 = vunpack.c.h.b16 %v2525
        %v3295 = vunpack.c.l.b16 %v2526
        %v3296 = vunpack.c.h.b16 %v2526
        %v3297 = vunpack.c.l.b16 %v2527
        %v3298 = vunpack.c.h.b16 %v2527
        %v3299 = vunpack.c.l.b16 %v2528
        %v3300 = vunpack.c.h.b16 %v2528
        %v3301 = vunpack.c.l.b16 %v2529
        %v3302 = vunpack.c.h.b16 %v2529
        %v3303 = vunpack.c.l.b16 %v2530
        %v3304 = vunpack.c.h.b16 %v2530
        %v3305 = vunpack.c.l.b16 %v2531
        %v3306 = vunpack.c.h.b16 %v2531
        %v3307 = vunpack.c.l.b16 %v2532
        %v3308 = vunpack.c.h.b16 %v2532
        %v3309 = vunpack.c.l.b16 %v2533
        %v3310 = vunpack.c.h.b16 %v2533
        %v3311 = vpack.c.b16 %v2803, %v2799
        %v3312 = vpack.c.b16 %v2804, %v2800
        %v3313 = vpack.c.b16 %v2805, %v2801
        %v3314 = vpack.c.b16 %v2806, %v2802
        %v3315 = vpack.c.b16 %v2811, %v2807
        %v3316 = vpack.c.b16 %v2812, %v2808
        %v3317 = vpack.c.b16 %v2813, %v2809
        %v3318 = vpack.c.b16 %v2814, %v2810
        %v3319 = vpack.c.b16 %v2819, %v2815
        %v3320 = vpack.c.b16 %v2820, %v2816
        %v3321 = vpack.c.b16 %v2821, %v2817
        %v3322 = vpack.c.b16 %v2822, %v2818
        %v3323 = vpack.c.b16 %v2827, %v2823
        %v3324 = vpack.c.b16 %v2828, %v2824
        %v3325 = vpack.c.b16 %v2829, %v2825
        %v3326 = vpack.c.b16 %v2830, %v2826
        %v3327 = vpack.c.b16 %v2835, %v2831
        %v3328 = vpack.c.b16 %v2836, %v2832
        %v3329 = vpack.c.b16 %v2837, %v2833
        %v3330 = vpack.c.b16 %v2838, %v2834
        %v3331 = vpack.c.b16 %v2843, %v2839
        %v3332 = vpack.c.b16 %v2844, %v2840
        %v3333 = vpack.c.b16 %v2845, %v2841
        %v3334 = vpack.c.b16 %v2846, %v2842
        %v3335 = vpack.c.b16 %v2851, %v2847
        %v3336 = vpack.c.b16 %v2852, %v2848
        %v3337 = vpack.c.b16 %v2853, %v2849
        %v3338 = vpack.c.b16 %v2854, %v2850
        %v3339 = vpack.c.b16 %v2859, %v2855
        %v3340 = vpack.c.b16 %v2860, %v2856
        %v3341 = vpack.c.b16 %v2861, %v2857
        %v3342 = vpack.c.b16 %v2862, %v2858
        %v3343 = vpack.c.b16 %v2867, %v2863
        %v3344 = vpack.c.b16 %v2868, %v2864
        %v3345 = vpack.c.b16 %v2869, %v2865
        %v3346 = vpack.c.b16 %v2870, %v2866
        %v3347 = vpack.c.b16 %v2875, %v2871
        %v3348 = vpack.c.b16 %v2876, %v2872
        %v3349 = vpack.c.b16 %v2877, %v2873
        %v3350 = vpack.c.b16 %v2878, %v2874
        %v3351 = vpack.c.b16 %v2883, %v2879
        %v3352 = vpack.c.b16 %v2884, %v2880
        %v3353 = vpack.c.b16 %v2885, %v2881
        %v3354 = vpack.c.b16 %v2886, %v2882
        %v3355 = vpack.c.b16 %v2891, %v2887
        %v3356 = vpack.c.b16 %v2892, %v2888
        %v3357 = vpack.c.b16 %v2893, %v2889
        %v3358 = vpack.c.b16 %v2894, %v2890
        %v3359 = vpack.c.b16 %v2899, %v2895
        %v3360 = vpack.c.b16 %v2900, %v2896
        %v3361 = vpack.c.b16 %v2901, %v2897
        %v3362 = vpack.c.b16 %v2902, %v2898
        %v3363 = vpack.c.b16 %v2907, %v2903
        %v3364 = vpack.c.b16 %v2908, %v2904
        %v3365 = vpack.c.b16 %v2909, %v2905
        %v3366 = vpack.c.b16 %v2910, %v2906
        %v3367 = vpack.c.b16 %v2915, %v2911
        %v3368 = vpack.c.b16 %v2916, %v2912
        %v3369 = vpack.c.b16 %v2917, %v2913
        %v3370 = vpack.c.b16 %v2918, %v2914
        %v3371 = vpack.c.b16 %v2923, %v2919
        %v3372 = vpack.c.b16 %v2924, %v2920
        %v3373 = vpack.c.b16 %v2925, %v2921
        %v3374 = vpack.c.b16 %v2926, %v2922
        %v3375 = vpack.c.b16 %v2931, %v2927
        %v3376 = vpack.c.b16 %v2932, %v2928
        %v3377 = vpack.c.b16 %v2933, %v2929
        %v3378 = vpack.c.b16 %v2934, %v2930
        %v3379 = vpack.c.b16 %v2939, %v2935
        %v3380 = vpack.c.b16 %v2940, %v2936
        %v3381 = vpack.c.b16 %v2941, %v2937
        %v3382 = vpack.c.b16 %v2942, %v2938
        %v3383 = vpack.c.b16 %v2947, %v2943
        %v3384 = vpack.c.b16 %v2948, %v2944
        %v3385 = vpack.c.b16 %v2949, %v2945
        %v3386 = vpack.c.b16 %v2950, %v2946
        %v3387 = vpack.c.b16 %v2955, %v2951
        %v3388 = vpack.c.b16 %v2956, %v2952
        %v3389 = vpack.c.b16 %v2957, %v2953
        %v3390 = vpack.c.b16 %v2958, %v2954
        %v3391 = vpack.c.b16 %v2963, %v2959
        %v3392 = vpack.c.b16 %v2964, %v2960
        %v3393 = vpack.c.b16 %v2965, %v2961
        %v3394 = vpack.c.b16 %v2966, %v2962
        %v3395 = vpack.c.b16 %v2971, %v2967
        %v3396 = vpack.c.b16 %v2972, %v2968
        %v3397 = vpack.c.b16 %v2973, %v2969
        %v3398 = vpack.c.b16 %v2974, %v2970
        %v3399 = vpack.c.b16 %v2979, %v2975
        %v3400 = vpack.c.b16 %v2980, %v2976
        %v3401 = vpack.c.b16 %v2981, %v2977
        %v3402 = vpack.c.b16 %v2982, %v2978
        %v3403 = vpack.c.b16 %v2987, %v2983
        %v3404 = vpack.c.b16 %v2988, %v2984
        %v3405 = vpack.c.b16 %v2989, %v2985
        %v3406 = vpack.c.b16 %v2990, %v2986
        %v3407 = vpack.c.b16 %v2995, %v2991
        %v3408 = vpack.c.b16 %v2996, %v2992
        %v3409 = vpack.c.b16 %v2997, %v2993
        %v3410 = vpack.c.b16 %v2998, %v2994
        %v3411 = vpack.c.b16 %v3003, %v2999
        %v3412 = vpack.c.b16 %v3004, %v3000
        %v3413 = vpack.c.b16 %v3005, %v3001
        %v3414 = vpack.c.b16 %v3006, %v3002
        %v3415 = vpack.c.b16 %v3011, %v3007
        %v3416 = vpack.c.b16 %v3012, %v3008
        %v3417 = vpack.c.b16 %v3013, %v3009
        %v3418 = vpack.c.b16 %v3014, %v3010
        %v3419 = vpack.c.b16 %v3019, %v3015
        %v3420 = vpack.c.b16 %v3020, %v3016
        %v3421 = vpack.c.b16 %v3021, %v3017
        %v3422 = vpack.c.b16 %v3022, %v3018
        %v3423 = vpack.c.b16 %v3027, %v3023
        %v3424 = vpack.c.b16 %v3028, %v3024
        %v3425 = vpack.c.b16 %v3029, %v3025
        %v3426 = vpack.c.b16 %v3030, %v3026
        %v3427 = vpack.c.b16 %v3035, %v3031
        %v3428 = vpack.c.b16 %v3036, %v3032
        %v3429 = vpack.c.b16 %v3037, %v3033
        %v3430 = vpack.c.b16 %v3038, %v3034
        %v3431 = vpack.c.b16 %v3043, %v3039
        %v3432 = vpack.c.b16 %v3044, %v3040
        %v3433 = vpack.c.b16 %v3045, %v3041
        %v3434 = vpack.c.b16 %v3046, %v3042
        %v3435 = vpack.c.b16 %v3051, %v3047
        %v3436 = vpack.c.b16 %v3052, %v3048
        %v3437 = vpack.c.b16 %v3053, %v3049
        %v3438 = vpack.c.b16 %v3054, %v3050
        %v3439 = vpack.c.b16 %v3059, %v3055
        %v3440 = vpack.c.b16 %v3060, %v3056
        %v3441 = vpack.c.b16 %v3061, %v3057
        %v3442 = vpack.c.b16 %v3062, %v3058
        %v3443 = vpack.c.b16 %v3067, %v3063
        %v3444 = vpack.c.b16 %v3068, %v3064
        %v3445 = vpack.c.b16 %v3069, %v3065
        %v3446 = vpack.c.b16 %v3070, %v3066
        %v3447 = vpack.c.b16 %v3075, %v3071
        %v3448 = vpack.c.b16 %v3076, %v3072
        %v3449 = vpack.c.b16 %v3077, %v3073
        %v3450 = vpack.c.b16 %v3078, %v3074
        %v3451 = vpack.c.b16 %v3083, %v3079
        %v3452 = vpack.c.b16 %v3084, %v3080
        %v3453 = vpack.c.b16 %v3085, %v3081
        %v3454 = vpack.c.b16 %v3086, %v3082
        %v3455 = vpack.c.b16 %v3091, %v3087
        %v3456 = vpack.c.b16 %v3092, %v3088
        %v3457 = vpack.c.b16 %v3093, %v3089
        %v3458 = vpack.c.b16 %v3094, %v3090
        %v3459 = vpack.c.b16 %v3099, %v3095
        %v3460 = vpack.c.b16 %v3100, %v3096
        %v3461 = vpack.c.b16 %v3101, %v3097
        %v3462 = vpack.c.b16 %v3102, %v3098
        %v3463 = vpack.c.b16 %v3107, %v3103
        %v3464 = vpack.c.b16 %v3108, %v3104
        %v3465 = vpack.c.b16 %v3109, %v3105
        %v3466 = vpack.c.b16 %v3110, %v3106
        %v3467 = vpack.c.b16 %v3115, %v3111
        %v3468 = vpack.c.b16 %v3116, %v3112
        %v3469 = vpack.c.b16 %v3117, %v3113
        %v3470 = vpack.c.b16 %v3118, %v3114
        %v3471 = vpack.c.b16 %v3123, %v3119
        %v3472 = vpack.c.b16 %v3124, %v3120
        %v3473 = vpack.c.b16 %v3125, %v3121
        %v3474 = vpack.c.b16 %v3126, %v3122
        %v3475 = vpack.c.b16 %v3131, %v3127
        %v3476 = vpack.c.b16 %v3132, %v3128
        %v3477 = vpack.c.b16 %v3133, %v3129
        %v3478 = vpack.c.b16 %v3134, %v3130
        %v3479 = vpack.c.b16 %v3139, %v3135
        %v3480 = vpack.c.b16 %v3140, %v3136
        %v3481 = vpack.c.b16 %v3141, %v3137
        %v3482 = vpack.c.b16 %v3142, %v3138
        %v3483 = vpack.c.b16 %v3147, %v3143
        %v3484 = vpack.c.b16 %v3148, %v3144
        %v3485 = vpack.c.b16 %v3149, %v3145
        %v3486 = vpack.c.b16 %v3150, %v3146
        %v3487 = vpack.c.b16 %v3155, %v3151
        %v3488 = vpack.c.b16 %v3156, %v3152
        %v3489 = vpack.c.b16 %v3157, %v3153
        %v3490 = vpack.c.b16 %v3158, %v3154
        %v3491 = vpack.c.b16 %v3163, %v3159
        %v3492 = vpack.c.b16 %v3164, %v3160
        %v3493 = vpack.c.b16 %v3165, %v3161
        %v3494 = vpack.c.b16 %v3166, %v3162
        %v3495 = vpack.c.b16 %v3171, %v3167
        %v3496 = vpack.c.b16 %v3172, %v3168
        %v3497 = vpack.c.b16 %v3173, %v3169
        %v3498 = vpack.c.b16 %v3174, %v3170
        %v3499 = vpack.c.b16 %v3179, %v3175
        %v3500 = vpack.c.b16 %v3180, %v3176
        %v3501 = vpack.c.b16 %v3181, %v3177
        %v3502 = vpack.c.b16 %v3182, %v3178
        %v3503 = vpack.c.b16 %v3187, %v3183
        %v3504 = vpack.c.b16 %v3188, %v3184
        %v3505 = vpack.c.b16 %v3189, %v3185
        %v3506 = vpack.c.b16 %v3190, %v3186
        %v3507 = vpack.c.b16 %v3195, %v3191
        %v3508 = vpack.c.b16 %v3196, %v3192
        %v3509 = vpack.c.b16 %v3197, %v3193
        %v3510 = vpack.c.b16 %v3198, %v3194
        %v3511 = vpack.c.b16 %v3203, %v3199
        %v3512 = vpack.c.b16 %v3204, %v3200
        %v3513 = vpack.c.b16 %v3205, %v3201
        %v3514 = vpack.c.b16 %v3206, %v3202
        %v3515 = vpack.c.b16 %v3211, %v3207
        %v3516 = vpack.c.b16 %v3212, %v3208
        %v3517 = vpack.c.b16 %v3213, %v3209
        %v3518 = vpack.c.b16 %v3214, %v3210
        %v3519 = vpack.c.b16 %v3219, %v3215
        %v3520 = vpack.c.b16 %v3220, %v3216
        %v3521 = vpack.c.b16 %v3221, %v3217
        %v3522 = vpack.c.b16 %v3222, %v3218
        %v3523 = vpack.c.b16 %v3227, %v3223
        %v3524 = vpack.c.b16 %v3228, %v3224
        %v3525 = vpack.c.b16 %v3229, %v3225
        %v3526 = vpack.c.b16 %v3230, %v3226
        %v3527 = vpack.c.b16 %v3235, %v3231
        %v3528 = vpack.c.b16 %v3236, %v3232
        %v3529 = vpack.c.b16 %v3237, %v3233
        %v3530 = vpack.c.b16 %v3238, %v3234
        %v3531 = vpack.c.b16 %v3243, %v3239
        %v3532 = vpack.c.b16 %v3244, %v3240
        %v3533 = vpack.c.b16 %v3245, %v3241
        %v3534 = vpack.c.b16 %v3246, %v3242
        %v3535 = vpack.c.b16 %v3251, %v3247
        %v3536 = vpack.c.b16 %v3252, %v3248
        %v3537 = vpack.c.b16 %v3253, %v3249
        %v3538 = vpack.c.b16 %v3254, %v3250
        %v3539 = vpack.c.b16 %v3259, %v3255
        %v3540 = vpack.c.b16 %v3260, %v3256
        %v3541 = vpack.c.b16 %v3261, %v3257
        %v3542 = vpack.c.b16 %v3262, %v3258
        %v3543 = vpack.c.b16 %v3267, %v3263
        %v3544 = vpack.c.b16 %v3268, %v3264
        %v3545 = vpack.c.b16 %v3269, %v3265
        %v3546 = vpack.c.b16 %v3270, %v3266
        %v3547 = vpack.c.b16 %v3275, %v3271
        %v3548 = vpack.c.b16 %v3276, %v3272
        %v3549 = vpack.c.b16 %v3277, %v3273
        %v3550 = vpack.c.b16 %v3278, %v3274
        %v3551 = vpack.c.b16 %v3283, %v3279
        %v3552 = vpack.c.b16 %v3284, %v3280
        %v3553 = vpack.c.b16 %v3285, %v3281
        %v3554 = vpack.c.b16 %v3286, %v3282
        %v3555 = vpack.c.b16 %v3291, %v3287
        %v3556 = vpack.c.b16 %v3292, %v3288
        %v3557 = vpack.c.b16 %v3293, %v3289
        %v3558 = vpack.c.b16 %v3294, %v3290
        %v3559 = vpack.c.b16 %v3299, %v3295
        %v3560 = vpack.c.b16 %v3300, %v3296
        %v3561 = vpack.c.b16 %v3301, %v3297
        %v3562 = vpack.c.b16 %v3302, %v3298
        %v3563 = vpack.c.b16 %v3307, %v3303
        %v3564 = vpack.c.b16 %v3308, %v3304
        %v3565 = vpack.c.b16 %v3309, %v3305
        %v3566 = vpack.c.b16 %v3310, %v3306
        %3823 = vmatpush.bf16.msra.mxu0 %v3339
        %3824 = vmatpush.bf16.msra.mxu0 %v3335
        %3825 = vmatpush.bf16.msra.mxu0 %v3331
        %3826 = vmatpush.bf16.msra.mxu0 %v3327
        %3827 = vmatpush.bf16.msra.mxu0 %v3323
        %3828 = vmatpush.bf16.msra.mxu0 %v3319
        %3829 = vmatpush.bf16.msra.mxu0 %v3315
        %3830 = vmatpush.bf16.msra.mxu0 %v3311
        %3831 = vmatmul.bf16.gmra.mxu0 %v2270
        %v3832 = vpop.f32.mrf.mxu0
        %v3833 = vadd.f32 %v2535, %v3832
        %v3834 = vpop.f32.mrf.mxu0
        %3835 = vdwg.mxu0
        %3836 = vmatpush.bf16.msra.mxu0 %v3371
        %3837 = vmatpush.bf16.msra.mxu0 %v3367
        %3838 = vmatpush.bf16.msra.mxu0 %v3363
        %3839 = vmatpush.bf16.msra.mxu0 %v3359
        %3840 = vmatpush.bf16.msra.mxu0 %v3355
        %3841 = vmatpush.bf16.msra.mxu0 %v3351
        %3842 = vmatpush.bf16.msra.mxu0 %v3347
        %3843 = vmatpush.bf16.msra.mxu0 %v3343
        %3844 = vmatmul.bf16.gmra.mxu0 %v2271
        %v3845 = vpop.f32.mrf.mxu0
        %v3846 = vadd.f32 %v3833, %v3845
        %v3847 = vpop.f32.mrf.mxu0
        %3848 = vdwg.mxu0
        %3849 = vmatpush.bf16.msra.mxu0 %v3403
        %3850 = vmatpush.bf16.msra.mxu0 %v3399
        %3851 = vmatpush.bf16.msra.mxu0 %v3395
        %3852 = vmatpush.bf16.msra.mxu0 %v3391
        %3853 = vmatpush.bf16.msra.mxu0 %v3387
        %3854 = vmatpush.bf16.msra.mxu0 %v3383
        %3855 = vmatpush.bf16.msra.mxu0 %v3379
        %3856 = vmatpush.bf16.msra.mxu0 %v3375
        %3857 = vmatmul.bf16.gmra.mxu0 %v2272
        %v3858 = vpop.f32.mrf.mxu0
        %v3859 = vadd.f32 %v3846, %v3858
        %v3860 = vpop.f32.mrf.mxu0
        %3861 = vdwg.mxu0
        %3862 = vmatpush.bf16.msra.mxu0 %v3435
        %3863 = vmatpush.bf16.msra.mxu0 %v3431
        %3864 = vmatpush.bf16.msra.mxu0 %v3427
        %3865 = vmatpush.bf16.msra.mxu0 %v3423
        %3866 = vmatpush.bf16.msra.mxu0 %v3419
        %3867 = vmatpush.bf16.msra.mxu0 %v3415
        %3868 = vmatpush.bf16.msra.mxu0 %v3411
        %3869 = vmatpush.bf16.msra.mxu0 %v3407
        %3870 = vmatmul.bf16.gmra.mxu0 %v2273
        %v3871 = vpop.f32.mrf.mxu0
        %v3872 = vadd.f32 %v3859, %v3871
        %v3873 = vpop.f32.mrf.mxu0
        %3874 = vdwg.mxu0
        %3875 = vmatpush.bf16.msra.mxu0 %v3467
        %3876 = vmatpush.bf16.msra.mxu0 %v3463
        %3877 = vmatpush.bf16.msra.mxu0 %v3459
        %3878 = vmatpush.bf16.msra.mxu0 %v3455
        %3879 = vmatpush.bf16.msra.mxu0 %v3451
        %3880 = vmatpush.bf16.msra.mxu0 %v3447
        %3881 = vmatpush.bf16.msra.mxu0 %v3443
        %3882 = vmatpush.bf16.msra.mxu0 %v3439
        %3883 = vmatmul.bf16.gmra.mxu0 %v2274
        %v3884 = vpop.f32.mrf.mxu0
        %v3885 = vadd.f32 %v3872, %v3884
        %v3886 = vpop.f32.mrf.mxu0
        %3887 = vdwg.mxu0
        %3888 = vmatpush.bf16.msra.mxu0 %v3499
        %3889 = vmatpush.bf16.msra.mxu0 %v3495
        %3890 = vmatpush.bf16.msra.mxu0 %v3491
        %3891 = vmatpush.bf16.msra.mxu0 %v3487
        %3892 = vmatpush.bf16.msra.mxu0 %v3483
        %3893 = vmatpush.bf16.msra.mxu0 %v3479
        %3894 = vmatpush.bf16.msra.mxu0 %v3475
        %3895 = vmatpush.bf16.msra.mxu0 %v3471
        %3896 = vmatmul.bf16.gmra.mxu0 %v2275
        %v3897 = vpop.f32.mrf.mxu0
        %v3898 = vadd.f32 %v3885, %v3897
        %v3899 = vpop.f32.mrf.mxu0
        %3900 = vdwg.mxu0
        %3901 = vmatpush.bf16.msra.mxu0 %v3531
        %3902 = vmatpush.bf16.msra.mxu0 %v3527
        %3903 = vmatpush.bf16.msra.mxu0 %v3523
        %3904 = vmatpush.bf16.msra.mxu0 %v3519
        %3905 = vmatpush.bf16.msra.mxu0 %v3515
        %3906 = vmatpush.bf16.msra.mxu0 %v3511
        %3907 = vmatpush.bf16.msra.mxu0 %v3507
        %3908 = vmatpush.bf16.msra.mxu0 %v3503
        %3909 = vmatmul.bf16.gmra.mxu0 %v2276
        %v3910 = vpop.f32.mrf.mxu0
        %v3911 = vadd.f32 %v3898, %v3910
        %v3912 = vpop.f32.mrf.mxu0
        %3913 = vdwg.mxu0
        %3914 = vmatpush.bf16.msra.mxu0 %v3563
        %3915 = vmatpush.bf16.msra.mxu0 %v3559
        %3916 = vmatpush.bf16.msra.mxu0 %v3555
        %3917 = vmatpush.bf16.msra.mxu0 %v3551
        %3918 = vmatpush.bf16.msra.mxu0 %v3547
        %3919 = vmatpush.bf16.msra.mxu0 %v3543
        %3920 = vmatpush.bf16.msra.mxu0 %v3539
        %3921 = vmatpush.bf16.msra.mxu0 %v3535
        %3922 = vmatmul.bf16.gmra.mxu0 %v2277
        %v3923 = vpop.f32.mrf.mxu0
        %v3924 = vadd.f32 %v3911, %v3923
        %v3925 = vpop.f32.mrf.mxu0
        %3926 = vdwg.mxu0
        %3927 = vmatpush.bf16.msra.mxu0 %v3340
        %3928 = vmatpush.bf16.msra.mxu0 %v3336
        %3929 = vmatpush.bf16.msra.mxu0 %v3332
        %3930 = vmatpush.bf16.msra.mxu0 %v3328
        %3931 = vmatpush.bf16.msra.mxu0 %v3324
        %3932 = vmatpush.bf16.msra.mxu0 %v3320
        %3933 = vmatpush.bf16.msra.mxu0 %v3316
        %3934 = vmatpush.bf16.msra.mxu0 %v3312
        %3935 = vmatmul.bf16.gmra.mxu0 %v2270
        %v3936 = vpop.f32.mrf.mxu0
        %v3937 = vadd.f32 %v2536, %v3936
        %v3938 = vpop.f32.mrf.mxu0
        %3939 = vdwg.mxu0
        %3940 = vmatpush.bf16.msra.mxu0 %v3372
        %3941 = vmatpush.bf16.msra.mxu0 %v3368
        %3942 = vmatpush.bf16.msra.mxu0 %v3364
        %3943 = vmatpush.bf16.msra.mxu0 %v3360
        %3944 = vmatpush.bf16.msra.mxu0 %v3356
        %3945 = vmatpush.bf16.msra.mxu0 %v3352
        %3946 = vmatpush.bf16.msra.mxu0 %v3348
        %3947 = vmatpush.bf16.msra.mxu0 %v3344
        %3948 = vmatmul.bf16.gmra.mxu0 %v2271
        %v3949 = vpop.f32.mrf.mxu0
        %v3950 = vadd.f32 %v3937, %v3949
        %v3951 = vpop.f32.mrf.mxu0
        %3952 = vdwg.mxu0
        %3953 = vmatpush.bf16.msra.mxu0 %v3404
        %3954 = vmatpush.bf16.msra.mxu0 %v3400
        %3955 = vmatpush.bf16.msra.mxu0 %v3396
        %3956 = vmatpush.bf16.msra.mxu0 %v3392
        %3957 = vmatpush.bf16.msra.mxu0 %v3388
        %3958 = vmatpush.bf16.msra.mxu0 %v3384
        %3959 = vmatpush.bf16.msra.mxu0 %v3380
        %3960 = vmatpush.bf16.msra.mxu0 %v3376
        %3961 = vmatmul.bf16.gmra.mxu0 %v2272
        %v3962 = vpop.f32.mrf.mxu0
        %v3963 = vadd.f32 %v3950, %v3962
        %v3964 = vpop.f32.mrf.mxu0
        %3965 = vdwg.mxu0
        %3966 = vmatpush.bf16.msra.mxu0 %v3436
        %3967 = vmatpush.bf16.msra.mxu0 %v3432
        %3968 = vmatpush.bf16.msra.mxu0 %v3428
        %3969 = vmatpush.bf16.msra.mxu0 %v3424
        %3970 = vmatpush.bf16.msra.mxu0 %v3420
        %3971 = vmatpush.bf16.msra.mxu0 %v3416
        %3972 = vmatpush.bf16.msra.mxu0 %v3412
        %3973 = vmatpush.bf16.msra.mxu0 %v3408
        %3974 = vmatmul.bf16.gmra.mxu0 %v2273
        %v3975 = vpop.f32.mrf.mxu0
        %v3976 = vadd.f32 %v3963, %v3975
        %v3977 = vpop.f32.mrf.mxu0
        %3978 = vdwg.mxu0
        %3979 = vmatpush.bf16.msra.mxu0 %v3468
        %3980 = vmatpush.bf16.msra.mxu0 %v3464
        %3981 = vmatpush.bf16.msra.mxu0 %v3460
        %3982 = vmatpush.bf16.msra.mxu0 %v3456
        %3983 = vmatpush.bf16.msra.mxu0 %v3452
        %3984 = vmatpush.bf16.msra.mxu0 %v3448
        %3985 = vmatpush.bf16.msra.mxu0 %v3444
        %3986 = vmatpush.bf16.msra.mxu0 %v3440
        %3987 = vmatmul.bf16.gmra.mxu0 %v2274
        %v3988 = vpop.f32.mrf.mxu0
        %v3989 = vadd.f32 %v3976, %v3988
        %v3990 = vpop.f32.mrf.mxu0
        %3991 = vdwg.mxu0
        %3992 = vmatpush.bf16.msra.mxu0 %v3500
        %3993 = vmatpush.bf16.msra.mxu0 %v3496
        %3994 = vmatpush.bf16.msra.mxu0 %v3492
        %3995 = vmatpush.bf16.msra.mxu0 %v3488
        %3996 = vmatpush.bf16.msra.mxu0 %v3484
        %3997 = vmatpush.bf16.msra.mxu0 %v3480
        %3998 = vmatpush.bf16.msra.mxu0 %v3476
        %3999 = vmatpush.bf16.msra.mxu0 %v3472
        %4000 = vmatmul.bf16.gmra.mxu0 %v2275
        %v4001 = vpop.f32.mrf.mxu0
        %v4002 = vadd.f32 %v3989, %v4001
        %v4003 = vpop.f32.mrf.mxu0
        %4004 = vdwg.mxu0
        %4005 = vmatpush.bf16.msra.mxu0 %v3532
        %4006 = vmatpush.bf16.msra.mxu0 %v3528
        %4007 = vmatpush.bf16.msra.mxu0 %v3524
        %4008 = vmatpush.bf16.msra.mxu0 %v3520
        %4009 = vmatpush.bf16.msra.mxu0 %v3516
        %4010 = vmatpush.bf16.msra.mxu0 %v3512
        %4011 = vmatpush.bf16.msra.mxu0 %v3508
        %4012 = vmatpush.bf16.msra.mxu0 %v3504
        %4013 = vmatmul.bf16.gmra.mxu0 %v2276
        %v4014 = vpop.f32.mrf.mxu0
        %v4015 = vadd.f32 %v4002, %v4014
        %v4016 = vpop.f32.mrf.mxu0
        %4017 = vdwg.mxu0
        %4018 = vmatpush.bf16.msra.mxu0 %v3564
        %4019 = vmatpush.bf16.msra.mxu0 %v3560
        %4020 = vmatpush.bf16.msra.mxu0 %v3556
        %4021 = vmatpush.bf16.msra.mxu0 %v3552
        %4022 = vmatpush.bf16.msra.mxu0 %v3548
        %4023 = vmatpush.bf16.msra.mxu0 %v3544
        %4024 = vmatpush.bf16.msra.mxu0 %v3540
        %4025 = vmatpush.bf16.msra.mxu0 %v3536
        %4026 = vmatmul.bf16.gmra.mxu0 %v2277
        %v4027 = vpop.f32.mrf.mxu0
        %v4028 = vadd.f32 %v4015, %v4027
        %v4029 = vpop.f32.mrf.mxu0
        %4030 = vdwg.mxu0
        %4031 = vmatpush.bf16.msra.mxu0 %v3341
        %4032 = vmatpush.bf16.msra.mxu0 %v3337
        %4033 = vmatpush.bf16.msra.mxu0 %v3333
        %4034 = vmatpush.bf16.msra.mxu0 %v3329
        %4035 = vmatpush.bf16.msra.mxu0 %v3325
        %4036 = vmatpush.bf16.msra.mxu0 %v3321
        %4037 = vmatpush.bf16.msra.mxu0 %v3317
        %4038 = vmatpush.bf16.msra.mxu0 %v3313
        %4039 = vmatmul.bf16.gmra.mxu0 %v2270
        %v4040 = vpop.f32.mrf.mxu0
        %v4041 = vadd.f32 %v2537, %v4040
        %v4042 = vpop.f32.mrf.mxu0
        %4043 = vdwg.mxu0
        %4044 = vmatpush.bf16.msra.mxu0 %v3373
        %4045 = vmatpush.bf16.msra.mxu0 %v3369
        %4046 = vmatpush.bf16.msra.mxu0 %v3365
        %4047 = vmatpush.bf16.msra.mxu0 %v3361
        %4048 = vmatpush.bf16.msra.mxu0 %v3357
        %4049 = vmatpush.bf16.msra.mxu0 %v3353
        %4050 = vmatpush.bf16.msra.mxu0 %v3349
        %4051 = vmatpush.bf16.msra.mxu0 %v3345
        %4052 = vmatmul.bf16.gmra.mxu0 %v2271
        %v4053 = vpop.f32.mrf.mxu0
        %v4054 = vadd.f32 %v4041, %v4053
        %v4055 = vpop.f32.mrf.mxu0
        %4056 = vdwg.mxu0
        %4057 = vmatpush.bf16.msra.mxu0 %v3405
        %4058 = vmatpush.bf16.msra.mxu0 %v3401
        %4059 = vmatpush.bf16.msra.mxu0 %v3397
        %4060 = vmatpush.bf16.msra.mxu0 %v3393
        %4061 = vmatpush.bf16.msra.mxu0 %v3389
        %4062 = vmatpush.bf16.msra.mxu0 %v3385
        %4063 = vmatpush.bf16.msra.mxu0 %v3381
        %4064 = vmatpush.bf16.msra.mxu0 %v3377
        %4065 = vmatmul.bf16.gmra.mxu0 %v2272
        %v4066 = vpop.f32.mrf.mxu0
        %v4067 = vadd.f32 %v4054, %v4066
        %v4068 = vpop.f32.mrf.mxu0
        %4069 = vdwg.mxu0
        %4070 = vmatpush.bf16.msra.mxu0 %v3437
        %4071 = vmatpush.bf16.msra.mxu0 %v3433
        %4072 = vmatpush.bf16.msra.mxu0 %v3429
        %4073 = vmatpush.bf16.msra.mxu0 %v3425
        %4074 = vmatpush.bf16.msra.mxu0 %v3421
        %4075 = vmatpush.bf16.msra.mxu0 %v3417
        %4076 = vmatpush.bf16.msra.mxu0 %v3413
        %4077 = vmatpush.bf16.msra.mxu0 %v3409
        %4078 = vmatmul.bf16.gmra.mxu0 %v2273
        %v4079 = vpop.f32.mrf.mxu0
        %v4080 = vadd.f32 %v4067, %v4079
        %v4081 = vpop.f32.mrf.mxu0
        %4082 = vdwg.mxu0
        %4083 = vmatpush.bf16.msra.mxu0 %v3469
        %4084 = vmatpush.bf16.msra.mxu0 %v3465
        %4085 = vmatpush.bf16.msra.mxu0 %v3461
        %4086 = vmatpush.bf16.msra.mxu0 %v3457
        %4087 = vmatpush.bf16.msra.mxu0 %v3453
        %4088 = vmatpush.bf16.msra.mxu0 %v3449
        %4089 = vmatpush.bf16.msra.mxu0 %v3445
        %4090 = vmatpush.bf16.msra.mxu0 %v3441
        %4091 = vmatmul.bf16.gmra.mxu0 %v2274
        %v4092 = vpop.f32.mrf.mxu0
        %v4093 = vadd.f32 %v4080, %v4092
        %v4094 = vpop.f32.mrf.mxu0
        %4095 = vdwg.mxu0
        %4096 = vmatpush.bf16.msra.mxu0 %v3501
        %4097 = vmatpush.bf16.msra.mxu0 %v3497
        %4098 = vmatpush.bf16.msra.mxu0 %v3493
        %4099 = vmatpush.bf16.msra.mxu0 %v3489
        %4100 = vmatpush.bf16.msra.mxu0 %v3485
        %4101 = vmatpush.bf16.msra.mxu0 %v3481
        %4102 = vmatpush.bf16.msra.mxu0 %v3477
        %4103 = vmatpush.bf16.msra.mxu0 %v3473
        %4104 = vmatmul.bf16.gmra.mxu0 %v2275
        %v4105 = vpop.f32.mrf.mxu0
        %v4106 = vadd.f32 %v4093, %v4105
        %v4107 = vpop.f32.mrf.mxu0
        %4108 = vdwg.mxu0
        %4109 = vmatpush.bf16.msra.mxu0 %v3533
        %4110 = vmatpush.bf16.msra.mxu0 %v3529
        %4111 = vmatpush.bf16.msra.mxu0 %v3525
        %4112 = vmatpush.bf16.msra.mxu0 %v3521
        %4113 = vmatpush.bf16.msra.mxu0 %v3517
        %4114 = vmatpush.bf16.msra.mxu0 %v3513
        %4115 = vmatpush.bf16.msra.mxu0 %v3509
        %4116 = vmatpush.bf16.msra.mxu0 %v3505
        %4117 = vmatmul.bf16.gmra.mxu0 %v2276
        %v4118 = vpop.f32.mrf.mxu0
        %v4119 = vadd.f32 %v4106, %v4118
        %v4120 = vpop.f32.mrf.mxu0
        %4121 = vdwg.mxu0
        %4122 = vmatpush.bf16.msra.mxu0 %v3565
        %4123 = vmatpush.bf16.msra.mxu0 %v3561
        %4124 = vmatpush.bf16.msra.mxu0 %v3557
        %4125 = vmatpush.bf16.msra.mxu0 %v3553
        %4126 = vmatpush.bf16.msra.mxu0 %v3549
        %4127 = vmatpush.bf16.msra.mxu0 %v3545
        %4128 = vmatpush.bf16.msra.mxu0 %v3541
        %4129 = vmatpush.bf16.msra.mxu0 %v3537
        %4130 = vmatmul.bf16.gmra.mxu0 %v2277
        %v4131 = vpop.f32.mrf.mxu0
        %v4132 = vadd.f32 %v4119, %v4131
        %v4133 = vpop.f32.mrf.mxu0
        %4134 = vdwg.mxu0
        %4135 = vmatpush.bf16.msra.mxu0 %v3342
        %4136 = vmatpush.bf16.msra.mxu0 %v3338
        %4137 = vmatpush.bf16.msra.mxu0 %v3334
        %4138 = vmatpush.bf16.msra.mxu0 %v3330
        %4139 = vmatpush.bf16.msra.mxu0 %v3326
        %4140 = vmatpush.bf16.msra.mxu0 %v3322
        %4141 = vmatpush.bf16.msra.mxu0 %v3318
        %4142 = vmatpush.bf16.msra.mxu0 %v3314
        %4143 = vmatmul.bf16.gmra.mxu0 %v2270
        %v4144 = vpop.f32.mrf.mxu0
        %v4145 = vadd.f32 %v2538, %v4144
        %v4146 = vpop.f32.mrf.mxu0
        %4147 = vdwg.mxu0
        %4148 = vmatpush.bf16.msra.mxu0 %v3374
        %4149 = vmatpush.bf16.msra.mxu0 %v3370
        %4150 = vmatpush.bf16.msra.mxu0 %v3366
        %4151 = vmatpush.bf16.msra.mxu0 %v3362
        %4152 = vmatpush.bf16.msra.mxu0 %v3358
        %4153 = vmatpush.bf16.msra.mxu0 %v3354
        %4154 = vmatpush.bf16.msra.mxu0 %v3350
        %4155 = vmatpush.bf16.msra.mxu0 %v3346
        %4156 = vmatmul.bf16.gmra.mxu0 %v2271
        %v4157 = vpop.f32.mrf.mxu0
        %v4158 = vadd.f32 %v4145, %v4157
        %v4159 = vpop.f32.mrf.mxu0
        %4160 = vdwg.mxu0
        %4161 = vmatpush.bf16.msra.mxu0 %v3406
        %4162 = vmatpush.bf16.msra.mxu0 %v3402
        %4163 = vmatpush.bf16.msra.mxu0 %v3398
        %4164 = vmatpush.bf16.msra.mxu0 %v3394
        %4165 = vmatpush.bf16.msra.mxu0 %v3390
        %4166 = vmatpush.bf16.msra.mxu0 %v3386
        %4167 = vmatpush.bf16.msra.mxu0 %v3382
        %4168 = vmatpush.bf16.msra.mxu0 %v3378
        %4169 = vmatmul.bf16.gmra.mxu0 %v2272
        %v4170 = vpop.f32.mrf.mxu0
        %v4171 = vadd.f32 %v4158, %v4170
        %v4172 = vpop.f32.mrf.mxu0
        %4173 = vdwg.mxu0
        %4174 = vmatpush.bf16.msra.mxu0 %v3438
        %4175 = vmatpush.bf16.msra.mxu0 %v3434
        %4176 = vmatpush.bf16.msra.mxu0 %v3430
        %4177 = vmatpush.bf16.msra.mxu0 %v3426
        %4178 = vmatpush.bf16.msra.mxu0 %v3422
        %4179 = vmatpush.bf16.msra.mxu0 %v3418
        %4180 = vmatpush.bf16.msra.mxu0 %v3414
        %4181 = vmatpush.bf16.msra.mxu0 %v3410
        %4182 = vmatmul.bf16.gmra.mxu0 %v2273
        %v4183 = vpop.f32.mrf.mxu0
        %v4184 = vadd.f32 %v4171, %v4183
        %v4185 = vpop.f32.mrf.mxu0
        %4186 = vdwg.mxu0
        %4187 = vmatpush.bf16.msra.mxu0 %v3470
        %4188 = vmatpush.bf16.msra.mxu0 %v3466
        %4189 = vmatpush.bf16.msra.mxu0 %v3462
        %4190 = vmatpush.bf16.msra.mxu0 %v3458
        %4191 = vmatpush.bf16.msra.mxu0 %v3454
        %4192 = vmatpush.bf16.msra.mxu0 %v3450
        %4193 = vmatpush.bf16.msra.mxu0 %v3446
        %4194 = vmatpush.bf16.msra.mxu0 %v3442
        %4195 = vmatmul.bf16.gmra.mxu0 %v2274
        %v4196 = vpop.f32.mrf.mxu0
        %v4197 = vadd.f32 %v4184, %v4196
        %v4198 = vpop.f32.mrf.mxu0
        %4199 = vdwg.mxu0
        %4200 = vmatpush.bf16.msra.mxu0 %v3502
        %4201 = vmatpush.bf16.msra.mxu0 %v3498
        %4202 = vmatpush.bf16.msra.mxu0 %v3494
        %4203 = vmatpush.bf16.msra.mxu0 %v3490
        %4204 = vmatpush.bf16.msra.mxu0 %v3486
        %4205 = vmatpush.bf16.msra.mxu0 %v3482
        %4206 = vmatpush.bf16.msra.mxu0 %v3478
        %4207 = vmatpush.bf16.msra.mxu0 %v3474
        %4208 = vmatmul.bf16.gmra.mxu0 %v2275
        %v4209 = vpop.f32.mrf.mxu0
        %v4210 = vadd.f32 %v4197, %v4209
        %v4211 = vpop.f32.mrf.mxu0
        %4212 = vdwg.mxu0
        %4213 = vmatpush.bf16.msra.mxu0 %v3534
        %4214 = vmatpush.bf16.msra.mxu0 %v3530
        %4215 = vmatpush.bf16.msra.mxu0 %v3526
        %4216 = vmatpush.bf16.msra.mxu0 %v3522
        %4217 = vmatpush.bf16.msra.mxu0 %v3518
        %4218 = vmatpush.bf16.msra.mxu0 %v3514
        %4219 = vmatpush.bf16.msra.mxu0 %v3510
        %4220 = vmatpush.bf16.msra.mxu0 %v3506
        %4221 = vmatmul.bf16.gmra.mxu0 %v2276
        %v4222 = vpop.f32.mrf.mxu0
        %v4223 = vadd.f32 %v4210, %v4222
        %v4224 = vpop.f32.mrf.mxu0
        %4225 = vdwg.mxu0
        %4226 = vmatpush.bf16.msra.mxu0 %v3566
        %4227 = vmatpush.bf16.msra.mxu0 %v3562
        %4228 = vmatpush.bf16.msra.mxu0 %v3558
        %4229 = vmatpush.bf16.msra.mxu0 %v3554
        %4230 = vmatpush.bf16.msra.mxu0 %v3550
        %4231 = vmatpush.bf16.msra.mxu0 %v3546
        %4232 = vmatpush.bf16.msra.mxu0 %v3542
        %4233 = vmatpush.bf16.msra.mxu0 %v3538
        %4234 = vmatmul.bf16.gmra.mxu0 %v2277
        %v4235 = vpop.f32.mrf.mxu0
        %v4236 = vadd.f32 %v4223, %v4235
        %v4237 = vpop.f32.mrf.mxu0
        %4238 = vdwg.mxu0
        %v4239 = vadd.f32 %v3924, %v266
        %v4240 = vadd.f32 %v4028, %v267
        %v4241 = vadd.f32 %v4132, %v268
        %v4242 = vadd.f32 %v4236, %v269
        %v4243 = vadd.f32 %v4239, %v4240
        %v4244 = vadd.f32 %v4243, %v4241
        %v4245 = vadd.f32 %v4244, %v4242
        %4246 = vadd.xlane.f32.xlu0 %v4245
        %v4247 = vpop.xlane.xlu0 %4246
        %v4248 = vrcp.pop 512.0
        %v4249 = vmul.f32 512.0, %v4248
        %v4250 = vsub.f32 1.0, %v4249
        %v4251 = vmul.f32 %v4248, %v4250
        %v4252 = vadd.f32 %v4248, %v4251
        %vm4253 = vweird.f32 %v4248
        %v4254 = vsel %vm4253, %v4248, %v4252
        %v4255 = vmul.f32 %v4247, %v4254
        %v4256 = vsub.f32 %v4239, %v4255
        %v4257 = vsub.f32 %v4240, %v4255
        %v4258 = vsub.f32 %v4241, %v4255
        %v4259 = vsub.f32 %v4242, %v4255
        %v4260 = vmul.f32 %v4256, %v4256
        %v4261 = vmul.f32 %v4257, %v4257
        %v4262 = vmul.f32 %v4258, %v4258
        %v4263 = vmul.f32 %v4259, %v4259
        %v4264 = vadd.f32 %v4260, %v4261
        %v4265 = vadd.f32 %v4264, %v4262
        %v4266 = vadd.f32 %v4265, %v4263
        %4267 = vadd.xlane.f32.xlu0 %v4266
        %v4268 = vpop.xlane.xlu0 %4267
        %v4269 = vmul.f32 %v4268, %v4254
        %v4270 = vadd.f32 %v4269, 1e-05
        %v4271 = vrsqrt.pop %v4270
        %v4272 = vmul.f32 %v4271, %v4270
        %v4273 = vmul.f32 %v4272, %v4271
        %v4274 = vmul.f32 0.5, %v4273
        %v4275 = vsub.f32 1.5, %v4274
        %v4276 = vmul.f32 %v4271, %v4275
        %vm4277 = vweird.f32 %v4270
        %vm4278 = vweird.f32 %v4271
        %vm4279 = vmor %vm4277, %vm4278
        %v4280 = vsel %vm4279, %v4271, %v4276
        %v4281 = vmul.f32 %v4256, %v4280
        %v4282 = vmul.f32 %v4257, %v4280
        %v4283 = vmul.f32 %v4258, %v4280
        %v4284 = vmul.f32 %v4259, %v4280
        %v4286 = vperm.slane %v276, 0
        %v4287 = vperm.slane %v276, 1
        %v4288 = vperm.slane %v276, 2
        %v4289 = vperm.slane %v276, 3
        %v4294 = vmul.f32 %v4281, %v4286
        %v4295 = vmul.f32 %v4282, %v4287
        %v4296 = vmul.f32 %v4283, %v4288
        %v4297 = vmul.f32 %v4284, %v4289
        %v4299 = vperm.slane %v278, 0
        %v4300 = vperm.slane %v278, 1
        %v4301 = vperm.slane %v278, 2
        %v4302 = vperm.slane %v278, 3
        %v4307 = vadd.f32 %v4294, %v4299
        %v4308 = vadd.f32 %v4295, %v4300
        %v4309 = vadd.f32 %v4296, %v4301
        %v4310 = vadd.f32 %v4297, %v4302
        %v4311 = vpack.c.bf16 %v4308, %v4307
        %v4312 = vpack.c.bf16 %v4310, %v4309
        %4313 = vst [vmem:[%s263] sm:$0xff] %v4311
        %4314 = vst [vmem:[%s263 + $0x8] sm:$0xff] %v4312
        %s4315 = sand.u32 %s120, 1
        %s4316 = scalar_lea.sflag [#allocation4], %s4315
        %s4317 = sand.u32 %s120, 1
        %s4318 = smul.addr %s4317, 16
        %s4319 = scalar_lea.vmem [#allocation10], %s4318
        // Predicated region
        $region53: #{tpu_custom_call.1} parent=35 // pred_check
          %p4320 = pneg %p130
        $region54: #{tpu_custom_call.1} parent=35 // pred_check_branch
          %4322 = sbr.rel (%p4320) target = $region56
        $region55: #{tpu_custom_call.1} parent=35 // pred_region
          %4324 = vsyncadd %s4316, 0
          %s4325 = smul.addr %s23, 4
          %s4326 = smul.addr %s4325, 4
          %s4327 = scalar_lea.hbm %s4, %s4326
          %s4329 = sshll.u32 %s4319, 4
          %s4330 = int_to_ptr.vmem [resolvable:$true] %s4329
          %s4331 = sshll.u32 %s4327, 4
          %s4332 = int_to_ptr.hbm [resolvable:$true] %s4331
          %4334 = dma.vmem_to_hbm [thread:$0]  %s4330, 256, %s4332, %s4316
        $region56: #{tpu_custom_call.1} parent=35 // pred_fallthru
          _
      $region36: #{tpu_custom_call.1} parent=5 // pred_fallthru
        _
      %p4335 = scmp.le.s32.totalorder 2, %s18
      // Predicated region
      $region57: #{tpu_custom_call.1} parent=5 // pred_check
        %p4336 = pneg %p4335
      $region58: #{tpu_custom_call.1} parent=5 // pred_check_branch
        %4338 = sbr.rel (%p4336) target = $region60
      $region59: #{tpu_custom_call.1} parent=5 // pred_region
        %s4339 = ssub.s32 %s18, 2
        // Predicated region
        $region61: #{tpu_custom_call.1} parent=59 // pred_check
          %p4340 = pneg %p136
        $region62: #{tpu_custom_call.1} parent=59 // pred_check_branch
          %4342 = sbr.rel (%p4340) target = $region64
        $region63: #{tpu_custom_call.1} parent=59 // pred_region
          %s4343 = sand.u32 %s121, 1
          %s4344 = scalar_lea.sflag [#allocation4], %s4343
          %s4345 = sand.u32 %s121, 1
          %s4346 = smul.addr %s4345, 16
          %s4347 = scalar_lea.vmem [#allocation10], %s4346
          %4349 = dma.done %s4344, 256
        $region64: #{tpu_custom_call.1} parent=59 // pred_fallthru
          _
      $region60: #{tpu_custom_call.1} parent=5 // pred_fallthru
        _
    $region6: #{tpu_custom_call.1} parent=1 // loop_footer
      %s22 = sadd.s32 1, %s18
    $region7: #{tpu_custom_call.1} parent=1 // loop_footer_branch
      %17 = sbr.rel target = $region3
    $region8: #{tpu_custom_call.1} parent=1 // loop_exit
      _
    %4350 = vsyncpa [#allocation3], 1
    %s4351 = scalar_lea.sflag [#allocation3], 1
    %4352 = vsyncpa %s4351, 1
    %4353 = vsyncpa [#allocation6], 1
    %4354 = vsyncpa [#allocation9], 1
    %4355 = vsyncpa [#allocation4], 1
    %s4356 = scalar_lea.sflag [#allocation4], 1
    %4357 = vsyncpa %s4356, 1

// kernel: tpu_custom_call.1
$region0: #{tpu_custom_call.1}
  #allocation0 [shape = 'u32[]', space=smem, size = 0x4, offset = 0x4, fixed_abs, tag = 'smem constant byte address 0x4 - core index']
  #allocation1 [shape = 'u32[72,128]{1,0:T(1,128)}', space=vmem, size = 0x9000, scoped, tag = 'internal scratch']
  %s0 = inlined_call_operand.hbm [shape: bf16[16,512], index: 0, kind: input, shape index: {}]
  %s1 = inlined_call_operand.hbm [shape: bf16[512,1024], index: 1, kind: input, shape index: {}]
  %s2 = inlined_call_operand.hbm [shape: bf16[1024,512], index: 2, kind: input, shape index: {}]
  %s3 = inlined_call_operand.hbm [shape: f32[8,1024], index: 3, kind: input, shape index: {}]
  %s4 = inlined_call_operand.hbm [shape: bf16[16,512], index: 4, kind: output, shape index: {}]
  %s5 = sld [smem:[#allocation0]]
  $region65: #{tpu_custom_call.1} parent=0
    _
  %s7 = ssub.s32 1, %s5
  %s8 = scalar_select 0, %s7, %s5
  $region1: #{tpu_custom_call.1} parent=0
    #allocation2 [shape = 'u8[16384]{0}', space=vmem, size = 0x4000, scoped, tag = 'input window, operand 0']
    #allocation3 [shape = 's32[2]{0}', space=sflag, size = 0x8, scoped, tag = 'scoped memory for tpu_custom_call.1']
    #allocation4 [shape = 's32[2]{0}', space=sflag, size = 0x8, scoped, tag = 'scoped memory for tpu_custom_call.1']
    #allocation5 [shape = 'u8[1048576]{0}', space=vmem, size = 0x100000, scoped, tag = 'input window, operand 1, single buffered']
    #allocation6 [shape = 's32[1]{0}', space=sflag, size = 0x4, scoped, tag = 'scoped memory for tpu_custom_call.1']
    #allocation7 [shape = 'u8[1048576]{0}', space=vmem, size = 0x100000, scoped, tag = 'input window, operand 2, single buffered']
    #allocation8 [shape = 'u8[32768]{0}', space=vmem, size = 0x8000, scoped, tag = 'input window, operand 3, single buffered']
    #allocation9 [shape = 's32[1]{0}', space=sflag, size = 0x4, scoped, tag = 'scoped memory for tpu_custom_call.1']
    #allocation10 [shape = 'u8[16384]{0}', space=vmem, size = 0x4000, scoped, tag = 'output window, operand 0']
    %9 = vsyncpa [#allocation3], 0
    %s10 = scalar_lea.sflag [#allocation3], 1
    %11 = vsyncpa %s10, 0
    %12 = vsyncpa [#allocation6], 0
    %13 = vsyncpa [#allocation9], 0
    %14 = vsyncpa [#allocation4], 0
    %s15 = scalar_lea.sflag [#allocation4], 1
    %16 = vsyncpa %s15, 0
    loop: start=0, step=1, limit=4
    $region2: #{tpu_custom_call.1} parent=1 // loop_pre_header
      _
    $region3: #{tpu_custom_call.1} parent=1 // loop_header
      %s18 = sphi 0, %s22
      %p19 = scmp.ge.s32.totalorder %s18, 4
      %s28 = sphi 0, %s30
      %s31 = sphi 0, %s28
      %s32 = sphi 0, %s31
      %s48 = sphi 0, %s32
      %s52 = sphi 0, %s52
      %s54 = sphi 0, %s52
      %s55 = sphi 0, %s54
      %s69 = sphi 0, %s55
      %s73 = sphi 0, %s73
      %s75 = sphi 0, %s73
      %s76 = sphi 0, %s75
      %s90 = sphi 0, %s76
      %s94 = sphi 0, %s94
      %s96 = sphi 0, %s94
      %s97 = sphi 0, %s96
      %s111 = sphi 0, %s97
      %s117 = sphi 0, %s119
      %s120 = sphi 0, %s117
      %s121 = sphi 0, %s120
      %s137 = sphi 0, %s121
    $region4: #{tpu_custom_call.1} parent=1 // loop_header_branch
      %21 = sbr.rel (%p19) target = $region8
    $region5: #{tpu_custom_call.1} parent=1 // loop_body
      %s23 = ssub.s32 %s18, 1
      %s24 = ssub.s32 %s18, 2
      %s25 = sadd.s32 %s18, 1
      %s26 = ssub.s32 %s18, %s25
      %p27 = scmp.eq.s32.totalorder %s26, 0
      %s29 = sadd.s32 %s28, 1
      %s30 = scalar_select %p27, %s28, %s29
      %p33 = pneg %p27
      %p34 = scmp.eq.s32.totalorder %s18, 1
      %p35 = por %p33, %p34
      %p36 = scmp.ne.s32.totalorder %s28, %s31
      %p37 = scmp.eq.s32.totalorder %s18, 0
      %p38 = por %p36, %p37
      %p39 = scmp.ne.s32.totalorder %s28, %s31
      %p40 = scmp.eq.s32.totalorder %s23, 1
      %p41 = por %p39, %p40
      %p42 = scmp.ne.s32.totalorder %s31, %s32
      %p43 = scmp.eq.s32.totalorder %s23, 0
      %p44 = por %p42, %p43
      %p45 = scmp.ne.s32.totalorder %s31, %s32
      %p46 = scmp.eq.s32.totalorder %s24, 1
      %p47 = por %p45, %p46
      %p49 = scmp.ne.s32.totalorder %s32, %s48
      %p50 = scmp.eq.s32.totalorder %s24, 0
      %p51 = por %p49, %p50
      %s53 = sadd.s32 %s52, 1
      %p56 = scmp.eq.s32.totalorder %s18, 1
      %p57 = scmp.ne.s32.totalorder %s52, %s54
      %p58 = scmp.eq.s32.totalorder %s18, 0
      %p59 = por %p57, %p58
      %p60 = scmp.ne.s32.totalorder %s52, %s54
      %p61 = scmp.eq.s32.totalorder %s23, 1
      %p62 = por %p60, %p61
      %p63 = scmp.ne.s32.totalorder %s54, %s55
      %p64 = scmp.eq.s32.totalorder %s23, 0
      %p65 = por %p63, %p64
      %p66 = scmp.ne.s32.totalorder %s54, %s55
      %p67 = scmp.eq.s32.totalorder %s24, 1
      %p68 = por %p66, %p67
      %p70 = scmp.ne.s32.totalorder %s55, %s69
      %p71 = scmp.eq.s32.totalorder %s24, 0
      %p72 = por %p70, %p71
      %s74 = sadd.s32 %s73, 1
      %p77 = scmp.eq.s32.totalorder %s18, 1
      %p78 = scmp.ne.s32.totalorder %s73, %s75
      %p79 = scmp.eq.s32.totalorder %s18, 0
      %p80 = por %p78, %p79
      %p81 = scmp.ne.s32.totalorder %s73, %s75
      %p82 = scmp.eq.s32.totalorder %s23, 1
      %p83 = por %p81, %p82
      %p84 = scmp.ne.s32.totalorder %s75, %s76
      %p85 = scmp.eq.s32.totalorder %s23, 0
      %p86 = por %p84, %p85
      %p87 = scmp.ne.s32.totalorder %s75, %s76
      %p88 = scmp.eq.s32.totalorder %s24, 1
      %p89 = por %p87, %p88
      %p91 = scmp.ne.s32.totalorder %s76, %s90
      %p92 = scmp.eq.s32.totalorder %s24, 0
      %p93 = por %p91, %p92
      %s95 = sadd.s32 %s94, 1
      %p98 = scmp.eq.s32.totalorder %s18, 1
      %p99 = scmp.ne.s32.totalorder %s94, %s96
      %p100 = scmp.eq.s32.totalorder %s18, 0
      %p101 = por %p99, %p100
      %p102 = scmp.ne.s32.totalorder %s94, %s96
      %p103 = scmp.eq.s32.totalorder %s23, 1
      %p104 = por %p102, %p103
      %p105 = scmp.ne.s32.totalorder %s96, %s97
      %p106 = scmp.eq.s32.totalorder %s23, 0
      %p107 = por %p105, %p106
      %p108 = scmp.ne.s32.totalorder %s96, %s97
      %p109 = scmp.eq.s32.totalorder %s24, 1
      %p110 = por %p108, %p109
      %p112 = scmp.ne.s32.totalorder %s97, %s111
      %p113 = scmp.eq.s32.totalorder %s24, 0
      %p114 = por %p112, %p113
      %s115 = ssub.s32 %s18, %s25
      %p116 = scmp.eq.s32.totalorder %s115, 0
      %s118 = sadd.s32 %s117, 1
      %s119 = scalar_select %p116, %s117, %s118
      %p122 = pneg %p116
      %p123 = scmp.eq.s32.totalorder %s18, 1
      %p124 = por %p122, %p123
      %p125 = scmp.ne.s32.totalorder %s117, %s120
      %p126 = scmp.eq.s32.totalorder %s18, 0
      %p127 = por %p125, %p126
      %p128 = scmp.ne.s32.totalorder %s117, %s120
      %p129 = scmp.eq.s32.totalorder %s23, 1
      %p130 = por %p128, %p129
      %p131 = scmp.ne.s32.totalorder %s120, %s121
      %p132 = scmp.eq.s32.totalorder %s23, 0
      %p133 = por %p131, %p132
      %p134 = scmp.ne.s32.totalorder %s120, %s121
      %p135 = scmp.eq.s32.totalorder %s24, 1
      %p136 = por %p134, %p135
      %p138 = scmp.ne.s32.totalorder %s121, %s137
      %p139 = scmp.eq.s32.totalorder %s24, 0
      %p140 = por %p138, %p139
      %p141 = scmp.le.s32.totalorder 1, %s18
      %p142 = scmp.lt.s32.totalorder %s18, 3
      %p143 = pnand %p141, %p142
      %p144 = pneg %p143
      // Predicated region
      $region9: #{tpu_custom_call.1} parent=5 // pred_check
        _
      $region10: #{tpu_custom_call.1} parent=5 // pred_check_branch
        %146 = sbr.rel (%p143) target = $region12
      $region11: #{tpu_custom_call.1} parent=5 // pred_region
        %s147 = ssub.s32 %s18, 1
        // Predicated region
        $region13: #{tpu_custom_call.1} parent=11 // pred_check
          %p148 = pneg %p65
        $region14: #{tpu_custom_call.1} parent=11 // pred_check_branch
          %150 = sbr.rel (%p148) target = $region16
        $region15: #{tpu_custom_call.1} parent=11 // pred_region
          %152 = vsyncadd [#allocation6], 0
          %s153 = sshll.u32 %s1, 4
          %s154 = int_to_ptr.hbm [resolvable:$true] %s153
          %s155 = sshll.u32 [#allocation5], 4
          %s156 = int_to_ptr.vmem [resolvable:$true] %s155
          %161 = dma.hbm_to_vmem [thread:$0]  %s154, 32768, %s156, [#allocation6], 512, 512, 32
        $region16: #{tpu_custom_call.1} parent=11 // pred_fallthru
          _
        // Predicated region
        $region17: #{tpu_custom_call.1} parent=11 // pred_check
          %p162 = pneg %p86
        $region18: #{tpu_custom_call.1} parent=11 // pred_check_branch
          %164 = sbr.rel (%p162) target = $region20
        $region19: #{tpu_custom_call.1} parent=11 // pred_region
          %166 = vsyncadd [#allocation6], 0
          %s167 = sshll.u32 %s2, 4
          %s168 = int_to_ptr.hbm [resolvable:$true] %s167
          %s169 = sshll.u32 [#allocation7], 4
          %s170 = int_to_ptr.vmem [resolvable:$true] %s169
          %175 = dma.hbm_to_vmem [thread:$0]  %s168, 32768, %s170, [#allocation6], 256, 256, 16
        $region20: #{tpu_custom_call.1} parent=11 // pred_fallthru
          _
        // Predicated region
        $region21: #{tpu_custom_call.1} parent=11 // pred_check
          %p176 = pneg %p107
        $region22: #{tpu_custom_call.1} parent=11 // pred_check_branch
          %178 = sbr.rel (%p176) target = $region24
        $region23: #{tpu_custom_call.1} parent=11 // pred_region
          %180 = vsyncadd [#allocation9], 0
          %s182 = sshll.u32 %s3, 4
          %s183 = int_to_ptr.hbm [resolvable:$true] %s182
          %s184 = sshll.u32 [#allocation8], 4
          %s185 = int_to_ptr.vmem [resolvable:$true] %s184
          %187 = dma.hbm_to_vmem [thread:$0]  %s183, 1024, %s185, [#allocation9]
        $region24: #{tpu_custom_call.1} parent=11 // pred_fallthru
          _
      $region12: #{tpu_custom_call.1} parent=5 // pred_fallthru
        _
      %p188 = scmp.lt.s32.totalorder %s18, 2
      // Predicated region
      $region25: #{tpu_custom_call.1} parent=5 // pred_check
        %p189 = pneg %p188
      $region26: #{tpu_custom_call.1} parent=5 // pred_check_branch
        %191 = sbr.rel (%p189) target = $region28
      $region27: #{tpu_custom_call.1} parent=5 // pred_region
        // Predicated region
        $region29: #{tpu_custom_call.1} parent=27 // pred_check
          %p192 = pneg %p38
        $region30: #{tpu_custom_call.1} parent=27 // pred_check_branch
          %194 = sbr.rel (%p192) target = $region32
        $region31: #{tpu_custom_call.1} parent=27 // pred_region
          %s195 = sand.u32 %s28, 1
          %s196 = scalar_lea.sflag [#allocation3], %s195
          %s197 = sand.u32 %s28, 1
          %s198 = smul.addr %s197, 16
          %s199 = scalar_lea.vmem [#allocation2], %s198
          %201 = vsyncadd %s196, 0
          %s202 = smul.addr %s18, 4
          %s203 = smul.addr %s202, 4
          %s204 = scalar_lea.hbm %s0, %s203
          %s206 = sshll.u32 %s204, 4
          %s207 = int_to_ptr.hbm [resolvable:$true] %s206
          %s208 = sshll.u32 %s199, 4
          %s209 = int_to_ptr.vmem [resolvable:$true] %s208
          %211 = dma.hbm_to_vmem [thread:$0]  %s207, 256, %s209, %s196
        $region32: #{tpu_custom_call.1} parent=27 // pred_fallthru
          _
      $region28: #{tpu_custom_call.1} parent=5 // pred_fallthru
        _
      %p212 = scmp.le.s32.totalorder 1, %s18
      %p213 = scmp.lt.s32.totalorder %s18, 3
      %p214 = pnand %p212, %p213
      %p215 = pneg %p214
      // Predicated region
      $region33: #{tpu_custom_call.1} parent=5 // pred_check
        _
      $region34: #{tpu_custom_call.1} parent=5 // pred_check_branch
        %217 = sbr.rel (%p214) target = $region36
      $region35: #{tpu_custom_call.1} parent=5 // pred_region
        %s218 = ssub.s32 %s18, 1
        %s219 = sand.u32 %s31, 1
        %s220 = scalar_lea.sflag [#allocation3], %s219
        %s221 = sand.u32 %s31, 1
        %s222 = smul.addr %s221, 16
        %s223 = scalar_lea.vmem [#allocation2], %s222
        // Predicated region
        $region37: #{tpu_custom_call.1} parent=35 // pred_check
          %p224 = pneg %p44
        $region38: #{tpu_custom_call.1} parent=35 // pred_check_branch
          %226 = sbr.rel (%p224) target = $region40
        $region39: #{tpu_custom_call.1} parent=35 // pred_region
          %228 = dma.done %s220, 256
        $region40: #{tpu_custom_call.1} parent=35 // pred_fallthru
          _
        // Predicated region
        $region41: #{tpu_custom_call.1} parent=35 // pred_check
          %p229 = pneg %p65
        $region42: #{tpu_custom_call.1} parent=35 // pred_check_branch
          %231 = sbr.rel (%p229) target = $region44
        $region43: #{tpu_custom_call.1} parent=35 // pred_region
          %233 = dma.done [#allocation6], 32768
        $region44: #{tpu_custom_call.1} parent=35 // pred_fallthru
          _
        // Predicated region
        $region45: #{tpu_custom_call.1} parent=35 // pred_check
          %p234 = pneg %p86
        $region46: #{tpu_custom_call.1} parent=35 // pred_check_branch
          %236 = sbr.rel (%p234) target = $region48
        $region47: #{tpu_custom_call.1} parent=35 // pred_region
          %238 = dma.done [#allocation6], 32768
        $region48: #{tpu_custom_call.1} parent=35 // pred_fallthru
          _
        // Predicated region
        $region49: #{tpu_custom_call.1} parent=35 // pred_check
          %p239 = pneg %p107
        $region50: #{tpu_custom_call.1} parent=35 // pred_check_branch
          %241 = sbr.rel (%p239) target = $region52
        $region51: #{tpu_custom_call.1} parent=35 // pred_region
          %243 = dma.done [#allocation9], 1024
        $region52: #{tpu_custom_call.1} parent=35 // pred_fallthru
          _
        %s244 = sand.u32 %s31, 1
        %s245 = scalar_lea.sflag [#allocation3], %s244
        %s246 = sand.u32 %s31, 1
        %s247 = smul.addr %s246, 16
        %s248 = scalar_lea.vmem [#allocation2], %s247
        %p249 = pneg %p44
        %p250 = pneg %p41
        %p251 = pneg %p65
        %p252 = pneg %p62
        %p253 = pneg %p86
        %p254 = pneg %p83
        %p255 = pneg %p107
        %p256 = pneg %p104
        %p257 = pneg %p133
        %p258 = pneg %p130
        %s259 = sand.u32 %s120, 1
        %s260 = scalar_lea.sflag [#allocation4], %s259
        %s261 = sand.u32 %s120, 1
        %s262 = smul.addr %s261, 16
        %s263 = scalar_lea.vmem [#allocation10], %s262
        %v264 = vld [vmem:[%s223] sm:$0xff]
        %v265 = vld [vmem:[%s223 + $0x8] sm:$0xff]
        %v266 = vunpack.c.l.bf16 %v264
        %v267 = vunpack.c.h.bf16 %v264
        %v268 = vunpack.c.l.bf16 %v265
        %v269 = vunpack.c.h.bf16 %v265
        %v270 = vld [vmem:[#allocation8] ss:$8 sm:$0xf]
        %v271 = vld [vmem:[#allocation8] ss:$8 sm:$0xf0]
        %v272 = vor.u32 %v270, %v271
        %s273 = scalar_lea.vmem [#allocation8], 1
        %v274 = vld [vmem:[%s273] ss:$8 sm:$0xf]
        %s275 = scalar_lea.vmem [#allocation8], 2
        %v276 = vld [vmem:[%s275] ss:$8 sm:$0xf]
        %s277 = scalar_lea.vmem [#allocation8], 3
        %v278 = vld [vmem:[%s277] ss:$8 sm:$0xf]
        %v279 = vld [vmem:[#allocation5] sm:$0xff]
        %v280 = vld [vmem:[#allocation5 + $0x8] sm:$0xff]
        %v281 = vld [vmem:[#allocation5 + $0x10] sm:$0xff]
        %v282 = vld [vmem:[#allocation5 + $0x18] sm:$0xff]
        %v283 = vld [vmem:[#allocation5 + $0x20] sm:$0xff]
        %v284 = vld [vmem:[#allocation5 + $0x28] sm:$0xff]
        %v285 = vld [vmem:[#allocation5 + $0x30] sm:$0xff]
        %v286 = vld [vmem:[#allocation5 + $0x38] sm:$0xff]
        %v287 = vld [vmem:[#allocation5 + $0x40] sm:$0xff]
        %v288 = vld [vmem:[#allocation5 + $0x48] sm:$0xff]
        %v289 = vld [vmem:[#allocation5 + $0x50] sm:$0xff]
        %v290 = vld [vmem:[#allocation5 + $0x58] sm:$0xff]
        %v291 = vld [vmem:[#allocation5 + $0x60] sm:$0xff]
        %v292 = vld [vmem:[#allocation5 + $0x68] sm:$0xff]
        %v293 = vld [vmem:[#allocation5 + $0x70] sm:$0xff]
        %v294 = vld [vmem:[#allocation5 + $0x78] sm:$0xff]
        %v295 = vld [vmem:[#allocation5 + $0x80] sm:$0xff]
        %v296 = vld [vmem:[#allocation5 + $0x88] sm:$0xff]
        %v297 = vld [vmem:[#allocation5 + $0x90] sm:$0xff]
        %v298 = vld [vmem:[#allocation5 + $0x98] sm:$0xff]
        %v299 = vld [vmem:[#allocation5 + $0xa0] sm:$0xff]
        %v300 = vld [vmem:[#allocation5 + $0xa8] sm:$0xff]
        %v301 = vld [vmem:[#allocation5 + $0xb0] sm:$0xff]
        %v302 = vld [vmem:[#allocation5 + $0xb8] sm:$0xff]
        %v303 = vld [vmem:[#allocation5 + $0xc0] sm:$0xff]
        %v304 = vld [vmem:[#allocation5 + $0xc8] sm:$0xff]
        %v305 = vld [vmem:[#allocation5 + $0xd0] sm:$0xff]
        %v306 = vld [vmem:[#allocation5 + $0xd8] sm:$0xff]
        %v307 = vld [vmem:[#allocation5 + $0xe0] sm:$0xff]
        %v308 = vld [vmem:[#allocation5 + $0xe8] sm:$0xff]
        %v309 = vld [vmem:[#allocation5 + $0xf0] sm:$0xff]
        %v310 = vld [vmem:[#allocation5 + $0xf8] sm:$0xff]
        %v311 = vld [vmem:[#allocation5 + $0x100] sm:$0xff]
        %v312 = vld [vmem:[#allocation5 + $0x108] sm:$0xff]
        %v313 = vld [vmem:[#allocation5 + $0x110] sm:$0xff]
        %v314 = vld [vmem:[#allocation5 + $0x118] sm:$0xff]
        %v315 = vld [vmem:[#allocation5 + $0x120] sm:$0xff]
        %v316 = vld [vmem:[#allocation5 + $0x128] sm:$0xff]
        %v317 = vld [vmem:[#allocation5 + $0x130] sm:$0xff]
        %v318 = vld [vmem:[#allocation5 + $0x138] sm:$0xff]
        %v319 = vld [vmem:[#allocation5 + $0x140] sm:$0xff]
        %v320 = vld [vmem:[#allocation5 + $0x148] sm:$0xff]
        %v321 = vld [vmem:[#allocation5 + $0x150] sm:$0xff]
        %v322 = vld [vmem:[#allocation5 + $0x158] sm:$0xff]
        %v323 = vld [vmem:[#allocation5 + $0x160] sm:$0xff]
        %v324 = vld [vmem:[#allocation5 + $0x168] sm:$0xff]
        %v325 = vld [vmem:[#allocation5 + $0x170] sm:$0xff]
        %v326 = vld [vmem:[#allocation5 + $0x178] sm:$0xff]
        %v327 = vld [vmem:[#allocation5 + $0x180] sm:$0xff]
        %v328 = vld [vmem:[#allocation5 + $0x188] sm:$0xff]
        %v329 = vld [vmem:[#allocation5 + $0x190] sm:$0xff]
        %v330 = vld [vmem:[#allocation5 + $0x198] sm:$0xff]
        %v331 = vld [vmem:[#allocation5 + $0x1a0] sm:$0xff]
        %v332 = vld [vmem:[#allocation5 + $0x1a8] sm:$0xff]
        %v333 = vld [vmem:[#allocation5 + $0x1b0] sm:$0xff]
        %v334 = vld [vmem:[#allocation5 + $0x1b8] sm:$0xff]
        %v335 = vld [vmem:[#allocation5 + $0x1c0] sm:$0xff]
        %v336 = vld [vmem:[#allocation5 + $0x1c8] sm:$0xff]
        %v337 = vld [vmem:[#allocation5 + $0x1d0] sm:$0xff]
        %v338 = vld [vmem:[#allocation5 + $0x1d8] sm:$0xff]
        %v339 = vld [vmem:[#allocation5 + $0x1e0] sm:$0xff]
        %v340 = vld [vmem:[#allocation5 + $0x1e8] sm:$0xff]
        %v341 = vld [vmem:[#allocation5 + $0x1f0] sm:$0xff]
        %v342 = vld [vmem:[#allocation5 + $0x1f8] sm:$0xff]
        %v343 = vld [vmem:[#allocation5 + $0x200] sm:$0xff]
        %v344 = vld [vmem:[#allocation5 + $0x208] sm:$0xff]
        %v345 = vld [vmem:[#allocation5 + $0x210] sm:$0xff]
        %v346 = vld [vmem:[#allocation5 + $0x218] sm:$0xff]
        %v347 = vld [vmem:[#allocation5 + $0x220] sm:$0xff]
        %v348 = vld [vmem:[#allocation5 + $0x228] sm:$0xff]
        %v349 = vld [vmem:[#allocation5 + $0x230] sm:$0xff]
        %v350 = vld [vmem:[#allocation5 + $0x238] sm:$0xff]
        %v351 = vld [vmem:[#allocation5 + $0x240] sm:$0xff]
        %v352 = vld [vmem:[#allocation5 + $0x248] sm:$0xff]
        %v353 = vld [vmem:[#allocation5 + $0x250] sm:$0xff]
        %v354 = vld [vmem:[#allocation5 + $0x258] sm:$0xff]
        %v355 = vld [vmem:[#allocation5 + $0x260] sm:$0xff]
        %v356 = vld [vmem:[#allocation5 + $0x268] sm:$0xff]
        %v357 = vld [vmem:[#allocation5 + $0x270] sm:$0xff]
        %v358 = vld [vmem:[#allocation5 + $0x278] sm:$0xff]
        %v359 = vld [vmem:[#allocation5 + $0x280] sm:$0xff]
        %v360 = vld [vmem:[#allocation5 + $0x288] sm:$0xff]
        %v361 = vld [vmem:[#allocation5 + $0x290] sm:$0xff]
        %v362 = vld [vmem:[#allocation5 + $0x298] sm:$0xff]
        %v363 = vld [vmem:[#allocation5 + $0x2a0] sm:$0xff]
        %v364 = vld [vmem:[#allocation5 + $0x2a8] sm:$0xff]
        %v365 = vld [vmem:[#allocation5 + $0x2b0] sm:$0xff]
        %v366 = vld [vmem:[#allocation5 + $0x2b8] sm:$0xff]
        %v367 = vld [vmem:[#allocation5 + $0x2c0] sm:$0xff]
        %v368 = vld [vmem:[#allocation5 + $0x2c8] sm:$0xff]
        %v369 = vld [vmem:[#allocation5 + $0x2d0] sm:$0xff]
        %v370 = vld [vmem:[#allocation5 + $0x2d8] sm:$0xff]
        %v371 = vld [vmem:[#allocation5 + $0x2e0] sm:$0xff]
        %v372 = vld [vmem:[#allocation5 + $0x2e8] sm:$0xff]
        %v373 = vld [vmem:[#allocation5 + $0x2f0] sm:$0xff]
        %v374 = vld [vmem:[#allocation5 + $0x2f8] sm:$0xff]
        %v375 = vld [vmem:[#allocation5 + $0x300] sm:$0xff]
        %v376 = vld [vmem:[#allocation5 + $0x308] sm:$0xff]
        %v377 = vld [vmem:[#allocation5 + $0x310] sm:$0xff]
        %v378 = vld [vmem:[#allocation5 + $0x318] sm:$0xff]
        %v379 = vld [vmem:[#allocation5 + $0x320] sm:$0xff]
        %v380 = vld [vmem:[#allocation5 + $0x328] sm:$0xff]
        %v381 = vld [vmem:[#allocation5 + $0x330] sm:$0xff]
        %v382 = vld [vmem:[#allocation5 + $0x338] sm:$0xff]
        %v383 = vld [vmem:[#allocation5 + $0x340] sm:$0xff]
        %v384 = vld [vmem:[#allocation5 + $0x348] sm:$0xff]
        %v385 = vld [vmem:[#allocation5 + $0x350] sm:$0xff]
        %v386 = vld [vmem:[#allocation5 + $0x358] sm:$0xff]
        %v387 = vld [vmem:[#allocation5 + $0x360] sm:$0xff]
        %v388 = vld [vmem:[#allocation5 + $0x368] sm:$0xff]
        %v389 = vld [vmem:[#allocation5 + $0x370] sm:$0xff]
        %v390 = vld [vmem:[#allocation5 + $0x378] sm:$0xff]
        %v391 = vld [vmem:[#allocation5 + $0x380] sm:$0xff]
        %v392 = vld [vmem:[#allocation5 + $0x388] sm:$0xff]
        %v393 = vld [vmem:[#allocation5 + $0x390] sm:$0xff]
        %v394 = vld [vmem:[#allocation5 + $0x398] sm:$0xff]
        %v395 = vld [vmem:[#allocation5 + $0x3a0] sm:$0xff]
        %v396 = vld [vmem:[#allocation5 + $0x3a8] sm:$0xff]
        %v397 = vld [vmem:[#allocation5 + $0x3b0] sm:$0xff]
        %v398 = vld [vmem:[#allocation5 + $0x3b8] sm:$0xff]
        %v399 = vld [vmem:[#allocation5 + $0x3c0] sm:$0xff]
        %v400 = vld [vmem:[#allocation5 + $0x3c8] sm:$0xff]
        %v401 = vld [vmem:[#allocation5 + $0x3d0] sm:$0xff]
        %v402 = vld [vmem:[#allocation5 + $0x3d8] sm:$0xff]
        %v403 = vld [vmem:[#allocation5 + $0x3e0] sm:$0xff]
        %v404 = vld [vmem:[#allocation5 + $0x3e8] sm:$0xff]
        %v405 = vld [vmem:[#allocation5 + $0x3f0] sm:$0xff]
        %v406 = vld [vmem:[#allocation5 + $0x3f8] sm:$0xff]
        %v407 = vld [vmem:[#allocation5 + $0x400] sm:$0xff]
        %v408 = vld [vmem:[#allocation5 + $0x408] sm:$0xff]
        %v409 = vld [vmem:[#allocation5 + $0x410] sm:$0xff]
        %v410 = vld [vmem:[#allocation5 + $0x418] sm:$0xff]
        %v411 = vld [vmem:[#allocation5 + $0x420] sm:$0xff]
        %v412 = vld [vmem:[#allocation5 + $0x428] sm:$0xff]
        %v413 = vld [vmem:[#allocation5 + $0x430] sm:$0xff]
        %v414 = vld [vmem:[#allocation5 + $0x438] sm:$0xff]
        %v415 = vld [vmem:[#allocation5 + $0x440] sm:$0xff]
        %v416 = vld [vmem:[#allocation5 + $0x448] sm:$0xff]
        %v417 = vld [vmem:[#allocation5 + $0x450] sm:$0xff]
        %v418 = vld [vmem:[#allocation5 + $0x458] sm:$0xff]
        %v419 = vld [vmem:[#allocation5 + $0x460] sm:$0xff]
        %v420 = vld [vmem:[#allocation5 + $0x468] sm:$0xff]
        %v421 = vld [vmem:[#allocation5 + $0x470] sm:$0xff]
        %v422 = vld [vmem:[#allocation5 + $0x478] sm:$0xff]
        %v423 = vld [vmem:[#allocation5 + $0x480] sm:$0xff]
        %v424 = vld [vmem:[#allocation5 + $0x488] sm:$0xff]
        %v425 = vld [vmem:[#allocation5 + $0x490] sm:$0xff]
        %v426 = vld [vmem:[#allocation5 + $0x498] sm:$0xff]
        %v427 = vld [vmem:[#allocation5 + $0x4a0] sm:$0xff]
        %v428 = vld [vmem:[#allocation5 + $0x4a8] sm:$0xff]
        %v429 = vld [vmem:[#allocation5 + $0x4b0] sm:$0xff]
        %v430 = vld [vmem:[#allocation5 + $0x4b8] sm:$0xff]
        %v431 = vld [vmem:[#allocation5 + $0x4c0] sm:$0xff]
        %v432 = vld [vmem:[#allocation5 + $0x4c8] sm:$0xff]
        %v433 = vld [vmem:[#allocation5 + $0x4d0] sm:$0xff]
        %v434 = vld [vmem:[#allocation5 + $0x4d8] sm:$0xff]
        %v435 = vld [vmem:[#allocation5 + $0x4e0] sm:$0xff]
        %v436 = vld [vmem:[#allocation5 + $0x4e8] sm:$0xff]
        %v437 = vld [vmem:[#allocation5 + $0x4f0] sm:$0xff]
        %v438 = vld [vmem:[#allocation5 + $0x4f8] sm:$0xff]
        %v439 = vld [vmem:[#allocation5 + $0x500] sm:$0xff]
        %v440 = vld [vmem:[#allocation5 + $0x508] sm:$0xff]
        %v441 = vld [vmem:[#allocation5 + $0x510] sm:$0xff]
        %v442 = vld [vmem:[#allocation5 + $0x518] sm:$0xff]
        %v443 = vld [vmem:[#allocation5 + $0x520] sm:$0xff]
        %v444 = vld [vmem:[#allocation5 + $0x528] sm:$0xff]
        %v445 = vld [vmem:[#allocation5 + $0x530] sm:$0xff]
        %v446 = vld [vmem:[#allocation5 + $0x538] sm:$0xff]
        %v447 = vld [vmem:[#allocation5 + $0x540] sm:$0xff]
        %v448 = vld [vmem:[#allocation5 + $0x548] sm:$0xff]
        %v449 = vld [vmem:[#allocation5 + $0x550] sm:$0xff]
        %v450 = vld [vmem:[#allocation5 + $0x558] sm:$0xff]
        %v451 = vld [vmem:[#allocation5 + $0x560] sm:$0xff]
        %v452 = vld [vmem:[#allocation5 + $0x568] sm:$0xff]
        %v453 = vld [vmem:[#allocation5 + $0x570] sm:$0xff]
        %v454 = vld [vmem:[#allocation5 + $0x578] sm:$0xff]
        %v455 = vld [vmem:[#allocation5 + $0x580] sm:$0xff]
        %v456 = vld [vmem:[#allocation5 + $0x588] sm:$0xff]
        %v457 = vld [vmem:[#allocation5 + $0x590] sm:$0xff]
        %v458 = vld [vmem:[#allocation5 + $0x598] sm:$0xff]
        %v459 = vld [vmem:[#allocation5 + $0x5a0] sm:$0xff]
        %v460 = vld [vmem:[#allocation5 + $0x5a8] sm:$0xff]
        %v461 = vld [vmem:[#allocation5 + $0x5b0] sm:$0xff]
        %v462 = vld [vmem:[#allocation5 + $0x5b8] sm:$0xff]
        %v463 = vld [vmem:[#allocation5 + $0x5c0] sm:$0xff]
        %v464 = vld [vmem:[#allocation5 + $0x5c8] sm:$0xff]
        %v465 = vld [vmem:[#allocation5 + $0x5d0] sm:$0xff]
        %v466 = vld [vmem:[#allocation5 + $0x5d8] sm:$0xff]
        %v467 = vld [vmem:[#allocation5 + $0x5e0] sm:$0xff]
        %v468 = vld [vmem:[#allocation5 + $0x5e8] sm:$0xff]
        %v469 = vld [vmem:[#allocation5 + $0x5f0] sm:$0xff]
        %v470 = vld [vmem:[#allocation5 + $0x5f8] sm:$0xff]
        %v471 = vld [vmem:[#allocation5 + $0x600] sm:$0xff]
        %v472 = vld [vmem:[#allocation5 + $0x608] sm:$0xff]
        %v473 = vld [vmem:[#allocation5 + $0x610] sm:$0xff]
        %v474 = vld [vmem:[#allocation5 + $0x618] sm:$0xff]
        %v475 = vld [vmem:[#allocation5 + $0x620] sm:$0xff]
        %v476 = vld [vmem:[#allocation5 + $0x628] sm:$0xff]
        %v477 = vld [vmem:[#allocation5 + $0x630] sm:$0xff]
        %v478 = vld [vmem:[#allocation5 + $0x638] sm:$0xff]
        %v479 = vld [vmem:[#allocation5 + $0x640] sm:$0xff]
        %v480 = vld [vmem:[#allocation5 + $0x648] sm:$0xff]
        %v481 = vld [vmem:[#allocation5 + $0x650] sm:$0xff]
        %v482 = vld [vmem:[#allocation5 + $0x658] sm:$0xff]
        %v483 = vld [vmem:[#allocation5 + $0x660] sm:$0xff]
        %v484 = vld [vmem:[#allocation5 + $0x668] sm:$0xff]
        %v485 = vld [vmem:[#allocation5 + $0x670] sm:$0xff]
        %v486 = vld [vmem:[#allocation5 + $0x678] sm:$0xff]
        %v487 = vld [vmem:[#allocation5 + $0x680] sm:$0xff]
        %v488 = vld [vmem:[#allocation5 + $0x688] sm:$0xff]
        %v489 = vld [vmem:[#allocation5 + $0x690] sm:$0xff]
        %v490 = vld [vmem:[#allocation5 + $0x698] sm:$0xff]
        %v491 = vld [vmem:[#allocation5 + $0x6a0] sm:$0xff]
        %v492 = vld [vmem:[#allocation5 + $0x6a8] sm:$0xff]
        %v493 = vld [vmem:[#allocation5 + $0x6b0] sm:$0xff]
        %v494 = vld [vmem:[#allocation5 + $0x6b8] sm:$0xff]
        %v495 = vld [vmem:[#allocation5 + $0x6c0] sm:$0xff]
        %v496 = vld [vmem:[#allocation5 + $0x6c8] sm:$0xff]
        %v497 = vld [vmem:[#allocation5 + $0x6d0] sm:$0xff]
        %v498 = vld [vmem:[#allocation5 + $0x6d8] sm:$0xff]
        %v499 = vld [vmem:[#allocation5 + $0x6e0] sm:$0xff]
        %v500 = vld [vmem:[#allocation5 + $0x6e8] sm:$0xff]
        %v501 = vld [vmem:[#allocation5 + $0x6f0] sm:$0xff]
        %v502 = vld [vmem:[#allocation5 + $0x6f8] sm:$0xff]
        %v503 = vld [vmem:[#allocation5 + $0x700] sm:$0xff]
        %v504 = vld [vmem:[#allocation5 + $0x708] sm:$0xff]
        %v505 = vld [vmem:[#allocation5 + $0x710] sm:$0xff]
        %v506 = vld [vmem:[#allocation5 + $0x718] sm:$0xff]
        %v507 = vld [vmem:[#allocation5 + $0x720] sm:$0xff]
        %v508 = vld [vmem:[#allocation5 + $0x728] sm:$0xff]
        %v509 = vld [vmem:[#allocation5 + $0x730] sm:$0xff]
        %v510 = vld [vmem:[#allocation5 + $0x738] sm:$0xff]
        %v511 = vld [vmem:[#allocation5 + $0x740] sm:$0xff]
        %v512 = vld [vmem:[#allocation5 + $0x748] sm:$0xff]
        %v513 = vld [vmem:[#allocation5 + $0x750] sm:$0xff]
        %v514 = vld [vmem:[#allocation5 + $0x758] sm:$0xff]
        %v515 = vld [vmem:[#allocation5 + $0x760] sm:$0xff]
        %v516 = vld [vmem:[#allocation5 + $0x768] sm:$0xff]
        %v517 = vld [vmem:[#allocation5 + $0x770] sm:$0xff]
        %v518 = vld [vmem:[#allocation5 + $0x778] sm:$0xff]
        %v519 = vld [vmem:[#allocation5 + $0x780] sm:$0xff]
        %v520 = vld [vmem:[#allocation5 + $0x788] sm:$0xff]
        %v521 = vld [vmem:[#allocation5 + $0x790] sm:$0xff]
        %v522 = vld [vmem:[#allocation5 + $0x798] sm:$0xff]
        %v523 = vld [vmem:[#allocation5 + $0x7a0] sm:$0xff]
        %v524 = vld [vmem:[#allocation5 + $0x7a8] sm:$0xff]
        %v525 = vld [vmem:[#allocation5 + $0x7b0] sm:$0xff]
        %v526 = vld [vmem:[#allocation5 + $0x7b8] sm:$0xff]
        %v527 = vld [vmem:[#allocation5 + $0x7c0] sm:$0xff]
        %v528 = vld [vmem:[#allocation5 + $0x7c8] sm:$0xff]
        %v529 = vld [vmem:[#allocation5 + $0x7d0] sm:$0xff]
        %v530 = vld [vmem:[#allocation5 + $0x7d8] sm:$0xff]
        %v531 = vld [vmem:[#allocation5 + $0x7e0] sm:$0xff]
        %v532 = vld [vmem:[#allocation5 + $0x7e8] sm:$0xff]
        %v533 = vld [vmem:[#allocation5 + $0x7f0] sm:$0xff]
        %v534 = vld [vmem:[#allocation5 + $0x7f8] sm:$0xff]
        %v536 = vperm.slane %v272, 0
        %v537 = vperm.slane %v272, 1
        %v538 = vperm.slane %v272, 2
        %v539 = vperm.slane %v272, 3
        %v540 = vperm.slane %v272, 4
        %v541 = vperm.slane %v272, 5
        %v542 = vperm.slane %v272, 6
        %v543 = vperm.slane %v272, 7
        %v554 = vunpack.c.l.b16 %v264
        %v555 = vunpack.c.h.b16 %v264
        %v556 = vunpack.c.l.b16 %v265
        %v557 = vunpack.c.h.b16 %v265
        %v558 = vpack.c.b16 %v554, %v554
        %v559 = vpack.c.b16 %v555, %v555
        %v560 = vpack.c.b16 %v556, %v556
        %v561 = vpack.c.b16 %v557, %v557
        %v822 = vunpack.c.l.b16 %v279
        %v823 = vunpack.c.h.b16 %v279
        %v824 = vunpack.c.l.b16 %v280
        %v825 = vunpack.c.h.b16 %v280
        %v826 = vunpack.c.l.b16 %v281
        %v827 = vunpack.c.h.b16 %v281
        %v828 = vunpack.c.l.b16 %v282
        %v829 = vunpack.c.h.b16 %v282
        %v830 = vunpack.c.l.b16 %v283
        %v831 = vunpack.c.h.b16 %v283
        %v832 = vunpack.c.l.b16 %v284
        %v833 = vunpack.c.h.b16 %v284
        %v834 = vunpack.c.l.b16 %v285
        %v835 = vunpack.c.h.b16 %v285
        %v836 = vunpack.c.l.b16 %v286
        %v837 = vunpack.c.h.b16 %v286
        %v838 = vunpack.c.l.b16 %v287
        %v839 = vunpack.c.h.b16 %v287
        %v840 = vunpack.c.l.b16 %v288
        %v841 = vunpack.c.h.b16 %v288
        %v842 = vunpack.c.l.b16 %v289
        %v843 = vunpack.c.h.b16 %v289
        %v844 = vunpack.c.l.b16 %v290
        %v845 = vunpack.c.h.b16 %v290
        %v846 = vunpack.c.l.b16 %v291
        %v847 = vunpack.c.h.b16 %v291
        %v848 = vunpack.c.l.b16 %v292
        %v849 = vunpack.c.h.b16 %v292
        %v850 = vunpack.c.l.b16 %v293
        %v851 = vunpack.c.h.b16 %v293
        %v852 = vunpack.c.l.b16 %v294
        %v853 = vunpack.c.h.b16 %v294
        %v854 = vunpack.c.l.b16 %v295
        %v855 = vunpack.c.h.b16 %v295
        %v856 = vunpack.c.l.b16 %v296
        %v857 = vunpack.c.h.b16 %v296
        %v858 = vunpack.c.l.b16 %v297
        %v859 = vunpack.c.h.b16 %v297
        %v860 = vunpack.c.l.b16 %v298
        %v861 = vunpack.c.h.b16 %v298
        %v862 = vunpack.c.l.b16 %v299
        %v863 = vunpack.c.h.b16 %v299
        %v864 = vunpack.c.l.b16 %v300
        %v865 = vunpack.c.h.b16 %v300
        %v866 = vunpack.c.l.b16 %v301
        %v867 = vunpack.c.h.b16 %v301
        %v868 = vunpack.c.l.b16 %v302
        %v869 = vunpack.c.h.b16 %v302
        %v870 = vunpack.c.l.b16 %v303
        %v871 = vunpack.c.h.b16 %v303
        %v872 = vunpack.c.l.b16 %v304
        %v873 = vunpack.c.h.b16 %v304
        %v874 = vunpack.c.l.b16 %v305
        %v875 = vunpack.c.h.b16 %v305
        %v876 = vunpack.c.l.b16 %v306
        %v877 = vunpack.c.h.b16 %v306
        %v878 = vunpack.c.l.b16 %v307
        %v879 = vunpack.c.h.b16 %v307
        %v880 = vunpack.c.l.b16 %v308
        %v881 = vunpack.c.h.b16 %v308
        %v882 = vunpack.c.l.b16 %v309
        %v883 = vunpack.c.h.b16 %v309
        %v884 = vunpack.c.l.b16 %v310
        %v885 = vunpack.c.h.b16 %v310
        %v886 = vunpack.c.l.b16 %v311
        %v887 = vunpack.c.h.b16 %v311
        %v888 = vunpack.c.l.b16 %v312
        %v889 = vunpack.c.h.b16 %v312
        %v890 = vunpack.c.l.b16 %v313
        %v891 = vunpack.c.h.b16 %v313
        %v892 = vunpack.c.l.b16 %v314
        %v893 = vunpack.c.h.b16 %v314
        %v894 = vunpack.c.l.b16 %v315
        %v895 = vunpack.c.h.b16 %v315
        %v896 = vunpack.c.l.b16 %v316
        %v897 = vunpack.c.h.b16 %v316
        %v898 = vunpack.c.l.b16 %v317
        %v899 = vunpack.c.h.b16 %v317
        %v900 = vunpack.c.l.b16 %v318
        %v901 = vunpack.c.h.b16 %v318
        %v902 = vunpack.c.l.b16 %v319
        %v903 = vunpack.c.h.b16 %v319
        %v904 = vunpack.c.l.b16 %v320
        %v905 = vunpack.c.h.b16 %v320
        %v906 = vunpack.c.l.b16 %v321
        %v907 = vunpack.c.h.b16 %v321
        %v908 = vunpack.c.l.b16 %v322
        %v909 = vunpack.c.h.b16 %v322
        %v910 = vunpack.c.l.b16 %v323
        %v911 = vunpack.c.h.b16 %v323
        %v912 = vunpack.c.l.b16 %v324
        %v913 = vunpack.c.h.b16 %v324
        %v914 = vunpack.c.l.b16 %v325
        %v915 = vunpack.c.h.b16 %v325
        %v916 = vunpack.c.l.b16 %v326
        %v917 = vunpack.c.h.b16 %v326
        %v918 = vunpack.c.l.b16 %v327
        %v919 = vunpack.c.h.b16 %v327
        %v920 = vunpack.c.l.b16 %v328
        %v921 = vunpack.c.h.b16 %v328
        %v922 = vunpack.c.l.b16 %v329
        %v923 = vunpack.c.h.b16 %v329
        %v924 = vunpack.c.l.b16 %v330
        %v925 = vunpack.c.h.b16 %v330
        %v926 = vunpack.c.l.b16 %v331
        %v927 = vunpack.c.h.b16 %v331
        %v928 = vunpack.c.l.b16 %v332
        %v929 = vunpack.c.h.b16 %v332
        %v930 = vunpack.c.l.b16 %v333
        %v931 = vunpack.c.h.b16 %v333
        %v932 = vunpack.c.l.b16 %v334
        %v933 = vunpack.c.h.b16 %v334
        %v934 = vunpack.c.l.b16 %v335
        %v935 = vunpack.c.h.b16 %v335
        %v936 = vunpack.c.l.b16 %v336
        %v937 = vunpack.c.h.b16 %v336
        %v938 = vunpack.c.l.b16 %v337
        %v939 = vunpack.c.h.b16 %v337
        %v940 = vunpack.c.l.b16 %v338
        %v941 = vunpack.c.h.b16 %v338
        %v942 = vunpack.c.l.b16 %v339
        %v943 = vunpack.c.h.b16 %v339
        %v944 = vunpack.c.l.b16 %v340
        %v945 = vunpack.c.h.b16 %v340
        %v946 = vunpack.c.l.b16 %v341
        %v947 = vunpack.c.h.b16 %v341
        %v948 = vunpack.c.l.b16 %v342
        %v949 = vunpack.c.h.b16 %v342
        %v950 = vunpack.c.l.b16 %v343
        %v951 = vunpack.c.h.b16 %v343
        %v952 = vunpack.c.l.b16 %v344
        %v953 = vunpack.c.h.b16 %v344
        %v954 = vunpack.c.l.b16 %v345
        %v955 = vunpack.c.h.b16 %v345
        %v956 = vunpack.c.l.b16 %v346
        %v957 = vunpack.c.h.b16 %v346
        %v958 = vunpack.c.l.b16 %v347
        %v959 = vunpack.c.h.b16 %v347
        %v960 = vunpack.c.l.b16 %v348
        %v961 = vunpack.c.h.b16 %v348
        %v962 = vunpack.c.l.b16 %v349
        %v963 = vunpack.c.h.b16 %v349
        %v964 = vunpack.c.l.b16 %v350
        %v965 = vunpack.c.h.b16 %v350
        %v966 = vunpack.c.l.b16 %v351
        %v967 = vunpack.c.h.b16 %v351
        %v968 = vunpack.c.l.b16 %v352
        %v969 = vunpack.c.h.b16 %v352
        %v970 = vunpack.c.l.b16 %v353
        %v971 = vunpack.c.h.b16 %v353
        %v972 = vunpack.c.l.b16 %v354
        %v973 = vunpack.c.h.b16 %v354
        %v974 = vunpack.c.l.b16 %v355
        %v975 = vunpack.c.h.b16 %v355
        %v976 = vunpack.c.l.b16 %v356
        %v977 = vunpack.c.h.b16 %v356
        %v978 = vunpack.c.l.b16 %v357
        %v979 = vunpack.c.h.b16 %v357
        %v980 = vunpack.c.l.b16 %v358
        %v981 = vunpack.c.h.b16 %v358
        %v982 = vunpack.c.l.b16 %v359
        %v983 = vunpack.c.h.b16 %v359
        %v984 = vunpack.c.l.b16 %v360
        %v985 = vunpack.c.h.b16 %v360
        %v986 = vunpack.c.l.b16 %v361
        %v987 = vunpack.c.h.b16 %v361
        %v988 = vunpack.c.l.b16 %v362
        %v989 = vunpack.c.h.b16 %v362
        %v990 = vunpack.c.l.b16 %v363
        %v991 = vunpack.c.h.b16 %v363
        %v992 = vunpack.c.l.b16 %v364
        %v993 = vunpack.c.h.b16 %v364
        %v994 = vunpack.c.l.b16 %v365
        %v995 = vunpack.c.h.b16 %v365
        %v996 = vunpack.c.l.b16 %v366
        %v997 = vunpack.c.h.b16 %v366
        %v998 = vunpack.c.l.b16 %v367
        %v999 = vunpack.c.h.b16 %v367
        %v1000 = vunpack.c.l.b16 %v368
        %v1001 = vunpack.c.h.b16 %v368
        %v1002 = vunpack.c.l.b16 %v369
        %v1003 = vunpack.c.h.b16 %v369
        %v1004 = vunpack.c.l.b16 %v370
        %v1005 = vunpack.c.h.b16 %v370
        %v1006 = vunpack.c.l.b16 %v371
        %v1007 = vunpack.c.h.b16 %v371
        %v1008 = vunpack.c.l.b16 %v372
        %v1009 = vunpack.c.h.b16 %v372
        %v1010 = vunpack.c.l.b16 %v373
        %v1011 = vunpack.c.h.b16 %v373
        %v1012 = vunpack.c.l.b16 %v374
        %v1013 = vunpack.c.h.b16 %v374
        %v1014 = vunpack.c.l.b16 %v375
        %v1015 = vunpack.c.h.b16 %v375
        %v1016 = vunpack.c.l.b16 %v376
        %v1017 = vunpack.c.h.b16 %v376
        %v1018 = vunpack.c.l.b16 %v377
        %v1019 = vunpack.c.h.b16 %v377
        %v1020 = vunpack.c.l.b16 %v378
        %v1021 = vunpack.c.h.b16 %v378
        %v1022 = vunpack.c.l.b16 %v379
        %v1023 = vunpack.c.h.b16 %v379
        %v1024 = vunpack.c.l.b16 %v380
        %v1025 = vunpack.c.h.b16 %v380
        %v1026 = vunpack.c.l.b16 %v381
        %v1027 = vunpack.c.h.b16 %v381
        %v1028 = vunpack.c.l.b16 %v382
        %v1029 = vunpack.c.h.b16 %v382
        %v1030 = vunpack.c.l.b16 %v383
        %v1031 = vunpack.c.h.b16 %v383
        %v1032 = vunpack.c.l.b16 %v384
        %v1033 = vunpack.c.h.b16 %v384
        %v1034 = vunpack.c.l.b16 %v385
        %v1035 = vunpack.c.h.b16 %v385
        %v1036 = vunpack.c.l.b16 %v386
        %v1037 = vunpack.c.h.b16 %v386
        %v1038 = vunpack.c.l.b16 %v387
        %v1039 = vunpack.c.h.b16 %v387
        %v1040 = vunpack.c.l.b16 %v388
        %v1041 = vunpack.c.h.b16 %v388
        %v1042 = vunpack.c.l.b16 %v389
        %v1043 = vunpack.c.h.b16 %v389
        %v1044 = vunpack.c.l.b16 %v390
        %v1045 = vunpack.c.h.b16 %v390
        %v1046 = vunpack.c.l.b16 %v391
        %v1047 = vunpack.c.h.b16 %v391
        %v1048 = vunpack.c.l.b16 %v392
        %v1049 = vunpack.c.h.b16 %v392
        %v1050 = vunpack.c.l.b16 %v393
        %v1051 = vunpack.c.h.b16 %v393
        %v1052 = vunpack.c.l.b16 %v394
        %v1053 = vunpack.c.h.b16 %v394
        %v1054 = vunpack.c.l.b16 %v395
        %v1055 = vunpack.c.h.b16 %v395
        %v1056 = vunpack.c.l.b16 %v396
        %v1057 = vunpack.c.h.b16 %v396
        %v1058 = vunpack.c.l.b16 %v397
        %v1059 = vunpack.c.h.b16 %v397
        %v1060 = vunpack.c.l.b16 %v398
        %v1061 = vunpack.c.h.b16 %v398
        %v1062 = vunpack.c.l.b16 %v399
        %v1063 = vunpack.c.h.b16 %v399
        %v1064 = vunpack.c.l.b16 %v400
        %v1065 = vunpack.c.h.b16 %v400
        %v1066 = vunpack.c.l.b16 %v401
        %v1067 = vunpack.c.h.b16 %v401
        %v1068 = vunpack.c.l.b16 %v402
        %v1069 = vunpack.c.h.b16 %v402
        %v1070 = vunpack.c.l.b16 %v403
        %v1071 = vunpack.c.h.b16 %v403
        %v1072 = vunpack.c.l.b16 %v404
        %v1073 = vunpack.c.h.b16 %v404
        %v1074 = vunpack.c.l.b16 %v405
        %v1075 = vunpack.c.h.b16 %v405
        %v1076 = vunpack.c.l.b16 %v406
        %v1077 = vunpack.c.h.b16 %v406
        %v1078 = vunpack.c.l.b16 %v407
        %v1079 = vunpack.c.h.b16 %v407
        %v1080 = vunpack.c.l.b16 %v408
        %v1081 = vunpack.c.h.b16 %v408
        %v1082 = vunpack.c.l.b16 %v409
        %v1083 = vunpack.c.h.b16 %v409
        %v1084 = vunpack.c.l.b16 %v410
        %v1085 = vunpack.c.h.b16 %v410
        %v1086 = vunpack.c.l.b16 %v411
        %v1087 = vunpack.c.h.b16 %v411
        %v1088 = vunpack.c.l.b16 %v412
        %v1089 = vunpack.c.h.b16 %v412
        %v1090 = vunpack.c.l.b16 %v413
        %v1091 = vunpack.c.h.b16 %v413
        %v1092 = vunpack.c.l.b16 %v414
        %v1093 = vunpack.c.h.b16 %v414
        %v1094 = vunpack.c.l.b16 %v415
        %v1095 = vunpack.c.h.b16 %v415
        %v1096 = vunpack.c.l.b16 %v416
        %v1097 = vunpack.c.h.b16 %v416
        %v1098 = vunpack.c.l.b16 %v417
        %v1099 = vunpack.c.h.b16 %v417
        %v1100 = vunpack.c.l.b16 %v418
        %v1101 = vunpack.c.h.b16 %v418
        %v1102 = vunpack.c.l.b16 %v419
        %v1103 = vunpack.c.h.b16 %v419
        %v1104 = vunpack.c.l.b16 %v420
        %v1105 = vunpack.c.h.b16 %v420
        %v1106 = vunpack.c.l.b16 %v421
        %v1107 = vunpack.c.h.b16 %v421
        %v1108 = vunpack.c.l.b16 %v422
        %v1109 = vunpack.c.h.b16 %v422
        %v1110 = vunpack.c.l.b16 %v423
        %v1111 = vunpack.c.h.b16 %v423
        %v1112 = vunpack.c.l.b16 %v424
        %v1113 = vunpack.c.h.b16 %v424
        %v1114 = vunpack.c.l.b16 %v425
        %v1115 = vunpack.c.h.b16 %v425
        %v1116 = vunpack.c.l.b16 %v426
        %v1117 = vunpack.c.h.b16 %v426
        %v1118 = vunpack.c.l.b16 %v427
        %v1119 = vunpack.c.h.b16 %v427
        %v1120 = vunpack.c.l.b16 %v428
        %v1121 = vunpack.c.h.b16 %v428
        %v1122 = vunpack.c.l.b16 %v429
        %v1123 = vunpack.c.h.b16 %v429
        %v1124 = vunpack.c.l.b16 %v430
        %v1125 = vunpack.c.h.b16 %v430
        %v1126 = vunpack.c.l.b16 %v431
        %v1127 = vunpack.c.h.b16 %v431
        %v1128 = vunpack.c.l.b16 %v432
        %v1129 = vunpack.c.h.b16 %v432
        %v1130 = vunpack.c.l.b16 %v433
        %v1131 = vunpack.c.h.b16 %v433
        %v1132 = vunpack.c.l.b16 %v434
        %v1133 = vunpack.c.h.b16 %v434
        %v1134 = vunpack.c.l.b16 %v435
        %v1135 = vunpack.c.h.b16 %v435
        %v1136 = vunpack.c.l.b16 %v436
        %v1137 = vunpack.c.h.b16 %v436
        %v1138 = vunpack.c.l.b16 %v437
        %v1139 = vunpack.c.h.b16 %v437
        %v1140 = vunpack.c.l.b16 %v438
        %v1141 = vunpack.c.h.b16 %v438
        %v1142 = vunpack.c.l.b16 %v439
        %v1143 = vunpack.c.h.b16 %v439
        %v1144 = vunpack.c.l.b16 %v440
        %v1145 = vunpack.c.h.b16 %v440
        %v1146 = vunpack.c.l.b16 %v441
        %v1147 = vunpack.c.h.b16 %v441
        %v1148 = vunpack.c.l.b16 %v442
        %v1149 = vunpack.c.h.b16 %v442
        %v1150 = vunpack.c.l.b16 %v443
        %v1151 = vunpack.c.h.b16 %v443
        %v1152 = vunpack.c.l.b16 %v444
        %v1153 = vunpack.c.h.b16 %v444
        %v1154 = vunpack.c.l.b16 %v445
        %v1155 = vunpack.c.h.b16 %v445
        %v1156 = vunpack.c.l.b16 %v446
        %v1157 = vunpack.c.h.b16 %v446
        %v1158 = vunpack.c.l.b16 %v447
        %v1159 = vunpack.c.h.b16 %v447
        %v1160 = vunpack.c.l.b16 %v448
        %v1161 = vunpack.c.h.b16 %v448
        %v1162 = vunpack.c.l.b16 %v449
        %v1163 = vunpack.c.h.b16 %v449
        %v1164 = vunpack.c.l.b16 %v450
        %v1165 = vunpack.c.h.b16 %v450
        %v1166 = vunpack.c.l.b16 %v451
        %v1167 = vunpack.c.h.b16 %v451
        %v1168 = vunpack.c.l.b16 %v452
        %v1169 = vunpack.c.h.b16 %v452
        %v1170 = vunpack.c.l.b16 %v453
        %v1171 = vunpack.c.h.b16 %v453
        %v1172 = vunpack.c.l.b16 %v454
        %v1173 = vunpack.c.h.b16 %v454
        %v1174 = vunpack.c.l.b16 %v455
        %v1175 = vunpack.c.h.b16 %v455
        %v1176 = vunpack.c.l.b16 %v456
        %v1177 = vunpack.c.h.b16 %v456
        %v1178 = vunpack.c.l.b16 %v457
        %v1179 = vunpack.c.h.b16 %v457
        %v1180 = vunpack.c.l.b16 %v458
        %v1181 = vunpack.c.h.b16 %v458
        %v1182 = vunpack.c.l.b16 %v459
        %v1183 = vunpack.c.h.b16 %v459
        %v1184 = vunpack.c.l.b16 %v460
        %v1185 = vunpack.c.h.b16 %v460
        %v1186 = vunpack.c.l.b16 %v461
        %v1187 = vunpack.c.h.b16 %v461
        %v1188 = vunpack.c.l.b16 %v462
        %v1189 = vunpack.c.h.b16 %v462
        %v1190 = vunpack.c.l.b16 %v463
        %v1191 = vunpack.c.h.b16 %v463
        %v1192 = vunpack.c.l.b16 %v464
        %v1193 = vunpack.c.h.b16 %v464
        %v1194 = vunpack.c.l.b16 %v465
        %v1195 = vunpack.c.h.b16 %v465
        %v1196 = vunpack.c.l.b16 %v466
        %v1197 = vunpack.c.h.b16 %v466
        %v1198 = vunpack.c.l.b16 %v467
        %v1199 = vunpack.c.h.b16 %v467
        %v1200 = vunpack.c.l.b16 %v468
        %v1201 = vunpack.c.h.b16 %v468
        %v1202 = vunpack.c.l.b16 %v469
        %v1203 = vunpack.c.h.b16 %v469
        %v1204 = vunpack.c.l.b16 %v470
        %v1205 = vunpack.c.h.b16 %v470
        %v1206 = vunpack.c.l.b16 %v471
        %v1207 = vunpack.c.h.b16 %v471
        %v1208 = vunpack.c.l.b16 %v472
        %v1209 = vunpack.c.h.b16 %v472
        %v1210 = vunpack.c.l.b16 %v473
        %v1211 = vunpack.c.h.b16 %v473
        %v1212 = vunpack.c.l.b16 %v474
        %v1213 = vunpack.c.h.b16 %v474
        %v1214 = vunpack.c.l.b16 %v475
        %v1215 = vunpack.c.h.b16 %v475
        %v1216 = vunpack.c.l.b16 %v476
        %v1217 = vunpack.c.h.b16 %v476
        %v1218 = vunpack.c.l.b16 %v477
        %v1219 = vunpack.c.h.b16 %v477
        %v1220 = vunpack.c.l.b16 %v478
        %v1221 = vunpack.c.h.b16 %v478
        %v1222 = vunpack.c.l.b16 %v479
        %v1223 = vunpack.c.h.b16 %v479
        %v1224 = vunpack.c.l.b16 %v480
        %v1225 = vunpack.c.h.b16 %v480
        %v1226 = vunpack.c.l.b16 %v481
        %v1227 = vunpack.c.h.b16 %v481
        %v1228 = vunpack.c.l.b16 %v482
        %v1229 = vunpack.c.h.b16 %v482
        %v1230 = vunpack.c.l.b16 %v483
        %v1231 = vunpack.c.h.b16 %v483
        %v1232 = vunpack.c.l.b16 %v484
        %v1233 = vunpack.c.h.b16 %v484
        %v1234 = vunpack.c.l.b16 %v485
        %v1235 = vunpack.c.h.b16 %v485
        %v1236 = vunpack.c.l.b16 %v486
        %v1237 = vunpack.c.h.b16 %v486
        %v1238 = vunpack.c.l.b16 %v487
        %v1239 = vunpack.c.h.b16 %v487
        %v1240 = vunpack.c.l.b16 %v488
        %v1241 = vunpack.c.h.b16 %v488
        %v1242 = vunpack.c.l.b16 %v489
        %v1243 = vunpack.c.h.b16 %v489
        %v1244 = vunpack.c.l.b16 %v490
        %v1245 = vunpack.c.h.b16 %v490
        %v1246 = vunpack.c.l.b16 %v491
        %v1247 = vunpack.c.h.b16 %v491
        %v1248 = vunpack.c.l.b16 %v492
        %v1249 = vunpack.c.h.b16 %v492
        %v1250 = vunpack.c.l.b16 %v493
        %v1251 = vunpack.c.h.b16 %v493
        %v1252 = vunpack.c.l.b16 %v494
        %v1253 = vunpack.c.h.b16 %v494
        %v1254 = vunpack.c.l.b16 %v495
        %v1255 = vunpack.c.h.b16 %v495
        %v1256 = vunpack.c.l.b16 %v496
        %v1257 = vunpack.c.h.b16 %v496
        %v1258 = vunpack.c.l.b16 %v497
        %v1259 = vunpack.c.h.b16 %v497
        %v1260 = vunpack.c.l.b16 %v498
        %v1261 = vunpack.c.h.b16 %v498
        %v1262 = vunpack.c.l.b16 %v499
        %v1263 = vunpack.c.h.b16 %v499
        %v1264 = vunpack.c.l.b16 %v500
        %v1265 = vunpack.c.h.b16 %v500
        %v1266 = vunpack.c.l.b16 %v501
        %v1267 = vunpack.c.h.b16 %v501
        %v1268 = vunpack.c.l.b16 %v502
        %v1269 = vunpack.c.h.b16 %v502
        %v1270 = vunpack.c.l.b16 %v503
        %v1271 = vunpack.c.h.b16 %v503
        %v1272 = vunpack.c.l.b16 %v504
        %v1273 = vunpack.c.h.b16 %v504
        %v1274 = vunpack.c.l.b16 %v505
        %v1275 = vunpack.c.h.b16 %v505
        %v1276 = vunpack.c.l.b16 %v506
        %v1277 = vunpack.c.h.b16 %v506
        %v1278 = vunpack.c.l.b16 %v507
        %v1279 = vunpack.c.h.b16 %v507
        %v1280 = vunpack.c.l.b16 %v508
        %v1281 = vunpack.c.h.b16 %v508
        %v1282 = vunpack.c.l.b16 %v509
        %v1283 = vunpack.c.h.b16 %v509
        %v1284 = vunpack.c.l.b16 %v510
        %v1285 = vunpack.c.h.b16 %v510
        %v1286 = vunpack.c.l.b16 %v511
        %v1287 = vunpack.c.h.b16 %v511
        %v1288 = vunpack.c.l.b16 %v512
        %v1289 = vunpack.c.h.b16 %v512
        %v1290 = vunpack.c.l.b16 %v513
        %v1291 = vunpack.c.h.b16 %v513
        %v1292 = vunpack.c.l.b16 %v514
        %v1293 = vunpack.c.h.b16 %v514
        %v1294 = vunpack.c.l.b16 %v515
        %v1295 = vunpack.c.h.b16 %v515
        %v1296 = vunpack.c.l.b16 %v516
        %v1297 = vunpack.c.h.b16 %v516
        %v1298 = vunpack.c.l.b16 %v517
        %v1299 = vunpack.c.h.b16 %v517
        %v1300 = vunpack.c.l.b16 %v518
        %v1301 = vunpack.c.h.b16 %v518
        %v1302 = vunpack.c.l.b16 %v519
        %v1303 = vunpack.c.h.b16 %v519
        %v1304 = vunpack.c.l.b16 %v520
        %v1305 = vunpack.c.h.b16 %v520
        %v1306 = vunpack.c.l.b16 %v521
        %v1307 = vunpack.c.h.b16 %v521
        %v1308 = vunpack.c.l.b16 %v522
        %v1309 = vunpack.c.h.b16 %v522
        %v1310 = vunpack.c.l.b16 %v523
        %v1311 = vunpack.c.h.b16 %v523
        %v1312 = vunpack.c.l.b16 %v524
        %v1313 = vunpack.c.h.b16 %v524
        %v1314 = vunpack.c.l.b16 %v525
        %v1315 = vunpack.c.h.b16 %v525
        %v1316 = vunpack.c.l.b16 %v526
        %v1317 = vunpack.c.h.b16 %v526
        %v1318 = vunpack.c.l.b16 %v527
        %v1319 = vunpack.c.h.b16 %v527
        %v1320 = vunpack.c.l.b16 %v528
        %v1321 = vunpack.c.h.b16 %v528
        %v1322 = vunpack.c.l.b16 %v529
        %v1323 = vunpack.c.h.b16 %v529
        %v1324 = vunpack.c.l.b16 %v530
        %v1325 = vunpack.c.h.b16 %v530
        %v1326 = vunpack.c.l.b16 %v531
        %v1327 = vunpack.c.h.b16 %v531
        %v1328 = vunpack.c.l.b16 %v532
        %v1329 = vunpack.c.h.b16 %v532
        %v1330 = vunpack.c.l.b16 %v533
        %v1331 = vunpack.c.h.b16 %v533
        %v1332 = vunpack.c.l.b16 %v534
        %v1333 = vunpack.c.h.b16 %v534
        %v1334 = vpack.c.b16 %v830, %v822
        %v1335 = vpack.c.b16 %v831, %v823
        %v1336 = vpack.c.b16 %v832, %v824
        %v1337 = vpack.c.b16 %v833, %v825
        %v1338 = vpack.c.b16 %v834, %v826
        %v1339 = vpack.c.b16 %v835, %v827
        %v1340 = vpack.c.b16 %v836, %v828
        %v1341 = vpack.c.b16 %v837, %v829
        %v1342 = vpack.c.b16 %v846, %v838
        %v1343 = vpack.c.b16 %v847, %v839
        %v1344 = vpack.c.b16 %v848, %v840
        %v1345 = vpack.c.b16 %v849, %v841
        %v1346 = vpack.c.b16 %v850, %v842
        %v1347 = vpack.c.b16 %v851, %v843
        %v1348 = vpack.c.b16 %v852, %v844
        %v1349 = vpack.c.b16 %v853, %v845
        %v1350 = vpack.c.b16 %v862, %v854
        %v1351 = vpack.c.b16 %v863, %v855
        %v1352 = vpack.c.b16 %v864, %v856
        %v1353 = vpack.c.b16 %v865, %v857
        %v1354 = vpack.c.b16 %v866, %v858
        %v1355 = vpack.c.b16 %v867, %v859
        %v1356 = vpack.c.b16 %v868, %v860
        %v1357 = vpack.c.b16 %v869, %v861
        %v1358 = vpack.c.b16 %v878, %v870
        %v1359 = vpack.c.b16 %v879, %v871
        %v1360 = vpack.c.b16 %v880, %v872
        %v1361 = vpack.c.b16 %v881, %v873
        %v1362 = vpack.c.b16 %v882, %v874
        %v1363 = vpack.c.b16 %v883, %v875
        %v1364 = vpack.c.b16 %v884, %v876
        %v1365 = vpack.c.b16 %v885, %v877
        %v1366 = vpack.c.b16 %v894, %v886
        %v1367 = vpack.c.b16 %v895, %v887
        %v1368 = vpack.c.b16 %v896, %v888
        %v1369 = vpack.c.b16 %v897, %v889
        %v1370 = vpack.c.b16 %v898, %v890
        %v1371 = vpack.c.b16 %v899, %v891
        %v1372 = vpack.c.b16 %v900, %v892
        %v1373 = vpack.c.b16 %v901, %v893
        %v1374 = vpack.c.b16 %v910, %v902
        %v1375 = vpack.c.b16 %v911, %v903
        %v1376 = vpack.c.b16 %v912, %v904
        %v1377 = vpack.c.b16 %v913, %v905
        %v1378 = vpack.c.b16 %v914, %v906
        %v1379 = vpack.c.b16 %v915, %v907
        %v1380 = vpack.c.b16 %v916, %v908
        %v1381 = vpack.c.b16 %v917, %v909
        %v1382 = vpack.c.b16 %v926, %v918
        %v1383 = vpack.c.b16 %v927, %v919
        %v1384 = vpack.c.b16 %v928, %v920
        %v1385 = vpack.c.b16 %v929, %v921
        %v1386 = vpack.c.b16 %v930, %v922
        %v1387 = vpack.c.b16 %v931, %v923
        %v1388 = vpack.c.b16 %v932, %v924
        %v1389 = vpack.c.b16 %v933, %v925
        %v1390 = vpack.c.b16 %v942, %v934
        %v1391 = vpack.c.b16 %v943, %v935
        %v1392 = vpack.c.b16 %v944, %v936
        %v1393 = vpack.c.b16 %v945, %v937
        %v1394 = vpack.c.b16 %v946, %v938
        %v1395 = vpack.c.b16 %v947, %v939
        %v1396 = vpack.c.b16 %v948, %v940
        %v1397 = vpack.c.b16 %v949, %v941
        %v1398 = vpack.c.b16 %v958, %v950
        %v1399 = vpack.c.b16 %v959, %v951
        %v1400 = vpack.c.b16 %v960, %v952
        %v1401 = vpack.c.b16 %v961, %v953
        %v1402 = vpack.c.b16 %v962, %v954
        %v1403 = vpack.c.b16 %v963, %v955
        %v1404 = vpack.c.b16 %v964, %v956
        %v1405 = vpack.c.b16 %v965, %v957
        %v1406 = vpack.c.b16 %v974, %v966
        %v1407 = vpack.c.b16 %v975, %v967
        %v1408 = vpack.c.b16 %v976, %v968
        %v1409 = vpack.c.b16 %v977, %v969
        %v1410 = vpack.c.b16 %v978, %v970
        %v1411 = vpack.c.b16 %v979, %v971
        %v1412 = vpack.c.b16 %v980, %v972
        %v1413 = vpack.c.b16 %v981, %v973
        %v1414 = vpack.c.b16 %v990, %v982
        %v1415 = vpack.c.b16 %v991, %v983
        %v1416 = vpack.c.b16 %v992, %v984
        %v1417 = vpack.c.b16 %v993, %v985
        %v1418 = vpack.c.b16 %v994, %v986
        %v1419 = vpack.c.b16 %v995, %v987
        %v1420 = vpack.c.b16 %v996, %v988
        %v1421 = vpack.c.b16 %v997, %v989
        %v1422 = vpack.c.b16 %v1006, %v998
        %v1423 = vpack.c.b16 %v1007, %v999
        %v1424 = vpack.c.b16 %v1008, %v1000
        %v1425 = vpack.c.b16 %v1009, %v1001
        %v1426 = vpack.c.b16 %v1010, %v1002
        %v1427 = vpack.c.b16 %v1011, %v1003
        %v1428 = vpack.c.b16 %v1012, %v1004
        %v1429 = vpack.c.b16 %v1013, %v1005
        %v1430 = vpack.c.b16 %v1022, %v1014
        %v1431 = vpack.c.b16 %v1023, %v1015
        %v1432 = vpack.c.b16 %v1024, %v1016
        %v1433 = vpack.c.b16 %v1025, %v1017
        %v1434 = vpack.c.b16 %v1026, %v1018
        %v1435 = vpack.c.b16 %v1027, %v1019
        %v1436 = vpack.c.b16 %v1028, %v1020
        %v1437 = vpack.c.b16 %v1029, %v1021
        %v1438 = vpack.c.b16 %v1038, %v1030
        %v1439 = vpack.c.b16 %v1039, %v1031
        %v1440 = vpack.c.b16 %v1040, %v1032
        %v1441 = vpack.c.b16 %v1041, %v1033
        %v1442 = vpack.c.b16 %v1042, %v1034
        %v1443 = vpack.c.b16 %v1043, %v1035
        %v1444 = vpack.c.b16 %v1044, %v1036
        %v1445 = vpack.c.b16 %v1045, %v1037
        %v1446 = vpack.c.b16 %v1054, %v1046
        %v1447 = vpack.c.b16 %v1055, %v1047
        %v1448 = vpack.c.b16 %v1056, %v1048
        %v1449 = vpack.c.b16 %v1057, %v1049
        %v1450 = vpack.c.b16 %v1058, %v1050
        %v1451 = vpack.c.b16 %v1059, %v1051
        %v1452 = vpack.c.b16 %v1060, %v1052
        %v1453 = vpack.c.b16 %v1061, %v1053
        %v1454 = vpack.c.b16 %v1070, %v1062
        %v1455 = vpack.c.b16 %v1071, %v1063
        %v1456 = vpack.c.b16 %v1072, %v1064
        %v1457 = vpack.c.b16 %v1073, %v1065
        %v1458 = vpack.c.b16 %v1074, %v1066
        %v1459 = vpack.c.b16 %v1075, %v1067
        %v1460 = vpack.c.b16 %v1076, %v1068
        %v1461 = vpack.c.b16 %v1077, %v1069
        %v1462 = vpack.c.b16 %v1086, %v1078
        %v1463 = vpack.c.b16 %v1087, %v1079
        %v1464 = vpack.c.b16 %v1088, %v1080
        %v1465 = vpack.c.b16 %v1089, %v1081
        %v1466 = vpack.c.b16 %v1090, %v1082
        %v1467 = vpack.c.b16 %v1091, %v1083
        %v1468 = vpack.c.b16 %v1092, %v1084
        %v1469 = vpack.c.b16 %v1093, %v1085
        %v1470 = vpack.c.b16 %v1102, %v1094
        %v1471 = vpack.c.b16 %v1103, %v1095
        %v1472 = vpack.c.b16 %v1104, %v1096
        %v1473 = vpack.c.b16 %v1105, %v1097
        %v1474 = vpack.c.b16 %v1106, %v1098
        %v1475 = vpack.c.b16 %v1107, %v1099
        %v1476 = vpack.c.b16 %v1108, %v1100
        %v1477 = vpack.c.b16 %v1109, %v1101
        %v1478 = vpack.c.b16 %v1118, %v1110
        %v1479 = vpack.c.b16 %v1119, %v1111
        %v1480 = vpack.c.b16 %v1120, %v1112
        %v1481 = vpack.c.b16 %v1121, %v1113
        %v1482 = vpack.c.b16 %v1122, %v1114
        %v1483 = vpack.c.b16 %v1123, %v1115
        %v1484 = vpack.c.b16 %v1124, %v1116
        %v1485 = vpack.c.b16 %v1125, %v1117
        %v1486 = vpack.c.b16 %v1134, %v1126
        %v1487 = vpack.c.b16 %v1135, %v1127
        %v1488 = vpack.c.b16 %v1136, %v1128
        %v1489 = vpack.c.b16 %v1137, %v1129
        %v1490 = vpack.c.b16 %v1138, %v1130
        %v1491 = vpack.c.b16 %v1139, %v1131
        %v1492 = vpack.c.b16 %v1140, %v1132
        %v1493 = vpack.c.b16 %v1141, %v1133
        %v1494 = vpack.c.b16 %v1150, %v1142
        %v1495 = vpack.c.b16 %v1151, %v1143
        %v1496 = vpack.c.b16 %v1152, %v1144
        %v1497 = vpack.c.b16 %v1153, %v1145
        %v1498 = vpack.c.b16 %v1154, %v1146
        %v1499 = vpack.c.b16 %v1155, %v1147
        %v1500 = vpack.c.b16 %v1156, %v1148
        %v1501 = vpack.c.b16 %v1157, %v1149
        %v1502 = vpack.c.b16 %v1166, %v1158
        %v1503 = vpack.c.b16 %v1167, %v1159
        %v1504 = vpack.c.b16 %v1168, %v1160
        %v1505 = vpack.c.b16 %v1169, %v1161
        %v1506 = vpack.c.b16 %v1170, %v1162
        %v1507 = vpack.c.b16 %v1171, %v1163
        %v1508 = vpack.c.b16 %v1172, %v1164
        %v1509 = vpack.c.b16 %v1173, %v1165
        %v1510 = vpack.c.b16 %v1182, %v1174
        %v1511 = vpack.c.b16 %v1183, %v1175
        %v1512 = vpack.c.b16 %v1184, %v1176
        %v1513 = vpack.c.b16 %v1185, %v1177
        %v1514 = vpack.c.b16 %v1186, %v1178
        %v1515 = vpack.c.b16 %v1187, %v1179
        %v1516 = vpack.c.b16 %v1188, %v1180
        %v1517 = vpack.c.b16 %v1189, %v1181
        %v1518 = vpack.c.b16 %v1198, %v1190
        %v1519 = vpack.c.b16 %v1199, %v1191
        %v1520 = vpack.c.b16 %v1200, %v1192
        %v1521 = vpack.c.b16 %v1201, %v1193
        %v1522 = vpack.c.b16 %v1202, %v1194
        %v1523 = vpack.c.b16 %v1203, %v1195
        %v1524 = vpack.c.b16 %v1204, %v1196
        %v1525 = vpack.c.b16 %v1205, %v1197
        %v1526 = vpack.c.b16 %v1214, %v1206
        %v1527 = vpack.c.b16 %v1215, %v1207
        %v1528 = vpack.c.b16 %v1216, %v1208
        %v1529 = vpack.c.b16 %v1217, %v1209
        %v1530 = vpack.c.b16 %v1218, %v1210
        %v1531 = vpack.c.b16 %v1219, %v1211
        %v1532 = vpack.c.b16 %v1220, %v1212
        %v1533 = vpack.c.b16 %v1221, %v1213
        %v1534 = vpack.c.b16 %v1230, %v1222
        %v1535 = vpack.c.b16 %v1231, %v1223
        %v1536 = vpack.c.b16 %v1232, %v1224
        %v1537 = vpack.c.b16 %v1233, %v1225
        %v1538 = vpack.c.b16 %v1234, %v1226
        %v1539 = vpack.c.b16 %v1235, %v1227
        %v1540 = vpack.c.b16 %v1236, %v1228
        %v1541 = vpack.c.b16 %v1237, %v1229
        %v1542 = vpack.c.b16 %v1246, %v1238
        %v1543 = vpack.c.b16 %v1247, %v1239
        %v1544 = vpack.c.b16 %v1248, %v1240
        %v1545 = vpack.c.b16 %v1249, %v1241
        %v1546 = vpack.c.b16 %v1250, %v1242
        %v1547 = vpack.c.b16 %v1251, %v1243
        %v1548 = vpack.c.b16 %v1252, %v1244
        %v1549 = vpack.c.b16 %v1253, %v1245
        %v1550 = vpack.c.b16 %v1262, %v1254
        %v1551 = vpack.c.b16 %v1263, %v1255
        %v1552 = vpack.c.b16 %v1264, %v1256
        %v1553 = vpack.c.b16 %v1265, %v1257
        %v1554 = vpack.c.b16 %v1266, %v1258
        %v1555 = vpack.c.b16 %v1267, %v1259
        %v1556 = vpack.c.b16 %v1268, %v1260
        %v1557 = vpack.c.b16 %v1269, %v1261
        %v1558 = vpack.c.b16 %v1278, %v1270
        %v1559 = vpack.c.b16 %v1279, %v1271
        %v1560 = vpack.c.b16 %v1280, %v1272
        %v1561 = vpack.c.b16 %v1281, %v1273
        %v1562 = vpack.c.b16 %v1282, %v1274
        %v1563 = vpack.c.b16 %v1283, %v1275
        %v1564 = vpack.c.b16 %v1284, %v1276
        %v1565 = vpack.c.b16 %v1285, %v1277
        %v1566 = vpack.c.b16 %v1294, %v1286
        %v1567 = vpack.c.b16 %v1295, %v1287
        %v1568 = vpack.c.b16 %v1296, %v1288
        %v1569 = vpack.c.b16 %v1297, %v1289
        %v1570 = vpack.c.b16 %v1298, %v1290
        %v1571 = vpack.c.b16 %v1299, %v1291
        %v1572 = vpack.c.b16 %v1300, %v1292
        %v1573 = vpack.c.b16 %v1301, %v1293
        %v1574 = vpack.c.b16 %v1310, %v1302
        %v1575 = vpack.c.b16 %v1311, %v1303
        %v1576 = vpack.c.b16 %v1312, %v1304
        %v1577 = vpack.c.b16 %v1313, %v1305
        %v1578 = vpack.c.b16 %v1314, %v1306
        %v1579 = vpack.c.b16 %v1315, %v1307
        %v1580 = vpack.c.b16 %v1316, %v1308
        %v1581 = vpack.c.b16 %v1317, %v1309
        %v1582 = vpack.c.b16 %v1326, %v1318
        %v1583 = vpack.c.b16 %v1327, %v1319
        %v1584 = vpack.c.b16 %v1328, %v1320
        %v1585 = vpack.c.b16 %v1329, %v1321
        %v1586 = vpack.c.b16 %v1330, %v1322
        %v1587 = vpack.c.b16 %v1331, %v1323
        %v1588 = vpack.c.b16 %v1332, %v1324
        %v1589 = vpack.c.b16 %v1333, %v1325
        %1846 = vmatpush.bf16.msra.mxu0 %v1390
        %1847 = vmatpush.bf16.msra.mxu0 %v1382
        %1848 = vmatpush.bf16.msra.mxu0 %v1374
        %1849 = vmatpush.bf16.msra.mxu0 %v1366
        %1850 = vmatpush.bf16.msra.mxu0 %v1358
        %1851 = vmatpush.bf16.msra.mxu0 %v1350
        %1852 = vmatpush.bf16.msra.mxu0 %v1342
        %1853 = vmatpush.bf16.msra.mxu0 %v1334
        %1854 = vmatmul.bf16.gmra.mxu0 %v558
        %v1855 = vpop.f32.mrf.mxu0
        %v1856 = vadd.f32 %v536, %v1855
        %v1857 = vpop.f32.mrf.mxu0
        %1858 = vdwg.mxu0
        %1859 = vmatpush.bf16.msra.mxu0 %v1454
        %1860 = vmatpush.bf16.msra.mxu0 %v1446
        %1861 = vmatpush.bf16.msra.mxu0 %v1438
        %1862 = vmatpush.bf16.msra.mxu0 %v1430
        %1863 = vmatpush.bf16.msra.mxu0 %v1422
        %1864 = vmatpush.bf16.msra.mxu0 %v1414
        %1865 = vmatpush.bf16.msra.mxu0 %v1406
        %1866 = vmatpush.bf16.msra.mxu0 %v1398
        %1867 = vmatmul.bf16.gmra.mxu0 %v559
        %v1868 = vpop.f32.mrf.mxu0
        %v1869 = vadd.f32 %v1856, %v1868
        %v1870 = vpop.f32.mrf.mxu0
        %1871 = vdwg.mxu0
        %1872 = vmatpush.bf16.msra.mxu0 %v1518
        %1873 = vmatpush.bf16.msra.mxu0 %v1510
        %1874 = vmatpush.bf16.msra.mxu0 %v1502
        %1875 = vmatpush.bf16.msra.mxu0 %v1494
        %1876 = vmatpush.bf16.msra.mxu0 %v1486
        %1877 = vmatpush.bf16.msra.mxu0 %v1478
        %1878 = vmatpush.bf16.msra.mxu0 %v1470
        %1879 = vmatpush.bf16.msra.mxu0 %v1462
        %1880 = vmatmul.bf16.gmra.mxu0 %v560
        %v1881 = vpop.f32.mrf.mxu0
        %v1882 = vadd.f32 %v1869, %v1881
        %v1883 = vpop.f32.mrf.mxu0
        %1884 = vdwg.mxu0
        %1885 = vmatpush.bf16.msra.mxu0 %v1582
        %1886 = vmatpush.bf16.msra.mxu0 %v1574
        %1887 = vmatpush.bf16.msra.mxu0 %v1566
        %1888 = vmatpush.bf16.msra.mxu0 %v1558
        %1889 = vmatpush.bf16.msra.mxu0 %v1550
        %1890 = vmatpush.bf16.msra.mxu0 %v1542
        %1891 = vmatpush.bf16.msra.mxu0 %v1534
        %1892 = vmatpush.bf16.msra.mxu0 %v1526
        %1893 = vmatmul.bf16.gmra.mxu0 %v561
        %v1894 = vpop.f32.mrf.mxu0
        %v1895 = vadd.f32 %v1882, %v1894
        %v1896 = vpop.f32.mrf.mxu0
        %1897 = vdwg.mxu0
        %1898 = vmatpush.bf16.msra.mxu0 %v1391
        %1899 = vmatpush.bf16.msra.mxu0 %v1383
        %1900 = vmatpush.bf16.msra.mxu0 %v1375
        %1901 = vmatpush.bf16.msra.mxu0 %v1367
        %1902 = vmatpush.bf16.msra.mxu0 %v1359
        %1903 = vmatpush.bf16.msra.mxu0 %v1351
        %1904 = vmatpush.bf16.msra.mxu0 %v1343
        %1905 = vmatpush.bf16.msra.mxu0 %v1335
        %1906 = vmatmul.bf16.gmra.mxu0 %v558
        %v1907 = vpop.f32.mrf.mxu0
        %v1908 = vadd.f32 %v537, %v1907
        %v1909 = vpop.f32.mrf.mxu0
        %1910 = vdwg.mxu0
        %1911 = vmatpush.bf16.msra.mxu0 %v1455
        %1912 = vmatpush.bf16.msra.mxu0 %v1447
        %1913 = vmatpush.bf16.msra.mxu0 %v1439
        %1914 = vmatpush.bf16.msra.mxu0 %v1431
        %1915 = vmatpush.bf16.msra.mxu0 %v1423
        %1916 = vmatpush.bf16.msra.mxu0 %v1415
        %1917 = vmatpush.bf16.msra.mxu0 %v1407
        %1918 = vmatpush.bf16.msra.mxu0 %v1399
        %1919 = vmatmul.bf16.gmra.mxu0 %v559
        %v1920 = vpop.f32.mrf.mxu0
        %v1921 = vadd.f32 %v1908, %v1920
        %v1922 = vpop.f32.mrf.mxu0
        %1923 = vdwg.mxu0
        %1924 = vmatpush.bf16.msra.mxu0 %v1519
        %1925 = vmatpush.bf16.msra.mxu0 %v1511
        %1926 = vmatpush.bf16.msra.mxu0 %v1503
        %1927 = vmatpush.bf16.msra.mxu0 %v1495
        %1928 = vmatpush.bf16.msra.mxu0 %v1487
        %1929 = vmatpush.bf16.msra.mxu0 %v1479
        %1930 = vmatpush.bf16.msra.mxu0 %v1471
        %1931 = vmatpush.bf16.msra.mxu0 %v1463
        %1932 = vmatmul.bf16.gmra.mxu0 %v560
        %v1933 = vpop.f32.mrf.mxu0
        %v1934 = vadd.f32 %v1921, %v1933
        %v1935 = vpop.f32.mrf.mxu0
        %1936 = vdwg.mxu0
        %1937 = vmatpush.bf16.msra.mxu0 %v1583
        %1938 = vmatpush.bf16.msra.mxu0 %v1575
        %1939 = vmatpush.bf16.msra.mxu0 %v1567
        %1940 = vmatpush.bf16.msra.mxu0 %v1559
        %1941 = vmatpush.bf16.msra.mxu0 %v1551
        %1942 = vmatpush.bf16.msra.mxu0 %v1543
        %1943 = vmatpush.bf16.msra.mxu0 %v1535
        %1944 = vmatpush.bf16.msra.mxu0 %v1527
        %1945 = vmatmul.bf16.gmra.mxu0 %v561
        %v1946 = vpop.f32.mrf.mxu0
        %v1947 = vadd.f32 %v1934, %v1946
        %v1948 = vpop.f32.mrf.mxu0
        %1949 = vdwg.mxu0
        %1950 = vmatpush.bf16.msra.mxu0 %v1392
        %1951 = vmatpush.bf16.msra.mxu0 %v1384
        %1952 = vmatpush.bf16.msra.mxu0 %v1376
        %1953 = vmatpush.bf16.msra.mxu0 %v1368
        %1954 = vmatpush.bf16.msra.mxu0 %v1360
        %1955 = vmatpush.bf16.msra.mxu0 %v1352
        %1956 = vmatpush.bf16.msra.mxu0 %v1344
        %1957 = vmatpush.bf16.msra.mxu0 %v1336
        %1958 = vmatmul.bf16.gmra.mxu0 %v558
        %v1959 = vpop.f32.mrf.mxu0
        %v1960 = vadd.f32 %v538, %v1959
        %v1961 = vpop.f32.mrf.mxu0
        %1962 = vdwg.mxu0
        %1963 = vmatpush.bf16.msra.mxu0 %v1456
        %1964 = vmatpush.bf16.msra.mxu0 %v1448
        %1965 = vmatpush.bf16.msra.mxu0 %v1440
        %1966 = vmatpush.bf16.msra.mxu0 %v1432
        %1967 = vmatpush.bf16.msra.mxu0 %v1424
        %1968 = vmatpush.bf16.msra.mxu0 %v1416
        %1969 = vmatpush.bf16.msra.mxu0 %v1408
        %1970 = vmatpush.bf16.msra.mxu0 %v1400
        %1971 = vmatmul.bf16.gmra.mxu0 %v559
        %v1972 = vpop.f32.mrf.mxu0
        %v1973 = vadd.f32 %v1960, %v1972
        %v1974 = vpop.f32.mrf.mxu0
        %1975 = vdwg.mxu0
        %1976 = vmatpush.bf16.msra.mxu0 %v1520
        %1977 = vmatpush.bf16.msra.mxu0 %v1512
        %1978 = vmatpush.bf16.msra.mxu0 %v1504
        %1979 = vmatpush.bf16.msra.mxu0 %v1496
        %1980 = vmatpush.bf16.msra.mxu0 %v1488
        %1981 = vmatpush.bf16.msra.mxu0 %v1480
        %1982 = vmatpush.bf16.msra.mxu0 %v1472
        %1983 = vmatpush.bf16.msra.mxu0 %v1464
        %1984 = vmatmul.bf16.gmra.mxu0 %v560
        %v1985 = vpop.f32.mrf.mxu0
        %v1986 = vadd.f32 %v1973, %v1985
        %v1987 = vpop.f32.mrf.mxu0
        %1988 = vdwg.mxu0
        %1989 = vmatpush.bf16.msra.mxu0 %v1584
        %1990 = vmatpush.bf16.msra.mxu0 %v1576
        %1991 = vmatpush.bf16.msra.mxu0 %v1568
        %1992 = vmatpush.bf16.msra.mxu0 %v1560
        %1993 = vmatpush.bf16.msra.mxu0 %v1552
        %1994 = vmatpush.bf16.msra.mxu0 %v1544
        %1995 = vmatpush.bf16.msra.mxu0 %v1536
        %1996 = vmatpush.bf16.msra.mxu0 %v1528
        %1997 = vmatmul.bf16.gmra.mxu0 %v561
        %v1998 = vpop.f32.mrf.mxu0
        %v1999 = vadd.f32 %v1986, %v1998
        %v2000 = vpop.f32.mrf.mxu0
        %2001 = vdwg.mxu0
        %2002 = vmatpush.bf16.msra.mxu0 %v1393
        %2003 = vmatpush.bf16.msra.mxu0 %v1385
        %2004 = vmatpush.bf16.msra.mxu0 %v1377
        %2005 = vmatpush.bf16.msra.mxu0 %v1369
        %2006 = vmatpush.bf16.msra.mxu0 %v1361
        %2007 = vmatpush.bf16.msra.mxu0 %v1353
        %2008 = vmatpush.bf16.msra.mxu0 %v1345
        %2009 = vmatpush.bf16.msra.mxu0 %v1337
        %2010 = vmatmul.bf16.gmra.mxu0 %v558
        %v2011 = vpop.f32.mrf.mxu0
        %v2012 = vadd.f32 %v539, %v2011
        %v2013 = vpop.f32.mrf.mxu0
        %2014 = vdwg.mxu0
        %2015 = vmatpush.bf16.msra.mxu0 %v1457
        %2016 = vmatpush.bf16.msra.mxu0 %v1449
        %2017 = vmatpush.bf16.msra.mxu0 %v1441
        %2018 = vmatpush.bf16.msra.mxu0 %v1433
        %2019 = vmatpush.bf16.msra.mxu0 %v1425
        %2020 = vmatpush.bf16.msra.mxu0 %v1417
        %2021 = vmatpush.bf16.msra.mxu0 %v1409
        %2022 = vmatpush.bf16.msra.mxu0 %v1401
        %2023 = vmatmul.bf16.gmra.mxu0 %v559
        %v2024 = vpop.f32.mrf.mxu0
        %v2025 = vadd.f32 %v2012, %v2024
        %v2026 = vpop.f32.mrf.mxu0
        %2027 = vdwg.mxu0
        %2028 = vmatpush.bf16.msra.mxu0 %v1521
        %2029 = vmatpush.bf16.msra.mxu0 %v1513
        %2030 = vmatpush.bf16.msra.mxu0 %v1505
        %2031 = vmatpush.bf16.msra.mxu0 %v1497
        %2032 = vmatpush.bf16.msra.mxu0 %v1489
        %2033 = vmatpush.bf16.msra.mxu0 %v1481
        %2034 = vmatpush.bf16.msra.mxu0 %v1473
        %2035 = vmatpush.bf16.msra.mxu0 %v1465
        %2036 = vmatmul.bf16.gmra.mxu0 %v560
        %v2037 = vpop.f32.mrf.mxu0
        %v2038 = vadd.f32 %v2025, %v2037
        %v2039 = vpop.f32.mrf.mxu0
        %2040 = vdwg.mxu0
        %2041 = vmatpush.bf16.msra.mxu0 %v1585
        %2042 = vmatpush.bf16.msra.mxu0 %v1577
        %2043 = vmatpush.bf16.msra.mxu0 %v1569
        %2044 = vmatpush.bf16.msra.mxu0 %v1561
        %2045 = vmatpush.bf16.msra.mxu0 %v1553
        %2046 = vmatpush.bf16.msra.mxu0 %v1545
        %2047 = vmatpush.bf16.msra.mxu0 %v1537
        %2048 = vmatpush.bf16.msra.mxu0 %v1529
        %2049 = vmatmul.bf16.gmra.mxu0 %v561
        %v2050 = vpop.f32.mrf.mxu0
        %v2051 = vadd.f32 %v2038, %v2050
        %v2052 = vpop.f32.mrf.mxu0
        %2053 = vdwg.mxu0
        %2054 = vmatpush.bf16.msra.mxu0 %v1394
        %2055 = vmatpush.bf16.msra.mxu0 %v1386
        %2056 = vmatpush.bf16.msra.mxu0 %v1378
        %2057 = vmatpush.bf16.msra.mxu0 %v1370
        %2058 = vmatpush.bf16.msra.mxu0 %v1362
        %2059 = vmatpush.bf16.msra.mxu0 %v1354
        %2060 = vmatpush.bf16.msra.mxu0 %v1346
        %2061 = vmatpush.bf16.msra.mxu0 %v1338
        %2062 = vmatmul.bf16.gmra.mxu0 %v558
        %v2063 = vpop.f32.mrf.mxu0
        %v2064 = vadd.f32 %v540, %v2063
        %v2065 = vpop.f32.mrf.mxu0
        %2066 = vdwg.mxu0
        %2067 = vmatpush.bf16.msra.mxu0 %v1458
        %2068 = vmatpush.bf16.msra.mxu0 %v1450
        %2069 = vmatpush.bf16.msra.mxu0 %v1442
        %2070 = vmatpush.bf16.msra.mxu0 %v1434
        %2071 = vmatpush.bf16.msra.mxu0 %v1426
        %2072 = vmatpush.bf16.msra.mxu0 %v1418
        %2073 = vmatpush.bf16.msra.mxu0 %v1410
        %2074 = vmatpush.bf16.msra.mxu0 %v1402
        %2075 = vmatmul.bf16.gmra.mxu0 %v559
        %v2076 = vpop.f32.mrf.mxu0
        %v2077 = vadd.f32 %v2064, %v2076
        %v2078 = vpop.f32.mrf.mxu0
        %2079 = vdwg.mxu0
        %2080 = vmatpush.bf16.msra.mxu0 %v1522
        %2081 = vmatpush.bf16.msra.mxu0 %v1514
        %2082 = vmatpush.bf16.msra.mxu0 %v1506
        %2083 = vmatpush.bf16.msra.mxu0 %v1498
        %2084 = vmatpush.bf16.msra.mxu0 %v1490
        %2085 = vmatpush.bf16.msra.mxu0 %v1482
        %2086 = vmatpush.bf16.msra.mxu0 %v1474
        %2087 = vmatpush.bf16.msra.mxu0 %v1466
        %2088 = vmatmul.bf16.gmra.mxu0 %v560
        %v2089 = vpop.f32.mrf.mxu0
        %v2090 = vadd.f32 %v2077, %v2089
        %v2091 = vpop.f32.mrf.mxu0
        %2092 = vdwg.mxu0
        %2093 = vmatpush.bf16.msra.mxu0 %v1586
        %2094 = vmatpush.bf16.msra.mxu0 %v1578
        %2095 = vmatpush.bf16.msra.mxu0 %v1570
        %2096 = vmatpush.bf16.msra.mxu0 %v1562
        %2097 = vmatpush.bf16.msra.mxu0 %v1554
        %2098 = vmatpush.bf16.msra.mxu0 %v1546
        %2099 = vmatpush.bf16.msra.mxu0 %v1538
        %2100 = vmatpush.bf16.msra.mxu0 %v1530
        %2101 = vmatmul.bf16.gmra.mxu0 %v561
        %v2102 = vpop.f32.mrf.mxu0
        %v2103 = vadd.f32 %v2090, %v2102
        %v2104 = vpop.f32.mrf.mxu0
        %2105 = vdwg.mxu0
        %2106 = vmatpush.bf16.msra.mxu0 %v1395
        %2107 = vmatpush.bf16.msra.mxu0 %v1387
        %2108 = vmatpush.bf16.msra.mxu0 %v1379
        %2109 = vmatpush.bf16.msra.mxu0 %v1371
        %2110 = vmatpush.bf16.msra.mxu0 %v1363
        %2111 = vmatpush.bf16.msra.mxu0 %v1355
        %2112 = vmatpush.bf16.msra.mxu0 %v1347
        %2113 = vmatpush.bf16.msra.mxu0 %v1339
        %2114 = vmatmul.bf16.gmra.mxu0 %v558
        %v2115 = vpop.f32.mrf.mxu0
        %v2116 = vadd.f32 %v541, %v2115
        %v2117 = vpop.f32.mrf.mxu0
        %2118 = vdwg.mxu0
        %2119 = vmatpush.bf16.msra.mxu0 %v1459
        %2120 = vmatpush.bf16.msra.mxu0 %v1451
        %2121 = vmatpush.bf16.msra.mxu0 %v1443
        %2122 = vmatpush.bf16.msra.mxu0 %v1435
        %2123 = vmatpush.bf16.msra.mxu0 %v1427
        %2124 = vmatpush.bf16.msra.mxu0 %v1419
        %2125 = vmatpush.bf16.msra.mxu0 %v1411
        %2126 = vmatpush.bf16.msra.mxu0 %v1403
        %2127 = vmatmul.bf16.gmra.mxu0 %v559
        %v2128 = vpop.f32.mrf.mxu0
        %v2129 = vadd.f32 %v2116, %v2128
        %v2130 = vpop.f32.mrf.mxu0
        %2131 = vdwg.mxu0
        %2132 = vmatpush.bf16.msra.mxu0 %v1523
        %2133 = vmatpush.bf16.msra.mxu0 %v1515
        %2134 = vmatpush.bf16.msra.mxu0 %v1507
        %2135 = vmatpush.bf16.msra.mxu0 %v1499
        %2136 = vmatpush.bf16.msra.mxu0 %v1491
        %2137 = vmatpush.bf16.msra.mxu0 %v1483
        %2138 = vmatpush.bf16.msra.mxu0 %v1475
        %2139 = vmatpush.bf16.msra.mxu0 %v1467
        %2140 = vmatmul.bf16.gmra.mxu0 %v560
        %v2141 = vpop.f32.mrf.mxu0
        %v2142 = vadd.f32 %v2129, %v2141
        %v2143 = vpop.f32.mrf.mxu0
        %2144 = vdwg.mxu0
        %2145 = vmatpush.bf16.msra.mxu0 %v1587
        %2146 = vmatpush.bf16.msra.mxu0 %v1579
        %2147 = vmatpush.bf16.msra.mxu0 %v1571
        %2148 = vmatpush.bf16.msra.mxu0 %v1563
        %2149 = vmatpush.bf16.msra.mxu0 %v1555
        %2150 = vmatpush.bf16.msra.mxu0 %v1547
        %2151 = vmatpush.bf16.msra.mxu0 %v1539
        %2152 = vmatpush.bf16.msra.mxu0 %v1531
        %2153 = vmatmul.bf16.gmra.mxu0 %v561
        %v2154 = vpop.f32.mrf.mxu0
        %v2155 = vadd.f32 %v2142, %v2154
        %v2156 = vpop.f32.mrf.mxu0
        %2157 = vdwg.mxu0
        %2158 = vmatpush.bf16.msra.mxu0 %v1396
        %2159 = vmatpush.bf16.msra.mxu0 %v1388
        %2160 = vmatpush.bf16.msra.mxu0 %v1380
        %2161 = vmatpush.bf16.msra.mxu0 %v1372
        %2162 = vmatpush.bf16.msra.mxu0 %v1364
        %2163 = vmatpush.bf16.msra.mxu0 %v1356
        %2164 = vmatpush.bf16.msra.mxu0 %v1348
        %2165 = vmatpush.bf16.msra.mxu0 %v1340
        %2166 = vmatmul.bf16.gmra.mxu0 %v558
        %v2167 = vpop.f32.mrf.mxu0
        %v2168 = vadd.f32 %v542, %v2167
        %v2169 = vpop.f32.mrf.mxu0
        %2170 = vdwg.mxu0
        %2171 = vmatpush.bf16.msra.mxu0 %v1460
        %2172 = vmatpush.bf16.msra.mxu0 %v1452
        %2173 = vmatpush.bf16.msra.mxu0 %v1444
        %2174 = vmatpush.bf16.msra.mxu0 %v1436
        %2175 = vmatpush.bf16.msra.mxu0 %v1428
        %2176 = vmatpush.bf16.msra.mxu0 %v1420
        %2177 = vmatpush.bf16.msra.mxu0 %v1412
        %2178 = vmatpush.bf16.msra.mxu0 %v1404
        %2179 = vmatmul.bf16.gmra.mxu0 %v559
        %v2180 = vpop.f32.mrf.mxu0
        %v2181 = vadd.f32 %v2168, %v2180
        %v2182 = vpop.f32.mrf.mxu0
        %2183 = vdwg.mxu0
        %2184 = vmatpush.bf16.msra.mxu0 %v1524
        %2185 = vmatpush.bf16.msra.mxu0 %v1516
        %2186 = vmatpush.bf16.msra.mxu0 %v1508
        %2187 = vmatpush.bf16.msra.mxu0 %v1500
        %2188 = vmatpush.bf16.msra.mxu0 %v1492
        %2189 = vmatpush.bf16.msra.mxu0 %v1484
        %2190 = vmatpush.bf16.msra.mxu0 %v1476
        %2191 = vmatpush.bf16.msra.mxu0 %v1468
        %2192 = vmatmul.bf16.gmra.mxu0 %v560
        %v2193 = vpop.f32.mrf.mxu0
        %v2194 = vadd.f32 %v2181, %v2193
        %v2195 = vpop.f32.mrf.mxu0
        %2196 = vdwg.mxu0
        %2197 = vmatpush.bf16.msra.mxu0 %v1588
        %2198 = vmatpush.bf16.msra.mxu0 %v1580
        %2199 = vmatpush.bf16.msra.mxu0 %v1572
        %2200 = vmatpush.bf16.msra.mxu0 %v1564
        %2201 = vmatpush.bf16.msra.mxu0 %v1556
        %2202 = vmatpush.bf16.msra.mxu0 %v1548
        %2203 = vmatpush.bf16.msra.mxu0 %v1540
        %2204 = vmatpush.bf16.msra.mxu0 %v1532
        %2205 = vmatmul.bf16.gmra.mxu0 %v561
        %v2206 = vpop.f32.mrf.mxu0
        %v2207 = vadd.f32 %v2194, %v2206
        %v2208 = vpop.f32.mrf.mxu0
        %2209 = vdwg.mxu0
        %2210 = vmatpush.bf16.msra.mxu0 %v1397
        %2211 = vmatpush.bf16.msra.mxu0 %v1389
        %2212 = vmatpush.bf16.msra.mxu0 %v1381
        %2213 = vmatpush.bf16.msra.mxu0 %v1373
        %2214 = vmatpush.bf16.msra.mxu0 %v1365
        %2215 = vmatpush.bf16.msra.mxu0 %v1357
        %2216 = vmatpush.bf16.msra.mxu0 %v1349
        %2217 = vmatpush.bf16.msra.mxu0 %v1341
        %2218 = vmatmul.bf16.gmra.mxu0 %v558
        %v2219 = vpop.f32.mrf.mxu0
        %v2220 = vadd.f32 %v543, %v2219
        %v2221 = vpop.f32.mrf.mxu0
        %2222 = vdwg.mxu0
        %2223 = vmatpush.bf16.msra.mxu0 %v1461
        %2224 = vmatpush.bf16.msra.mxu0 %v1453
        %2225 = vmatpush.bf16.msra.mxu0 %v1445
        %2226 = vmatpush.bf16.msra.mxu0 %v1437
        %2227 = vmatpush.bf16.msra.mxu0 %v1429
        %2228 = vmatpush.bf16.msra.mxu0 %v1421
        %2229 = vmatpush.bf16.msra.mxu0 %v1413
        %2230 = vmatpush.bf16.msra.mxu0 %v1405
        %2231 = vmatmul.bf16.gmra.mxu0 %v559
        %v2232 = vpop.f32.mrf.mxu0
        %v2233 = vadd.f32 %v2220, %v2232
        %v2234 = vpop.f32.mrf.mxu0
        %2235 = vdwg.mxu0
        %2236 = vmatpush.bf16.msra.mxu0 %v1525
        %2237 = vmatpush.bf16.msra.mxu0 %v1517
        %2238 = vmatpush.bf16.msra.mxu0 %v1509
        %2239 = vmatpush.bf16.msra.mxu0 %v1501
        %2240 = vmatpush.bf16.msra.mxu0 %v1493
        %2241 = vmatpush.bf16.msra.mxu0 %v1485
        %2242 = vmatpush.bf16.msra.mxu0 %v1477
        %2243 = vmatpush.bf16.msra.mxu0 %v1469
        %2244 = vmatmul.bf16.gmra.mxu0 %v560
        %v2245 = vpop.f32.mrf.mxu0
        %v2246 = vadd.f32 %v2233, %v2245
        %v2247 = vpop.f32.mrf.mxu0
        %2248 = vdwg.mxu0
        %2249 = vmatpush.bf16.msra.mxu0 %v1589
        %2250 = vmatpush.bf16.msra.mxu0 %v1581
        %2251 = vmatpush.bf16.msra.mxu0 %v1573
        %2252 = vmatpush.bf16.msra.mxu0 %v1565
        %2253 = vmatpush.bf16.msra.mxu0 %v1557
        %2254 = vmatpush.bf16.msra.mxu0 %v1549
        %2255 = vmatpush.bf16.msra.mxu0 %v1541
        %2256 = vmatpush.bf16.msra.mxu0 %v1533
        %2257 = vmatmul.bf16.gmra.mxu0 %v561
        %v2258 = vpop.f32.mrf.mxu0
        %v2259 = vadd.f32 %v2246, %v2258
        %v2260 = vpop.f32.mrf.mxu0
        %2261 = vdwg.mxu0
        %v2262 = vmax.f32 %v1895, 0.0
        %v2263 = vmax.f32 %v1947, 0.0
        %v2264 = vmax.f32 %v1999, 0.0
        %v2265 = vmax.f32 %v2051, 0.0
        %v2266 = vmax.f32 %v2103, 0.0
        %v2267 = vmax.f32 %v2155, 0.0
        %v2268 = vmax.f32 %v2207, 0.0
        %v2269 = vmax.f32 %v2259, 0.0
        %v2270 = vpack.c.bf16 %v2262, %v2262
        %v2271 = vpack.c.bf16 %v2263, %v2263
        %v2272 = vpack.c.bf16 %v2264, %v2264
        %v2273 = vpack.c.bf16 %v2265, %v2265
        %v2274 = vpack.c.bf16 %v2266, %v2266
        %v2275 = vpack.c.bf16 %v2267, %v2267
        %v2276 = vpack.c.bf16 %v2268, %v2268
        %v2277 = vpack.c.bf16 %v2269, %v2269
        %v2278 = vld [vmem:[#allocation7] sm:$0xff]
        %v2279 = vld [vmem:[#allocation7 + $0x8] sm:$0xff]
        %v2280 = vld [vmem:[#allocation7 + $0x10] sm:$0xff]
        %v2281 = vld [vmem:[#allocation7 + $0x18] sm:$0xff]
        %v2282 = vld [vmem:[#allocation7 + $0x20] sm:$0xff]
        %v2283 = vld [vmem:[#allocation7 + $0x28] sm:$0xff]
        %v2284 = vld [vmem:[#allocation7 + $0x30] sm:$0xff]
        %v2285 = vld [vmem:[#allocation7 + $0x38] sm:$0xff]
        %v2286 = vld [vmem:[#allocation7 + $0x40] sm:$0xff]
        %v2287 = vld [vmem:[#allocation7 + $0x48] sm:$0xff]
        %v2288 = vld [vmem:[#allocation7 + $0x50] sm:$0xff]
        %v2289 = vld [vmem:[#allocation7 + $0x58] sm:$0xff]
        %v2290 = vld [vmem:[#allocation7 + $0x60] sm:$0xff]
        %v2291 = vld [vmem:[#allocation7 + $0x68] sm:$0xff]
        %v2292 = vld [vmem:[#allocation7 + $0x70] sm:$0xff]
        %v2293 = vld [vmem:[#allocation7 + $0x78] sm:$0xff]
        %v2294 = vld [vmem:[#allocation7 + $0x80] sm:$0xff]
        %v2295 = vld [vmem:[#allocation7 + $0x88] sm:$0xff]
        %v2296 = vld [vmem:[#allocation7 + $0x90] sm:$0xff]
        %v2297 = vld [vmem:[#allocation7 + $0x98] sm:$0xff]
        %v2298 = vld [vmem:[#allocation7 + $0xa0] sm:$0xff]
        %v2299 = vld [vmem:[#allocation7 + $0xa8] sm:$0xff]
        %v2300 = vld [vmem:[#allocation7 + $0xb0] sm:$0xff]
        %v2301 = vld [vmem:[#allocation7 + $0xb8] sm:$0xff]
        %v2302 = vld [vmem:[#allocation7 + $0xc0] sm:$0xff]
        %v2303 = vld [vmem:[#allocation7 + $0xc8] sm:$0xff]
        %v2304 = vld [vmem:[#allocation7 + $0xd0] sm:$0xff]
        %v2305 = vld [vmem:[#allocation7 + $0xd8] sm:$0xff]
        %v2306 = vld [vmem:[#allocation7 + $0xe0] sm:$0xff]
        %v2307 = vld [vmem:[#allocation7 + $0xe8] sm:$0xff]
        %v2308 = vld [vmem:[#allocation7 + $0xf0] sm:$0xff]
        %v2309 = vld [vmem:[#allocation7 + $0xf8] sm:$0xff]
        %v2310 = vld [vmem:[#allocation7 + $0x100] sm:$0xff]
        %v2311 = vld [vmem:[#allocation7 + $0x108] sm:$0xff]
        %v2312 = vld [vmem:[#allocation7 + $0x110] sm:$0xff]
        %v2313 = vld [vmem:[#allocation7 + $0x118] sm:$0xff]
        %v2314 = vld [vmem:[#allocation7 + $0x120] sm:$0xff]
        %v2315 = vld [vmem:[#allocation7 + $0x128] sm:$0xff]
        %v2316 = vld [vmem:[#allocation7 + $0x130] sm:$0xff]
        %v2317 = vld [vmem:[#allocation7 + $0x138] sm:$0xff]
        %v2318 = vld [vmem:[#allocation7 + $0x140] sm:$0xff]
        %v2319 = vld [vmem:[#allocation7 + $0x148] sm:$0xff]
        %v2320 = vld [vmem:[#allocation7 + $0x150] sm:$0xff]
        %v2321 = vld [vmem:[#allocation7 + $0x158] sm:$0xff]
        %v2322 = vld [vmem:[#allocation7 + $0x160] sm:$0xff]
        %v2323 = vld [vmem:[#allocation7 + $0x168] sm:$0xff]
        %v2324 = vld [vmem:[#allocation7 + $0x170] sm:$0xff]
        %v2325 = vld [vmem:[#allocation7 + $0x178] sm:$0xff]
        %v2326 = vld [vmem:[#allocation7 + $0x180] sm:$0xff]
        %v2327 = vld [vmem:[#allocation7 + $0x188] sm:$0xff]
        %v2328 = vld [vmem:[#allocation7 + $0x190] sm:$0xff]
        %v2329 = vld [vmem:[#allocation7 + $0x198] sm:$0xff]
        %v2330 = vld [vmem:[#allocation7 + $0x1a0] sm:$0xff]
        %v2331 = vld [vmem:[#allocation7 + $0x1a8] sm:$0xff]
        %v2332 = vld [vmem:[#allocation7 + $0x1b0] sm:$0xff]
        %v2333 = vld [vmem:[#allocation7 + $0x1b8] sm:$0xff]
        %v2334 = vld [vmem:[#allocation7 + $0x1c0] sm:$0xff]
        %v2335 = vld [vmem:[#allocation7 + $0x1c8] sm:$0xff]
        %v2336 = vld [vmem:[#allocation7 + $0x1d0] sm:$0xff]
        %v2337 = vld [vmem:[#allocation7 + $0x1d8] sm:$0xff]
        %v2338 = vld [vmem:[#allocation7 + $0x1e0] sm:$0xff]
        %v2339 = vld [vmem:[#allocation7 + $0x1e8] sm:$0xff]
        %v2340 = vld [vmem:[#allocation7 + $0x1f0] sm:$0xff]
        %v2341 = vld [vmem:[#allocation7 + $0x1f8] sm:$0xff]
        %v2342 = vld [vmem:[#allocation7 + $0x200] sm:$0xff]
        %v2343 = vld [vmem:[#allocation7 + $0x208] sm:$0xff]
        %v2344 = vld [vmem:[#allocation7 + $0x210] sm:$0xff]
        %v2345 = vld [vmem:[#allocation7 + $0x218] sm:$0xff]
        %v2346 = vld [vmem:[#allocation7 + $0x220] sm:$0xff]
        %v2347 = vld [vmem:[#allocation7 + $0x228] sm:$0xff]
        %v2348 = vld [vmem:[#allocation7 + $0x230] sm:$0xff]
        %v2349 = vld [vmem:[#allocation7 + $0x238] sm:$0xff]
        %v2350 = vld [vmem:[#allocation7 + $0x240] sm:$0xff]
        %v2351 = vld [vmem:[#allocation7 + $0x248] sm:$0xff]
        %v2352 = vld [vmem:[#allocation7 + $0x250] sm:$0xff]
        %v2353 = vld [vmem:[#allocation7 + $0x258] sm:$0xff]
        %v2354 = vld [vmem:[#allocation7 + $0x260] sm:$0xff]
        %v2355 = vld [vmem:[#allocation7 + $0x268] sm:$0xff]
        %v2356 = vld [vmem:[#allocation7 + $0x270] sm:$0xff]
        %v2357 = vld [vmem:[#allocation7 + $0x278] sm:$0xff]
        %v2358 = vld [vmem:[#allocation7 + $0x280] sm:$0xff]
        %v2359 = vld [vmem:[#allocation7 + $0x288] sm:$0xff]
        %v2360 = vld [vmem:[#allocation7 + $0x290] sm:$0xff]
        %v2361 = vld [vmem:[#allocation7 + $0x298] sm:$0xff]
        %v2362 = vld [vmem:[#allocation7 + $0x2a0] sm:$0xff]
        %v2363 = vld [vmem:[#allocation7 + $0x2a8] sm:$0xff]
        %v2364 = vld [vmem:[#allocation7 + $0x2b0] sm:$0xff]
        %v2365 = vld [vmem:[#allocation7 + $0x2b8] sm:$0xff]
        %v2366 = vld [vmem:[#allocation7 + $0x2c0] sm:$0xff]
        %v2367 = vld [vmem:[#allocation7 + $0x2c8] sm:$0xff]
        %v2368 = vld [vmem:[#allocation7 + $0x2d0] sm:$0xff]
        %v2369 = vld [vmem:[#allocation7 + $0x2d8] sm:$0xff]
        %v2370 = vld [vmem:[#allocation7 + $0x2e0] sm:$0xff]
        %v2371 = vld [vmem:[#allocation7 + $0x2e8] sm:$0xff]
        %v2372 = vld [vmem:[#allocation7 + $0x2f0] sm:$0xff]
        %v2373 = vld [vmem:[#allocation7 + $0x2f8] sm:$0xff]
        %v2374 = vld [vmem:[#allocation7 + $0x300] sm:$0xff]
        %v2375 = vld [vmem:[#allocation7 + $0x308] sm:$0xff]
        %v2376 = vld [vmem:[#allocation7 + $0x310] sm:$0xff]
        %v2377 = vld [vmem:[#allocation7 + $0x318] sm:$0xff]
        %v2378 = vld [vmem:[#allocation7 + $0x320] sm:$0xff]
        %v2379 = vld [vmem:[#allocation7 + $0x328] sm:$0xff]
        %v2380 = vld [vmem:[#allocation7 + $0x330] sm:$0xff]
        %v2381 = vld [vmem:[#allocation7 + $0x338] sm:$0xff]
        %v2382 = vld [vmem:[#allocation7 + $0x340] sm:$0xff]
        %v2383 = vld [vmem:[#allocation7 + $0x348] sm:$0xff]
        %v2384 = vld [vmem:[#allocation7 + $0x350] sm:$0xff]
        %v2385 = vld [vmem:[#allocation7 + $0x358] sm:$0xff]
        %v2386 = vld [vmem:[#allocation7 + $0x360] sm:$0xff]
        %v2387 = vld [vmem:[#allocation7 + $0x368] sm:$0xff]
        %v2388 = vld [vmem:[#allocation7 + $0x370] sm:$0xff]
        %v2389 = vld [vmem:[#allocation7 + $0x378] sm:$0xff]
        %v2390 = vld [vmem:[#allocation7 + $0x380] sm:$0xff]
        %v2391 = vld [vmem:[#allocation7 + $0x388] sm:$0xff]
        %v2392 = vld [vmem:[#allocation7 + $0x390] sm:$0xff]
        %v2393 = vld [vmem:[#allocation7 + $0x398] sm:$0xff]
        %v2394 = vld [vmem:[#allocation7 + $0x3a0] sm:$0xff]
        %v2395 = vld [vmem:[#allocation7 + $0x3a8] sm:$0xff]
        %v2396 = vld [vmem:[#allocation7 + $0x3b0] sm:$0xff]
        %v2397 = vld [vmem:[#allocation7 + $0x3b8] sm:$0xff]
        %v2398 = vld [vmem:[#allocation7 + $0x3c0] sm:$0xff]
        %v2399 = vld [vmem:[#allocation7 + $0x3c8] sm:$0xff]
        %v2400 = vld [vmem:[#allocation7 + $0x3d0] sm:$0xff]
        %v2401 = vld [vmem:[#allocation7 + $0x3d8] sm:$0xff]
        %v2402 = vld [vmem:[#allocation7 + $0x3e0] sm:$0xff]
        %v2403 = vld [vmem:[#allocation7 + $0x3e8] sm:$0xff]
        %v2404 = vld [vmem:[#allocation7 + $0x3f0] sm:$0xff]
        %v2405 = vld [vmem:[#allocation7 + $0x3f8] sm:$0xff]
        %v2406 = vld [vmem:[#allocation7 + $0x400] sm:$0xff]
        %v2407 = vld [vmem:[#allocation7 + $0x408] sm:$0xff]
        %v2408 = vld [vmem:[#allocation7 + $0x410] sm:$0xff]
        %v2409 = vld [vmem:[#allocation7 + $0x418] sm:$0xff]
        %v2410 = vld [vmem:[#allocation7 + $0x420] sm:$0xff]
        %v2411 = vld [vmem:[#allocation7 + $0x428] sm:$0xff]
        %v2412 = vld [vmem:[#allocation7 + $0x430] sm:$0xff]
        %v2413 = vld [vmem:[#allocation7 + $0x438] sm:$0xff]
        %v2414 = vld [vmem:[#allocation7 + $0x440] sm:$0xff]
        %v2415 = vld [vmem:[#allocation7 + $0x448] sm:$0xff]
        %v2416 = vld [vmem:[#allocation7 + $0x450] sm:$0xff]
        %v2417 = vld [vmem:[#allocation7 + $0x458] sm:$0xff]
        %v2418 = vld [vmem:[#allocation7 + $0x460] sm:$0xff]
        %v2419 = vld [vmem:[#allocation7 + $0x468] sm:$0xff]
        %v2420 = vld [vmem:[#allocation7 + $0x470] sm:$0xff]
        %v2421 = vld [vmem:[#allocation7 + $0x478] sm:$0xff]
        %v2422 = vld [vmem:[#allocation7 + $0x480] sm:$0xff]
        %v2423 = vld [vmem:[#allocation7 + $0x488] sm:$0xff]
        %v2424 = vld [vmem:[#allocation7 + $0x490] sm:$0xff]
        %v2425 = vld [vmem:[#allocation7 + $0x498] sm:$0xff]
        %v2426 = vld [vmem:[#allocation7 + $0x4a0] sm:$0xff]
        %v2427 = vld [vmem:[#allocation7 + $0x4a8] sm:$0xff]
        %v2428 = vld [vmem:[#allocation7 + $0x4b0] sm:$0xff]
        %v2429 = vld [vmem:[#allocation7 + $0x4b8] sm:$0xff]
        %v2430 = vld [vmem:[#allocation7 + $0x4c0] sm:$0xff]
        %v2431 = vld [vmem:[#allocation7 + $0x4c8] sm:$0xff]
        %v2432 = vld [vmem:[#allocation7 + $0x4d0] sm:$0xff]
        %v2433 = vld [vmem:[#allocation7 + $0x4d8] sm:$0xff]
        %v2434 = vld [vmem:[#allocation7 + $0x4e0] sm:$0xff]
        %v2435 = vld [vmem:[#allocation7 + $0x4e8] sm:$0xff]
        %v2436 = vld [vmem:[#allocation7 + $0x4f0] sm:$0xff]
        %v2437 = vld [vmem:[#allocation7 + $0x4f8] sm:$0xff]
        %v2438 = vld [vmem:[#allocation7 + $0x500] sm:$0xff]
        %v2439 = vld [vmem:[#allocation7 + $0x508] sm:$0xff]
        %v2440 = vld [vmem:[#allocation7 + $0x510] sm:$0xff]
        %v2441 = vld [vmem:[#allocation7 + $0x518] sm:$0xff]
        %v2442 = vld [vmem:[#allocation7 + $0x520] sm:$0xff]
        %v2443 = vld [vmem:[#allocation7 + $0x528] sm:$0xff]
        %v2444 = vld [vmem:[#allocation7 + $0x530] sm:$0xff]
        %v2445 = vld [vmem:[#allocation7 + $0x538] sm:$0xff]
        %v2446 = vld [vmem:[#allocation7 + $0x540] sm:$0xff]
        %v2447 = vld [vmem:[#allocation7 + $0x548] sm:$0xff]
        %v2448 = vld [vmem:[#allocation7 + $0x550] sm:$0xff]
        %v2449 = vld [vmem:[#allocation7 + $0x558] sm:$0xff]
        %v2450 = vld [vmem:[#allocation7 + $0x560] sm:$0xff]
        %v2451 = vld [vmem:[#allocation7 + $0x568] sm:$0xff]
        %v2452 = vld [vmem:[#allocation7 + $0x570] sm:$0xff]
        %v2453 = vld [vmem:[#allocation7 + $0x578] sm:$0xff]
        %v2454 = vld [vmem:[#allocation7 + $0x580] sm:$0xff]
        %v2455 = vld [vmem:[#allocation7 + $0x588] sm:$0xff]
        %v2456 = vld [vmem:[#allocation7 + $0x590] sm:$0xff]
        %v2457 = vld [vmem:[#allocation7 + $0x598] sm:$0xff]
        %v2458 = vld [vmem:[#allocation7 + $0x5a0] sm:$0xff]
        %v2459 = vld [vmem:[#allocation7 + $0x5a8] sm:$0xff]
        %v2460 = vld [vmem:[#allocation7 + $0x5b0] sm:$0xff]
        %v2461 = vld [vmem:[#allocation7 + $0x5b8] sm:$0xff]
        %v2462 = vld [vmem:[#allocation7 + $0x5c0] sm:$0xff]
        %v2463 = vld [vmem:[#allocation7 + $0x5c8] sm:$0xff]
        %v2464 = vld [vmem:[#allocation7 + $0x5d0] sm:$0xff]
        %v2465 = vld [vmem:[#allocation7 + $0x5d8] sm:$0xff]
        %v2466 = vld [vmem:[#allocation7 + $0x5e0] sm:$0xff]
        %v2467 = vld [vmem:[#allocation7 + $0x5e8] sm:$0xff]
        %v2468 = vld [vmem:[#allocation7 + $0x5f0] sm:$0xff]
        %v2469 = vld [vmem:[#allocation7 + $0x5f8] sm:$0xff]
        %v2470 = vld [vmem:[#allocation7 + $0x600] sm:$0xff]
        %v2471 = vld [vmem:[#allocation7 + $0x608] sm:$0xff]
        %v2472 = vld [vmem:[#allocation7 + $0x610] sm:$0xff]
        %v2473 = vld [vmem:[#allocation7 + $0x618] sm:$0xff]
        %v2474 = vld [vmem:[#allocation7 + $0x620] sm:$0xff]
        %v2475 = vld [vmem:[#allocation7 + $0x628] sm:$0xff]
        %v2476 = vld [vmem:[#allocation7 + $0x630] sm:$0xff]
        %v2477 = vld [vmem:[#allocation7 + $0x638] sm:$0xff]
        %v2478 = vld [vmem:[#allocation7 + $0x640] sm:$0xff]
        %v2479 = vld [vmem:[#allocation7 + $0x648] sm:$0xff]
        %v2480 = vld [vmem:[#allocation7 + $0x650] sm:$0xff]
        %v2481 = vld [vmem:[#allocation7 + $0x658] sm:$0xff]
        %v2482 = vld [vmem:[#allocation7 + $0x660] sm:$0xff]
        %v2483 = vld [vmem:[#allocation7 + $0x668] sm:$0xff]
        %v2484 = vld [vmem:[#allocation7 + $0x670] sm:$0xff]
        %v2485 = vld [vmem:[#allocation7 + $0x678] sm:$0xff]
        %v2486 = vld [vmem:[#allocation7 + $0x680] sm:$0xff]
        %v2487 = vld [vmem:[#allocation7 + $0x688] sm:$0xff]
        %v2488 = vld [vmem:[#allocation7 + $0x690] sm:$0xff]
        %v2489 = vld [vmem:[#allocation7 + $0x698] sm:$0xff]
        %v2490 = vld [vmem:[#allocation7 + $0x6a0] sm:$0xff]
        %v2491 = vld [vmem:[#allocation7 + $0x6a8] sm:$0xff]
        %v2492 = vld [vmem:[#allocation7 + $0x6b0] sm:$0xff]
        %v2493 = vld [vmem:[#allocation7 + $0x6b8] sm:$0xff]
        %v2494 = vld [vmem:[#allocation7 + $0x6c0] sm:$0xff]
        %v2495 = vld [vmem:[#allocation7 + $0x6c8] sm:$0xff]
        %v2496 = vld [vmem:[#allocation7 + $0x6d0] sm:$0xff]
        %v2497 = vld [vmem:[#allocation7 + $0x6d8] sm:$0xff]
        %v2498 = vld [vmem:[#allocation7 + $0x6e0] sm:$0xff]
        %v2499 = vld [vmem:[#allocation7 + $0x6e8] sm:$0xff]
        %v2500 = vld [vmem:[#allocation7 + $0x6f0] sm:$0xff]
        %v2501 = vld [vmem:[#allocation7 + $0x6f8] sm:$0xff]
        %v2502 = vld [vmem:[#allocation7 + $0x700] sm:$0xff]
        %v2503 = vld [vmem:[#allocation7 + $0x708] sm:$0xff]
        %v2504 = vld [vmem:[#allocation7 + $0x710] sm:$0xff]
        %v2505 = vld [vmem:[#allocation7 + $0x718] sm:$0xff]
        %v2506 = vld [vmem:[#allocation7 + $0x720] sm:$0xff]
        %v2507 = vld [vmem:[#allocation7 + $0x728] sm:$0xff]
        %v2508 = vld [vmem:[#allocation7 + $0x730] sm:$0xff]
        %v2509 = vld [vmem:[#allocation7 + $0x738] sm:$0xff]
        %v2510 = vld [vmem:[#allocation7 + $0x740] sm:$0xff]
        %v2511 = vld [vmem:[#allocation7 + $0x748] sm:$0xff]
        %v2512 = vld [vmem:[#allocation7 + $0x750] sm:$0xff]
        %v2513 = vld [vmem:[#allocation7 + $0x758] sm:$0xff]
        %v2514 = vld [vmem:[#allocation7 + $0x760] sm:$0xff]
        %v2515 = vld [vmem:[#allocation7 + $0x768] sm:$0xff]
        %v2516 = vld [vmem:[#allocation7 + $0x770] sm:$0xff]
        %v2517 = vld [vmem:[#allocation7 + $0x778] sm:$0xff]
        %v2518 = vld [vmem:[#allocation7 + $0x780] sm:$0xff]
        %v2519 = vld [vmem:[#allocation7 + $0x788] sm:$0xff]
        %v2520 = vld [vmem:[#allocation7 + $0x790] sm:$0xff]
        %v2521 = vld [vmem:[#allocation7 + $0x798] sm:$0xff]
        %v2522 = vld [vmem:[#allocation7 + $0x7a0] sm:$0xff]
        %v2523 = vld [vmem:[#allocation7 + $0x7a8] sm:$0xff]
        %v2524 = vld [vmem:[#allocation7 + $0x7b0] sm:$0xff]
        %v2525 = vld [vmem:[#allocation7 + $0x7b8] sm:$0xff]
        %v2526 = vld [vmem:[#allocation7 + $0x7c0] sm:$0xff]
        %v2527 = vld [vmem:[#allocation7 + $0x7c8] sm:$0xff]
        %v2528 = vld [vmem:[#allocation7 + $0x7d0] sm:$0xff]
        %v2529 = vld [vmem:[#allocation7 + $0x7d8] sm:$0xff]
        %v2530 = vld [vmem:[#allocation7 + $0x7e0] sm:$0xff]
        %v2531 = vld [vmem:[#allocation7 + $0x7e8] sm:$0xff]
        %v2532 = vld [vmem:[#allocation7 + $0x7f0] sm:$0xff]
        %v2533 = vld [vmem:[#allocation7 + $0x7f8] sm:$0xff]
        %v2535 = vperm.slane %v274, 0
        %v2536 = vperm.slane %v274, 1
        %v2537 = vperm.slane %v274, 2
        %v2538 = vperm.slane %v274, 3
        %v2799 = vunpack.c.l.b16 %v2278
        %v2800 = vunpack.c.h.b16 %v2278
        %v2801 = vunpack.c.l.b16 %v2279
        %v2802 = vunpack.c.h.b16 %v2279
        %v2803 = vunpack.c.l.b16 %v2280
        %v2804 = vunpack.c.h.b16 %v2280
        %v2805 = vunpack.c.l.b16 %v2281
        %v2806 = vunpack.c.h.b16 %v2281
        %v2807 = vunpack.c.l.b16 %v2282
        %v2808 = vunpack.c.h.b16 %v2282
        %v2809 = vunpack.c.l.b16 %v2283
        %v2810 = vunpack.c.h.b16 %v2283
        %v2811 = vunpack.c.l.b16 %v2284
        %v2812 = vunpack.c.h.b16 %v2284
        %v2813 = vunpack.c.l.b16 %v2285
        %v2814 = vunpack.c.h.b16 %v2285
        %v2815 = vunpack.c.l.b16 %v2286
        %v2816 = vunpack.c.h.b16 %v2286
        %v2817 = vunpack.c.l.b16 %v2287
        %v2818 = vunpack.c.h.b16 %v2287
        %v2819 = vunpack.c.l.b16 %v2288
        %v2820 = vunpack.c.h.b16 %v2288
        %v2821 = vunpack.c.l.b16 %v2289
        %v2822 = vunpack.c.h.b16 %v2289
        %v2823 = vunpack.c.l.b16 %v2290
        %v2824 = vunpack.c.h.b16 %v2290
        %v2825 = vunpack.c.l.b16 %v2291
        %v2826 = vunpack.c.h.b16 %v2291
        %v2827 = vunpack.c.l.b16 %v2292
        %v2828 = vunpack.c.h.b16 %v2292
        %v2829 = vunpack.c.l.b16 %v2293
        %v2830 = vunpack.c.h.b16 %v2293
        %v2831 = vunpack.c.l.b16 %v2294
        %v2832 = vunpack.c.h.b16 %v2294
        %v2833 = vunpack.c.l.b16 %v2295
        %v2834 = vunpack.c.h.b16 %v2295
        %v2835 = vunpack.c.l.b16 %v2296
        %v2836 = vunpack.c.h.b16 %v2296
        %v2837 = vunpack.c.l.b16 %v2297
        %v2838 = vunpack.c.h.b16 %v2297
        %v2839 = vunpack.c.l.b16 %v2298
        %v2840 = vunpack.c.h.b16 %v2298
        %v2841 = vunpack.c.l.b16 %v2299
        %v2842 = vunpack.c.h.b16 %v2299
        %v2843 = vunpack.c.l.b16 %v2300
        %v2844 = vunpack.c.h.b16 %v2300
        %v2845 = vunpack.c.l.b16 %v2301
        %v2846 = vunpack.c.h.b16 %v2301
        %v2847 = vunpack.c.l.b16 %v2302
        %v2848 = vunpack.c.h.b16 %v2302
        %v2849 = vunpack.c.l.b16 %v2303
        %v2850 = vunpack.c.h.b16 %v2303
        %v2851 = vunpack.c.l.b16 %v2304
        %v2852 = vunpack.c.h.b16 %v2304
        %v2853 = vunpack.c.l.b16 %v2305
        %v2854 = vunpack.c.h.b16 %v2305
        %v2855 = vunpack.c.l.b16 %v2306
        %v2856 = vunpack.c.h.b16 %v2306
        %v2857 = vunpack.c.l.b16 %v2307
        %v2858 = vunpack.c.h.b16 %v2307
        %v2859 = vunpack.c.l.b16 %v2308
        %v2860 = vunpack.c.h.b16 %v2308
        %v2861 = vunpack.c.l.b16 %v2309
        %v2862 = vunpack.c.h.b16 %v2309
        %v2863 = vunpack.c.l.b16 %v2310
        %v2864 = vunpack.c.h.b16 %v2310
        %v2865 = vunpack.c.l.b16 %v2311
        %v2866 = vunpack.c.h.b16 %v2311
        %v2867 = vunpack.c.l.b16 %v2312
        %v2868 = vunpack.c.h.b16 %v2312
        %v2869 = vunpack.c.l.b16 %v2313
        %v2870 = vunpack.c.h.b16 %v2313
        %v2871 = vunpack.c.l.b16 %v2314
        %v2872 = vunpack.c.h.b16 %v2314
        %v2873 = vunpack.c.l.b16 %v2315
        %v2874 = vunpack.c.h.b16 %v2315
        %v2875 = vunpack.c.l.b16 %v2316
        %v2876 = vunpack.c.h.b16 %v2316
        %v2877 = vunpack.c.l.b16 %v2317
        %v2878 = vunpack.c.h.b16 %v2317
        %v2879 = vunpack.c.l.b16 %v2318
        %v2880 = vunpack.c.h.b16 %v2318
        %v2881 = vunpack.c.l.b16 %v2319
        %v2882 = vunpack.c.h.b16 %v2319
        %v2883 = vunpack.c.l.b16 %v2320
        %v2884 = vunpack.c.h.b16 %v2320
        %v2885 = vunpack.c.l.b16 %v2321
        %v2886 = vunpack.c.h.b16 %v2321
        %v2887 = vunpack.c.l.b16 %v2322
        %v2888 = vunpack.c.h.b16 %v2322
        %v2889 = vunpack.c.l.b16 %v2323
        %v2890 = vunpack.c.h.b16 %v2323
        %v2891 = vunpack.c.l.b16 %v2324
        %v2892 = vunpack.c.h.b16 %v2324
        %v2893 = vunpack.c.l.b16 %v2325
        %v2894 = vunpack.c.h.b16 %v2325
        %v2895 = vunpack.c.l.b16 %v2326
        %v2896 = vunpack.c.h.b16 %v2326
        %v2897 = vunpack.c.l.b16 %v2327
        %v2898 = vunpack.c.h.b16 %v2327
        %v2899 = vunpack.c.l.b16 %v2328
        %v2900 = vunpack.c.h.b16 %v2328
        %v2901 = vunpack.c.l.b16 %v2329
        %v2902 = vunpack.c.h.b16 %v2329
        %v2903 = vunpack.c.l.b16 %v2330
        %v2904 = vunpack.c.h.b16 %v2330
        %v2905 = vunpack.c.l.b16 %v2331
        %v2906 = vunpack.c.h.b16 %v2331
        %v2907 = vunpack.c.l.b16 %v2332
        %v2908 = vunpack.c.h.b16 %v2332
        %v2909 = vunpack.c.l.b16 %v2333
        %v2910 = vunpack.c.h.b16 %v2333
        %v2911 = vunpack.c.l.b16 %v2334
        %v2912 = vunpack.c.h.b16 %v2334
        %v2913 = vunpack.c.l.b16 %v2335
        %v2914 = vunpack.c.h.b16 %v2335
        %v2915 = vunpack.c.l.b16 %v2336
        %v2916 = vunpack.c.h.b16 %v2336
        %v2917 = vunpack.c.l.b16 %v2337
        %v2918 = vunpack.c.h.b16 %v2337
        %v2919 = vunpack.c.l.b16 %v2338
        %v2920 = vunpack.c.h.b16 %v2338
        %v2921 = vunpack.c.l.b16 %v2339
        %v2922 = vunpack.c.h.b16 %v2339
        %v2923 = vunpack.c.l.b16 %v2340
        %v2924 = vunpack.c.h.b16 %v2340
        %v2925 = vunpack.c.l.b16 %v2341
        %v2926 = vunpack.c.h.b16 %v2341
        %v2927 = vunpack.c.l.b16 %v2342
        %v2928 = vunpack.c.h.b16 %v2342
        %v2929 = vunpack.c.l.b16 %v2343
        %v2930 = vunpack.c.h.b16 %v2343
        %v2931 = vunpack.c.l.b16 %v2344
        %v2932 = vunpack.c.h.b16 %v2344
        %v2933 = vunpack.c.l.b16 %v2345
        %v2934 = vunpack.c.h.b16 %v2345
        %v2935 = vunpack.c.l.b16 %v2346
        %v2936 = vunpack.c.h.b16 %v2346
        %v2937 = vunpack.c.l.b16 %v2347
        %v2938 = vunpack.c.h.b16 %v2347
        %v2939 = vunpack.c.l.b16 %v2348
        %v2940 = vunpack.c.h.b16 %v2348
        %v2941 = vunpack.c.l.b16 %v2349
        %v2942 = vunpack.c.h.b16 %v2349
        %v2943 = vunpack.c.l.b16 %v2350
        %v2944 = vunpack.c.h.b16 %v2350
        %v2945 = vunpack.c.l.b16 %v2351
        %v2946 = vunpack.c.h.b16 %v2351
        %v2947 = vunpack.c.l.b16 %v2352
        %v2948 = vunpack.c.h.b16 %v2352
        %v2949 = vunpack.c.l.b16 %v2353
        %v2950 = vunpack.c.h.b16 %v2353
        %v2951 = vunpack.c.l.b16 %v2354
        %v2952 = vunpack.c.h.b16 %v2354
        %v2953 = vunpack.c.l.b16 %v2355
        %v2954 = vunpack.c.h.b16 %v2355
        %v2955 = vunpack.c.l.b16 %v2356
        %v2956 = vunpack.c.h.b16 %v2356
        %v2957 = vunpack.c.l.b16 %v2357
        %v2958 = vunpack.c.h.b16 %v2357
        %v2959 = vunpack.c.l.b16 %v2358
        %v2960 = vunpack.c.h.b16 %v2358
        %v2961 = vunpack.c.l.b16 %v2359
        %v2962 = vunpack.c.h.b16 %v2359
        %v2963 = vunpack.c.l.b16 %v2360
        %v2964 = vunpack.c.h.b16 %v2360
        %v2965 = vunpack.c.l.b16 %v2361
        %v2966 = vunpack.c.h.b16 %v2361
        %v2967 = vunpack.c.l.b16 %v2362
        %v2968 = vunpack.c.h.b16 %v2362
        %v2969 = vunpack.c.l.b16 %v2363
        %v2970 = vunpack.c.h.b16 %v2363
        %v2971 = vunpack.c.l.b16 %v2364
        %v2972 = vunpack.c.h.b16 %v2364
        %v2973 = vunpack.c.l.b16 %v2365
        %v2974 = vunpack.c.h.b16 %v2365
        %v2975 = vunpack.c.l.b16 %v2366
        %v2976 = vunpack.c.h.b16 %v2366
        %v2977 = vunpack.c.l.b16 %v2367
        %v2978 = vunpack.c.h.b16 %v2367
        %v2979 = vunpack.c.l.b16 %v2368
        %v2980 = vunpack.c.h.b16 %v2368
        %v2981 = vunpack.c.l.b16 %v2369
        %v2982 = vunpack.c.h.b16 %v2369
        %v2983 = vunpack.c.l.b16 %v2370
        %v2984 = vunpack.c.h.b16 %v2370
        %v2985 = vunpack.c.l.b16 %v2371
        %v2986 = vunpack.c.h.b16 %v2371
        %v2987 = vunpack.c.l.b16 %v2372
        %v2988 = vunpack.c.h.b16 %v2372
        %v2989 = vunpack.c.l.b16 %v2373
        %v2990 = vunpack.c.h.b16 %v2373
        %v2991 = vunpack.c.l.b16 %v2374
        %v2992 = vunpack.c.h.b16 %v2374
        %v2993 = vunpack.c.l.b16 %v2375
        %v2994 = vunpack.c.h.b16 %v2375
        %v2995 = vunpack.c.l.b16 %v2376
        %v2996 = vunpack.c.h.b16 %v2376
        %v2997 = vunpack.c.l.b16 %v2377
        %v2998 = vunpack.c.h.b16 %v2377
        %v2999 = vunpack.c.l.b16 %v2378
        %v3000 = vunpack.c.h.b16 %v2378
        %v3001 = vunpack.c.l.b16 %v2379
        %v3002 = vunpack.c.h.b16 %v2379
        %v3003 = vunpack.c.l.b16 %v2380
        %v3004 = vunpack.c.h.b16 %v2380
        %v3005 = vunpack.c.l.b16 %v2381
        %v3006 = vunpack.c.h.b16 %v2381
        %v3007 = vunpack.c.l.b16 %v2382
        %v3008 = vunpack.c.h.b16 %v2382
        %v3009 = vunpack.c.l.b16 %v2383
        %v3010 = vunpack.c.h.b16 %v2383
        %v3011 = vunpack.c.l.b16 %v2384
        %v3012 = vunpack.c.h.b16 %v2384
        %v3013 = vunpack.c.l.b16 %v2385
        %v3014 = vunpack.c.h.b16 %v2385
        %v3015 = vunpack.c.l.b16 %v2386
        %v3016 = vunpack.c.h.b16 %v2386
        %v3017 = vunpack.c.l.b16 %v2387
        %v3018 = vunpack.c.h.b16 %v2387
        %v3019 = vunpack.c.l.b16 %v2388
        %v3020 = vunpack.c.h.b16 %v2388
        %v3021 = vunpack.c.l.b16 %v2389
        %v3022 = vunpack.c.h.b16 %v2389
        %v3023 = vunpack.c.l.b16 %v2390
        %v3024 = vunpack.c.h.b16 %v2390
        %v3025 = vunpack.c.l.b16 %v2391
        %v3026 = vunpack.c.h.b16 %v2391
        %v3027 = vunpack.c.l.b16 %v2392
        %v3028 = vunpack.c.h.b16 %v2392
        %v3029 = vunpack.c.l.b16 %v2393
        %v3030 = vunpack.c.h.b16 %v2393
        %v3031 = vunpack.c.l.b16 %v2394
        %v3032 = vunpack.c.h.b16 %v2394
        %v3033 = vunpack.c.l.b16 %v2395
        %v3034 = vunpack.c.h.b16 %v2395
        %v3035 = vunpack.c.l.b16 %v2396
        %v3036 = vunpack.c.h.b16 %v2396
        %v3037 = vunpack.c.l.b16 %v2397
        %v3038 = vunpack.c.h.b16 %v2397
        %v3039 = vunpack.c.l.b16 %v2398
        %v3040 = vunpack.c.h.b16 %v2398
        %v3041 = vunpack.c.l.b16 %v2399
        %v3042 = vunpack.c.h.b16 %v2399
        %v3043 = vunpack.c.l.b16 %v2400
        %v3044 = vunpack.c.h.b16 %v2400
        %v3045 = vunpack.c.l.b16 %v2401
        %v3046 = vunpack.c.h.b16 %v2401
        %v3047 = vunpack.c.l.b16 %v2402
        %v3048 = vunpack.c.h.b16 %v2402
        %v3049 = vunpack.c.l.b16 %v2403
        %v3050 = vunpack.c.h.b16 %v2403
        %v3051 = vunpack.c.l.b16 %v2404
        %v3052 = vunpack.c.h.b16 %v2404
        %v3053 = vunpack.c.l.b16 %v2405
        %v3054 = vunpack.c.h.b16 %v2405
        %v3055 = vunpack.c.l.b16 %v2406
        %v3056 = vunpack.c.h.b16 %v2406
        %v3057 = vunpack.c.l.b16 %v2407
        %v3058 = vunpack.c.h.b16 %v2407
        %v3059 = vunpack.c.l.b16 %v2408
        %v3060 = vunpack.c.h.b16 %v2408
        %v3061 = vunpack.c.l.b16 %v2409
        %v3062 = vunpack.c.h.b16 %v2409
        %v3063 = vunpack.c.l.b16 %v2410
        %v3064 = vunpack.c.h.b16 %v2410
        %v3065 = vunpack.c.l.b16 %v2411
        %v3066 = vunpack.c.h.b16 %v2411
        %v3067 = vunpack.c.l.b16 %v2412
        %v3068 = vunpack.c.h.b16 %v2412
        %v3069 = vunpack.c.l.b16 %v2413
        %v3070 = vunpack.c.h.b16 %v2413
        %v3071 = vunpack.c.l.b16 %v2414
        %v3072 = vunpack.c.h.b16 %v2414
        %v3073 = vunpack.c.l.b16 %v2415
        %v3074 = vunpack.c.h.b16 %v2415
        %v3075 = vunpack.c.l.b16 %v2416
        %v3076 = vunpack.c.h.b16 %v2416
        %v3077 = vunpack.c.l.b16 %v2417
        %v3078 = vunpack.c.h.b16 %v2417
        %v3079 = vunpack.c.l.b16 %v2418
        %v3080 = vunpack.c.h.b16 %v2418
        %v3081 = vunpack.c.l.b16 %v2419
        %v3082 = vunpack.c.h.b16 %v2419
        %v3083 = vunpack.c.l.b16 %v2420
        %v3084 = vunpack.c.h.b16 %v2420
        %v3085 = vunpack.c.l.b16 %v2421
        %v3086 = vunpack.c.h.b16 %v2421
        %v3087 = vunpack.c.l.b16 %v2422
        %v3088 = vunpack.c.h.b16 %v2422
        %v3089 = vunpack.c.l.b16 %v2423
        %v3090 = vunpack.c.h.b16 %v2423
        %v3091 = vunpack.c.l.b16 %v2424
        %v3092 = vunpack.c.h.b16 %v2424
        %v3093 = vunpack.c.l.b16 %v2425
        %v3094 = vunpack.c.h.b16 %v2425
        %v3095 = vunpack.c.l.b16 %v2426
        %v3096 = vunpack.c.h.b16 %v2426
        %v3097 = vunpack.c.l.b16 %v2427
        %v3098 = vunpack.c.h.b16 %v2427
        %v3099 = vunpack.c.l.b16 %v2428
        %v3100 = vunpack.c.h.b16 %v2428
        %v3101 = vunpack.c.l.b16 %v2429
        %v3102 = vunpack.c.h.b16 %v2429
        %v3103 = vunpack.c.l.b16 %v2430
        %v3104 = vunpack.c.h.b16 %v2430
        %v3105 = vunpack.c.l.b16 %v2431
        %v3106 = vunpack.c.h.b16 %v2431
        %v3107 = vunpack.c.l.b16 %v2432
        %v3108 = vunpack.c.h.b16 %v2432
        %v3109 = vunpack.c.l.b16 %v2433
        %v3110 = vunpack.c.h.b16 %v2433
        %v3111 = vunpack.c.l.b16 %v2434
        %v3112 = vunpack.c.h.b16 %v2434
        %v3113 = vunpack.c.l.b16 %v2435
        %v3114 = vunpack.c.h.b16 %v2435
        %v3115 = vunpack.c.l.b16 %v2436
        %v3116 = vunpack.c.h.b16 %v2436
        %v3117 = vunpack.c.l.b16 %v2437
        %v3118 = vunpack.c.h.b16 %v2437
        %v3119 = vunpack.c.l.b16 %v2438
        %v3120 = vunpack.c.h.b16 %v2438
        %v3121 = vunpack.c.l.b16 %v2439
        %v3122 = vunpack.c.h.b16 %v2439
        %v3123 = vunpack.c.l.b16 %v2440
        %v3124 = vunpack.c.h.b16 %v2440
        %v3125 = vunpack.c.l.b16 %v2441
        %v3126 = vunpack.c.h.b16 %v2441
        %v3127 = vunpack.c.l.b16 %v2442
        %v3128 = vunpack.c.h.b16 %v2442
        %v3129 = vunpack.c.l.b16 %v2443
        %v3130 = vunpack.c.h.b16 %v2443
        %v3131 = vunpack.c.l.b16 %v2444
        %v3132 = vunpack.c.h.b16 %v2444
        %v3133 = vunpack.c.l.b16 %v2445
        %v3134 = vunpack.c.h.b16 %v2445
        %v3135 = vunpack.c.l.b16 %v2446
        %v3136 = vunpack.c.h.b16 %v2446
        %v3137 = vunpack.c.l.b16 %v2447
        %v3138 = vunpack.c.h.b16 %v2447
        %v3139 = vunpack.c.l.b16 %v2448
        %v3140 = vunpack.c.h.b16 %v2448
        %v3141 = vunpack.c.l.b16 %v2449
        %v3142 = vunpack.c.h.b16 %v2449
        %v3143 = vunpack.c.l.b16 %v2450
        %v3144 = vunpack.c.h.b16 %v2450
        %v3145 = vunpack.c.l.b16 %v2451
        %v3146 = vunpack.c.h.b16 %v2451
        %v3147 = vunpack.c.l.b16 %v2452
        %v3148 = vunpack.c.h.b16 %v2452
        %v3149 = vunpack.c.l.b16 %v2453
        %v3150 = vunpack.c.h.b16 %v2453
        %v3151 = vunpack.c.l.b16 %v2454
        %v3152 = vunpack.c.h.b16 %v2454
        %v3153 = vunpack.c.l.b16 %v2455
        %v3154 = vunpack.c.h.b16 %v2455
        %v3155 = vunpack.c.l.b16 %v2456
        %v3156 = vunpack.c.h.b16 %v2456
        %v3157 = vunpack.c.l.b16 %v2457
        %v3158 = vunpack.c.h.b16 %v2457
        %v3159 = vunpack.c.l.b16 %v2458
        %v3160 = vunpack.c.h.b16 %v2458
        %v3161 = vunpack.c.l.b16 %v2459
        %v3162 = vunpack.c.h.b16 %v2459
        %v3163 = vunpack.c.l.b16 %v2460
        %v3164 = vunpack.c.h.b16 %v2460
        %v3165 = vunpack.c.l.b16 %v2461
        %v3166 = vunpack.c.h.b16 %v2461
        %v3167 = vunpack.c.l.b16 %v2462
        %v3168 = vunpack.c.h.b16 %v2462
        %v3169 = vunpack.c.l.b16 %v2463
        %v3170 = vunpack.c.h.b16 %v2463
        %v3171 = vunpack.c.l.b16 %v2464
        %v3172 = vunpack.c.h.b16 %v2464
        %v3173 = vunpack.c.l.b16 %v2465
        %v3174 = vunpack.c.h.b16 %v2465
        %v3175 = vunpack.c.l.b16 %v2466
        %v3176 = vunpack.c.h.b16 %v2466
        %v3177 = vunpack.c.l.b16 %v2467
        %v3178 = vunpack.c.h.b16 %v2467
        %v3179 = vunpack.c.l.b16 %v2468
        %v3180 = vunpack.c.h.b16 %v2468
        %v3181 = vunpack.c.l.b16 %v2469
        %v3182 = vunpack.c.h.b16 %v2469
        %v3183 = vunpack.c.l.b16 %v2470
        %v3184 = vunpack.c.h.b16 %v2470
        %v3185 = vunpack.c.l.b16 %v2471
        %v3186 = vunpack.c.h.b16 %v2471
        %v3187 = vunpack.c.l.b16 %v2472
        %v3188 = vunpack.c.h.b16 %v2472
        %v3189 = vunpack.c.l.b16 %v2473
        %v3190 = vunpack.c.h.b16 %v2473
        %v3191 = vunpack.c.l.b16 %v2474
        %v3192 = vunpack.c.h.b16 %v2474
        %v3193 = vunpack.c.l.b16 %v2475
        %v3194 = vunpack.c.h.b16 %v2475
        %v3195 = vunpack.c.l.b16 %v2476
        %v3196 = vunpack.c.h.b16 %v2476
        %v3197 = vunpack.c.l.b16 %v2477
        %v3198 = vunpack.c.h.b16 %v2477
        %v3199 = vunpack.c.l.b16 %v2478
        %v3200 = vunpack.c.h.b16 %v2478
        %v3201 = vunpack.c.l.b16 %v2479
        %v3202 = vunpack.c.h.b16 %v2479
        %v3203 = vunpack.c.l.b16 %v2480
        %v3204 = vunpack.c.h.b16 %v2480
        %v3205 = vunpack.c.l.b16 %v2481
        %v3206 = vunpack.c.h.b16 %v2481
        %v3207 = vunpack.c.l.b16 %v2482
        %v3208 = vunpack.c.h.b16 %v2482
        %v3209 = vunpack.c.l.b16 %v2483
        %v3210 = vunpack.c.h.b16 %v2483
        %v3211 = vunpack.c.l.b16 %v2484
        %v3212 = vunpack.c.h.b16 %v2484
        %v3213 = vunpack.c.l.b16 %v2485
        %v3214 = vunpack.c.h.b16 %v2485
        %v3215 = vunpack.c.l.b16 %v2486
        %v3216 = vunpack.c.h.b16 %v2486
        %v3217 = vunpack.c.l.b16 %v2487
        %v3218 = vunpack.c.h.b16 %v2487
        %v3219 = vunpack.c.l.b16 %v2488
        %v3220 = vunpack.c.h.b16 %v2488
        %v3221 = vunpack.c.l.b16 %v2489
        %v3222 = vunpack.c.h.b16 %v2489
        %v3223 = vunpack.c.l.b16 %v2490
        %v3224 = vunpack.c.h.b16 %v2490
        %v3225 = vunpack.c.l.b16 %v2491
        %v3226 = vunpack.c.h.b16 %v2491
        %v3227 = vunpack.c.l.b16 %v2492
        %v3228 = vunpack.c.h.b16 %v2492
        %v3229 = vunpack.c.l.b16 %v2493
        %v3230 = vunpack.c.h.b16 %v2493
        %v3231 = vunpack.c.l.b16 %v2494
        %v3232 = vunpack.c.h.b16 %v2494
        %v3233 = vunpack.c.l.b16 %v2495
        %v3234 = vunpack.c.h.b16 %v2495
        %v3235 = vunpack.c.l.b16 %v2496
        %v3236 = vunpack.c.h.b16 %v2496
        %v3237 = vunpack.c.l.b16 %v2497
        %v3238 = vunpack.c.h.b16 %v2497
        %v3239 = vunpack.c.l.b16 %v2498
        %v3240 = vunpack.c.h.b16 %v2498
        %v3241 = vunpack.c.l.b16 %v2499
        %v3242 = vunpack.c.h.b16 %v2499
        %v3243 = vunpack.c.l.b16 %v2500
        %v3244 = vunpack.c.h.b16 %v2500
        %v3245 = vunpack.c.l.b16 %v2501
        %v3246 = vunpack.c.h.b16 %v2501
        %v3247 = vunpack.c.l.b16 %v2502
        %v3248 = vunpack.c.h.b16 %v2502
        %v3249 = vunpack.c.l.b16 %v2503
        %v3250 = vunpack.c.h.b16 %v2503
        %v3251 = vunpack.c.l.b16 %v2504
        %v3252 = vunpack.c.h.b16 %v2504
        %v3253 = vunpack.c.l.b16 %v2505
        %v3254 = vunpack.c.h.b16 %v2505
        %v3255 = vunpack.c.l.b16 %v2506
        %v3256 = vunpack.c.h.b16 %v2506
        %v3257 = vunpack.c.l.b16 %v2507
        %v3258 = vunpack.c.h.b16 %v2507
        %v3259 = vunpack.c.l.b16 %v2508
        %v3260 = vunpack.c.h.b16 %v2508
        %v3261 = vunpack.c.l.b16 %v2509
        %v3262 = vunpack.c.h.b16 %v2509
        %v3263 = vunpack.c.l.b16 %v2510
        %v3264 = vunpack.c.h.b16 %v2510
        %v3265 = vunpack.c.l.b16 %v2511
        %v3266 = vunpack.c.h.b16 %v2511
        %v3267 = vunpack.c.l.b16 %v2512
        %v3268 = vunpack.c.h.b16 %v2512
        %v3269 = vunpack.c.l.b16 %v2513
        %v3270 = vunpack.c.h.b16 %v2513
        %v3271 = vunpack.c.l.b16 %v2514
        %v3272 = vunpack.c.h.b16 %v2514
        %v3273 = vunpack.c.l.b16 %v2515
        %v3274 = vunpack.c.h.b16 %v2515
        %v3275 = vunpack.c.l.b16 %v2516
        %v3276 = vunpack.c.h.b16 %v2516
        %v3277 = vunpack.c.l.b16 %v2517
        %v3278 = vunpack.c.h.b16 %v2517
        %v3279 = vunpack.c.l.b16 %v2518
        %v3280 = vunpack.c.h.b16 %v2518
        %v3281 = vunpack.c.l.b16 %v2519
        %v3282 = vunpack.c.h.b16 %v2519
        %v3283 = vunpack.c.l.b16 %v2520
        %v3284 = vunpack.c.h.b16 %v2520
        %v3285 = vunpack.c.l.b16 %v2521
        %v3286 = vunpack.c.h.b16 %v2521
        %v3287 = vunpack.c.l.b16 %v2522
        %v3288 = vunpack.c.h.b16 %v2522
        %v3289 = vunpack.c.l.b16 %v2523
        %v3290 = vunpack.c.h.b16 %v2523
        %v3291 = vunpack.c.l.b16 %v2524
        %v3292 = vunpack.c.h.b16 %v2524
        %v3293 = vunpack.c.l.b16 %v2525
        %v3294 = vunpack.c.h.b16 %v2525
        %v3295 = vunpack.c.l.b16 %v2526
        %v3296 = vunpack.c.h.b16 %v2526
        %v3297 = vunpack.c.l.b16 %v2527
        %v3298 = vunpack.c.h.b16 %v2527
        %v3299 = vunpack.c.l.b16 %v2528
        %v3300 = vunpack.c.h.b16 %v2528
        %v3301 = vunpack.c.l.b16 %v2529
        %v3302 = vunpack.c.h.b16 %v2529
        %v3303 = vunpack.c.l.b16 %v2530
        %v3304 = vunpack.c.h.b16 %v2530
        %v3305 = vunpack.c.l.b16 %v2531
        %v3306 = vunpack.c.h.b16 %v2531
        %v3307 = vunpack.c.l.b16 %v2532
        %v3308 = vunpack.c.h.b16 %v2532
        %v3309 = vunpack.c.l.b16 %v2533
        %v3310 = vunpack.c.h.b16 %v2533
        %v3311 = vpack.c.b16 %v2803, %v2799
        %v3312 = vpack.c.b16 %v2804, %v2800
        %v3313 = vpack.c.b16 %v2805, %v2801
        %v3314 = vpack.c.b16 %v2806, %v2802
        %v3315 = vpack.c.b16 %v2811, %v2807
        %v3316 = vpack.c.b16 %v2812, %v2808
        %v3317 = vpack.c.b16 %v2813, %v2809
        %v3318 = vpack.c.b16 %v2814, %v2810
        %v3319 = vpack.c.b16 %v2819, %v2815
        %v3320 = vpack.c.b16 %v2820, %v2816
        %v3321 = vpack.c.b16 %v2821, %v2817
        %v3322 = vpack.c.b16 %v2822, %v2818
        %v3323 = vpack.c.b16 %v2827, %v2823
        %v3324 = vpack.c.b16 %v2828, %v2824
        %v3325 = vpack.c.b16 %v2829, %v2825
        %v3326 = vpack.c.b16 %v2830, %v2826
        %v3327 = vpack.c.b16 %v2835, %v2831
        %v3328 = vpack.c.b16 %v2836, %v2832
        %v3329 = vpack.c.b16 %v2837, %v2833
        %v3330 = vpack.c.b16 %v2838, %v2834
        %v3331 = vpack.c.b16 %v2843, %v2839
        %v3332 = vpack.c.b16 %v2844, %v2840
        %v3333 = vpack.c.b16 %v2845, %v2841
        %v3334 = vpack.c.b16 %v2846, %v2842
        %v3335 = vpack.c.b16 %v2851, %v2847
        %v3336 = vpack.c.b16 %v2852, %v2848
        %v3337 = vpack.c.b16 %v2853, %v2849
        %v3338 = vpack.c.b16 %v2854, %v2850
        %v3339 = vpack.c.b16 %v2859, %v2855
        %v3340 = vpack.c.b16 %v2860, %v2856
        %v3341 = vpack.c.b16 %v2861, %v2857
        %v3342 = vpack.c.b16 %v2862, %v2858
        %v3343 = vpack.c.b16 %v2867, %v2863
        %v3344 = vpack.c.b16 %v2868, %v2864
        %v3345 = vpack.c.b16 %v2869, %v2865
        %v3346 = vpack.c.b16 %v2870, %v2866
        %v3347 = vpack.c.b16 %v2875, %v2871
        %v3348 = vpack.c.b16 %v2876, %v2872
        %v3349 = vpack.c.b16 %v2877, %v2873
        %v3350 = vpack.c.b16 %v2878, %v2874
        %v3351 = vpack.c.b16 %v2883, %v2879
        %v3352 = vpack.c.b16 %v2884, %v2880
        %v3353 = vpack.c.b16 %v2885, %v2881
        %v3354 = vpack.c.b16 %v2886, %v2882
        %v3355 = vpack.c.b16 %v2891, %v2887
        %v3356 = vpack.c.b16 %v2892, %v2888
        %v3357 = vpack.c.b16 %v2893, %v2889
        %v3358 = vpack.c.b16 %v2894, %v2890
        %v3359 = vpack.c.b16 %v2899, %v2895
        %v3360 = vpack.c.b16 %v2900, %v2896
        %v3361 = vpack.c.b16 %v2901, %v2897
        %v3362 = vpack.c.b16 %v2902, %v2898
        %v3363 = vpack.c.b16 %v2907, %v2903
        %v3364 = vpack.c.b16 %v2908, %v2904
        %v3365 = vpack.c.b16 %v2909, %v2905
        %v3366 = vpack.c.b16 %v2910, %v2906
        %v3367 = vpack.c.b16 %v2915, %v2911
        %v3368 = vpack.c.b16 %v2916, %v2912
        %v3369 = vpack.c.b16 %v2917, %v2913
        %v3370 = vpack.c.b16 %v2918, %v2914
        %v3371 = vpack.c.b16 %v2923, %v2919
        %v3372 = vpack.c.b16 %v2924, %v2920
        %v3373 = vpack.c.b16 %v2925, %v2921
        %v3374 = vpack.c.b16 %v2926, %v2922
        %v3375 = vpack.c.b16 %v2931, %v2927
        %v3376 = vpack.c.b16 %v2932, %v2928
        %v3377 = vpack.c.b16 %v2933, %v2929
        %v3378 = vpack.c.b16 %v2934, %v2930
        %v3379 = vpack.c.b16 %v2939, %v2935
        %v3380 = vpack.c.b16 %v2940, %v2936
        %v3381 = vpack.c.b16 %v2941, %v2937
        %v3382 = vpack.c.b16 %v2942, %v2938
        %v3383 = vpack.c.b16 %v2947, %v2943
        %v3384 = vpack.c.b16 %v2948, %v2944
        %v3385 = vpack.c.b16 %v2949, %v2945
        %v3386 = vpack.c.b16 %v2950, %v2946
        %v3387 = vpack.c.b16 %v2955, %v2951
        %v3388 = vpack.c.b16 %v2956, %v2952
        %v3389 = vpack.c.b16 %v2957, %v2953
        %v3390 = vpack.c.b16 %v2958, %v2954
        %v3391 = vpack.c.b16 %v2963, %v2959
        %v3392 = vpack.c.b16 %v2964, %v2960
        %v3393 = vpack.c.b16 %v2965, %v2961
        %v3394 = vpack.c.b16 %v2966, %v2962
        %v3395 = vpack.c.b16 %v2971, %v2967
        %v3396 = vpack.c.b16 %v2972, %v2968
        %v3397 = vpack.c.b16 %v2973, %v2969
        %v3398 = vpack.c.b16 %v2974, %v2970
        %v3399 = vpack.c.b16 %v2979, %v2975
        %v3400 = vpack.c.b16 %v2980, %v2976
        %v3401 = vpack.c.b16 %v2981, %v2977
        %v3402 = vpack.c.b16 %v2982, %v2978
        %v3403 = vpack.c.b16 %v2987, %v2983
        %v3404 = vpack.c.b16 %v2988, %v2984
        %v3405 = vpack.c.b16 %v2989, %v2985
        %v3406 = vpack.c.b16 %v2990, %v2986
        %v3407 = vpack.c.b16 %v2995, %v2991
        %v3408 = vpack.c.b16 %v2996, %v2992
        %v3409 = vpack.c.b16 %v2997, %v2993
        %v3410 = vpack.c.b16 %v2998, %v2994
        %v3411 = vpack.c.b16 %v3003, %v2999
        %v3412 = vpack.c.b16 %v3004, %v3000
        %v3413 = vpack.c.b16 %v3005, %v3001
        %v3414 = vpack.c.b16 %v3006, %v3002
        %v3415 = vpack.c.b16 %v3011, %v3007
        %v3416 = vpack.c.b16 %v3012, %v3008
        %v3417 = vpack.c.b16 %v3013, %v3009
        %v3418 = vpack.c.b16 %v3014, %v3010
        %v3419 = vpack.c.b16 %v3019, %v3015
        %v3420 = vpack.c.b16 %v3020, %v3016
        %v3421 = vpack.c.b16 %v3021, %v3017
        %v3422 = vpack.c.b16 %v3022, %v3018
        %v3423 = vpack.c.b16 %v3027, %v3023
        %v3424 = vpack.c.b16 %v3028, %v3024
        %v3425 = vpack.c.b16 %v3029, %v3025
        %v3426 = vpack.c.b16 %v3030, %v3026
        %v3427 = vpack.c.b16 %v3035, %v3031
        %v3428 = vpack.c.b16 %v3036, %v3032
        %v3429 = vpack.c.b16 %v3037, %v3033
        %v3430 = vpack.c.b16 %v3038, %v3034
        %v3431 = vpack.c.b16 %v3043, %v3039
        %v3432 = vpack.c.b16 %v3044, %v3040
        %v3433 = vpack.c.b16 %v3045, %v3041
        %v3434 = vpack.c.b16 %v3046, %v3042
        %v3435 = vpack.c.b16 %v3051, %v3047
        %v3436 = vpack.c.b16 %v3052, %v3048
        %v3437 = vpack.c.b16 %v3053, %v3049
        %v3438 = vpack.c.b16 %v3054, %v3050
        %v3439 = vpack.c.b16 %v3059, %v3055
        %v3440 = vpack.c.b16 %v3060, %v3056
        %v3441 = vpack.c.b16 %v3061, %v3057
        %v3442 = vpack.c.b16 %v3062, %v3058
        %v3443 = vpack.c.b16 %v3067, %v3063
        %v3444 = vpack.c.b16 %v3068, %v3064
        %v3445 = vpack.c.b16 %v3069, %v3065
        %v3446 = vpack.c.b16 %v3070, %v3066
        %v3447 = vpack.c.b16 %v3075, %v3071
        %v3448 = vpack.c.b16 %v3076, %v3072
        %v3449 = vpack.c.b16 %v3077, %v3073
        %v3450 = vpack.c.b16 %v3078, %v3074
        %v3451 = vpack.c.b16 %v3083, %v3079
        %v3452 = vpack.c.b16 %v3084, %v3080
        %v3453 = vpack.c.b16 %v3085, %v3081
        %v3454 = vpack.c.b16 %v3086, %v3082
        %v3455 = vpack.c.b16 %v3091, %v3087
        %v3456 = vpack.c.b16 %v3092, %v3088
        %v3457 = vpack.c.b16 %v3093, %v3089
        %v3458 = vpack.c.b16 %v3094, %v3090
        %v3459 = vpack.c.b16 %v3099, %v3095
        %v3460 = vpack.c.b16 %v3100, %v3096
        %v3461 = vpack.c.b16 %v3101, %v3097
        %v3462 = vpack.c.b16 %v3102, %v3098
        %v3463 = vpack.c.b16 %v3107, %v3103
        %v3464 = vpack.c.b16 %v3108, %v3104
        %v3465 = vpack.c.b16 %v3109, %v3105
        %v3466 = vpack.c.b16 %v3110, %v3106
        %v3467 = vpack.c.b16 %v3115, %v3111
        %v3468 = vpack.c.b16 %v3116, %v3112
        %v3469 = vpack.c.b16 %v3117, %v3113
        %v3470 = vpack.c.b16 %v3118, %v3114
        %v3471 = vpack.c.b16 %v3123, %v3119
        %v3472 = vpack.c.b16 %v3124, %v3120
        %v3473 = vpack.c.b16 %v3125, %v3121
        %v3474 = vpack.c.b16 %v3126, %v3122
        %v3475 = vpack.c.b16 %v3131, %v3127
        %v3476 = vpack.c.b16 %v3132, %v3128
        %v3477 = vpack.c.b16 %v3133, %v3129
        %v3478 = vpack.c.b16 %v3134, %v3130
        %v3479 = vpack.c.b16 %v3139, %v3135
        %v3480 = vpack.c.b16 %v3140, %v3136
        %v3481 = vpack.c.b16 %v3141, %v3137
        %v3482 = vpack.c.b16 %v3142, %v3138
        %v3483 = vpack.c.b16 %v3147, %v3143
        %v3484 = vpack.c.b16 %v3148, %v3144
        %v3485 = vpack.c.b16 %v3149, %v3145
        %v3486 = vpack.c.b16 %v3150, %v3146
        %v3487 = vpack.c.b16 %v3155, %v3151
        %v3488 = vpack.c.b16 %v3156, %v3152
        %v3489 = vpack.c.b16 %v3157, %v3153
        %v3490 = vpack.c.b16 %v3158, %v3154
        %v3491 = vpack.c.b16 %v3163, %v3159
        %v3492 = vpack.c.b16 %v3164, %v3160
        %v3493 = vpack.c.b16 %v3165, %v3161
        %v3494 = vpack.c.b16 %v3166, %v3162
        %v3495 = vpack.c.b16 %v3171, %v3167
        %v3496 = vpack.c.b16 %v3172, %v3168
        %v3497 = vpack.c.b16 %v3173, %v3169
        %v3498 = vpack.c.b16 %v3174, %v3170
        %v3499 = vpack.c.b16 %v3179, %v3175
        %v3500 = vpack.c.b16 %v3180, %v3176
        %v3501 = vpack.c.b16 %v3181, %v3177
        %v3502 = vpack.c.b16 %v3182, %v3178
        %v3503 = vpack.c.b16 %v3187, %v3183
        %v3504 = vpack.c.b16 %v3188, %v3184
        %v3505 = vpack.c.b16 %v3189, %v3185
        %v3506 = vpack.c.b16 %v3190, %v3186
        %v3507 = vpack.c.b16 %v3195, %v3191
        %v3508 = vpack.c.b16 %v3196, %v3192
        %v3509 = vpack.c.b16 %v3197, %v3193
        %v3510 = vpack.c.b16 %v3198, %v3194
        %v3511 = vpack.c.b16 %v3203, %v3199
        %v3512 = vpack.c.b16 %v3204, %v3200
        %v3513 = vpack.c.b16 %v3205, %v3201
        %v3514 = vpack.c.b16 %v3206, %v3202
        %v3515 = vpack.c.b16 %v3211, %v3207
        %v3516 = vpack.c.b16 %v3212, %v3208
        %v3517 = vpack.c.b16 %v3213, %v3209
        %v3518 = vpack.c.b16 %v3214, %v3210
        %v3519 = vpack.c.b16 %v3219, %v3215
        %v3520 = vpack.c.b16 %v3220, %v3216
        %v3521 = vpack.c.b16 %v3221, %v3217
        %v3522 = vpack.c.b16 %v3222, %v3218
        %v3523 = vpack.c.b16 %v3227, %v3223
        %v3524 = vpack.c.b16 %v3228, %v3224
        %v3525 = vpack.c.b16 %v3229, %v3225
        %v3526 = vpack.c.b16 %v3230, %v3226
        %v3527 = vpack.c.b16 %v3235, %v3231
        %v3528 = vpack.c.b16 %v3236, %v3232
        %v3529 = vpack.c.b16 %v3237, %v3233
        %v3530 = vpack.c.b16 %v3238, %v3234
        %v3531 = vpack.c.b16 %v3243, %v3239
        %v3532 = vpack.c.b16 %v3244, %v3240
        %v3533 = vpack.c.b16 %v3245, %v3241
        %v3534 = vpack.c.b16 %v3246, %v3242
        %v3535 = vpack.c.b16 %v3251, %v3247
        %v3536 = vpack.c.b16 %v3252, %v3248
        %v3537 = vpack.c.b16 %v3253, %v3249
        %v3538 = vpack.c.b16 %v3254, %v3250
        %v3539 = vpack.c.b16 %v3259, %v3255
        %v3540 = vpack.c.b16 %v3260, %v3256
        %v3541 = vpack.c.b16 %v3261, %v3257
        %v3542 = vpack.c.b16 %v3262, %v3258
        %v3543 = vpack.c.b16 %v3267, %v3263
        %v3544 = vpack.c.b16 %v3268, %v3264
        %v3545 = vpack.c.b16 %v3269, %v3265
        %v3546 = vpack.c.b16 %v3270, %v3266
        %v3547 = vpack.c.b16 %v3275, %v3271
        %v3548 = vpack.c.b16 %v3276, %v3272
        %v3549 = vpack.c.b16 %v3277, %v3273
        %v3550 = vpack.c.b16 %v3278, %v3274
        %v3551 = vpack.c.b16 %v3283, %v3279
        %v3552 = vpack.c.b16 %v3284, %v3280
        %v3553 = vpack.c.b16 %v3285, %v3281
        %v3554 = vpack.c.b16 %v3286, %v3282
        %v3555 = vpack.c.b16 %v3291, %v3287
        %v3556 = vpack.c.b16 %v3292, %v3288
        %v3557 = vpack.c.b16 %v3293, %v3289
        %v3558 = vpack.c.b16 %v3294, %v3290
        %v3559 = vpack.c.b16 %v3299, %v3295
        %v3560 = vpack.c.b16 %v3300, %v3296
        %v3561 = vpack.c.b16 %v3301, %v3297
        %v3562 = vpack.c.b16 %v3302, %v3298
        %v3563 = vpack.c.b16 %v3307, %v3303
        %v3564 = vpack.c.b16 %v3308, %v3304
        %v3565 = vpack.c.b16 %v3309, %v3305
        %v3566 = vpack.c.b16 %v3310, %v3306
        %3823 = vmatpush.bf16.msra.mxu0 %v3339
        %3824 = vmatpush.bf16.msra.mxu0 %v3335
        %3825 = vmatpush.bf16.msra.mxu0 %v3331
        %3826 = vmatpush.bf16.msra.mxu0 %v3327
        %3827 = vmatpush.bf16.msra.mxu0 %v3323
        %3828 = vmatpush.bf16.msra.mxu0 %v3319
        %3829 = vmatpush.bf16.msra.mxu0 %v3315
        %3830 = vmatpush.bf16.msra.mxu0 %v3311
        %3831 = vmatmul.bf16.gmra.mxu0 %v2270
        %v3832 = vpop.f32.mrf.mxu0
        %v3833 = vadd.f32 %v2535, %v3832
        %v3834 = vpop.f32.mrf.mxu0
        %3835 = vdwg.mxu0
        %3836 = vmatpush.bf16.msra.mxu0 %v3371
        %3837 = vmatpush.bf16.msra.mxu0 %v3367
        %3838 = vmatpush.bf16.msra.mxu0 %v3363
        %3839 = vmatpush.bf16.msra.mxu0 %v3359
        %3840 = vmatpush.bf16.msra.mxu0 %v3355
        %3841 = vmatpush.bf16.msra.mxu0 %v3351
        %3842 = vmatpush.bf16.msra.mxu0 %v3347
        %3843 = vmatpush.bf16.msra.mxu0 %v3343
        %3844 = vmatmul.bf16.gmra.mxu0 %v2271
        %v3845 = vpop.f32.mrf.mxu0
        %v3846 = vadd.f32 %v3833, %v3845
        %v3847 = vpop.f32.mrf.mxu0
        %3848 = vdwg.mxu0
        %3849 = vmatpush.bf16.msra.mxu0 %v3403
        %3850 = vmatpush.bf16.msra.mxu0 %v3399
        %3851 = vmatpush.bf16.msra.mxu0 %v3395
        %3852 = vmatpush.bf16.msra.mxu0 %v3391
        %3853 = vmatpush.bf16.msra.mxu0 %v3387
        %3854 = vmatpush.bf16.msra.mxu0 %v3383
        %3855 = vmatpush.bf16.msra.mxu0 %v3379
        %3856 = vmatpush.bf16.msra.mxu0 %v3375
        %3857 = vmatmul.bf16.gmra.mxu0 %v2272
        %v3858 = vpop.f32.mrf.mxu0
        %v3859 = vadd.f32 %v3846, %v3858
        %v3860 = vpop.f32.mrf.mxu0
        %3861 = vdwg.mxu0
        %3862 = vmatpush.bf16.msra.mxu0 %v3435
        %3863 = vmatpush.bf16.msra.mxu0 %v3431
        %3864 = vmatpush.bf16.msra.mxu0 %v3427
        %3865 = vmatpush.bf16.msra.mxu0 %v3423
        %3866 = vmatpush.bf16.msra.mxu0 %v3419
        %3867 = vmatpush.bf16.msra.mxu0 %v3415
        %3868 = vmatpush.bf16.msra.mxu0 %v3411
        %3869 = vmatpush.bf16.msra.mxu0 %v3407
        %3870 = vmatmul.bf16.gmra.mxu0 %v2273
        %v3871 = vpop.f32.mrf.mxu0
        %v3872 = vadd.f32 %v3859, %v3871
        %v3873 = vpop.f32.mrf.mxu0
        %3874 = vdwg.mxu0
        %3875 = vmatpush.bf16.msra.mxu0 %v3467
        %3876 = vmatpush.bf16.msra.mxu0 %v3463
        %3877 = vmatpush.bf16.msra.mxu0 %v3459
        %3878 = vmatpush.bf16.msra.mxu0 %v3455
        %3879 = vmatpush.bf16.msra.mxu0 %v3451
        %3880 = vmatpush.bf16.msra.mxu0 %v3447
        %3881 = vmatpush.bf16.msra.mxu0 %v3443
        %3882 = vmatpush.bf16.msra.mxu0 %v3439
        %3883 = vmatmul.bf16.gmra.mxu0 %v2274
        %v3884 = vpop.f32.mrf.mxu0
        %v3885 = vadd.f32 %v3872, %v3884
        %v3886 = vpop.f32.mrf.mxu0
        %3887 = vdwg.mxu0
        %3888 = vmatpush.bf16.msra.mxu0 %v3499
        %3889 = vmatpush.bf16.msra.mxu0 %v3495
        %3890 = vmatpush.bf16.msra.mxu0 %v3491
        %3891 = vmatpush.bf16.msra.mxu0 %v3487
        %3892 = vmatpush.bf16.msra.mxu0 %v3483
        %3893 = vmatpush.bf16.msra.mxu0 %v3479
        %3894 = vmatpush.bf16.msra.mxu0 %v3475
        %3895 = vmatpush.bf16.msra.mxu0 %v3471
        %3896 = vmatmul.bf16.gmra.mxu0 %v2275
        %v3897 = vpop.f32.mrf.mxu0
        %v3898 = vadd.f32 %v3885, %v3897
        %v3899 = vpop.f32.mrf.mxu0
        %3900 = vdwg.mxu0
        %3901 = vmatpush.bf16.msra.mxu0 %v3531
        %3902 = vmatpush.bf16.msra.mxu0 %v3527
        %3903 = vmatpush.bf16.msra.mxu0 %v3523
        %3904 = vmatpush.bf16.msra.mxu0 %v3519
        %3905 = vmatpush.bf16.msra.mxu0 %v3515
        %3906 = vmatpush.bf16.msra.mxu0 %v3511
        %3907 = vmatpush.bf16.msra.mxu0 %v3507
        %3908 = vmatpush.bf16.msra.mxu0 %v3503
        %3909 = vmatmul.bf16.gmra.mxu0 %v2276
        %v3910 = vpop.f32.mrf.mxu0
        %v3911 = vadd.f32 %v3898, %v3910
        %v3912 = vpop.f32.mrf.mxu0
        %3913 = vdwg.mxu0
        %3914 = vmatpush.bf16.msra.mxu0 %v3563
        %3915 = vmatpush.bf16.msra.mxu0 %v3559
        %3916 = vmatpush.bf16.msra.mxu0 %v3555
        %3917 = vmatpush.bf16.msra.mxu0 %v3551
        %3918 = vmatpush.bf16.msra.mxu0 %v3547
        %3919 = vmatpush.bf16.msra.mxu0 %v3543
        %3920 = vmatpush.bf16.msra.mxu0 %v3539
        %3921 = vmatpush.bf16.msra.mxu0 %v3535
        %3922 = vmatmul.bf16.gmra.mxu0 %v2277
        %v3923 = vpop.f32.mrf.mxu0
        %v3924 = vadd.f32 %v3911, %v3923
        %v3925 = vpop.f32.mrf.mxu0
        %3926 = vdwg.mxu0
        %3927 = vmatpush.bf16.msra.mxu0 %v3340
        %3928 = vmatpush.bf16.msra.mxu0 %v3336
        %3929 = vmatpush.bf16.msra.mxu0 %v3332
        %3930 = vmatpush.bf16.msra.mxu0 %v3328
        %3931 = vmatpush.bf16.msra.mxu0 %v3324
        %3932 = vmatpush.bf16.msra.mxu0 %v3320
        %3933 = vmatpush.bf16.msra.mxu0 %v3316
        %3934 = vmatpush.bf16.msra.mxu0 %v3312
        %3935 = vmatmul.bf16.gmra.mxu0 %v2270
        %v3936 = vpop.f32.mrf.mxu0
        %v3937 = vadd.f32 %v2536, %v3936
        %v3938 = vpop.f32.mrf.mxu0
        %3939 = vdwg.mxu0
        %3940 = vmatpush.bf16.msra.mxu0 %v3372
        %3941 = vmatpush.bf16.msra.mxu0 %v3368
        %3942 = vmatpush.bf16.msra.mxu0 %v3364
        %3943 = vmatpush.bf16.msra.mxu0 %v3360
        %3944 = vmatpush.bf16.msra.mxu0 %v3356
        %3945 = vmatpush.bf16.msra.mxu0 %v3352
        %3946 = vmatpush.bf16.msra.mxu0 %v3348
        %3947 = vmatpush.bf16.msra.mxu0 %v3344
        %3948 = vmatmul.bf16.gmra.mxu0 %v2271
        %v3949 = vpop.f32.mrf.mxu0
        %v3950 = vadd.f32 %v3937, %v3949
        %v3951 = vpop.f32.mrf.mxu0
        %3952 = vdwg.mxu0
        %3953 = vmatpush.bf16.msra.mxu0 %v3404
        %3954 = vmatpush.bf16.msra.mxu0 %v3400
        %3955 = vmatpush.bf16.msra.mxu0 %v3396
        %3956 = vmatpush.bf16.msra.mxu0 %v3392
        %3957 = vmatpush.bf16.msra.mxu0 %v3388
        %3958 = vmatpush.bf16.msra.mxu0 %v3384
        %3959 = vmatpush.bf16.msra.mxu0 %v3380
        %3960 = vmatpush.bf16.msra.mxu0 %v3376
        %3961 = vmatmul.bf16.gmra.mxu0 %v2272
        %v3962 = vpop.f32.mrf.mxu0
        %v3963 = vadd.f32 %v3950, %v3962
        %v3964 = vpop.f32.mrf.mxu0
        %3965 = vdwg.mxu0
        %3966 = vmatpush.bf16.msra.mxu0 %v3436
        %3967 = vmatpush.bf16.msra.mxu0 %v3432
        %3968 = vmatpush.bf16.msra.mxu0 %v3428
        %3969 = vmatpush.bf16.msra.mxu0 %v3424
        %3970 = vmatpush.bf16.msra.mxu0 %v3420
        %3971 = vmatpush.bf16.msra.mxu0 %v3416
        %3972 = vmatpush.bf16.msra.mxu0 %v3412
        %3973 = vmatpush.bf16.msra.mxu0 %v3408
        %3974 = vmatmul.bf16.gmra.mxu0 %v2273
        %v3975 = vpop.f32.mrf.mxu0
        %v3976 = vadd.f32 %v3963, %v3975
        %v3977 = vpop.f32.mrf.mxu0
        %3978 = vdwg.mxu0
        %3979 = vmatpush.bf16.msra.mxu0 %v3468
        %3980 = vmatpush.bf16.msra.mxu0 %v3464
        %3981 = vmatpush.bf16.msra.mxu0 %v3460
        %3982 = vmatpush.bf16.msra.mxu0 %v3456
        %3983 = vmatpush.bf16.msra.mxu0 %v3452
        %3984 = vmatpush.bf16.msra.mxu0 %v3448
        %3985 = vmatpush.bf16.msra.mxu0 %v3444
        %3986 = vmatpush.bf16.msra.mxu0 %v3440
        %3987 = vmatmul.bf16.gmra.mxu0 %v2274
        %v3988 = vpop.f32.mrf.mxu0
        %v3989 = vadd.f32 %v3976, %v3988
        %v3990 = vpop.f32.mrf.mxu0
        %3991 = vdwg.mxu0
        %3992 = vmatpush.bf16.msra.mxu0 %v3500
        %3993 = vmatpush.bf16.msra.mxu0 %v3496
        %3994 = vmatpush.bf16.msra.mxu0 %v3492
        %3995 = vmatpush.bf16.msra.mxu0 %v3488
        %3996 = vmatpush.bf16.msra.mxu0 %v3484
        %3997 = vmatpush.bf16.msra.mxu0 %v3480
        %3998 = vmatpush.bf16.msra.mxu0 %v3476
        %3999 = vmatpush.bf16.msra.mxu0 %v3472
        %4000 = vmatmul.bf16.gmra.mxu0 %v2275
        %v4001 = vpop.f32.mrf.mxu0
        %v4002 = vadd.f32 %v3989, %v4001
        %v4003 = vpop.f32.mrf.mxu0
        %4004 = vdwg.mxu0
        %4005 = vmatpush.bf16.msra.mxu0 %v3532
        %4006 = vmatpush.bf16.msra.mxu0 %v3528
        %4007 = vmatpush.bf16.msra.mxu0 %v3524
        %4008 = vmatpush.bf16.msra.mxu0 %v3520
        %4009 = vmatpush.bf16.msra.mxu0 %v3516
        %4010 = vmatpush.bf16.msra.mxu0 %v3512
        %4011 = vmatpush.bf16.msra.mxu0 %v3508
        %4012 = vmatpush.bf16.msra.mxu0 %v3504
        %4013 = vmatmul.bf16.gmra.mxu0 %v2276
        %v4014 = vpop.f32.mrf.mxu0
        %v4015 = vadd.f32 %v4002, %v4014
        %v4016 = vpop.f32.mrf.mxu0
        %4017 = vdwg.mxu0
        %4018 = vmatpush.bf16.msra.mxu0 %v3564
        %4019 = vmatpush.bf16.msra.mxu0 %v3560
        %4020 = vmatpush.bf16.msra.mxu0 %v3556
        %4021 = vmatpush.bf16.msra.mxu0 %v3552
        %4022 = vmatpush.bf16.msra.mxu0 %v3548
        %4023 = vmatpush.bf16.msra.mxu0 %v3544
        %4024 = vmatpush.bf16.msra.mxu0 %v3540
        %4025 = vmatpush.bf16.msra.mxu0 %v3536
        %4026 = vmatmul.bf16.gmra.mxu0 %v2277
        %v4027 = vpop.f32.mrf.mxu0
        %v4028 = vadd.f32 %v4015, %v4027
        %v4029 = vpop.f32.mrf.mxu0
        %4030 = vdwg.mxu0
        %4031 = vmatpush.bf16.msra.mxu0 %v3341
        %4032 = vmatpush.bf16.msra.mxu0 %v3337
        %4033 = vmatpush.bf16.msra.mxu0 %v3333
        %4034 = vmatpush.bf16.msra.mxu0 %v3329
        %4035 = vmatpush.bf16.msra.mxu0 %v3325
        %4036 = vmatpush.bf16.msra.mxu0 %v3321
        %4037 = vmatpush.bf16.msra.mxu0 %v3317
        %4038 = vmatpush.bf16.msra.mxu0 %v3313
        %4039 = vmatmul.bf16.gmra.mxu0 %v2270
        %v4040 = vpop.f32.mrf.mxu0
        %v4041 = vadd.f32 %v2537, %v4040
        %v4042 = vpop.f32.mrf.mxu0
        %4043 = vdwg.mxu0
        %4044 = vmatpush.bf16.msra.mxu0 %v3373
        %4045 = vmatpush.bf16.msra.mxu0 %v3369
        %4046 = vmatpush.bf16.msra.mxu0 %v3365
        %4047 = vmatpush.bf16.msra.mxu0 %v3361
        %4048 = vmatpush.bf16.msra.mxu0 %v3357
        %4049 = vmatpush.bf16.msra.mxu0 %v3353
        %4050 = vmatpush.bf16.msra.mxu0 %v3349
        %4051 = vmatpush.bf16.msra.mxu0 %v3345
        %4052 = vmatmul.bf16.gmra.mxu0 %v2271
        %v4053 = vpop.f32.mrf.mxu0
        %v4054 = vadd.f32 %v4041, %v4053
        %v4055 = vpop.f32.mrf.mxu0
        %4056 = vdwg.mxu0
        %4057 = vmatpush.bf16.msra.mxu0 %v3405
        %4058 = vmatpush.bf16.msra.mxu0 %v3401
        %4059 = vmatpush.bf16.msra.mxu0 %v3397
        %4060 = vmatpush.bf16.msra.mxu0 %v3393
        %4061 = vmatpush.bf16.msra.mxu0 %v3389
        %4062 = vmatpush.bf16.msra.mxu0 %v3385
        %4063 = vmatpush.bf16.msra.mxu0 %v3381
        %4064 = vmatpush.bf16.msra.mxu0 %v3377
        %4065 = vmatmul.bf16.gmra.mxu0 %v2272
        %v4066 = vpop.f32.mrf.mxu0
        %v4067 = vadd.f32 %v4054, %v4066
        %v4068 = vpop.f32.mrf.mxu0
        %4069 = vdwg.mxu0
        %4070 = vmatpush.bf16.msra.mxu0 %v3437
        %4071 = vmatpush.bf16.msra.mxu0 %v3433
        %4072 = vmatpush.bf16.msra.mxu0 %v3429
        %4073 = vmatpush.bf16.msra.mxu0 %v3425
        %4074 = vmatpush.bf16.msra.mxu0 %v3421
        %4075 = vmatpush.bf16.msra.mxu0 %v3417
        %4076 = vmatpush.bf16.msra.mxu0 %v3413
        %4077 = vmatpush.bf16.msra.mxu0 %v3409
        %4078 = vmatmul.bf16.gmra.mxu0 %v2273
        %v4079 = vpop.f32.mrf.mxu0
        %v4080 = vadd.f32 %v4067, %v4079
        %v4081 = vpop.f32.mrf.mxu0
        %4082 = vdwg.mxu0
        %4083 = vmatpush.bf16.msra.mxu0 %v3469
        %4084 = vmatpush.bf16.msra.mxu0 %v3465
        %4085 = vmatpush.bf16.msra.mxu0 %v3461
        %4086 = vmatpush.bf16.msra.mxu0 %v3457
        %4087 = vmatpush.bf16.msra.mxu0 %v3453
        %4088 = vmatpush.bf16.msra.mxu0 %v3449
        %4089 = vmatpush.bf16.msra.mxu0 %v3445
        %4090 = vmatpush.bf16.msra.mxu0 %v3441
        %4091 = vmatmul.bf16.gmra.mxu0 %v2274
        %v4092 = vpop.f32.mrf.mxu0
        %v4093 = vadd.f32 %v4080, %v4092
        %v4094 = vpop.f32.mrf.mxu0
        %4095 = vdwg.mxu0
        %4096 = vmatpush.bf16.msra.mxu0 %v3501
        %4097 = vmatpush.bf16.msra.mxu0 %v3497
        %4098 = vmatpush.bf16.msra.mxu0 %v3493
        %4099 = vmatpush.bf16.msra.mxu0 %v3489
        %4100 = vmatpush.bf16.msra.mxu0 %v3485
        %4101 = vmatpush.bf16.msra.mxu0 %v3481
        %4102 = vmatpush.bf16.msra.mxu0 %v3477
        %4103 = vmatpush.bf16.msra.mxu0 %v3473
        %4104 = vmatmul.bf16.gmra.mxu0 %v2275
        %v4105 = vpop.f32.mrf.mxu0
        %v4106 = vadd.f32 %v4093, %v4105
        %v4107 = vpop.f32.mrf.mxu0
        %4108 = vdwg.mxu0
        %4109 = vmatpush.bf16.msra.mxu0 %v3533
        %4110 = vmatpush.bf16.msra.mxu0 %v3529
        %4111 = vmatpush.bf16.msra.mxu0 %v3525
        %4112 = vmatpush.bf16.msra.mxu0 %v3521
        %4113 = vmatpush.bf16.msra.mxu0 %v3517
        %4114 = vmatpush.bf16.msra.mxu0 %v3513
        %4115 = vmatpush.bf16.msra.mxu0 %v3509
        %4116 = vmatpush.bf16.msra.mxu0 %v3505
        %4117 = vmatmul.bf16.gmra.mxu0 %v2276
        %v4118 = vpop.f32.mrf.mxu0
        %v4119 = vadd.f32 %v4106, %v4118
        %v4120 = vpop.f32.mrf.mxu0
        %4121 = vdwg.mxu0
        %4122 = vmatpush.bf16.msra.mxu0 %v3565
        %4123 = vmatpush.bf16.msra.mxu0 %v3561
        %4124 = vmatpush.bf16.msra.mxu0 %v3557
        %4125 = vmatpush.bf16.msra.mxu0 %v3553
        %4126 = vmatpush.bf16.msra.mxu0 %v3549
        %4127 = vmatpush.bf16.msra.mxu0 %v3545
        %4128 = vmatpush.bf16.msra.mxu0 %v3541
        %4129 = vmatpush.bf16.msra.mxu0 %v3537
        %4130 = vmatmul.bf16.gmra.mxu0 %v2277
        %v4131 = vpop.f32.mrf.mxu0
        %v4132 = vadd.f32 %v4119, %v4131
        %v4133 = vpop.f32.mrf.mxu0
        %4134 = vdwg.mxu0
        %4135 = vmatpush.bf16.msra.mxu0 %v3342
        %4136 = vmatpush.bf16.msra.mxu0 %v3338
        %4137 = vmatpush.bf16.msra.mxu0 %v3334
        %4138 = vmatpush.bf16.msra.mxu0 %v3330
        %4139 = vmatpush.bf16.msra.mxu0 %v3326
        %4140 = vmatpush.bf16.msra.mxu0 %v3322
        %4141 = vmatpush.bf16.msra.mxu0 %v3318
        %4142 = vmatpush.bf16.msra.mxu0 %v3314
        %4143 = vmatmul.bf16.gmra.mxu0 %v2270
        %v4144 = vpop.f32.mrf.mxu0
        %v4145 = vadd.f32 %v2538, %v4144
        %v4146 = vpop.f32.mrf.mxu0
        %4147 = vdwg.mxu0
        %4148 = vmatpush.bf16.msra.mxu0 %v3374
        %4149 = vmatpush.bf16.msra.mxu0 %v3370
        %4150 = vmatpush.bf16.msra.mxu0 %v3366
        %4151 = vmatpush.bf16.msra.mxu0 %v3362
        %4152 = vmatpush.bf16.msra.mxu0 %v3358
        %4153 = vmatpush.bf16.msra.mxu0 %v3354
        %4154 = vmatpush.bf16.msra.mxu0 %v3350
        %4155 = vmatpush.bf16.msra.mxu0 %v3346
        %4156 = vmatmul.bf16.gmra.mxu0 %v2271
        %v4157 = vpop.f32.mrf.mxu0
        %v4158 = vadd.f32 %v4145, %v4157
        %v4159 = vpop.f32.mrf.mxu0
        %4160 = vdwg.mxu0
        %4161 = vmatpush.bf16.msra.mxu0 %v3406
        %4162 = vmatpush.bf16.msra.mxu0 %v3402
        %4163 = vmatpush.bf16.msra.mxu0 %v3398
        %4164 = vmatpush.bf16.msra.mxu0 %v3394
        %4165 = vmatpush.bf16.msra.mxu0 %v3390
        %4166 = vmatpush.bf16.msra.mxu0 %v3386
        %4167 = vmatpush.bf16.msra.mxu0 %v3382
        %4168 = vmatpush.bf16.msra.mxu0 %v3378
        %4169 = vmatmul.bf16.gmra.mxu0 %v2272
        %v4170 = vpop.f32.mrf.mxu0
        %v4171 = vadd.f32 %v4158, %v4170
        %v4172 = vpop.f32.mrf.mxu0
        %4173 = vdwg.mxu0
        %4174 = vmatpush.bf16.msra.mxu0 %v3438
        %4175 = vmatpush.bf16.msra.mxu0 %v3434
        %4176 = vmatpush.bf16.msra.mxu0 %v3430
        %4177 = vmatpush.bf16.msra.mxu0 %v3426
        %4178 = vmatpush.bf16.msra.mxu0 %v3422
        %4179 = vmatpush.bf16.msra.mxu0 %v3418
        %4180 = vmatpush.bf16.msra.mxu0 %v3414
        %4181 = vmatpush.bf16.msra.mxu0 %v3410
        %4182 = vmatmul.bf16.gmra.mxu0 %v2273
        %v4183 = vpop.f32.mrf.mxu0
        %v4184 = vadd.f32 %v4171, %v4183
        %v4185 = vpop.f32.mrf.mxu0
        %4186 = vdwg.mxu0
        %4187 = vmatpush.bf16.msra.mxu0 %v3470
        %4188 = vmatpush.bf16.msra.mxu0 %v3466
        %4189 = vmatpush.bf16.msra.mxu0 %v3462
        %4190 = vmatpush.bf16.msra.mxu0 %v3458
        %4191 = vmatpush.bf16.msra.mxu0 %v3454
        %4192 = vmatpush.bf16.msra.mxu0 %v3450
        %4193 = vmatpush.bf16.msra.mxu0 %v3446
        %4194 = vmatpush.bf16.msra.mxu0 %v3442
        %4195 = vmatmul.bf16.gmra.mxu0 %v2274
        %v4196 = vpop.f32.mrf.mxu0
        %v4197 = vadd.f32 %v4184, %v4196
        %v4198 = vpop.f32.mrf.mxu0
        %4199 = vdwg.mxu0
        %4200 = vmatpush.bf16.msra.mxu0 %v3502
        %4201 = vmatpush.bf16.msra.mxu0 %v3498
        %4202 = vmatpush.bf16.msra.mxu0 %v3494
        %4203 = vmatpush.bf16.msra.mxu0 %v3490
        %4204 = vmatpush.bf16.msra.mxu0 %v3486
        %4205 = vmatpush.bf16.msra.mxu0 %v3482
        %4206 = vmatpush.bf16.msra.mxu0 %v3478
        %4207 = vmatpush.bf16.msra.mxu0 %v3474
        %4208 = vmatmul.bf16.gmra.mxu0 %v2275
        %v4209 = vpop.f32.mrf.mxu0
        %v4210 = vadd.f32 %v4197, %v4209
        %v4211 = vpop.f32.mrf.mxu0
        %4212 = vdwg.mxu0
        %4213 = vmatpush.bf16.msra.mxu0 %v3534
        %4214 = vmatpush.bf16.msra.mxu0 %v3530
        %4215 = vmatpush.bf16.msra.mxu0 %v3526
        %4216 = vmatpush.bf16.msra.mxu0 %v3522
        %4217 = vmatpush.bf16.msra.mxu0 %v3518
        %4218 = vmatpush.bf16.msra.mxu0 %v3514
        %4219 = vmatpush.bf16.msra.mxu0 %v3510
        %4220 = vmatpush.bf16.msra.mxu0 %v3506
        %4221 = vmatmul.bf16.gmra.mxu0 %v2276
        %v4222 = vpop.f32.mrf.mxu0
        %v4223 = vadd.f32 %v4210, %v4222
        %v4224 = vpop.f32.mrf.mxu0
        %4225 = vdwg.mxu0
        %4226 = vmatpush.bf16.msra.mxu0 %v3566
        %4227 = vmatpush.bf16.msra.mxu0 %v3562
        %4228 = vmatpush.bf16.msra.mxu0 %v3558
        %4229 = vmatpush.bf16.msra.mxu0 %v3554
        %4230 = vmatpush.bf16.msra.mxu0 %v3550
        %4231 = vmatpush.bf16.msra.mxu0 %v3546
        %4232 = vmatpush.bf16.msra.mxu0 %v3542
        %4233 = vmatpush.bf16.msra.mxu0 %v3538
        %4234 = vmatmul.bf16.gmra.mxu0 %v2277
        %v4235 = vpop.f32.mrf.mxu0
        %v4236 = vadd.f32 %v4223, %v4235
        %v4237 = vpop.f32.mrf.mxu0
        %4238 = vdwg.mxu0
        %v4239 = vadd.f32 %v3924, %v266
        %v4240 = vadd.f32 %v4028, %v267
        %v4241 = vadd.f32 %v4132, %v268
        %v4242 = vadd.f32 %v4236, %v269
        %v4243 = vadd.f32 %v4239, %v4240
        %v4244 = vadd.f32 %v4243, %v4241
        %v4245 = vadd.f32 %v4244, %v4242
        %4246 = vadd.xlane.f32.xlu0 %v4245
        %v4247 = vpop.xlane.xlu0 %4246
        %v4248 = vrcp.pop 512.0
        %v4249 = vmul.f32 512.0, %v4248
        %v4250 = vsub.f32 1.0, %v4249
        %v4251 = vmul.f32 %v4248, %v4250
        %v4252 = vadd.f32 %v4248, %v4251
        %vm4253 = vweird.f32 %v4248
        %v4254 = vsel %vm4253, %v4248, %v4252
        %v4255 = vmul.f32 %v4247, %v4254
        %v4256 = vsub.f32 %v4239, %v4255
        %v4257 = vsub.f32 %v4240, %v4255
        %v4258 = vsub.f32 %v4241, %v4255
        %v4259 = vsub.f32 %v4242, %v4255
        %v4260 = vmul.f32 %v4256, %v4256
        %v4261 = vmul.f32 %v4257, %v4257
        %v4262 = vmul.f32 %v4258, %v4258
        %v4263 = vmul.f32 %v4259, %v4259
        %v4264 = vadd.f32 %v4260, %v4261
        %v4265 = vadd.f32 %v4264, %v4262
        %v4266 = vadd.f32 %v4265, %v4263
        %4267 = vadd.xlane.f32.xlu0 %v4266
        %v4268 = vpop.xlane.xlu0 %4267
        %v4269 = vmul.f32 %v4268, %v4254
        %v4270 = vadd.f32 %v4269, 1e-05
        %v4271 = vrsqrt.pop %v4270
        %v4272 = vmul.f32 %v4271, %v4270
        %v4273 = vmul.f32 %v4272, %v4271
        %v4274 = vmul.f32 0.5, %v4273
        %v4275 = vsub.f32 1.5, %v4274
        %v4276 = vmul.f32 %v4271, %v4275
        %vm4277 = vweird.f32 %v4270
        %vm4278 = vweird.f32 %v4271
        %vm4279 = vmor %vm4277, %vm4278
        %v4280 = vsel %vm4279, %v4271, %v4276
        %v4281 = vmul.f32 %v4256, %v4280
        %v4282 = vmul.f32 %v4257, %v4280
        %v4283 = vmul.f32 %v4258, %v4280
        %v4284 = vmul.f32 %v4259, %v4280
        %v4286 = vperm.slane %v276, 0
        %v4287 = vperm.slane %v276, 1
        %v4288 = vperm.slane %v276, 2
        %v4289 = vperm.slane %v276, 3
        %v4294 = vmul.f32 %v4281, %v4286
        %v4295 = vmul.f32 %v4282, %v4287
        %v4296 = vmul.f32 %v4283, %v4288
        %v4297 = vmul.f32 %v4284, %v4289
        %v4299 = vperm.slane %v278, 0
        %v4300 = vperm.slane %v278, 1
        %v4301 = vperm.slane %v278, 2
        %v4302 = vperm.slane %v278, 3
        %v4307 = vadd.f32 %v4294, %v4299
        %v4308 = vadd.f32 %v4295, %v4300
        %v4309 = vadd.f32 %v4296, %v4301
        %v4310 = vadd.f32 %v4297, %v4302
        %v4311 = vpack.c.bf16 %v4308, %v4307
        %v4312 = vpack.c.bf16 %v4310, %v4309
        %4313 = vst [vmem:[%s263] sm:$0xff] %v4311
        %4314 = vst [vmem:[%s263 + $0x8] sm:$0xff] %v4312
        %s4315 = sand.u32 %s120, 1
        %s4316 = scalar_lea.sflag [#allocation4], %s4315
        %s4317 = sand.u32 %s120, 1
        %s4318 = smul.addr %s4317, 16
        %s4319 = scalar_lea.vmem [#allocation10], %s4318
        // Predicated region
        $region53: #{tpu_custom_call.1} parent=35 // pred_check
          %p4320 = pneg %p130
        $region54: #{tpu_custom_call.1} parent=35 // pred_check_branch
          %4322 = sbr.rel (%p4320) target = $region56
        $region55: #{tpu_custom_call.1} parent=35 // pred_region
          %4324 = vsyncadd %s4316, 0
          %s4325 = smul.addr %s23, 4
          %s4326 = smul.addr %s4325, 4
          %s4327 = scalar_lea.hbm %s4, %s4326
          %s4329 = sshll.u32 %s4319, 4
          %s4330 = int_to_ptr.vmem [resolvable:$true] %s4329
          %s4331 = sshll.u32 %s4327, 4
          %s4332 = int_to_ptr.hbm [resolvable:$true] %s4331
          %4334 = dma.vmem_to_hbm [thread:$0]  %s4330, 256, %s4332, %s4316
        $region56: #{tpu_custom_call.1} parent=35 // pred_fallthru
          _
      $region36: #{tpu_custom_call.1} parent=5 // pred_fallthru
        _
      %p4335 = scmp.le.s32.totalorder 2, %s18
      // Predicated region
      $region57: #{tpu_custom_call.1} parent=5 // pred_check
        %p4336 = pneg %p4335
      $region58: #{tpu_custom_call.1} parent=5 // pred_check_branch
        %4338 = sbr.rel (%p4336) target = $region60
      $region59: #{tpu_custom_call.1} parent=5 // pred_region
        %s4339 = ssub.s32 %s18, 2
        // Predicated region
        $region61: #{tpu_custom_call.1} parent=59 // pred_check
          %p4340 = pneg %p136
        $region62: #{tpu_custom_call.1} parent=59 // pred_check_branch
          %4342 = sbr.rel (%p4340) target = $region64
        $region63: #{tpu_custom_call.1} parent=59 // pred_region
          %s4343 = sand.u32 %s121, 1
          %s4344 = scalar_lea.sflag [#allocation4], %s4343
          %s4345 = sand.u32 %s121, 1
          %s4346 = smul.addr %s4345, 16
          %s4347 = scalar_lea.vmem [#allocation10], %s4346
          %4349 = dma.done %s4344, 256
        $region64: #{tpu_custom_call.1} parent=59 // pred_fallthru
          _
      $region60: #{tpu_custom_call.1} parent=5 // pred_fallthru
        _
    $region6: #{tpu_custom_call.1} parent=1 // loop_footer
      %s22 = sadd.s32 1, %s18
    $region7: #{tpu_custom_call.1} parent=1 // loop_footer_branch
      %17 = sbr.rel target = $region3
    $region8: #{tpu_custom_call.1} parent=1 // loop_exit
      _
    %4350 = vsyncpa [#allocation3], 1
    %s4351 = scalar_lea.sflag [#allocation3], 1
    %4352 = vsyncpa %s4351, 1
    %4353 = vsyncpa [#allocation6], 1
    %4354 = vsyncpa [#allocation9], 1
    %4355 = vsyncpa [#allocation4], 1
    %s4356 = scalar_lea.sflag [#allocation4], 1
    %4357 = vsyncpa %s4356, 1

</llo_original>
